<compile_context>
chip_gen: v6e
topology: v6e:2x2x1
jax: 0.10.0
libtpu: 0.0.40
codegen_flags: <defaults>
</compile_context>

<pallas_src>
import functools

import jax
import jax.numpy as jnp
from jax import lax
from jax.experimental import pallas as pl
from jax.experimental.pallas import tpu as pltpu


def _elu(x):
    # ELU(alpha=1): x if x > 0 else exp(x) - 1  (exp(min(x,0)) avoids overflow)
    return jnp.where(x > 0, x, jnp.exp(jnp.minimum(x, 0.0)) - 1.0)


def eegnet_kernel(x_ref, wa_ref, wb_ref, wc_ref, bias_ref, out_ref, *, la, lb):
    # Stage A: temporal conv + BN1 + depthwise spatial conv + BN2 (folded), ELU.
    h = jnp.dot(x_ref[...], wa_ref[...], preferred_element_type=jnp.float32)
    h = _elu(h + bias_ref[:, :la]).astype(jnp.bfloat16)

    # Stage B: AvgPool(1,4) + zero-pad + depthwise (1,16) conv + BN3 +
    # pointwise (1,1) conv + BN4 (folded), ELU.
    h = jnp.dot(h, wb_ref[...], preferred_element_type=jnp.float32)
    h = _elu(h + bias_ref[:, la:la + lb]).astype(jnp.bfloat16)

    # Stage C: AvgPool(1,8) + flatten + Linear (folded; classes padded to 128
    # lanes so the store is lane-dense).
    out_ref[...] = (jnp.dot(h, wc_ref[...], preferred_element_type=jnp.float32)
                    + bias_ref[:, la + lb:])


def build_eegnet_operators(params, *, chans, samples, kern_len, f1, d, f2,
                           n_classes):
    """Fold convs/pools/BN/linear into three dense operators. Call ONCE per params."""
    assert samples % 32 == 0, "Samples must be divisible by 32 (4*8 pooling)"
    fd = f1 * d
    t1 = samples // 4
    spad = samples + kern_len - 1
    nc_pad = max(128, ((n_classes + 127) // 128) * 128)
    la = fd * samples
    lb = f2 * t1
    # Lane-aligned bias-slab segment boundaries (holds for module defaults).
    assert la % 128 == 0 and lb % 128 == 0, (
        "F1*D*Samples and F2*Samples/4 must be multiples of 128")

    w1 = params['w1']                          # (f1, kern_len)
    s1, sh1 = params['s1'][:, 0], params['b1'][:, 0]
    wd2 = params['wd'].reshape(fd, chans)      # row o = f*D + d
    s2, sh2 = params['s2'][:, 0], params['b2'][:, 0]
    wsd = params['wsd']                        # (fd, 16)
    s3, sh3 = params['s3'][:, 0], params['b3'][:, 0]
    wp = params['wp']                          # (f2, fd)
    s4, sh4 = params['s4'][:, 0], params['b4'][:, 0]
    wfc = params['wfc']                        # (t2, f2, n_classes)
    bfc = params['bfc'][0]                     # (n_classes,)

    # ---- stage A: x(b, c*spad + i) -> h2_pre(b, o*samples + t) -------------
    i_idx = jnp.arange(spad)[:, None]
    t_idx = jnp.arange(samples)[None, :]
    k = i_idx - t_idx                                          # (spad, samples)
    valid_a = (k >= 0) & (k < kern_len)
    band = jnp.where(valid_a[None], w1[:, jnp.clip(k, 0, kern_len - 1)], 0.0)
    band_o = jnp.repeat(band, d, axis=0)                       # (fd, spad, samples)
    coef_a = (s2 * jnp.repeat(s1, d))[:, None] * wd2           # (fd, chans)
    w_a = jnp.einsum('oc,oit->ciot', coef_a, band_o)
    w_a = w_a.reshape(chans * spad, la)
    b_a = jnp.repeat(s2 * jnp.repeat(sh1, d) * wd2.sum(axis=1) + sh2, samples)

    # Pad the stage-A contraction dim to a multiple of 128 (lane-aligned x loads,
    # clean MXU K edge).  x is padded with matching zeros in the wrapper.
    k_a = chans * spad
    k_a_pad = ((k_a + 127) // 128) * 128
    w_a = jnp.pad(w_a, ((0, k_a_pad - k_a), (0, 0)))

    # ---- stage B: h2(b, o*samples + t) -> h4_pre(b, j*t1 + u) --------------
    tau = jnp.arange(samples) // 4
    u = jnp.arange(t1)
    kk = tau[:, None] - u[None, :] + 7                         # (samples, t1)
    valid_b = (kk >= 0) & (kk < 16)
    g = jnp.where(valid_b[None], wsd[:, jnp.clip(kk, 0, 15)], 0.0) * 0.25
    coef_b = s4[:, None] * wp * s3[None, :]                    # (f2, fd)
    w_b = jnp.einsum('jo,otu->otju', coef_b, g)
    w_b = w_b.reshape(la, lb)
    b_b = jnp.repeat(s4 * (wp @ sh3) + sh4, t1)

    # ---- stage C: h4(b, j*t1 + u) -> logits(b, n) --------------------------
    wrep = jnp.repeat(wfc, 8, axis=0)                          # (t1, f2, nc)
    w_c = wrep.transpose(1, 0, 2).reshape(lb, n_classes) * 0.125
    w_c = jnp.pad(w_c, ((0, 0), (0, nc_pad - n_classes)))
    b_c = jnp.pad(bfc, (0, nc_pad - n_classes))

    bias = jnp.concatenate([b_a, b_b, b_c]).reshape(1, -1)     # (1, la+lb+nc_pad)

    return dict(
        w_a=w_a.astype(jnp.bfloat16),      # (k_a_pad, la)   MXU-native bf16
        w_b=w_b.astype(jnp.bfloat16),      # (la, lb)
        w_c=w_c.astype(jnp.bfloat16),      # (lb, nc_pad)
        bias=bias.astype(jnp.float32),     # f32 bias slab (accumulation stays f32)
        kern_len=kern_len,
        n_classes=n_classes,
    )


def _choose_batch_tile(b):
    """>=8 sublane-aligned rows per step; cap 256 for MXU M; >=2 steps (v7x 2 TCs)."""
    b8 = ((b + 7) // 8) * 8
    if b8 <= 8:
        return 8
    tile = min(256, b8)
    n_steps = -(-b8 // tile)
    if n_steps < 2:
        n_steps = 2
    return max(8, ((-(-b8 // n_steps) + 7) // 8) * 8)


@functools.partial(jax.jit, static_argnames=("kern_len", "n_classes"))
def _eegnet_apply(x, w_a, w_b, w_c, bias, *, kern_len, n_classes):
    b, chans, samples = x.shape
    spad = samples + kern_len - 1
    pad_l = kern_len // 2 - 1
    pad_r = kern_len - kern_len // 2
    k_a = chans * spad
    k_a_pad, la = w_a.shape
    lb = w_b.shape[1]
    nc_pad = w_c.shape[1]

    # glue: ZeroPad2d along time + flatten (chans, time) into lanes + pad K to 128.
    xp = jnp.pad(x, ((0, 0), (0, 0), (pad_l, pad_r))).reshape(b, k_a)

    b_tile = _choose_batch_tile(b)
    b_pad = ((b + b_tile - 1) // b_tile) * b_tile
    xp = jnp.pad(xp, ((0, b_pad - b), (0, k_a_pad - k_a))).astype(jnp.bfloat16)

    kernel = functools.partial(eegnet_kernel, la=la, lb=lb)

    # Right-sized VMEM reservation: weights single-buffered bf16, x/out
    # double-buffered, f32 intermediates, plus headroom.
    weight_bytes = (w_a.size + w_b.size + w_c.size) * 2
    x_bytes = 2 * b_tile * k_a_pad * 2
    out_bytes = 2 * b_tile * nc_pad * 4
    bias_bytes = bias.size * 4
    interm_bytes = b_tile * (la + lb) * 4
    vmem_limit = int(1.5 * (weight_bytes + x_bytes + out_bytes + bias_bytes
                            + interm_bytes)) + (4 << 20)
    vmem_limit = min(max(vmem_limit, 16 << 20), 96 << 20)

    grid_spec = pltpu.PrefetchScalarGridSpec(
        num_scalar_prefetch=0,
        grid=(b_pad // b_tile,),
        in_specs=[
            # x tile: changes per grid step -> default double-buffering.
            pl.BlockSpec((b_tile, k_a_pad), lambda i: (i, 0)),
            # Grid-invariant operators & bias slab: single-buffered.
            pl.BlockSpec((k_a_pad, la), lambda i: (0, 0),
                         pipeline_mode=pl.Buffered(1)),
            pl.BlockSpec((la, lb), lambda i: (0, 0),
                         pipeline_mode=pl.Buffered(1)),
            pl.BlockSpec((lb, nc_pad), lambda i: (0, 0),
                         pipeline_mode=pl.Buffered(1)),
            pl.BlockSpec((1, la + lb + nc_pad), lambda i: (0, 0),
                         pipeline_mode=pl.Buffered(1)),
        ],
        out_specs=pl.BlockSpec((b_tile, nc_pad), lambda i: (i, 0)),
    )

    out = pl.pallas_call(
        kernel,
        out_shape=jax.ShapeDtypeStruct((b_pad, nc_pad), jnp.float32),
        grid_spec=grid_spec,
        compiler_params=pltpu.CompilerParams(
            dimension_semantics=("parallel",),     # batch steps are independent
            vmem_limit_bytes=vmem_limit,
        ),
    )(xp, w_a, w_b, w_c, bias)
    return out[:b, :n_classes]


def eegnet_forward(x, ops):
    """x: (B, Chans, Samples) f32; ops: result of build_eegnet_operators (built once)."""
    return _eegnet_apply(x, ops["w_a"], ops["w_b"], ops["w_c"], ops["bias"],
                         kern_len=ops["kern_len"], n_classes=ops["n_classes"])


def init_params(key, *, chans, samples, kern_len, f1, d, f2, n_classes):
    fd = f1 * d
    t2 = samples // 32
    keys = jax.random.split(key, 10)

    def bn(k, c):
        kg, kb, km, kv = jax.random.split(k, 4)
        gamma = 1.0 + 0.1 * jax.random.normal(kg, (c,), jnp.float32)
        beta = 0.1 * jax.random.normal(kb, (c,), jnp.float32)
        mean = 0.1 * jax.random.normal(km, (c,), jnp.float32)
        var = 1.0 + 0.1 * jnp.abs(jax.random.normal(kv, (c,), jnp.float32))
        scale = gamma * lax.rsqrt(var + 1e-5)
        shift = beta - mean * scale
        return scale.reshape(c, 1), shift.reshape(c, 1)

    w1 = 0.1 * jax.random.normal(keys[0], (f1, kern_len), jnp.float32)
    s1, b1 = bn(keys[1], f1)
    wd = 0.1 * jax.random.normal(keys[2], (f1, d, chans), jnp.float32)
    s2, b2 = bn(keys[3], fd)
    wsd = 0.1 * jax.random.normal(keys[4], (fd, 16), jnp.float32)
    s3, b3 = bn(keys[5], fd)
    wp = 0.1 * jax.random.normal(keys[6], (f2, fd), jnp.float32)
    s4, b4 = bn(keys[7], f2)
    wfc_flat = 0.1 * jax.random.normal(keys[8], (n_classes, f2 * t2), jnp.float32)
    bfc = 0.1 * jax.random.normal(keys[9], (n_classes,), jnp.float32)
    # PyTorch flatten order: feature index = f*t2 + t  ->  wfc[t, f, n]
    wfc = wfc_flat.reshape(n_classes, f2, t2).transpose(2, 1, 0)
    return dict(w1=w1, s1=s1, b1=b1, wd=wd, s2=s2, b2=b2, wsd=wsd, s3=s3, b3=b3,
                wp=wp, s4=s4, b4=b4, wfc=wfc, bfc=bfc.reshape(1, n_classes))


def eegnet_reference(x, params, *, kern_len, f1, d, f2, n_classes):
    """Pure-JAX layer-by-layer reference (eval-mode EEGNet) for correctness."""
    b, chans, samples = x.shape
    fd = f1 * d
    t1, t2 = samples // 4, samples // 32
    xp = jnp.pad(x, ((0, 0), (0, 0), (kern_len // 2 - 1, kern_len - kern_len // 2)))
    h1 = jnp.zeros((b, f1, chans, samples), jnp.float32)
    for k in range(kern_len):
        h1 = h1 + params['w1'][None, :, k, None, None] * xp[:, None, :, k:k + samples]
    h1 = h1 * params['s1'].reshape(1, f1, 1, 1) + params['b1'].reshape(1, f1, 1, 1)
    h2 = jnp.einsum('fdc,bfct->bfdt', params['wd'], h1).reshape(b, fd, samples)
    h2 = h2 * params['s2'].reshape(1, fd, 1) + params['b2'].reshape(1, fd, 1)
    h2 = jnp.where(h2 > 0, h2, jnp.exp(jnp.minimum(h2, 0.0)) - 1.0)
    p1 = h2.reshape(b, fd, t1, 4).mean(-1)
    p1p = jnp.pad(p1, ((0, 0), (0, 0), (7, 8)))
    h3 = jnp.zeros((b, fd, t1), jnp.float32)
    for k in range(16):
        h3 = h3 + params['wsd'][None, :, k, None] * p1p[:, :, k:k + t1]
    h3 = h3 * params['s3'].reshape(1, fd, 1) + params['b3'].reshape(1, fd, 1)
    h4 = jnp.einsum('of,bft->bot', params['wp'], h3)
    h4 = h4 * params['s4'].reshape(1, f2, 1) + params['b4'].reshape(1, f2, 1)
    h4 = jnp.where(h4 > 0, h4, jnp.exp(jnp.minimum(h4, 0.0)) - 1.0)
    p2 = h4.reshape(b, f2, t2, 8).mean(-1)
    return jnp.einsum('bft,tfn->bn', p2, params['wfc']) + params['bfc']


if __name__ == "__main__":
    # Small but consistent shapes: Samples must be divisible by 32.
    B, CHANS, SAMPLES = 2, 4, 128
    KERN_LEN, F1, D, F2, N_CLASSES = 32, 8, 2, 16, 4

    key = jax.random.PRNGKey(0)
    kx, kp = jax.random.split(key)
    x = jax.random.normal(kx, (B, CHANS, SAMPLES), jnp.float32)
    params = init_params(kp, chans=CHANS, samples=SAMPLES, kern_len=KERN_LEN,
                         f1=F1, d=D, f2=F2, n_classes=N_CLASSES)

    # Operators are built once per parameter set (hoisted out of the forward path).
    ops = build_eegnet_operators(params, chans=CHANS, samples=SAMPLES,
                                 kern_len=KERN_LEN, f1=F1, d=D, f2=F2,
                                 n_classes=N_CLASSES)

    out = eegnet_forward(x, ops)
    out = jax.block_until_ready(out)
    assert out.shape == (B, N_CLASSES), out.shape

    ref = eegnet_reference(x, params, kern_len=KERN_LEN, f1=F1, d=D, f2=F2,
                           n_classes=N_CLASSES)
    err = float(jnp.max(jnp.abs(out - ref)))
    # Tolerance accounts for bf16-cast inputs/operators (accumulation stays f32)
    # vs. the all-f32 VPU reference.
    assert err < 5e-2, f"kernel/reference mismatch: max abs err = {err}"

    print("KERNEL_OK")
</pallas_src>

<mosaic_0001>
module attributes {stable_mosaic.version = 11 : i64} {
  func.func @eegnet_kernel(%arg0: i32, %arg1: memref<8x640xbf16, #tpu.memory_space<vmem>>, %arg2: memref<640x2048xbf16, #tpu.memory_space<vmem>>, %arg3: memref<2048x512xbf16, #tpu.memory_space<vmem>>, %arg4: memref<512x128xbf16, #tpu.memory_space<vmem>>, %arg5: memref<1x2688xf32, #tpu.memory_space<vmem>>, %arg6: memref<8x128xf32, #tpu.memory_space<vmem>>) attributes {dimension_semantics = [#tpu.dimension_semantics<parallel>], iteration_bounds = array<i64: 1>, scalar_prefetch = 0 : i64, scratch_operands = 0 : i64, tpu.core_type = #tpu.core_type<tc>, window_params = [{transform_indices = @transform_0, window_bounds = array<i64: 8, 640>}, {pipeline_mode = #tpu.pipeline_mode<synchronous>, transform_indices = @transform_1, window_bounds = array<i64: 640, 2048>}, {pipeline_mode = #tpu.pipeline_mode<synchronous>, transform_indices = @transform_2, window_bounds = array<i64: 2048, 512>}, {pipeline_mode = #tpu.pipeline_mode<synchronous>, transform_indices = @transform_3, window_bounds = array<i64: 512, 128>}, {pipeline_mode = #tpu.pipeline_mode<synchronous>, transform_indices = @transform_4, window_bounds = array<i64: 1, 2688>}, {transform_indices = @transform_5, window_bounds = array<i64: 8, 128>}]} {
    %c0 = arith.constant 0 : index
    %c0_0 = arith.constant 0 : index
    %0 = vector.load %arg1[%c0, %c0_0] : memref<8x640xbf16, #tpu.memory_space<vmem>>, vector<8x640xbf16>
    %c0_1 = arith.constant 0 : index
    %c0_2 = arith.constant 0 : index
    %1 = vector.load %arg2[%c0_1, %c0_2] : memref<640x2048xbf16, #tpu.memory_space<vmem>>, vector<640x2048xbf16>
    %cst = arith.constant dense<0.000000e+00> : vector<8x2048xf32>
    %2 = tpu.matmul %0, %1, %cst {dimension_numbers = #tpu.dot_dimension_numbers<[1], [0], [0], [1], [0, 0, 1, 1], [], []>} : vector<8x640xbf16>, vector<640x2048xbf16>, vector<8x2048xf32> -> vector<8x2048xf32>
    %c0_3 = arith.constant 0 : index
    %c0_4 = arith.constant 0 : index
    %3 = vector.load %arg5[%c0_3, %c0_4] : memref<1x2688xf32, #tpu.memory_space<vmem>>, vector<1x2048xf32>
    %4 = vector.broadcast %3 : vector<1x2048xf32> to vector<8x2048xf32>
    %5 = arith.addf %2, %4 : vector<8x2048xf32>
    %cst_5 = arith.constant 0.000000e+00 : f32
    %6 = vector.broadcast %cst_5 : f32 to vector<8x2048xf32>
    %7 = arith.cmpf ogt, %5, %6 : vector<8x2048xf32>
    %cst_6 = arith.constant 0.000000e+00 : f32
    %8 = vector.broadcast %cst_6 : f32 to vector<8x2048xf32>
    %9 = arith.minimumf %5, %8 : vector<8x2048xf32>
    %10 = math.exp %9 : vector<8x2048xf32>
    %cst_7 = arith.constant 1.000000e+00 : f32
    %11 = vector.broadcast %cst_7 : f32 to vector<8x2048xf32>
    %12 = arith.subf %10, %11 : vector<8x2048xf32>
    %13 = arith.select %7, %5, %12 : vector<8x2048xi1>, vector<8x2048xf32>
    %14 = arith.truncf %13 : vector<8x2048xf32> to vector<8x2048xbf16>
    %c0_8 = arith.constant 0 : index
    %c0_9 = arith.constant 0 : index
    %15 = vector.load %arg3[%c0_8, %c0_9] : memref<2048x512xbf16, #tpu.memory_space<vmem>>, vector<2048x512xbf16>
    %cst_10 = arith.constant dense<0.000000e+00> : vector<8x512xf32>
    %16 = tpu.matmul %14, %15, %cst_10 {dimension_numbers = #tpu.dot_dimension_numbers<[1], [0], [0], [1], [0, 0, 1, 1], [], []>} : vector<8x2048xbf16>, vector<2048x512xbf16>, vector<8x512xf32> -> vector<8x512xf32>
    %c0_11 = arith.constant 0 : index
    %c2048 = arith.constant 2048 : index
    %17 = vector.load %arg5[%c0_11, %c2048] : memref<1x2688xf32, #tpu.memory_space<vmem>>, vector<1x512xf32>
    %18 = vector.broadcast %17 : vector<1x512xf32> to vector<8x512xf32>
    %19 = arith.addf %16, %18 : vector<8x512xf32>
    %cst_12 = arith.constant 0.000000e+00 : f32
    %20 = vector.broadcast %cst_12 : f32 to vector<8x512xf32>
    %21 = arith.cmpf ogt, %19, %20 : vector<8x512xf32>
    %cst_13 = arith.constant 0.000000e+00 : f32
    %22 = vector.broadcast %cst_13 : f32 to vector<8x512xf32>
    %23 = arith.minimumf %19, %22 : vector<8x512xf32>
    %24 = math.exp %23 : vector<8x512xf32>
    %cst_14 = arith.constant 1.000000e+00 : f32
    %25 = vector.broadcast %cst_14 : f32 to vector<8x512xf32>
    %26 = arith.subf %24, %25 : vector<8x512xf32>
    %27 = arith.select %21, %19, %26 : vector<8x512xi1>, vector<8x512xf32>
    %28 = arith.truncf %27 : vector<8x512xf32> to vector<8x512xbf16>
    %c0_15 = arith.constant 0 : index
    %c0_16 = arith.constant 0 : index
    %29 = vector.load %arg4[%c0_15, %c0_16] : memref<512x128xbf16, #tpu.memory_space<vmem>>, vector<512x128xbf16>
    %cst_17 = arith.constant dense<0.000000e+00> : vector<8x128xf32>
    %30 = tpu.matmul %28, %29, %cst_17 {dimension_numbers = #tpu.dot_dimension_numbers<[1], [0], [0], [1], [0, 0, 1, 1], [], []>} : vector<8x512xbf16>, vector<512x128xbf16>, vector<8x128xf32> -> vector<8x128xf32>
    %c0_18 = arith.constant 0 : index
    %c2560 = arith.constant 2560 : index
    %31 = vector.load %arg5[%c0_18, %c2560] : memref<1x2688xf32, #tpu.memory_space<vmem>>, vector<1x128xf32>
    %32 = vector.broadcast %31 : vector<1x128xf32> to vector<8x128xf32>
    %33 = arith.addf %30, %32 : vector<8x128xf32>
    %c0_19 = arith.constant 0 : index
    %c0_20 = arith.constant 0 : index
    %34 = vector.load %arg6[%c0_19, %c0_20] : memref<8x128xf32, #tpu.memory_space<vmem>>, vector<8x128xf32>
    tpu.vector_store %arg6[%c0_19, %c0_20], %33 {strides = array<i32>} : memref<8x128xf32, #tpu.memory_space<vmem>>, vector<8x128xf32>,
    return
  }
  func.func @transform_0(%arg0: i32) -> (i32, i32) {
    %c0_i32 = arith.constant 0 : i32
    %c0_i32_0 = arith.constant 0 : i32
    return %arg0, %c0_i32 : i32, i32
  }
  func.func @transform_1(%arg0: i32) -> (i32, i32) {
    %c0_i32 = arith.constant 0 : i32
    %c0_i32_0 = arith.constant 0 : i32
    %c0_i32_1 = arith.constant 0 : i32
    return %c0_i32, %c0_i32_0 : i32, i32
  }
  func.func @transform_2(%arg0: i32) -> (i32, i32) {
    %c0_i32 = arith.constant 0 : i32
    %c0_i32_0 = arith.constant 0 : i32
    %c0_i32_1 = arith.constant 0 : i32
    return %c0_i32, %c0_i32_0 : i32, i32
  }
  func.func @transform_3(%arg0: i32) -> (i32, i32) {
    %c0_i32 = arith.constant 0 : i32
    %c0_i32_0 = arith.constant 0 : i32
    %c0_i32_1 = arith.constant 0 : i32
    return %c0_i32, %c0_i32_0 : i32, i32
  }
  func.func @transform_4(%arg0: i32) -> (i32, i32) {
    %c0_i32 = arith.constant 0 : i32
    %c0_i32_0 = arith.constant 0 : i32
    %c0_i32_1 = arith.constant 0 : i32
    return %c0_i32, %c0_i32_0 : i32, i32
  }
  func.func @transform_5(%arg0: i32) -> (i32, i32) {
    %c0_i32 = arith.constant 0 : i32
    %c0_i32_0 = arith.constant 0 : i32
    return %arg0, %c0_i32 : i32, i32
  }
}

</mosaic_0001>

<llo_original>
// kernel: _eegnet_apply.1
$region0: #{_eegnet_apply.1}
  #allocation0 [shape = 'u32[]', space=smem, size = 0x4, offset = 0x4, fixed_abs, tag = 'smem constant byte address 0x4 - core index']
  #allocation1 [shape = 'u32[144,128]{1,0:T(1,128)}', space=vmem, size = 0x12000, scoped, tag = 'internal scratch']
  %s0 = inlined_call_operand.vmem [shape: bf16[8,640], index: 0, kind: input, shape index: {}]
  %s1 = inlined_call_operand.hbm [shape: bf16[640,2048], index: 1, kind: input, shape index: {}]
  %s2 = inlined_call_operand.hbm [shape: bf16[2048,512], index: 2, kind: input, shape index: {}]
  %s3 = inlined_call_operand.hbm [shape: bf16[512,128], index: 3, kind: input, shape index: {}]
  %s4 = inlined_call_operand.hbm [shape: f32[1,2688], index: 4, kind: input, shape index: {}]
  %s5 = inlined_call_operand.vmem [shape: f32[8,128], index: 5, kind: output, shape index: {}]
  %s6 = sld [smem:[#allocation0]]
  $region46: #{_eegnet_apply.1} parent=0
    _
  %s8 = ssub.s32 1, %s6
  %s9 = scalar_select 0, %s8, %s6
  $region1: #{_eegnet_apply.1} parent=0
    #allocation2 [shape = 'u8[2621440]{0}', space=vmem, size = 0x280000, scoped, tag = 'input window, operand 1, single buffered']
    #allocation3 [shape = 's32[1]{0}', space=sflag, size = 0x4, scoped, tag = 'scoped memory for _eegnet_apply.1']
    #allocation4 [shape = 'u8[2097152]{0}', space=vmem, size = 0x200000, scoped, tag = 'input window, operand 2, single buffered']
    #allocation5 [shape = 's32[1]{0}', space=sflag, size = 0x4, scoped, tag = 'scoped memory for _eegnet_apply.1']
    #allocation6 [shape = 'u8[131072]{0}', space=vmem, size = 0x20000, scoped, tag = 'input window, operand 3, single buffered']
    #allocation7 [shape = 'u8[10752]{0}', space=vmem, size = 0x2c00, scoped, tag = 'input window, operand 4, single buffered']
    #allocation8 [shape = 's32[1]{0}', space=sflag, size = 0x4, scoped, tag = 'scoped memory for _eegnet_apply.1']
    %10 = vsyncpa [#allocation3], 0
    %11 = vsyncpa [#allocation5], 0
    %12 = vsyncpa [#allocation8], 0
    // Predicated region
    $region2: #{_eegnet_apply.1} parent=1 // pred_check
      _
    $region3: #{_eegnet_apply.1} parent=1 // pred_check_branch
      %14 = sbr.rel (0) target = $region5
    $region4: #{_eegnet_apply.1} parent=1 // pred_region
      _
    $region5: #{_eegnet_apply.1} parent=1 // pred_fallthru
      _
    // Predicated region
    $region6: #{_eegnet_apply.1} parent=1 // pred_check
      _
    $region7: #{_eegnet_apply.1} parent=1 // pred_check_branch
      %16 = sbr.rel (0) target = $region9
    $region8: #{_eegnet_apply.1} parent=1 // pred_region
      %s18 = ssub.s32 81920, 81920
      %19 = vsyncadd [#allocation3], %s18
      %s20 = sshll.u32 [#allocation2], 4
      %s21 = int_to_ptr.vmem [resolvable:$true] %s20
      %26 = dma.hbm_to_vmem [thread:$0]  %s1, 81920, %s21, [#allocation3], 1024, 1024, 64
    $region9: #{_eegnet_apply.1} parent=1 // pred_fallthru
      _
    // Predicated region
    $region10: #{_eegnet_apply.1} parent=1 // pred_check
      _
    $region11: #{_eegnet_apply.1} parent=1 // pred_check_branch
      %28 = sbr.rel (0) target = $region13
    $region12: #{_eegnet_apply.1} parent=1 // pred_region
      %s30 = ssub.s32 65536, 65536
      %31 = vsyncadd [#allocation5], %s30
      %s32 = sshll.u32 [#allocation4], 4
      %s33 = int_to_ptr.vmem [resolvable:$true] %s32
      %38 = dma.hbm_to_vmem [thread:$0]  %s2, 65536, %s33, [#allocation5], 256, 256, 16
    $region13: #{_eegnet_apply.1} parent=1 // pred_fallthru
      _
    // Predicated region
    $region14: #{_eegnet_apply.1} parent=1 // pred_check
      _
    $region15: #{_eegnet_apply.1} parent=1 // pred_check_branch
      %40 = sbr.rel (0) target = $region17
    $region16: #{_eegnet_apply.1} parent=1 // pred_region
      %s42 = ssub.s32 4096, 4096
      %43 = vsyncadd [#allocation5], %s42
      %s44 = sshll.u32 [#allocation6], 4
      %s45 = int_to_ptr.vmem [resolvable:$true] %s44
      %50 = dma.hbm_to_vmem [thread:$0]  %s3, 4096, %s45, [#allocation5], 64, 64, 4
    $region17: #{_eegnet_apply.1} parent=1 // pred_fallthru
      _
    // Predicated region
    $region18: #{_eegnet_apply.1} parent=1 // pred_check
      _
    $region19: #{_eegnet_apply.1} parent=1 // pred_check_branch
      %52 = sbr.rel (0) target = $region21
    $region20: #{_eegnet_apply.1} parent=1 // pred_region
      %s54 = ssub.s32 336, 336
      %55 = vsyncadd [#allocation8], %s54
      %s57 = sshll.u32 [#allocation7], 4
      %s58 = int_to_ptr.vmem [resolvable:$true] %s57
      %60 = dma.hbm_to_vmem [thread:$0]  %s4, 336, %s58, [#allocation8]
    $region21: #{_eegnet_apply.1} parent=1 // pred_fallthru
      _
    // Predicated region
    $region22: #{_eegnet_apply.1} parent=1 // pred_check
      _
    $region23: #{_eegnet_apply.1} parent=1 // pred_check_branch
      %62 = sbr.rel (0) target = $region25
    $region24: #{_eegnet_apply.1} parent=1 // pred_region
      %63 = dma.done [#allocation3], 81920
    $region25: #{_eegnet_apply.1} parent=1 // pred_fallthru
      _
    // Predicated region
    $region26: #{_eegnet_apply.1} parent=1 // pred_check
      _
    $region27: #{_eegnet_apply.1} parent=1 // pred_check_branch
      %65 = sbr.rel (0) target = $region29
    $region28: #{_eegnet_apply.1} parent=1 // pred_region
      %66 = dma.done [#allocation5], 65536
    $region29: #{_eegnet_apply.1} parent=1 // pred_fallthru
      _
    // Predicated region
    $region30: #{_eegnet_apply.1} parent=1 // pred_check
      _
    $region31: #{_eegnet_apply.1} parent=1 // pred_check_branch
      %68 = sbr.rel (0) target = $region33
    $region32: #{_eegnet_apply.1} parent=1 // pred_region
      %69 = dma.done [#allocation5], 4096
    $region33: #{_eegnet_apply.1} parent=1 // pred_fallthru
      _
    // Predicated region
    $region34: #{_eegnet_apply.1} parent=1 // pred_check
      _
    $region35: #{_eegnet_apply.1} parent=1 // pred_check_branch
      %71 = sbr.rel (0) target = $region37
    $region36: #{_eegnet_apply.1} parent=1 // pred_region
      %72 = dma.done [#allocation8], 336
    $region37: #{_eegnet_apply.1} parent=1 // pred_fallthru
      _
    %v74 = vld [vmem:[%s0] sm:$0xff]
    %v75 = vld [vmem:[%s0 + $0x8] sm:$0xff]
    %v76 = vld [vmem:[%s0 + $0x10] sm:$0xf]
    %v77 = vld [vmem:[#allocation2] sm:$0xff]
    %v78 = vld [vmem:[#allocation2 + $0x8] sm:$0xff]
    %v79 = vld [vmem:[#allocation2 + $0x10] sm:$0xff]
    %v80 = vld [vmem:[#allocation2 + $0x18] sm:$0xff]
    %v81 = vld [vmem:[#allocation2 + $0x20] sm:$0xff]
    %v82 = vld [vmem:[#allocation2 + $0x28] sm:$0xff]
    %v83 = vld [vmem:[#allocation2 + $0x30] sm:$0xff]
    %v84 = vld [vmem:[#allocation2 + $0x38] sm:$0xff]
    %v85 = vld [vmem:[#allocation2 + $0x40] sm:$0xff]
    %v86 = vld [vmem:[#allocation2 + $0x48] sm:$0xff]
    %v87 = vld [vmem:[#allocation2 + $0x50] sm:$0xff]
    %v88 = vld [vmem:[#allocation2 + $0x58] sm:$0xff]
    %v89 = vld [vmem:[#allocation2 + $0x60] sm:$0xff]
    %v90 = vld [vmem:[#allocation2 + $0x68] sm:$0xff]
    %v91 = vld [vmem:[#allocation2 + $0x70] sm:$0xff]
    %v92 = vld [vmem:[#allocation2 + $0x78] sm:$0xff]
    %v93 = vld [vmem:[#allocation2 + $0x80] sm:$0xff]
    %v94 = vld [vmem:[#allocation2 + $0x88] sm:$0xff]
    %v95 = vld [vmem:[#allocation2 + $0x90] sm:$0xff]
    %v96 = vld [vmem:[#allocation2 + $0x98] sm:$0xff]
    %v97 = vld [vmem:[#allocation2 + $0xa0] sm:$0xff]
    %v98 = vld [vmem:[#allocation2 + $0xa8] sm:$0xff]
    %v99 = vld [vmem:[#allocation2 + $0xb0] sm:$0xff]
    %v100 = vld [vmem:[#allocation2 + $0xb8] sm:$0xff]
    %v101 = vld [vmem:[#allocation2 + $0xc0] sm:$0xff]
    %v102 = vld [vmem:[#allocation2 + $0xc8] sm:$0xff]
    %v103 = vld [vmem:[#allocation2 + $0xd0] sm:$0xff]
    %v104 = vld [vmem:[#allocation2 + $0xd8] sm:$0xff]
    %v105 = vld [vmem:[#allocation2 + $0xe0] sm:$0xff]
    %v106 = vld [vmem:[#allocation2 + $0xe8] sm:$0xff]
    %v107 = vld [vmem:[#allocation2 + $0xf0] sm:$0xff]
    %v108 = vld [vmem:[#allocation2 + $0xf8] sm:$0xff]
    %v109 = vld [vmem:[#allocation2 + $0x100] sm:$0xff]
    %v110 = vld [vmem:[#allocation2 + $0x108] sm:$0xff]
    %v111 = vld [vmem:[#allocation2 + $0x110] sm:$0xff]
    %v112 = vld [vmem:[#allocation2 + $0x118] sm:$0xff]
    %v113 = vld [vmem:[#allocation2 + $0x120] sm:$0xff]
    %v114 = vld [vmem:[#allocation2 + $0x128] sm:$0xff]
    %v115 = vld [vmem:[#allocation2 + $0x130] sm:$0xff]
    %v116 = vld [vmem:[#allocation2 + $0x138] sm:$0xff]
    %v117 = vld [vmem:[#allocation2 + $0x140] sm:$0xff]
    %v118 = vld [vmem:[#allocation2 + $0x148] sm:$0xff]
    %v119 = vld [vmem:[#allocation2 + $0x150] sm:$0xff]
    %v120 = vld [vmem:[#allocation2 + $0x158] sm:$0xff]
    %v121 = vld [vmem:[#allocation2 + $0x160] sm:$0xff]
    %v122 = vld [vmem:[#allocation2 + $0x168] sm:$0xff]
    %v123 = vld [vmem:[#allocation2 + $0x170] sm:$0xff]
    %v124 = vld [vmem:[#allocation2 + $0x178] sm:$0xff]
    %v125 = vld [vmem:[#allocation2 + $0x180] sm:$0xff]
    %v126 = vld [vmem:[#allocation2 + $0x188] sm:$0xff]
    %v127 = vld [vmem:[#allocation2 + $0x190] sm:$0xff]
    %v128 = vld [vmem:[#allocation2 + $0x198] sm:$0xff]
    %v129 = vld [vmem:[#allocation2 + $0x1a0] sm:$0xff]
    %v130 = vld [vmem:[#allocation2 + $0x1a8] sm:$0xff]
    %v131 = vld [vmem:[#allocation2 + $0x1b0] sm:$0xff]
    %v132 = vld [vmem:[#allocation2 + $0x1b8] sm:$0xff]
    %v133 = vld [vmem:[#allocation2 + $0x1c0] sm:$0xff]
    %v134 = vld [vmem:[#allocation2 + $0x1c8] sm:$0xff]
    %v135 = vld [vmem:[#allocation2 + $0x1d0] sm:$0xff]
    %v136 = vld [vmem:[#allocation2 + $0x1d8] sm:$0xff]
    %v137 = vld [vmem:[#allocation2 + $0x1e0] sm:$0xff]
    %v138 = vld [vmem:[#allocation2 + $0x1e8] sm:$0xff]
    %v139 = vld [vmem:[#allocation2 + $0x1f0] sm:$0xff]
    %v140 = vld [vmem:[#allocation2 + $0x1f8] sm:$0xff]
    %v141 = vld [vmem:[#allocation2 + $0x200] sm:$0xff]
    %v142 = vld [vmem:[#allocation2 + $0x208] sm:$0xff]
    %v143 = vld [vmem:[#allocation2 + $0x210] sm:$0xff]
    %v144 = vld [vmem:[#allocation2 + $0x218] sm:$0xff]
    %v145 = vld [vmem:[#allocation2 + $0x220] sm:$0xff]
    %v146 = vld [vmem:[#allocation2 + $0x228] sm:$0xff]
    %v147 = vld [vmem:[#allocation2 + $0x230] sm:$0xff]
    %v148 = vld [vmem:[#allocation2 + $0x238] sm:$0xff]
    %v149 = vld [vmem:[#allocation2 + $0x240] sm:$0xff]
    %v150 = vld [vmem:[#allocation2 + $0x248] sm:$0xff]
    %v151 = vld [vmem:[#allocation2 + $0x250] sm:$0xff]
    %v152 = vld [vmem:[#allocation2 + $0x258] sm:$0xff]
    %v153 = vld [vmem:[#allocation2 + $0x260] sm:$0xff]
    %v154 = vld [vmem:[#allocation2 + $0x268] sm:$0xff]
    %v155 = vld [vmem:[#allocation2 + $0x270] sm:$0xff]
    %v156 = vld [vmem:[#allocation2 + $0x278] sm:$0xff]
    %v157 = vld [vmem:[#allocation2 + $0x280] sm:$0xff]
    %v158 = vld [vmem:[#allocation2 + $0x288] sm:$0xff]
    %v159 = vld [vmem:[#allocation2 + $0x290] sm:$0xff]
    %v160 = vld [vmem:[#allocation2 + $0x298] sm:$0xff]
    %v161 = vld [vmem:[#allocation2 + $0x2a0] sm:$0xff]
    %v162 = vld [vmem:[#allocation2 + $0x2a8] sm:$0xff]
    %v163 = vld [vmem:[#allocation2 + $0x2b0] sm:$0xff]
    %v164 = vld [vmem:[#allocation2 + $0x2b8] sm:$0xff]
    %v165 = vld [vmem:[#allocation2 + $0x2c0] sm:$0xff]
    %v166 = vld [vmem:[#allocation2 + $0x2c8] sm:$0xff]
    %v167 = vld [vmem:[#allocation2 + $0x2d0] sm:$0xff]
    %v168 = vld [vmem:[#allocation2 + $0x2d8] sm:$0xff]
    %v169 = vld [vmem:[#allocation2 + $0x2e0] sm:$0xff]
    %v170 = vld [vmem:[#allocation2 + $0x2e8] sm:$0xff]
    %v171 = vld [vmem:[#allocation2 + $0x2f0] sm:$0xff]
    %v172 = vld [vmem:[#allocation2 + $0x2f8] sm:$0xff]
    %v173 = vld [vmem:[#allocation2 + $0x300] sm:$0xff]
    %v174 = vld [vmem:[#allocation2 + $0x308] sm:$0xff]
    %v175 = vld [vmem:[#allocation2 + $0x310] sm:$0xff]
    %v176 = vld [vmem:[#allocation2 + $0x318] sm:$0xff]
    %v177 = vld [vmem:[#allocation2 + $0x320] sm:$0xff]
    %v178 = vld [vmem:[#allocation2 + $0x328] sm:$0xff]
    %v179 = vld [vmem:[#allocation2 + $0x330] sm:$0xff]
    %v180 = vld [vmem:[#allocation2 + $0x338] sm:$0xff]
    %v181 = vld [vmem:[#allocation2 + $0x340] sm:$0xff]
    %v182 = vld [vmem:[#allocation2 + $0x348] sm:$0xff]
    %v183 = vld [vmem:[#allocation2 + $0x350] sm:$0xff]
    %v184 = vld [vmem:[#allocation2 + $0x358] sm:$0xff]
    %v185 = vld [vmem:[#allocation2 + $0x360] sm:$0xff]
    %v186 = vld [vmem:[#allocation2 + $0x368] sm:$0xff]
    %v187 = vld [vmem:[#allocation2 + $0x370] sm:$0xff]
    %v188 = vld [vmem:[#allocation2 + $0x378] sm:$0xff]
    %v189 = vld [vmem:[#allocation2 + $0x380] sm:$0xff]
    %v190 = vld [vmem:[#allocation2 + $0x388] sm:$0xff]
    %v191 = vld [vmem:[#allocation2 + $0x390] sm:$0xff]
    %v192 = vld [vmem:[#allocation2 + $0x398] sm:$0xff]
    %v193 = vld [vmem:[#allocation2 + $0x3a0] sm:$0xff]
    %v194 = vld [vmem:[#allocation2 + $0x3a8] sm:$0xff]
    %v195 = vld [vmem:[#allocation2 + $0x3b0] sm:$0xff]
    %v196 = vld [vmem:[#allocation2 + $0x3b8] sm:$0xff]
    %v197 = vld [vmem:[#allocation2 + $0x3c0] sm:$0xff]
    %v198 = vld [vmem:[#allocation2 + $0x3c8] sm:$0xff]
    %v199 = vld [vmem:[#allocation2 + $0x3d0] sm:$0xff]
    %v200 = vld [vmem:[#allocation2 + $0x3d8] sm:$0xff]
    %v201 = vld [vmem:[#allocation2 + $0x3e0] sm:$0xff]
    %v202 = vld [vmem:[#allocation2 + $0x3e8] sm:$0xff]
    %v203 = vld [vmem:[#allocation2 + $0x3f0] sm:$0xff]
    %v204 = vld [vmem:[#allocation2 + $0x3f8] sm:$0xff]
    %v205 = vld [vmem:[#allocation2 + $0x400] sm:$0xff]
    %v206 = vld [vmem:[#allocation2 + $0x408] sm:$0xff]
    %v207 = vld [vmem:[#allocation2 + $0x410] sm:$0xff]
    %v208 = vld [vmem:[#allocation2 + $0x418] sm:$0xff]
    %v209 = vld [vmem:[#allocation2 + $0x420] sm:$0xff]
    %v210 = vld [vmem:[#allocation2 + $0x428] sm:$0xff]
    %v211 = vld [vmem:[#allocation2 + $0x430] sm:$0xff]
    %v212 = vld [vmem:[#allocation2 + $0x438] sm:$0xff]
    %v213 = vld [vmem:[#allocation2 + $0x440] sm:$0xff]
    %v214 = vld [vmem:[#allocation2 + $0x448] sm:$0xff]
    %v215 = vld [vmem:[#allocation2 + $0x450] sm:$0xff]
    %v216 = vld [vmem:[#allocation2 + $0x458] sm:$0xff]
    %v217 = vld [vmem:[#allocation2 + $0x460] sm:$0xff]
    %v218 = vld [vmem:[#allocation2 + $0x468] sm:$0xff]
    %v219 = vld [vmem:[#allocation2 + $0x470] sm:$0xff]
    %v220 = vld [vmem:[#allocation2 + $0x478] sm:$0xff]
    %v221 = vld [vmem:[#allocation2 + $0x480] sm:$0xff]
    %v222 = vld [vmem:[#allocation2 + $0x488] sm:$0xff]
    %v223 = vld [vmem:[#allocation2 + $0x490] sm:$0xff]
    %v224 = vld [vmem:[#allocation2 + $0x498] sm:$0xff]
    %v225 = vld [vmem:[#allocation2 + $0x4a0] sm:$0xff]
    %v226 = vld [vmem:[#allocation2 + $0x4a8] sm:$0xff]
    %v227 = vld [vmem:[#allocation2 + $0x4b0] sm:$0xff]
    %v228 = vld [vmem:[#allocation2 + $0x4b8] sm:$0xff]
    %v229 = vld [vmem:[#allocation2 + $0x4c0] sm:$0xff]
    %v230 = vld [vmem:[#allocation2 + $0x4c8] sm:$0xff]
    %v231 = vld [vmem:[#allocation2 + $0x4d0] sm:$0xff]
    %v232 = vld [vmem:[#allocation2 + $0x4d8] sm:$0xff]
    %v233 = vld [vmem:[#allocation2 + $0x4e0] sm:$0xff]
    %v234 = vld [vmem:[#allocation2 + $0x4e8] sm:$0xff]
    %v235 = vld [vmem:[#allocation2 + $0x4f0] sm:$0xff]
    %v236 = vld [vmem:[#allocation2 + $0x4f8] sm:$0xff]
    %v237 = vld [vmem:[#allocation2 + $0x500] sm:$0xff]
    %v238 = vld [vmem:[#allocation2 + $0x508] sm:$0xff]
    %v239 = vld [vmem:[#allocation2 + $0x510] sm:$0xff]
    %v240 = vld [vmem:[#allocation2 + $0x518] sm:$0xff]
    %v241 = vld [vmem:[#allocation2 + $0x520] sm:$0xff]
    %v242 = vld [vmem:[#allocation2 + $0x528] sm:$0xff]
    %v243 = vld [vmem:[#allocation2 + $0x530] sm:$0xff]
    %v244 = vld [vmem:[#allocation2 + $0x538] sm:$0xff]
    %v245 = vld [vmem:[#allocation2 + $0x540] sm:$0xff]
    %v246 = vld [vmem:[#allocation2 + $0x548] sm:$0xff]
    %v247 = vld [vmem:[#allocation2 + $0x550] sm:$0xff]
    %v248 = vld [vmem:[#allocation2 + $0x558] sm:$0xff]
    %v249 = vld [vmem:[#allocation2 + $0x560] sm:$0xff]
    %v250 = vld [vmem:[#allocation2 + $0x568] sm:$0xff]
    %v251 = vld [vmem:[#allocation2 + $0x570] sm:$0xff]
    %v252 = vld [vmem:[#allocation2 + $0x578] sm:$0xff]
    %v253 = vld [vmem:[#allocation2 + $0x580] sm:$0xff]
    %v254 = vld [vmem:[#allocation2 + $0x588] sm:$0xff]
    %v255 = vld [vmem:[#allocation2 + $0x590] sm:$0xff]
    %v256 = vld [vmem:[#allocation2 + $0x598] sm:$0xff]
    %v257 = vld [vmem:[#allocation2 + $0x5a0] sm:$0xff]
    %v258 = vld [vmem:[#allocation2 + $0x5a8] sm:$0xff]
    %v259 = vld [vmem:[#allocation2 + $0x5b0] sm:$0xff]
    %v260 = vld [vmem:[#allocation2 + $0x5b8] sm:$0xff]
    %v261 = vld [vmem:[#allocation2 + $0x5c0] sm:$0xff]
    %v262 = vld [vmem:[#allocation2 + $0x5c8] sm:$0xff]
    %v263 = vld [vmem:[#allocation2 + $0x5d0] sm:$0xff]
    %v264 = vld [vmem:[#allocation2 + $0x5d8] sm:$0xff]
    %v265 = vld [vmem:[#allocation2 + $0x5e0] sm:$0xff]
    %v266 = vld [vmem:[#allocation2 + $0x5e8] sm:$0xff]
    %v267 = vld [vmem:[#allocation2 + $0x5f0] sm:$0xff]
    %v268 = vld [vmem:[#allocation2 + $0x5f8] sm:$0xff]
    %v269 = vld [vmem:[#allocation2 + $0x600] sm:$0xff]
    %v270 = vld [vmem:[#allocation2 + $0x608] sm:$0xff]
    %v271 = vld [vmem:[#allocation2 + $0x610] sm:$0xff]
    %v272 = vld [vmem:[#allocation2 + $0x618] sm:$0xff]
    %v273 = vld [vmem:[#allocation2 + $0x620] sm:$0xff]
    %v274 = vld [vmem:[#allocation2 + $0x628] sm:$0xff]
    %v275 = vld [vmem:[#allocation2 + $0x630] sm:$0xff]
    %v276 = vld [vmem:[#allocation2 + $0x638] sm:$0xff]
    %v277 = vld [vmem:[#allocation2 + $0x640] sm:$0xff]
    %v278 = vld [vmem:[#allocation2 + $0x648] sm:$0xff]
    %v279 = vld [vmem:[#allocation2 + $0x650] sm:$0xff]
    %v280 = vld [vmem:[#allocation2 + $0x658] sm:$0xff]
    %v281 = vld [vmem:[#allocation2 + $0x660] sm:$0xff]
    %v282 = vld [vmem:[#allocation2 + $0x668] sm:$0xff]
    %v283 = vld [vmem:[#allocation2 + $0x670] sm:$0xff]
    %v284 = vld [vmem:[#allocation2 + $0x678] sm:$0xff]
    %v285 = vld [vmem:[#allocation2 + $0x680] sm:$0xff]
    %v286 = vld [vmem:[#allocation2 + $0x688] sm:$0xff]
    %v287 = vld [vmem:[#allocation2 + $0x690] sm:$0xff]
    %v288 = vld [vmem:[#allocation2 + $0x698] sm:$0xff]
    %v289 = vld [vmem:[#allocation2 + $0x6a0] sm:$0xff]
    %v290 = vld [vmem:[#allocation2 + $0x6a8] sm:$0xff]
    %v291 = vld [vmem:[#allocation2 + $0x6b0] sm:$0xff]
    %v292 = vld [vmem:[#allocation2 + $0x6b8] sm:$0xff]
    %v293 = vld [vmem:[#allocation2 + $0x6c0] sm:$0xff]
    %v294 = vld [vmem:[#allocation2 + $0x6c8] sm:$0xff]
    %v295 = vld [vmem:[#allocation2 + $0x6d0] sm:$0xff]
    %v296 = vld [vmem:[#allocation2 + $0x6d8] sm:$0xff]
    %v297 = vld [vmem:[#allocation2 + $0x6e0] sm:$0xff]
    %v298 = vld [vmem:[#allocation2 + $0x6e8] sm:$0xff]
    %v299 = vld [vmem:[#allocation2 + $0x6f0] sm:$0xff]
    %v300 = vld [vmem:[#allocation2 + $0x6f8] sm:$0xff]
    %v301 = vld [vmem:[#allocation2 + $0x700] sm:$0xff]
    %v302 = vld [vmem:[#allocation2 + $0x708] sm:$0xff]
    %v303 = vld [vmem:[#allocation2 + $0x710] sm:$0xff]
    %v304 = vld [vmem:[#allocation2 + $0x718] sm:$0xff]
    %v305 = vld [vmem:[#allocation2 + $0x720] sm:$0xff]
    %v306 = vld [vmem:[#allocation2 + $0x728] sm:$0xff]
    %v307 = vld [vmem:[#allocation2 + $0x730] sm:$0xff]
    %v308 = vld [vmem:[#allocation2 + $0x738] sm:$0xff]
    %v309 = vld [vmem:[#allocation2 + $0x740] sm:$0xff]
    %v310 = vld [vmem:[#allocation2 + $0x748] sm:$0xff]
    %v311 = vld [vmem:[#allocation2 + $0x750] sm:$0xff]
    %v312 = vld [vmem:[#allocation2 + $0x758] sm:$0xff]
    %v313 = vld [vmem:[#allocation2 + $0x760] sm:$0xff]
    %v314 = vld [vmem:[#allocation2 + $0x768] sm:$0xff]
    %v315 = vld [vmem:[#allocation2 + $0x770] sm:$0xff]
    %v316 = vld [vmem:[#allocation2 + $0x778] sm:$0xff]
    %v317 = vld [vmem:[#allocation2 + $0x780] sm:$0xff]
    %v318 = vld [vmem:[#allocation2 + $0x788] sm:$0xff]
    %v319 = vld [vmem:[#allocation2 + $0x790] sm:$0xff]
    %v320 = vld [vmem:[#allocation2 + $0x798] sm:$0xff]
    %v321 = vld [vmem:[#allocation2 + $0x7a0] sm:$0xff]
    %v322 = vld [vmem:[#allocation2 + $0x7a8] sm:$0xff]
    %v323 = vld [vmem:[#allocation2 + $0x7b0] sm:$0xff]
    %v324 = vld [vmem:[#allocation2 + $0x7b8] sm:$0xff]
    %v325 = vld [vmem:[#allocation2 + $0x7c0] sm:$0xff]
    %v326 = vld [vmem:[#allocation2 + $0x7c8] sm:$0xff]
    %v327 = vld [vmem:[#allocation2 + $0x7d0] sm:$0xff]
    %v328 = vld [vmem:[#allocation2 + $0x7d8] sm:$0xff]
    %v329 = vld [vmem:[#allocation2 + $0x7e0] sm:$0xff]
    %v330 = vld [vmem:[#allocation2 + $0x7e8] sm:$0xff]
    %v331 = vld [vmem:[#allocation2 + $0x7f0] sm:$0xff]
    %v332 = vld [vmem:[#allocation2 + $0x7f8] sm:$0xff]
    %v333 = vld [vmem:[#allocation2 + $0x800] sm:$0xff]
    %v334 = vld [vmem:[#allocation2 + $0x808] sm:$0xff]
    %v335 = vld [vmem:[#allocation2 + $0x810] sm:$0xff]
    %v336 = vld [vmem:[#allocation2 + $0x818] sm:$0xff]
    %v337 = vld [vmem:[#allocation2 + $0x820] sm:$0xff]
    %v338 = vld [vmem:[#allocation2 + $0x828] sm:$0xff]
    %v339 = vld [vmem:[#allocation2 + $0x830] sm:$0xff]
    %v340 = vld [vmem:[#allocation2 + $0x838] sm:$0xff]
    %v341 = vld [vmem:[#allocation2 + $0x840] sm:$0xff]
    %v342 = vld [vmem:[#allocation2 + $0x848] sm:$0xff]
    %v343 = vld [vmem:[#allocation2 + $0x850] sm:$0xff]
    %v344 = vld [vmem:[#allocation2 + $0x858] sm:$0xff]
    %v345 = vld [vmem:[#allocation2 + $0x860] sm:$0xff]
    %v346 = vld [vmem:[#allocation2 + $0x868] sm:$0xff]
    %v347 = vld [vmem:[#allocation2 + $0x870] sm:$0xff]
    %v348 = vld [vmem:[#allocation2 + $0x878] sm:$0xff]
    %v349 = vld [vmem:[#allocation2 + $0x880] sm:$0xff]
    %v350 = vld [vmem:[#allocation2 + $0x888] sm:$0xff]
    %v351 = vld [vmem:[#allocation2 + $0x890] sm:$0xff]
    %v352 = vld [vmem:[#allocation2 + $0x898] sm:$0xff]
    %v353 = vld [vmem:[#allocation2 + $0x8a0] sm:$0xff]
    %v354 = vld [vmem:[#allocation2 + $0x8a8] sm:$0xff]
    %v355 = vld [vmem:[#allocation2 + $0x8b0] sm:$0xff]
    %v356 = vld [vmem:[#allocation2 + $0x8b8] sm:$0xff]
    %v357 = vld [vmem:[#allocation2 + $0x8c0] sm:$0xff]
    %v358 = vld [vmem:[#allocation2 + $0x8c8] sm:$0xff]
    %v359 = vld [vmem:[#allocation2 + $0x8d0] sm:$0xff]
    %v360 = vld [vmem:[#allocation2 + $0x8d8] sm:$0xff]
    %v361 = vld [vmem:[#allocation2 + $0x8e0] sm:$0xff]
    %v362 = vld [vmem:[#allocation2 + $0x8e8] sm:$0xff]
    %v363 = vld [vmem:[#allocation2 + $0x8f0] sm:$0xff]
    %v364 = vld [vmem:[#allocation2 + $0x8f8] sm:$0xff]
    %v365 = vld [vmem:[#allocation2 + $0x900] sm:$0xff]
    %v366 = vld [vmem:[#allocation2 + $0x908] sm:$0xff]
    %v367 = vld [vmem:[#allocation2 + $0x910] sm:$0xff]
    %v368 = vld [vmem:[#allocation2 + $0x918] sm:$0xff]
    %v369 = vld [vmem:[#allocation2 + $0x920] sm:$0xff]
    %v370 = vld [vmem:[#allocation2 + $0x928] sm:$0xff]
    %v371 = vld [vmem:[#allocation2 + $0x930] sm:$0xff]
    %v372 = vld [vmem:[#allocation2 + $0x938] sm:$0xff]
    %v373 = vld [vmem:[#allocation2 + $0x940] sm:$0xff]
    %v374 = vld [vmem:[#allocation2 + $0x948] sm:$0xff]
    %v375 = vld [vmem:[#allocation2 + $0x950] sm:$0xff]
    %v376 = vld [vmem:[#allocation2 + $0x958] sm:$0xff]
    %v377 = vld [vmem:[#allocation2 + $0x960] sm:$0xff]
    %v378 = vld [vmem:[#allocation2 + $0x968] sm:$0xff]
    %v379 = vld [vmem:[#allocation2 + $0x970] sm:$0xff]
    %v380 = vld [vmem:[#allocation2 + $0x978] sm:$0xff]
    %v381 = vld [vmem:[#allocation2 + $0x980] sm:$0xff]
    %v382 = vld [vmem:[#allocation2 + $0x988] sm:$0xff]
    %v383 = vld [vmem:[#allocation2 + $0x990] sm:$0xff]
    %v384 = vld [vmem:[#allocation2 + $0x998] sm:$0xff]
    %v385 = vld [vmem:[#allocation2 + $0x9a0] sm:$0xff]
    %v386 = vld [vmem:[#allocation2 + $0x9a8] sm:$0xff]
    %v387 = vld [vmem:[#allocation2 + $0x9b0] sm:$0xff]
    %v388 = vld [vmem:[#allocation2 + $0x9b8] sm:$0xff]
    %v389 = vld [vmem:[#allocation2 + $0x9c0] sm:$0xff]
    %v390 = vld [vmem:[#allocation2 + $0x9c8] sm:$0xff]
    %v391 = vld [vmem:[#allocation2 + $0x9d0] sm:$0xff]
    %v392 = vld [vmem:[#allocation2 + $0x9d8] sm:$0xff]
    %v393 = vld [vmem:[#allocation2 + $0x9e0] sm:$0xff]
    %v394 = vld [vmem:[#allocation2 + $0x9e8] sm:$0xff]
    %v395 = vld [vmem:[#allocation2 + $0x9f0] sm:$0xff]
    %v396 = vld [vmem:[#allocation2 + $0x9f8] sm:$0xff]
    %v397 = vld [vmem:[#allocation2 + $0xa00] sm:$0xff]
    %v398 = vld [vmem:[#allocation2 + $0xa08] sm:$0xff]
    %v399 = vld [vmem:[#allocation2 + $0xa10] sm:$0xff]
    %v400 = vld [vmem:[#allocation2 + $0xa18] sm:$0xff]
    %v401 = vld [vmem:[#allocation2 + $0xa20] sm:$0xff]
    %v402 = vld [vmem:[#allocation2 + $0xa28] sm:$0xff]
    %v403 = vld [vmem:[#allocation2 + $0xa30] sm:$0xff]
    %v404 = vld [vmem:[#allocation2 + $0xa38] sm:$0xff]
    %v405 = vld [vmem:[#allocation2 + $0xa40] sm:$0xff]
    %v406 = vld [vmem:[#allocation2 + $0xa48] sm:$0xff]
    %v407 = vld [vmem:[#allocation2 + $0xa50] sm:$0xff]
    %v408 = vld [vmem:[#allocation2 + $0xa58] sm:$0xff]
    %v409 = vld [vmem:[#allocation2 + $0xa60] sm:$0xff]
    %v410 = vld [vmem:[#allocation2 + $0xa68] sm:$0xff]
    %v411 = vld [vmem:[#allocation2 + $0xa70] sm:$0xff]
    %v412 = vld [vmem:[#allocation2 + $0xa78] sm:$0xff]
    %v413 = vld [vmem:[#allocation2 + $0xa80] sm:$0xff]
    %v414 = vld [vmem:[#allocation2 + $0xa88] sm:$0xff]
    %v415 = vld [vmem:[#allocation2 + $0xa90] sm:$0xff]
    %v416 = vld [vmem:[#allocation2 + $0xa98] sm:$0xff]
    %v417 = vld [vmem:[#allocation2 + $0xaa0] sm:$0xff]
    %v418 = vld [vmem:[#allocation2 + $0xaa8] sm:$0xff]
    %v419 = vld [vmem:[#allocation2 + $0xab0] sm:$0xff]
    %v420 = vld [vmem:[#allocation2 + $0xab8] sm:$0xff]
    %v421 = vld [vmem:[#allocation2 + $0xac0] sm:$0xff]
    %v422 = vld [vmem:[#allocation2 + $0xac8] sm:$0xff]
    %v423 = vld [vmem:[#allocation2 + $0xad0] sm:$0xff]
    %v424 = vld [vmem:[#allocation2 + $0xad8] sm:$0xff]
    %v425 = vld [vmem:[#allocation2 + $0xae0] sm:$0xff]
    %v426 = vld [vmem:[#allocation2 + $0xae8] sm:$0xff]
    %v427 = vld [vmem:[#allocation2 + $0xaf0] sm:$0xff]
    %v428 = vld [vmem:[#allocation2 + $0xaf8] sm:$0xff]
    %v429 = vld [vmem:[#allocation2 + $0xb00] sm:$0xff]
    %v430 = vld [vmem:[#allocation2 + $0xb08] sm:$0xff]
    %v431 = vld [vmem:[#allocation2 + $0xb10] sm:$0xff]
    %v432 = vld [vmem:[#allocation2 + $0xb18] sm:$0xff]
    %v433 = vld [vmem:[#allocation2 + $0xb20] sm:$0xff]
    %v434 = vld [vmem:[#allocation2 + $0xb28] sm:$0xff]
    %v435 = vld [vmem:[#allocation2 + $0xb30] sm:$0xff]
    %v436 = vld [vmem:[#allocation2 + $0xb38] sm:$0xff]
    %v437 = vld [vmem:[#allocation2 + $0xb40] sm:$0xff]
    %v438 = vld [vmem:[#allocation2 + $0xb48] sm:$0xff]
    %v439 = vld [vmem:[#allocation2 + $0xb50] sm:$0xff]
    %v440 = vld [vmem:[#allocation2 + $0xb58] sm:$0xff]
    %v441 = vld [vmem:[#allocation2 + $0xb60] sm:$0xff]
    %v442 = vld [vmem:[#allocation2 + $0xb68] sm:$0xff]
    %v443 = vld [vmem:[#allocation2 + $0xb70] sm:$0xff]
    %v444 = vld [vmem:[#allocation2 + $0xb78] sm:$0xff]
    %v445 = vld [vmem:[#allocation2 + $0xb80] sm:$0xff]
    %v446 = vld [vmem:[#allocation2 + $0xb88] sm:$0xff]
    %v447 = vld [vmem:[#allocation2 + $0xb90] sm:$0xff]
    %v448 = vld [vmem:[#allocation2 + $0xb98] sm:$0xff]
    %v449 = vld [vmem:[#allocation2 + $0xba0] sm:$0xff]
    %v450 = vld [vmem:[#allocation2 + $0xba8] sm:$0xff]
    %v451 = vld [vmem:[#allocation2 + $0xbb0] sm:$0xff]
    %v452 = vld [vmem:[#allocation2 + $0xbb8] sm:$0xff]
    %v453 = vld [vmem:[#allocation2 + $0xbc0] sm:$0xff]
    %v454 = vld [vmem:[#allocation2 + $0xbc8] sm:$0xff]
    %v455 = vld [vmem:[#allocation2 + $0xbd0] sm:$0xff]
    %v456 = vld [vmem:[#allocation2 + $0xbd8] sm:$0xff]
    %v457 = vld [vmem:[#allocation2 + $0xbe0] sm:$0xff]
    %v458 = vld [vmem:[#allocation2 + $0xbe8] sm:$0xff]
    %v459 = vld [vmem:[#allocation2 + $0xbf0] sm:$0xff]
    %v460 = vld [vmem:[#allocation2 + $0xbf8] sm:$0xff]
    %v461 = vld [vmem:[#allocation2 + $0xc00] sm:$0xff]
    %v462 = vld [vmem:[#allocation2 + $0xc08] sm:$0xff]
    %v463 = vld [vmem:[#allocation2 + $0xc10] sm:$0xff]
    %v464 = vld [vmem:[#allocation2 + $0xc18] sm:$0xff]
    %v465 = vld [vmem:[#allocation2 + $0xc20] sm:$0xff]
    %v466 = vld [vmem:[#allocation2 + $0xc28] sm:$0xff]
    %v467 = vld [vmem:[#allocation2 + $0xc30] sm:$0xff]
    %v468 = vld [vmem:[#allocation2 + $0xc38] sm:$0xff]
    %v469 = vld [vmem:[#allocation2 + $0xc40] sm:$0xff]
    %v470 = vld [vmem:[#allocation2 + $0xc48] sm:$0xff]
    %v471 = vld [vmem:[#allocation2 + $0xc50] sm:$0xff]
    %v472 = vld [vmem:[#allocation2 + $0xc58] sm:$0xff]
    %v473 = vld [vmem:[#allocation2 + $0xc60] sm:$0xff]
    %v474 = vld [vmem:[#allocation2 + $0xc68] sm:$0xff]
    %v475 = vld [vmem:[#allocation2 + $0xc70] sm:$0xff]
    %v476 = vld [vmem:[#allocation2 + $0xc78] sm:$0xff]
    %v477 = vld [vmem:[#allocation2 + $0xc80] sm:$0xff]
    %v478 = vld [vmem:[#allocation2 + $0xc88] sm:$0xff]
    %v479 = vld [vmem:[#allocation2 + $0xc90] sm:$0xff]
    %v480 = vld [vmem:[#allocation2 + $0xc98] sm:$0xff]
    %v481 = vld [vmem:[#allocation2 + $0xca0] sm:$0xff]
    %v482 = vld [vmem:[#allocation2 + $0xca8] sm:$0xff]
    %v483 = vld [vmem:[#allocation2 + $0xcb0] sm:$0xff]
    %v484 = vld [vmem:[#allocation2 + $0xcb8] sm:$0xff]
    %v485 = vld [vmem:[#allocation2 + $0xcc0] sm:$0xff]
    %v486 = vld [vmem:[#allocation2 + $0xcc8] sm:$0xff]
    %v487 = vld [vmem:[#allocation2 + $0xcd0] sm:$0xff]
    %v488 = vld [vmem:[#allocation2 + $0xcd8] sm:$0xff]
    %v489 = vld [vmem:[#allocation2 + $0xce0] sm:$0xff]
    %v490 = vld [vmem:[#allocation2 + $0xce8] sm:$0xff]
    %v491 = vld [vmem:[#allocation2 + $0xcf0] sm:$0xff]
    %v492 = vld [vmem:[#allocation2 + $0xcf8] sm:$0xff]
    %v493 = vld [vmem:[#allocation2 + $0xd00] sm:$0xff]
    %v494 = vld [vmem:[#allocation2 + $0xd08] sm:$0xff]
    %v495 = vld [vmem:[#allocation2 + $0xd10] sm:$0xff]
    %v496 = vld [vmem:[#allocation2 + $0xd18] sm:$0xff]
    %v497 = vld [vmem:[#allocation2 + $0xd20] sm:$0xff]
    %v498 = vld [vmem:[#allocation2 + $0xd28] sm:$0xff]
    %v499 = vld [vmem:[#allocation2 + $0xd30] sm:$0xff]
    %v500 = vld [vmem:[#allocation2 + $0xd38] sm:$0xff]
    %v501 = vld [vmem:[#allocation2 + $0xd40] sm:$0xff]
    %v502 = vld [vmem:[#allocation2 + $0xd48] sm:$0xff]
    %v503 = vld [vmem:[#allocation2 + $0xd50] sm:$0xff]
    %v504 = vld [vmem:[#allocation2 + $0xd58] sm:$0xff]
    %v505 = vld [vmem:[#allocation2 + $0xd60] sm:$0xff]
    %v506 = vld [vmem:[#allocation2 + $0xd68] sm:$0xff]
    %v507 = vld [vmem:[#allocation2 + $0xd70] sm:$0xff]
    %v508 = vld [vmem:[#allocation2 + $0xd78] sm:$0xff]
    %v509 = vld [vmem:[#allocation2 + $0xd80] sm:$0xff]
    %v510 = vld [vmem:[#allocation2 + $0xd88] sm:$0xff]
    %v511 = vld [vmem:[#allocation2 + $0xd90] sm:$0xff]
    %v512 = vld [vmem:[#allocation2 + $0xd98] sm:$0xff]
    %v513 = vld [vmem:[#allocation2 + $0xda0] sm:$0xff]
    %v514 = vld [vmem:[#allocation2 + $0xda8] sm:$0xff]
    %v515 = vld [vmem:[#allocation2 + $0xdb0] sm:$0xff]
    %v516 = vld [vmem:[#allocation2 + $0xdb8] sm:$0xff]
    %v517 = vld [vmem:[#allocation2 + $0xdc0] sm:$0xff]
    %v518 = vld [vmem:[#allocation2 + $0xdc8] sm:$0xff]
    %v519 = vld [vmem:[#allocation2 + $0xdd0] sm:$0xff]
    %v520 = vld [vmem:[#allocation2 + $0xdd8] sm:$0xff]
    %v521 = vld [vmem:[#allocation2 + $0xde0] sm:$0xff]
    %v522 = vld [vmem:[#allocation2 + $0xde8] sm:$0xff]
    %v523 = vld [vmem:[#allocation2 + $0xdf0] sm:$0xff]
    %v524 = vld [vmem:[#allocation2 + $0xdf8] sm:$0xff]
    %v525 = vld [vmem:[#allocation2 + $0xe00] sm:$0xff]
    %v526 = vld [vmem:[#allocation2 + $0xe08] sm:$0xff]
    %v527 = vld [vmem:[#allocation2 + $0xe10] sm:$0xff]
    %v528 = vld [vmem:[#allocation2 + $0xe18] sm:$0xff]
    %v529 = vld [vmem:[#allocation2 + $0xe20] sm:$0xff]
    %v530 = vld [vmem:[#allocation2 + $0xe28] sm:$0xff]
    %v531 = vld [vmem:[#allocation2 + $0xe30] sm:$0xff]
    %v532 = vld [vmem:[#allocation2 + $0xe38] sm:$0xff]
    %v533 = vld [vmem:[#allocation2 + $0xe40] sm:$0xff]
    %v534 = vld [vmem:[#allocation2 + $0xe48] sm:$0xff]
    %v535 = vld [vmem:[#allocation2 + $0xe50] sm:$0xff]
    %v536 = vld [vmem:[#allocation2 + $0xe58] sm:$0xff]
    %v537 = vld [vmem:[#allocation2 + $0xe60] sm:$0xff]
    %v538 = vld [vmem:[#allocation2 + $0xe68] sm:$0xff]
    %v539 = vld [vmem:[#allocation2 + $0xe70] sm:$0xff]
    %v540 = vld [vmem:[#allocation2 + $0xe78] sm:$0xff]
    %v541 = vld [vmem:[#allocation2 + $0xe80] sm:$0xff]
    %v542 = vld [vmem:[#allocation2 + $0xe88] sm:$0xff]
    %v543 = vld [vmem:[#allocation2 + $0xe90] sm:$0xff]
    %v544 = vld [vmem:[#allocation2 + $0xe98] sm:$0xff]
    %v545 = vld [vmem:[#allocation2 + $0xea0] sm:$0xff]
    %v546 = vld [vmem:[#allocation2 + $0xea8] sm:$0xff]
    %v547 = vld [vmem:[#allocation2 + $0xeb0] sm:$0xff]
    %v548 = vld [vmem:[#allocation2 + $0xeb8] sm:$0xff]
    %v549 = vld [vmem:[#allocation2 + $0xec0] sm:$0xff]
    %v550 = vld [vmem:[#allocation2 + $0xec8] sm:$0xff]
    %v551 = vld [vmem:[#allocation2 + $0xed0] sm:$0xff]
    %v552 = vld [vmem:[#allocation2 + $0xed8] sm:$0xff]
    %v553 = vld [vmem:[#allocation2 + $0xee0] sm:$0xff]
    %v554 = vld [vmem:[#allocation2 + $0xee8] sm:$0xff]
    %v555 = vld [vmem:[#allocation2 + $0xef0] sm:$0xff]
    %v556 = vld [vmem:[#allocation2 + $0xef8] sm:$0xff]
    %v557 = vld [vmem:[#allocation2 + $0xf00] sm:$0xff]
    %v558 = vld [vmem:[#allocation2 + $0xf08] sm:$0xff]
    %v559 = vld [vmem:[#allocation2 + $0xf10] sm:$0xff]
    %v560 = vld [vmem:[#allocation2 + $0xf18] sm:$0xff]
    %v561 = vld [vmem:[#allocation2 + $0xf20] sm:$0xff]
    %v562 = vld [vmem:[#allocation2 + $0xf28] sm:$0xff]
    %v563 = vld [vmem:[#allocation2 + $0xf30] sm:$0xff]
    %v564 = vld [vmem:[#allocation2 + $0xf38] sm:$0xff]
    %v565 = vld [vmem:[#allocation2 + $0xf40] sm:$0xff]
    %v566 = vld [vmem:[#allocation2 + $0xf48] sm:$0xff]
    %v567 = vld [vmem:[#allocation2 + $0xf50] sm:$0xff]
    %v568 = vld [vmem:[#allocation2 + $0xf58] sm:$0xff]
    %v569 = vld [vmem:[#allocation2 + $0xf60] sm:$0xff]
    %v570 = vld [vmem:[#allocation2 + $0xf68] sm:$0xff]
    %v571 = vld [vmem:[#allocation2 + $0xf70] sm:$0xff]
    %v572 = vld [vmem:[#allocation2 + $0xf78] sm:$0xff]
    %v573 = vld [vmem:[#allocation2 + $0xf80] sm:$0xff]
    %v574 = vld [vmem:[#allocation2 + $0xf88] sm:$0xff]
    %v575 = vld [vmem:[#allocation2 + $0xf90] sm:$0xff]
    %v576 = vld [vmem:[#allocation2 + $0xf98] sm:$0xff]
    %v577 = vld [vmem:[#allocation2 + $0xfa0] sm:$0xff]
    %v578 = vld [vmem:[#allocation2 + $0xfa8] sm:$0xff]
    %v579 = vld [vmem:[#allocation2 + $0xfb0] sm:$0xff]
    %v580 = vld [vmem:[#allocation2 + $0xfb8] sm:$0xff]
    %v581 = vld [vmem:[#allocation2 + $0xfc0] sm:$0xff]
    %v582 = vld [vmem:[#allocation2 + $0xfc8] sm:$0xff]
    %v583 = vld [vmem:[#allocation2 + $0xfd0] sm:$0xff]
    %v584 = vld [vmem:[#allocation2 + $0xfd8] sm:$0xff]
    %v585 = vld [vmem:[#allocation2 + $0xfe0] sm:$0xff]
    %v586 = vld [vmem:[#allocation2 + $0xfe8] sm:$0xff]
    %v587 = vld [vmem:[#allocation2 + $0xff0] sm:$0xff]
    %v588 = vld [vmem:[#allocation2 + $0xff8] sm:$0xff]
    %v589 = vld [vmem:[#allocation2 + $0x1000] sm:$0xff]
    %v590 = vld [vmem:[#allocation2 + $0x1008] sm:$0xff]
    %v591 = vld [vmem:[#allocation2 + $0x1010] sm:$0xff]
    %v592 = vld [vmem:[#allocation2 + $0x1018] sm:$0xff]
    %v593 = vld [vmem:[#allocation2 + $0x1020] sm:$0xff]
    %v594 = vld [vmem:[#allocation2 + $0x1028] sm:$0xff]
    %v595 = vld [vmem:[#allocation2 + $0x1030] sm:$0xff]
    %v596 = vld [vmem:[#allocation2 + $0x1038] sm:$0xff]
    %v597 = vld [vmem:[#allocation2 + $0x1040] sm:$0xff]
    %v598 = vld [vmem:[#allocation2 + $0x1048] sm:$0xff]
    %v599 = vld [vmem:[#allocation2 + $0x1050] sm:$0xff]
    %v600 = vld [vmem:[#allocation2 + $0x1058] sm:$0xff]
    %v601 = vld [vmem:[#allocation2 + $0x1060] sm:$0xff]
    %v602 = vld [vmem:[#allocation2 + $0x1068] sm:$0xff]
    %v603 = vld [vmem:[#allocation2 + $0x1070] sm:$0xff]
    %v604 = vld [vmem:[#allocation2 + $0x1078] sm:$0xff]
    %v605 = vld [vmem:[#allocation2 + $0x1080] sm:$0xff]
    %v606 = vld [vmem:[#allocation2 + $0x1088] sm:$0xff]
    %v607 = vld [vmem:[#allocation2 + $0x1090] sm:$0xff]
    %v608 = vld [vmem:[#allocation2 + $0x1098] sm:$0xff]
    %v609 = vld [vmem:[#allocation2 + $0x10a0] sm:$0xff]
    %v610 = vld [vmem:[#allocation2 + $0x10a8] sm:$0xff]
    %v611 = vld [vmem:[#allocation2 + $0x10b0] sm:$0xff]
    %v612 = vld [vmem:[#allocation2 + $0x10b8] sm:$0xff]
    %v613 = vld [vmem:[#allocation2 + $0x10c0] sm:$0xff]
    %v614 = vld [vmem:[#allocation2 + $0x10c8] sm:$0xff]
    %v615 = vld [vmem:[#allocation2 + $0x10d0] sm:$0xff]
    %v616 = vld [vmem:[#allocation2 + $0x10d8] sm:$0xff]
    %v617 = vld [vmem:[#allocation2 + $0x10e0] sm:$0xff]
    %v618 = vld [vmem:[#allocation2 + $0x10e8] sm:$0xff]
    %v619 = vld [vmem:[#allocation2 + $0x10f0] sm:$0xff]
    %v620 = vld [vmem:[#allocation2 + $0x10f8] sm:$0xff]
    %v621 = vld [vmem:[#allocation2 + $0x1100] sm:$0xff]
    %v622 = vld [vmem:[#allocation2 + $0x1108] sm:$0xff]
    %v623 = vld [vmem:[#allocation2 + $0x1110] sm:$0xff]
    %v624 = vld [vmem:[#allocation2 + $0x1118] sm:$0xff]
    %v625 = vld [vmem:[#allocation2 + $0x1120] sm:$0xff]
    %v626 = vld [vmem:[#allocation2 + $0x1128] sm:$0xff]
    %v627 = vld [vmem:[#allocation2 + $0x1130] sm:$0xff]
    %v628 = vld [vmem:[#allocation2 + $0x1138] sm:$0xff]
    %v629 = vld [vmem:[#allocation2 + $0x1140] sm:$0xff]
    %v630 = vld [vmem:[#allocation2 + $0x1148] sm:$0xff]
    %v631 = vld [vmem:[#allocation2 + $0x1150] sm:$0xff]
    %v632 = vld [vmem:[#allocation2 + $0x1158] sm:$0xff]
    %v633 = vld [vmem:[#allocation2 + $0x1160] sm:$0xff]
    %v634 = vld [vmem:[#allocation2 + $0x1168] sm:$0xff]
    %v635 = vld [vmem:[#allocation2 + $0x1170] sm:$0xff]
    %v636 = vld [vmem:[#allocation2 + $0x1178] sm:$0xff]
    %v637 = vld [vmem:[#allocation2 + $0x1180] sm:$0xff]
    %v638 = vld [vmem:[#allocation2 + $0x1188] sm:$0xff]
    %v639 = vld [vmem:[#allocation2 + $0x1190] sm:$0xff]
    %v640 = vld [vmem:[#allocation2 + $0x1198] sm:$0xff]
    %v641 = vld [vmem:[#allocation2 + $0x11a0] sm:$0xff]
    %v642 = vld [vmem:[#allocation2 + $0x11a8] sm:$0xff]
    %v643 = vld [vmem:[#allocation2 + $0x11b0] sm:$0xff]
    %v644 = vld [vmem:[#allocation2 + $0x11b8] sm:$0xff]
    %v645 = vld [vmem:[#allocation2 + $0x11c0] sm:$0xff]
    %v646 = vld [vmem:[#allocation2 + $0x11c8] sm:$0xff]
    %v647 = vld [vmem:[#allocation2 + $0x11d0] sm:$0xff]
    %v648 = vld [vmem:[#allocation2 + $0x11d8] sm:$0xff]
    %v649 = vld [vmem:[#allocation2 + $0x11e0] sm:$0xff]
    %v650 = vld [vmem:[#allocation2 + $0x11e8] sm:$0xff]
    %v651 = vld [vmem:[#allocation2 + $0x11f0] sm:$0xff]
    %v652 = vld [vmem:[#allocation2 + $0x11f8] sm:$0xff]
    %v653 = vld [vmem:[#allocation2 + $0x1200] sm:$0xff]
    %v654 = vld [vmem:[#allocation2 + $0x1208] sm:$0xff]
    %v655 = vld [vmem:[#allocation2 + $0x1210] sm:$0xff]
    %v656 = vld [vmem:[#allocation2 + $0x1218] sm:$0xff]
    %v657 = vld [vmem:[#allocation2 + $0x1220] sm:$0xff]
    %v658 = vld [vmem:[#allocation2 + $0x1228] sm:$0xff]
    %v659 = vld [vmem:[#allocation2 + $0x1230] sm:$0xff]
    %v660 = vld [vmem:[#allocation2 + $0x1238] sm:$0xff]
    %v661 = vld [vmem:[#allocation2 + $0x1240] sm:$0xff]
    %v662 = vld [vmem:[#allocation2 + $0x1248] sm:$0xff]
    %v663 = vld [vmem:[#allocation2 + $0x1250] sm:$0xff]
    %v664 = vld [vmem:[#allocation2 + $0x1258] sm:$0xff]
    %v665 = vld [vmem:[#allocation2 + $0x1260] sm:$0xff]
    %v666 = vld [vmem:[#allocation2 + $0x1268] sm:$0xff]
    %v667 = vld [vmem:[#allocation2 + $0x1270] sm:$0xff]
    %v668 = vld [vmem:[#allocation2 + $0x1278] sm:$0xff]
    %v669 = vld [vmem:[#allocation2 + $0x1280] sm:$0xff]
    %v670 = vld [vmem:[#allocation2 + $0x1288] sm:$0xff]
    %v671 = vld [vmem:[#allocation2 + $0x1290] sm:$0xff]
    %v672 = vld [vmem:[#allocation2 + $0x1298] sm:$0xff]
    %v673 = vld [vmem:[#allocation2 + $0x12a0] sm:$0xff]
    %v674 = vld [vmem:[#allocation2 + $0x12a8] sm:$0xff]
    %v675 = vld [vmem:[#allocation2 + $0x12b0] sm:$0xff]
    %v676 = vld [vmem:[#allocation2 + $0x12b8] sm:$0xff]
    %v677 = vld [vmem:[#allocation2 + $0x12c0] sm:$0xff]
    %v678 = vld [vmem:[#allocation2 + $0x12c8] sm:$0xff]
    %v679 = vld [vmem:[#allocation2 + $0x12d0] sm:$0xff]
    %v680 = vld [vmem:[#allocation2 + $0x12d8] sm:$0xff]
    %v681 = vld [vmem:[#allocation2 + $0x12e0] sm:$0xff]
    %v682 = vld [vmem:[#allocation2 + $0x12e8] sm:$0xff]
    %v683 = vld [vmem:[#allocation2 + $0x12f0] sm:$0xff]
    %v684 = vld [vmem:[#allocation2 + $0x12f8] sm:$0xff]
    %v685 = vld [vmem:[#allocation2 + $0x1300] sm:$0xff]
    %v686 = vld [vmem:[#allocation2 + $0x1308] sm:$0xff]
    %v687 = vld [vmem:[#allocation2 + $0x1310] sm:$0xff]
    %v688 = vld [vmem:[#allocation2 + $0x1318] sm:$0xff]
    %v689 = vld [vmem:[#allocation2 + $0x1320] sm:$0xff]
    %v690 = vld [vmem:[#allocation2 + $0x1328] sm:$0xff]
    %v691 = vld [vmem:[#allocation2 + $0x1330] sm:$0xff]
    %v692 = vld [vmem:[#allocation2 + $0x1338] sm:$0xff]
    %v693 = vld [vmem:[#allocation2 + $0x1340] sm:$0xff]
    %v694 = vld [vmem:[#allocation2 + $0x1348] sm:$0xff]
    %v695 = vld [vmem:[#allocation2 + $0x1350] sm:$0xff]
    %v696 = vld [vmem:[#allocation2 + $0x1358] sm:$0xff]
    %v697 = vld [vmem:[#allocation2 + $0x1360] sm:$0xff]
    %v698 = vld [vmem:[#allocation2 + $0x1368] sm:$0xff]
    %v699 = vld [vmem:[#allocation2 + $0x1370] sm:$0xff]
    %v700 = vld [vmem:[#allocation2 + $0x1378] sm:$0xff]
    %v701 = vld [vmem:[#allocation2 + $0x1380] sm:$0xff]
    %v702 = vld [vmem:[#allocation2 + $0x1388] sm:$0xff]
    %v703 = vld [vmem:[#allocation2 + $0x1390] sm:$0xff]
    %v704 = vld [vmem:[#allocation2 + $0x1398] sm:$0xff]
    %v705 = vld [vmem:[#allocation2 + $0x13a0] sm:$0xff]
    %v706 = vld [vmem:[#allocation2 + $0x13a8] sm:$0xff]
    %v707 = vld [vmem:[#allocation2 + $0x13b0] sm:$0xff]
    %v708 = vld [vmem:[#allocation2 + $0x13b8] sm:$0xff]
    %v709 = vld [vmem:[#allocation2 + $0x13c0] sm:$0xff]
    %v710 = vld [vmem:[#allocation2 + $0x13c8] sm:$0xff]
    %v711 = vld [vmem:[#allocation2 + $0x13d0] sm:$0xff]
    %v712 = vld [vmem:[#allocation2 + $0x13d8] sm:$0xff]
    %v713 = vld [vmem:[#allocation2 + $0x13e0] sm:$0xff]
    %v714 = vld [vmem:[#allocation2 + $0x13e8] sm:$0xff]
    %v715 = vld [vmem:[#allocation2 + $0x13f0] sm:$0xff]
    %v716 = vld [vmem:[#allocation2 + $0x13f8] sm:$0xff]
    %v717 = vld [vmem:[#allocation7] sm:$0xff]
    %v718 = vld [vmem:[#allocation7 + $0x8] sm:$0xff]
    %v721 = vlaneseq
    %v722 = vshrl.u32 %v721, 7
    %v723 = vsub.s32 0, %v722
    %v724 = vrot.slane %v717, %v723
    %v725 = vlaneseq
    %v726 = vshrl.u32 %v725, 7
    %v727 = vsub.s32 1, %v726
    %v728 = vrot.slane %v717, %v727
    %v729 = vlaneseq
    %v730 = vshrl.u32 %v729, 7
    %v731 = vsub.s32 2, %v730
    %v732 = vrot.slane %v717, %v731
    %v733 = vlaneseq
    %v734 = vshrl.u32 %v733, 7
    %v735 = vsub.s32 3, %v734
    %v736 = vrot.slane %v717, %v735
    %v737 = vlaneseq
    %v738 = vshrl.u32 %v737, 7
    %v739 = vsub.s32 4, %v738
    %v740 = vrot.slane %v717, %v739
    %v741 = vlaneseq
    %v742 = vshrl.u32 %v741, 7
    %v743 = vsub.s32 5, %v742
    %v744 = vrot.slane %v717, %v743
    %v745 = vlaneseq
    %v746 = vshrl.u32 %v745, 7
    %v747 = vsub.s32 6, %v746
    %v748 = vrot.slane %v717, %v747
    %v749 = vlaneseq
    %v750 = vshrl.u32 %v749, 7
    %v751 = vsub.s32 7, %v750
    %v752 = vrot.slane %v717, %v751
    %v753 = vlaneseq
    %v754 = vshrl.u32 %v753, 7
    %v755 = vsub.s32 0, %v754
    %v756 = vrot.slane %v718, %v755
    %v757 = vlaneseq
    %v758 = vshrl.u32 %v757, 7
    %v759 = vsub.s32 1, %v758
    %v760 = vrot.slane %v718, %v759
    %v761 = vlaneseq
    %v762 = vshrl.u32 %v761, 7
    %v763 = vsub.s32 2, %v762
    %v764 = vrot.slane %v718, %v763
    %v765 = vlaneseq
    %v766 = vshrl.u32 %v765, 7
    %v767 = vsub.s32 3, %v766
    %v768 = vrot.slane %v718, %v767
    %v769 = vlaneseq
    %v770 = vshrl.u32 %v769, 7
    %v771 = vsub.s32 4, %v770
    %v772 = vrot.slane %v718, %v771
    %v773 = vlaneseq
    %v774 = vshrl.u32 %v773, 7
    %v775 = vsub.s32 5, %v774
    %v776 = vrot.slane %v718, %v775
    %v777 = vlaneseq
    %v778 = vshrl.u32 %v777, 7
    %v779 = vsub.s32 6, %v778
    %v780 = vrot.slane %v718, %v779
    %v781 = vlaneseq
    %v782 = vshrl.u32 %v781, 7
    %v783 = vsub.s32 7, %v782
    %v784 = vrot.slane %v718, %v783
    %v804 = vunpack.c.l.b16 %v74
    %v805 = vunpack.c.h.b16 %v74
    %v806 = vunpack.c.l.b16 %v75
    %v807 = vunpack.c.h.b16 %v75
    %v808 = vunpack.c.l.b16 %v76
    %v809 = vpack.c.b16 %v804, %v804
    %v810 = vpack.c.b16 %v805, %v805
    %v811 = vpack.c.b16 %v806, %v806
    %v812 = vpack.c.b16 %v807, %v807
    %v813 = vpack.c.b16 %v808, %v808
    %v1459 = vunpack.c.l.b16 %v77
    %v1460 = vunpack.c.h.b16 %v77
    %v1461 = vunpack.c.l.b16 %v78
    %v1462 = vunpack.c.h.b16 %v78
    %v1463 = vunpack.c.l.b16 %v79
    %v1464 = vunpack.c.h.b16 %v79
    %v1465 = vunpack.c.l.b16 %v80
    %v1466 = vunpack.c.h.b16 %v80
    %v1467 = vunpack.c.l.b16 %v81
    %v1468 = vunpack.c.h.b16 %v81
    %v1469 = vunpack.c.l.b16 %v82
    %v1470 = vunpack.c.h.b16 %v82
    %v1471 = vunpack.c.l.b16 %v83
    %v1472 = vunpack.c.h.b16 %v83
    %v1473 = vunpack.c.l.b16 %v84
    %v1474 = vunpack.c.h.b16 %v84
    %v1475 = vunpack.c.l.b16 %v85
    %v1476 = vunpack.c.h.b16 %v85
    %v1477 = vunpack.c.l.b16 %v86
    %v1478 = vunpack.c.h.b16 %v86
    %v1479 = vunpack.c.l.b16 %v87
    %v1480 = vunpack.c.h.b16 %v87
    %v1481 = vunpack.c.l.b16 %v88
    %v1482 = vunpack.c.h.b16 %v88
    %v1483 = vunpack.c.l.b16 %v89
    %v1484 = vunpack.c.h.b16 %v89
    %v1485 = vunpack.c.l.b16 %v90
    %v1486 = vunpack.c.h.b16 %v90
    %v1487 = vunpack.c.l.b16 %v91
    %v1488 = vunpack.c.h.b16 %v91
    %v1489 = vunpack.c.l.b16 %v92
    %v1490 = vunpack.c.h.b16 %v92
    %v1491 = vunpack.c.l.b16 %v93
    %v1492 = vunpack.c.h.b16 %v93
    %v1493 = vunpack.c.l.b16 %v94
    %v1494 = vunpack.c.h.b16 %v94
    %v1495 = vunpack.c.l.b16 %v95
    %v1496 = vunpack.c.h.b16 %v95
    %v1497 = vunpack.c.l.b16 %v96
    %v1498 = vunpack.c.h.b16 %v96
    %v1499 = vunpack.c.l.b16 %v97
    %v1500 = vunpack.c.h.b16 %v97
    %v1501 = vunpack.c.l.b16 %v98
    %v1502 = vunpack.c.h.b16 %v98
    %v1503 = vunpack.c.l.b16 %v99
    %v1504 = vunpack.c.h.b16 %v99
    %v1505 = vunpack.c.l.b16 %v100
    %v1506 = vunpack.c.h.b16 %v100
    %v1507 = vunpack.c.l.b16 %v101
    %v1508 = vunpack.c.h.b16 %v101
    %v1509 = vunpack.c.l.b16 %v102
    %v1510 = vunpack.c.h.b16 %v102
    %v1511 = vunpack.c.l.b16 %v103
    %v1512 = vunpack.c.h.b16 %v103
    %v1513 = vunpack.c.l.b16 %v104
    %v1514 = vunpack.c.h.b16 %v104
    %v1515 = vunpack.c.l.b16 %v105
    %v1516 = vunpack.c.h.b16 %v105
    %v1517 = vunpack.c.l.b16 %v106
    %v1518 = vunpack.c.h.b16 %v106
    %v1519 = vunpack.c.l.b16 %v107
    %v1520 = vunpack.c.h.b16 %v107
    %v1521 = vunpack.c.l.b16 %v108
    %v1522 = vunpack.c.h.b16 %v108
    %v1523 = vunpack.c.l.b16 %v109
    %v1524 = vunpack.c.h.b16 %v109
    %v1525 = vunpack.c.l.b16 %v110
    %v1526 = vunpack.c.h.b16 %v110
    %v1527 = vunpack.c.l.b16 %v111
    %v1528 = vunpack.c.h.b16 %v111
    %v1529 = vunpack.c.l.b16 %v112
    %v1530 = vunpack.c.h.b16 %v112
    %v1531 = vunpack.c.l.b16 %v113
    %v1532 = vunpack.c.h.b16 %v113
    %v1533 = vunpack.c.l.b16 %v114
    %v1534 = vunpack.c.h.b16 %v114
    %v1535 = vunpack.c.l.b16 %v115
    %v1536 = vunpack.c.h.b16 %v115
    %v1537 = vunpack.c.l.b16 %v116
    %v1538 = vunpack.c.h.b16 %v116
    %v1539 = vunpack.c.l.b16 %v117
    %v1540 = vunpack.c.h.b16 %v117
    %v1541 = vunpack.c.l.b16 %v118
    %v1542 = vunpack.c.h.b16 %v118
    %v1543 = vunpack.c.l.b16 %v119
    %v1544 = vunpack.c.h.b16 %v119
    %v1545 = vunpack.c.l.b16 %v120
    %v1546 = vunpack.c.h.b16 %v120
    %v1547 = vunpack.c.l.b16 %v121
    %v1548 = vunpack.c.h.b16 %v121
    %v1549 = vunpack.c.l.b16 %v122
    %v1550 = vunpack.c.h.b16 %v122
    %v1551 = vunpack.c.l.b16 %v123
    %v1552 = vunpack.c.h.b16 %v123
    %v1553 = vunpack.c.l.b16 %v124
    %v1554 = vunpack.c.h.b16 %v124
    %v1555 = vunpack.c.l.b16 %v125
    %v1556 = vunpack.c.h.b16 %v125
    %v1557 = vunpack.c.l.b16 %v126
    %v1558 = vunpack.c.h.b16 %v126
    %v1559 = vunpack.c.l.b16 %v127
    %v1560 = vunpack.c.h.b16 %v127
    %v1561 = vunpack.c.l.b16 %v128
    %v1562 = vunpack.c.h.b16 %v128
    %v1563 = vunpack.c.l.b16 %v129
    %v1564 = vunpack.c.h.b16 %v129
    %v1565 = vunpack.c.l.b16 %v130
    %v1566 = vunpack.c.h.b16 %v130
    %v1567 = vunpack.c.l.b16 %v131
    %v1568 = vunpack.c.h.b16 %v131
    %v1569 = vunpack.c.l.b16 %v132
    %v1570 = vunpack.c.h.b16 %v132
    %v1571 = vunpack.c.l.b16 %v133
    %v1572 = vunpack.c.h.b16 %v133
    %v1573 = vunpack.c.l.b16 %v134
    %v1574 = vunpack.c.h.b16 %v134
    %v1575 = vunpack.c.l.b16 %v135
    %v1576 = vunpack.c.h.b16 %v135
    %v1577 = vunpack.c.l.b16 %v136
    %v1578 = vunpack.c.h.b16 %v136
    %v1579 = vunpack.c.l.b16 %v137
    %v1580 = vunpack.c.h.b16 %v137
    %v1581 = vunpack.c.l.b16 %v138
    %v1582 = vunpack.c.h.b16 %v138
    %v1583 = vunpack.c.l.b16 %v139
    %v1584 = vunpack.c.h.b16 %v139
    %v1585 = vunpack.c.l.b16 %v140
    %v1586 = vunpack.c.h.b16 %v140
    %v1587 = vunpack.c.l.b16 %v141
    %v1588 = vunpack.c.h.b16 %v141
    %v1589 = vunpack.c.l.b16 %v142
    %v1590 = vunpack.c.h.b16 %v142
    %v1591 = vunpack.c.l.b16 %v143
    %v1592 = vunpack.c.h.b16 %v143
    %v1593 = vunpack.c.l.b16 %v144
    %v1594 = vunpack.c.h.b16 %v144
    %v1595 = vunpack.c.l.b16 %v145
    %v1596 = vunpack.c.h.b16 %v145
    %v1597 = vunpack.c.l.b16 %v146
    %v1598 = vunpack.c.h.b16 %v146
    %v1599 = vunpack.c.l.b16 %v147
    %v1600 = vunpack.c.h.b16 %v147
    %v1601 = vunpack.c.l.b16 %v148
    %v1602 = vunpack.c.h.b16 %v148
    %v1603 = vunpack.c.l.b16 %v149
    %v1604 = vunpack.c.h.b16 %v149
    %v1605 = vunpack.c.l.b16 %v150
    %v1606 = vunpack.c.h.b16 %v150
    %v1607 = vunpack.c.l.b16 %v151
    %v1608 = vunpack.c.h.b16 %v151
    %v1609 = vunpack.c.l.b16 %v152
    %v1610 = vunpack.c.h.b16 %v152
    %v1611 = vunpack.c.l.b16 %v153
    %v1612 = vunpack.c.h.b16 %v153
    %v1613 = vunpack.c.l.b16 %v154
    %v1614 = vunpack.c.h.b16 %v154
    %v1615 = vunpack.c.l.b16 %v155
    %v1616 = vunpack.c.h.b16 %v155
    %v1617 = vunpack.c.l.b16 %v156
    %v1618 = vunpack.c.h.b16 %v156
    %v1619 = vunpack.c.l.b16 %v157
    %v1620 = vunpack.c.h.b16 %v157
    %v1621 = vunpack.c.l.b16 %v158
    %v1622 = vunpack.c.h.b16 %v158
    %v1623 = vunpack.c.l.b16 %v159
    %v1624 = vunpack.c.h.b16 %v159
    %v1625 = vunpack.c.l.b16 %v160
    %v1626 = vunpack.c.h.b16 %v160
    %v1627 = vunpack.c.l.b16 %v161
    %v1628 = vunpack.c.h.b16 %v161
    %v1629 = vunpack.c.l.b16 %v162
    %v1630 = vunpack.c.h.b16 %v162
    %v1631 = vunpack.c.l.b16 %v163
    %v1632 = vunpack.c.h.b16 %v163
    %v1633 = vunpack.c.l.b16 %v164
    %v1634 = vunpack.c.h.b16 %v164
    %v1635 = vunpack.c.l.b16 %v165
    %v1636 = vunpack.c.h.b16 %v165
    %v1637 = vunpack.c.l.b16 %v166
    %v1638 = vunpack.c.h.b16 %v166
    %v1639 = vunpack.c.l.b16 %v167
    %v1640 = vunpack.c.h.b16 %v167
    %v1641 = vunpack.c.l.b16 %v168
    %v1642 = vunpack.c.h.b16 %v168
    %v1643 = vunpack.c.l.b16 %v169
    %v1644 = vunpack.c.h.b16 %v169
    %v1645 = vunpack.c.l.b16 %v170
    %v1646 = vunpack.c.h.b16 %v170
    %v1647 = vunpack.c.l.b16 %v171
    %v1648 = vunpack.c.h.b16 %v171
    %v1649 = vunpack.c.l.b16 %v172
    %v1650 = vunpack.c.h.b16 %v172
    %v1651 = vunpack.c.l.b16 %v173
    %v1652 = vunpack.c.h.b16 %v173
    %v1653 = vunpack.c.l.b16 %v174
    %v1654 = vunpack.c.h.b16 %v174
    %v1655 = vunpack.c.l.b16 %v175
    %v1656 = vunpack.c.h.b16 %v175
    %v1657 = vunpack.c.l.b16 %v176
    %v1658 = vunpack.c.h.b16 %v176
    %v1659 = vunpack.c.l.b16 %v177
    %v1660 = vunpack.c.h.b16 %v177
    %v1661 = vunpack.c.l.b16 %v178
    %v1662 = vunpack.c.h.b16 %v178
    %v1663 = vunpack.c.l.b16 %v179
    %v1664 = vunpack.c.h.b16 %v179
    %v1665 = vunpack.c.l.b16 %v180
    %v1666 = vunpack.c.h.b16 %v180
    %v1667 = vunpack.c.l.b16 %v181
    %v1668 = vunpack.c.h.b16 %v181
    %v1669 = vunpack.c.l.b16 %v182
    %v1670 = vunpack.c.h.b16 %v182
    %v1671 = vunpack.c.l.b16 %v183
    %v1672 = vunpack.c.h.b16 %v183
    %v1673 = vunpack.c.l.b16 %v184
    %v1674 = vunpack.c.h.b16 %v184
    %v1675 = vunpack.c.l.b16 %v185
    %v1676 = vunpack.c.h.b16 %v185
    %v1677 = vunpack.c.l.b16 %v186
    %v1678 = vunpack.c.h.b16 %v186
    %v1679 = vunpack.c.l.b16 %v187
    %v1680 = vunpack.c.h.b16 %v187
    %v1681 = vunpack.c.l.b16 %v188
    %v1682 = vunpack.c.h.b16 %v188
    %v1683 = vunpack.c.l.b16 %v189
    %v1684 = vunpack.c.h.b16 %v189
    %v1685 = vunpack.c.l.b16 %v190
    %v1686 = vunpack.c.h.b16 %v190
    %v1687 = vunpack.c.l.b16 %v191
    %v1688 = vunpack.c.h.b16 %v191
    %v1689 = vunpack.c.l.b16 %v192
    %v1690 = vunpack.c.h.b16 %v192
    %v1691 = vunpack.c.l.b16 %v193
    %v1692 = vunpack.c.h.b16 %v193
    %v1693 = vunpack.c.l.b16 %v194
    %v1694 = vunpack.c.h.b16 %v194
    %v1695 = vunpack.c.l.b16 %v195
    %v1696 = vunpack.c.h.b16 %v195
    %v1697 = vunpack.c.l.b16 %v196
    %v1698 = vunpack.c.h.b16 %v196
    %v1699 = vunpack.c.l.b16 %v197
    %v1700 = vunpack.c.h.b16 %v197
    %v1701 = vunpack.c.l.b16 %v198
    %v1702 = vunpack.c.h.b16 %v198
    %v1703 = vunpack.c.l.b16 %v199
    %v1704 = vunpack.c.h.b16 %v199
    %v1705 = vunpack.c.l.b16 %v200
    %v1706 = vunpack.c.h.b16 %v200
    %v1707 = vunpack.c.l.b16 %v201
    %v1708 = vunpack.c.h.b16 %v201
    %v1709 = vunpack.c.l.b16 %v202
    %v1710 = vunpack.c.h.b16 %v202
    %v1711 = vunpack.c.l.b16 %v203
    %v1712 = vunpack.c.h.b16 %v203
    %v1713 = vunpack.c.l.b16 %v204
    %v1714 = vunpack.c.h.b16 %v204
    %v1715 = vunpack.c.l.b16 %v205
    %v1716 = vunpack.c.h.b16 %v205
    %v1717 = vunpack.c.l.b16 %v206
    %v1718 = vunpack.c.h.b16 %v206
    %v1719 = vunpack.c.l.b16 %v207
    %v1720 = vunpack.c.h.b16 %v207
    %v1721 = vunpack.c.l.b16 %v208
    %v1722 = vunpack.c.h.b16 %v208
    %v1723 = vunpack.c.l.b16 %v209
    %v1724 = vunpack.c.h.b16 %v209
    %v1725 = vunpack.c.l.b16 %v210
    %v1726 = vunpack.c.h.b16 %v210
    %v1727 = vunpack.c.l.b16 %v211
    %v1728 = vunpack.c.h.b16 %v211
    %v1729 = vunpack.c.l.b16 %v212
    %v1730 = vunpack.c.h.b16 %v212
    %v1731 = vunpack.c.l.b16 %v213
    %v1732 = vunpack.c.h.b16 %v213
    %v1733 = vunpack.c.l.b16 %v214
    %v1734 = vunpack.c.h.b16 %v214
    %v1735 = vunpack.c.l.b16 %v215
    %v1736 = vunpack.c.h.b16 %v215
    %v1737 = vunpack.c.l.b16 %v216
    %v1738 = vunpack.c.h.b16 %v216
    %v1739 = vunpack.c.l.b16 %v217
    %v1740 = vunpack.c.h.b16 %v217
    %v1741 = vunpack.c.l.b16 %v218
    %v1742 = vunpack.c.h.b16 %v218
    %v1743 = vunpack.c.l.b16 %v219
    %v1744 = vunpack.c.h.b16 %v219
    %v1745 = vunpack.c.l.b16 %v220
    %v1746 = vunpack.c.h.b16 %v220
    %v1747 = vunpack.c.l.b16 %v221
    %v1748 = vunpack.c.h.b16 %v221
    %v1749 = vunpack.c.l.b16 %v222
    %v1750 = vunpack.c.h.b16 %v222
    %v1751 = vunpack.c.l.b16 %v223
    %v1752 = vunpack.c.h.b16 %v223
    %v1753 = vunpack.c.l.b16 %v224
    %v1754 = vunpack.c.h.b16 %v224
    %v1755 = vunpack.c.l.b16 %v225
    %v1756 = vunpack.c.h.b16 %v225
    %v1757 = vunpack.c.l.b16 %v226
    %v1758 = vunpack.c.h.b16 %v226
    %v1759 = vunpack.c.l.b16 %v227
    %v1760 = vunpack.c.h.b16 %v227
    %v1761 = vunpack.c.l.b16 %v228
    %v1762 = vunpack.c.h.b16 %v228
    %v1763 = vunpack.c.l.b16 %v229
    %v1764 = vunpack.c.h.b16 %v229
    %v1765 = vunpack.c.l.b16 %v230
    %v1766 = vunpack.c.h.b16 %v230
    %v1767 = vunpack.c.l.b16 %v231
    %v1768 = vunpack.c.h.b16 %v231
    %v1769 = vunpack.c.l.b16 %v232
    %v1770 = vunpack.c.h.b16 %v232
    %v1771 = vunpack.c.l.b16 %v233
    %v1772 = vunpack.c.h.b16 %v233
    %v1773 = vunpack.c.l.b16 %v234
    %v1774 = vunpack.c.h.b16 %v234
    %v1775 = vunpack.c.l.b16 %v235
    %v1776 = vunpack.c.h.b16 %v235
    %v1777 = vunpack.c.l.b16 %v236
    %v1778 = vunpack.c.h.b16 %v236
    %v1779 = vunpack.c.l.b16 %v237
    %v1780 = vunpack.c.h.b16 %v237
    %v1781 = vunpack.c.l.b16 %v238
    %v1782 = vunpack.c.h.b16 %v238
    %v1783 = vunpack.c.l.b16 %v239
    %v1784 = vunpack.c.h.b16 %v239
    %v1785 = vunpack.c.l.b16 %v240
    %v1786 = vunpack.c.h.b16 %v240
    %v1787 = vunpack.c.l.b16 %v241
    %v1788 = vunpack.c.h.b16 %v241
    %v1789 = vunpack.c.l.b16 %v242
    %v1790 = vunpack.c.h.b16 %v242
    %v1791 = vunpack.c.l.b16 %v243
    %v1792 = vunpack.c.h.b16 %v243
    %v1793 = vunpack.c.l.b16 %v244
    %v1794 = vunpack.c.h.b16 %v244
    %v1795 = vunpack.c.l.b16 %v245
    %v1796 = vunpack.c.h.b16 %v245
    %v1797 = vunpack.c.l.b16 %v246
    %v1798 = vunpack.c.h.b16 %v246
    %v1799 = vunpack.c.l.b16 %v247
    %v1800 = vunpack.c.h.b16 %v247
    %v1801 = vunpack.c.l.b16 %v248
    %v1802 = vunpack.c.h.b16 %v248
    %v1803 = vunpack.c.l.b16 %v249
    %v1804 = vunpack.c.h.b16 %v249
    %v1805 = vunpack.c.l.b16 %v250
    %v1806 = vunpack.c.h.b16 %v250
    %v1807 = vunpack.c.l.b16 %v251
    %v1808 = vunpack.c.h.b16 %v251
    %v1809 = vunpack.c.l.b16 %v252
    %v1810 = vunpack.c.h.b16 %v252
    %v1811 = vunpack.c.l.b16 %v253
    %v1812 = vunpack.c.h.b16 %v253
    %v1813 = vunpack.c.l.b16 %v254
    %v1814 = vunpack.c.h.b16 %v254
    %v1815 = vunpack.c.l.b16 %v255
    %v1816 = vunpack.c.h.b16 %v255
    %v1817 = vunpack.c.l.b16 %v256
    %v1818 = vunpack.c.h.b16 %v256
    %v1819 = vunpack.c.l.b16 %v257
    %v1820 = vunpack.c.h.b16 %v257
    %v1821 = vunpack.c.l.b16 %v258
    %v1822 = vunpack.c.h.b16 %v258
    %v1823 = vunpack.c.l.b16 %v259
    %v1824 = vunpack.c.h.b16 %v259
    %v1825 = vunpack.c.l.b16 %v260
    %v1826 = vunpack.c.h.b16 %v260
    %v1827 = vunpack.c.l.b16 %v261
    %v1828 = vunpack.c.h.b16 %v261
    %v1829 = vunpack.c.l.b16 %v262
    %v1830 = vunpack.c.h.b16 %v262
    %v1831 = vunpack.c.l.b16 %v263
    %v1832 = vunpack.c.h.b16 %v263
    %v1833 = vunpack.c.l.b16 %v264
    %v1834 = vunpack.c.h.b16 %v264
    %v1835 = vunpack.c.l.b16 %v265
    %v1836 = vunpack.c.h.b16 %v265
    %v1837 = vunpack.c.l.b16 %v266
    %v1838 = vunpack.c.h.b16 %v266
    %v1839 = vunpack.c.l.b16 %v267
    %v1840 = vunpack.c.h.b16 %v267
    %v1841 = vunpack.c.l.b16 %v268
    %v1842 = vunpack.c.h.b16 %v268
    %v1843 = vunpack.c.l.b16 %v269
    %v1844 = vunpack.c.h.b16 %v269
    %v1845 = vunpack.c.l.b16 %v270
    %v1846 = vunpack.c.h.b16 %v270
    %v1847 = vunpack.c.l.b16 %v271
    %v1848 = vunpack.c.h.b16 %v271
    %v1849 = vunpack.c.l.b16 %v272
    %v1850 = vunpack.c.h.b16 %v272
    %v1851 = vunpack.c.l.b16 %v273
    %v1852 = vunpack.c.h.b16 %v273
    %v1853 = vunpack.c.l.b16 %v274
    %v1854 = vunpack.c.h.b16 %v274
    %v1855 = vunpack.c.l.b16 %v275
    %v1856 = vunpack.c.h.b16 %v275
    %v1857 = vunpack.c.l.b16 %v276
    %v1858 = vunpack.c.h.b16 %v276
    %v1859 = vunpack.c.l.b16 %v277
    %v1860 = vunpack.c.h.b16 %v277
    %v1861 = vunpack.c.l.b16 %v278
    %v1862 = vunpack.c.h.b16 %v278
    %v1863 = vunpack.c.l.b16 %v279
    %v1864 = vunpack.c.h.b16 %v279
    %v1865 = vunpack.c.l.b16 %v280
    %v1866 = vunpack.c.h.b16 %v280
    %v1867 = vunpack.c.l.b16 %v281
    %v1868 = vunpack.c.h.b16 %v281
    %v1869 = vunpack.c.l.b16 %v282
    %v1870 = vunpack.c.h.b16 %v282
    %v1871 = vunpack.c.l.b16 %v283
    %v1872 = vunpack.c.h.b16 %v283
    %v1873 = vunpack.c.l.b16 %v284
    %v1874 = vunpack.c.h.b16 %v284
    %v1875 = vunpack.c.l.b16 %v285
    %v1876 = vunpack.c.h.b16 %v285
    %v1877 = vunpack.c.l.b16 %v286
    %v1878 = vunpack.c.h.b16 %v286
    %v1879 = vunpack.c.l.b16 %v287
    %v1880 = vunpack.c.h.b16 %v287
    %v1881 = vunpack.c.l.b16 %v288
    %v1882 = vunpack.c.h.b16 %v288
    %v1883 = vunpack.c.l.b16 %v289
    %v1884 = vunpack.c.h.b16 %v289
    %v1885 = vunpack.c.l.b16 %v290
    %v1886 = vunpack.c.h.b16 %v290
    %v1887 = vunpack.c.l.b16 %v291
    %v1888 = vunpack.c.h.b16 %v291
    %v1889 = vunpack.c.l.b16 %v292
    %v1890 = vunpack.c.h.b16 %v292
    %v1891 = vunpack.c.l.b16 %v293
    %v1892 = vunpack.c.h.b16 %v293
    %v1893 = vunpack.c.l.b16 %v294
    %v1894 = vunpack.c.h.b16 %v294
    %v1895 = vunpack.c.l.b16 %v295
    %v1896 = vunpack.c.h.b16 %v295
    %v1897 = vunpack.c.l.b16 %v296
    %v1898 = vunpack.c.h.b16 %v296
    %v1899 = vunpack.c.l.b16 %v297
    %v1900 = vunpack.c.h.b16 %v297
    %v1901 = vunpack.c.l.b16 %v298
    %v1902 = vunpack.c.h.b16 %v298
    %v1903 = vunpack.c.l.b16 %v299
    %v1904 = vunpack.c.h.b16 %v299
    %v1905 = vunpack.c.l.b16 %v300
    %v1906 = vunpack.c.h.b16 %v300
    %v1907 = vunpack.c.l.b16 %v301
    %v1908 = vunpack.c.h.b16 %v301
    %v1909 = vunpack.c.l.b16 %v302
    %v1910 = vunpack.c.h.b16 %v302
    %v1911 = vunpack.c.l.b16 %v303
    %v1912 = vunpack.c.h.b16 %v303
    %v1913 = vunpack.c.l.b16 %v304
    %v1914 = vunpack.c.h.b16 %v304
    %v1915 = vunpack.c.l.b16 %v305
    %v1916 = vunpack.c.h.b16 %v305
    %v1917 = vunpack.c.l.b16 %v306
    %v1918 = vunpack.c.h.b16 %v306
    %v1919 = vunpack.c.l.b16 %v307
    %v1920 = vunpack.c.h.b16 %v307
    %v1921 = vunpack.c.l.b16 %v308
    %v1922 = vunpack.c.h.b16 %v308
    %v1923 = vunpack.c.l.b16 %v309
    %v1924 = vunpack.c.h.b16 %v309
    %v1925 = vunpack.c.l.b16 %v310
    %v1926 = vunpack.c.h.b16 %v310
    %v1927 = vunpack.c.l.b16 %v311
    %v1928 = vunpack.c.h.b16 %v311
    %v1929 = vunpack.c.l.b16 %v312
    %v1930 = vunpack.c.h.b16 %v312
    %v1931 = vunpack.c.l.b16 %v313
    %v1932 = vunpack.c.h.b16 %v313
    %v1933 = vunpack.c.l.b16 %v314
    %v1934 = vunpack.c.h.b16 %v314
    %v1935 = vunpack.c.l.b16 %v315
    %v1936 = vunpack.c.h.b16 %v315
    %v1937 = vunpack.c.l.b16 %v316
    %v1938 = vunpack.c.h.b16 %v316
    %v1939 = vunpack.c.l.b16 %v317
    %v1940 = vunpack.c.h.b16 %v317
    %v1941 = vunpack.c.l.b16 %v318
    %v1942 = vunpack.c.h.b16 %v318
    %v1943 = vunpack.c.l.b16 %v319
    %v1944 = vunpack.c.h.b16 %v319
    %v1945 = vunpack.c.l.b16 %v320
    %v1946 = vunpack.c.h.b16 %v320
    %v1947 = vunpack.c.l.b16 %v321
    %v1948 = vunpack.c.h.b16 %v321
    %v1949 = vunpack.c.l.b16 %v322
    %v1950 = vunpack.c.h.b16 %v322
    %v1951 = vunpack.c.l.b16 %v323
    %v1952 = vunpack.c.h.b16 %v323
    %v1953 = vunpack.c.l.b16 %v324
    %v1954 = vunpack.c.h.b16 %v324
    %v1955 = vunpack.c.l.b16 %v325
    %v1956 = vunpack.c.h.b16 %v325
    %v1957 = vunpack.c.l.b16 %v326
    %v1958 = vunpack.c.h.b16 %v326
    %v1959 = vunpack.c.l.b16 %v327
    %v1960 = vunpack.c.h.b16 %v327
    %v1961 = vunpack.c.l.b16 %v328
    %v1962 = vunpack.c.h.b16 %v328
    %v1963 = vunpack.c.l.b16 %v329
    %v1964 = vunpack.c.h.b16 %v329
    %v1965 = vunpack.c.l.b16 %v330
    %v1966 = vunpack.c.h.b16 %v330
    %v1967 = vunpack.c.l.b16 %v331
    %v1968 = vunpack.c.h.b16 %v331
    %v1969 = vunpack.c.l.b16 %v332
    %v1970 = vunpack.c.h.b16 %v332
    %v1971 = vunpack.c.l.b16 %v333
    %v1972 = vunpack.c.h.b16 %v333
    %v1973 = vunpack.c.l.b16 %v334
    %v1974 = vunpack.c.h.b16 %v334
    %v1975 = vunpack.c.l.b16 %v335
    %v1976 = vunpack.c.h.b16 %v335
    %v1977 = vunpack.c.l.b16 %v336
    %v1978 = vunpack.c.h.b16 %v336
    %v1979 = vunpack.c.l.b16 %v337
    %v1980 = vunpack.c.h.b16 %v337
    %v1981 = vunpack.c.l.b16 %v338
    %v1982 = vunpack.c.h.b16 %v338
    %v1983 = vunpack.c.l.b16 %v339
    %v1984 = vunpack.c.h.b16 %v339
    %v1985 = vunpack.c.l.b16 %v340
    %v1986 = vunpack.c.h.b16 %v340
    %v1987 = vunpack.c.l.b16 %v341
    %v1988 = vunpack.c.h.b16 %v341
    %v1989 = vunpack.c.l.b16 %v342
    %v1990 = vunpack.c.h.b16 %v342
    %v1991 = vunpack.c.l.b16 %v343
    %v1992 = vunpack.c.h.b16 %v343
    %v1993 = vunpack.c.l.b16 %v344
    %v1994 = vunpack.c.h.b16 %v344
    %v1995 = vunpack.c.l.b16 %v345
    %v1996 = vunpack.c.h.b16 %v345
    %v1997 = vunpack.c.l.b16 %v346
    %v1998 = vunpack.c.h.b16 %v346
    %v1999 = vunpack.c.l.b16 %v347
    %v2000 = vunpack.c.h.b16 %v347
    %v2001 = vunpack.c.l.b16 %v348
    %v2002 = vunpack.c.h.b16 %v348
    %v2003 = vunpack.c.l.b16 %v349
    %v2004 = vunpack.c.h.b16 %v349
    %v2005 = vunpack.c.l.b16 %v350
    %v2006 = vunpack.c.h.b16 %v350
    %v2007 = vunpack.c.l.b16 %v351
    %v2008 = vunpack.c.h.b16 %v351
    %v2009 = vunpack.c.l.b16 %v352
    %v2010 = vunpack.c.h.b16 %v352
    %v2011 = vunpack.c.l.b16 %v353
    %v2012 = vunpack.c.h.b16 %v353
    %v2013 = vunpack.c.l.b16 %v354
    %v2014 = vunpack.c.h.b16 %v354
    %v2015 = vunpack.c.l.b16 %v355
    %v2016 = vunpack.c.h.b16 %v355
    %v2017 = vunpack.c.l.b16 %v356
    %v2018 = vunpack.c.h.b16 %v356
    %v2019 = vunpack.c.l.b16 %v357
    %v2020 = vunpack.c.h.b16 %v357
    %v2021 = vunpack.c.l.b16 %v358
    %v2022 = vunpack.c.h.b16 %v358
    %v2023 = vunpack.c.l.b16 %v359
    %v2024 = vunpack.c.h.b16 %v359
    %v2025 = vunpack.c.l.b16 %v360
    %v2026 = vunpack.c.h.b16 %v360
    %v2027 = vunpack.c.l.b16 %v361
    %v2028 = vunpack.c.h.b16 %v361
    %v2029 = vunpack.c.l.b16 %v362
    %v2030 = vunpack.c.h.b16 %v362
    %v2031 = vunpack.c.l.b16 %v363
    %v2032 = vunpack.c.h.b16 %v363
    %v2033 = vunpack.c.l.b16 %v364
    %v2034 = vunpack.c.h.b16 %v364
    %v2035 = vunpack.c.l.b16 %v365
    %v2036 = vunpack.c.h.b16 %v365
    %v2037 = vunpack.c.l.b16 %v366
    %v2038 = vunpack.c.h.b16 %v366
    %v2039 = vunpack.c.l.b16 %v367
    %v2040 = vunpack.c.h.b16 %v367
    %v2041 = vunpack.c.l.b16 %v368
    %v2042 = vunpack.c.h.b16 %v368
    %v2043 = vunpack.c.l.b16 %v369
    %v2044 = vunpack.c.h.b16 %v369
    %v2045 = vunpack.c.l.b16 %v370
    %v2046 = vunpack.c.h.b16 %v370
    %v2047 = vunpack.c.l.b16 %v371
    %v2048 = vunpack.c.h.b16 %v371
    %v2049 = vunpack.c.l.b16 %v372
    %v2050 = vunpack.c.h.b16 %v372
    %v2051 = vunpack.c.l.b16 %v373
    %v2052 = vunpack.c.h.b16 %v373
    %v2053 = vunpack.c.l.b16 %v374
    %v2054 = vunpack.c.h.b16 %v374
    %v2055 = vunpack.c.l.b16 %v375
    %v2056 = vunpack.c.h.b16 %v375
    %v2057 = vunpack.c.l.b16 %v376
    %v2058 = vunpack.c.h.b16 %v376
    %v2059 = vunpack.c.l.b16 %v377
    %v2060 = vunpack.c.h.b16 %v377
    %v2061 = vunpack.c.l.b16 %v378
    %v2062 = vunpack.c.h.b16 %v378
    %v2063 = vunpack.c.l.b16 %v379
    %v2064 = vunpack.c.h.b16 %v379
    %v2065 = vunpack.c.l.b16 %v380
    %v2066 = vunpack.c.h.b16 %v380
    %v2067 = vunpack.c.l.b16 %v381
    %v2068 = vunpack.c.h.b16 %v381
    %v2069 = vunpack.c.l.b16 %v382
    %v2070 = vunpack.c.h.b16 %v382
    %v2071 = vunpack.c.l.b16 %v383
    %v2072 = vunpack.c.h.b16 %v383
    %v2073 = vunpack.c.l.b16 %v384
    %v2074 = vunpack.c.h.b16 %v384
    %v2075 = vunpack.c.l.b16 %v385
    %v2076 = vunpack.c.h.b16 %v385
    %v2077 = vunpack.c.l.b16 %v386
    %v2078 = vunpack.c.h.b16 %v386
    %v2079 = vunpack.c.l.b16 %v387
    %v2080 = vunpack.c.h.b16 %v387
    %v2081 = vunpack.c.l.b16 %v388
    %v2082 = vunpack.c.h.b16 %v388
    %v2083 = vunpack.c.l.b16 %v389
    %v2084 = vunpack.c.h.b16 %v389
    %v2085 = vunpack.c.l.b16 %v390
    %v2086 = vunpack.c.h.b16 %v390
    %v2087 = vunpack.c.l.b16 %v391
    %v2088 = vunpack.c.h.b16 %v391
    %v2089 = vunpack.c.l.b16 %v392
    %v2090 = vunpack.c.h.b16 %v392
    %v2091 = vunpack.c.l.b16 %v393
    %v2092 = vunpack.c.h.b16 %v393
    %v2093 = vunpack.c.l.b16 %v394
    %v2094 = vunpack.c.h.b16 %v394
    %v2095 = vunpack.c.l.b16 %v395
    %v2096 = vunpack.c.h.b16 %v395
    %v2097 = vunpack.c.l.b16 %v396
    %v2098 = vunpack.c.h.b16 %v396
    %v2099 = vunpack.c.l.b16 %v397
    %v2100 = vunpack.c.h.b16 %v397
    %v2101 = vunpack.c.l.b16 %v398
    %v2102 = vunpack.c.h.b16 %v398
    %v2103 = vunpack.c.l.b16 %v399
    %v2104 = vunpack.c.h.b16 %v399
    %v2105 = vunpack.c.l.b16 %v400
    %v2106 = vunpack.c.h.b16 %v400
    %v2107 = vunpack.c.l.b16 %v401
    %v2108 = vunpack.c.h.b16 %v401
    %v2109 = vunpack.c.l.b16 %v402
    %v2110 = vunpack.c.h.b16 %v402
    %v2111 = vunpack.c.l.b16 %v403
    %v2112 = vunpack.c.h.b16 %v403
    %v2113 = vunpack.c.l.b16 %v404
    %v2114 = vunpack.c.h.b16 %v404
    %v2115 = vunpack.c.l.b16 %v405
    %v2116 = vunpack.c.h.b16 %v405
    %v2117 = vunpack.c.l.b16 %v406
    %v2118 = vunpack.c.h.b16 %v406
    %v2119 = vunpack.c.l.b16 %v407
    %v2120 = vunpack.c.h.b16 %v407
    %v2121 = vunpack.c.l.b16 %v408
    %v2122 = vunpack.c.h.b16 %v408
    %v2123 = vunpack.c.l.b16 %v409
    %v2124 = vunpack.c.h.b16 %v409
    %v2125 = vunpack.c.l.b16 %v410
    %v2126 = vunpack.c.h.b16 %v410
    %v2127 = vunpack.c.l.b16 %v411
    %v2128 = vunpack.c.h.b16 %v411
    %v2129 = vunpack.c.l.b16 %v412
    %v2130 = vunpack.c.h.b16 %v412
    %v2131 = vunpack.c.l.b16 %v413
    %v2132 = vunpack.c.h.b16 %v413
    %v2133 = vunpack.c.l.b16 %v414
    %v2134 = vunpack.c.h.b16 %v414
    %v2135 = vunpack.c.l.b16 %v415
    %v2136 = vunpack.c.h.b16 %v415
    %v2137 = vunpack.c.l.b16 %v416
    %v2138 = vunpack.c.h.b16 %v416
    %v2139 = vunpack.c.l.b16 %v417
    %v2140 = vunpack.c.h.b16 %v417
    %v2141 = vunpack.c.l.b16 %v418
    %v2142 = vunpack.c.h.b16 %v418
    %v2143 = vunpack.c.l.b16 %v419
    %v2144 = vunpack.c.h.b16 %v419
    %v2145 = vunpack.c.l.b16 %v420
    %v2146 = vunpack.c.h.b16 %v420
    %v2147 = vunpack.c.l.b16 %v421
    %v2148 = vunpack.c.h.b16 %v421
    %v2149 = vunpack.c.l.b16 %v422
    %v2150 = vunpack.c.h.b16 %v422
    %v2151 = vunpack.c.l.b16 %v423
    %v2152 = vunpack.c.h.b16 %v423
    %v2153 = vunpack.c.l.b16 %v424
    %v2154 = vunpack.c.h.b16 %v424
    %v2155 = vunpack.c.l.b16 %v425
    %v2156 = vunpack.c.h.b16 %v425
    %v2157 = vunpack.c.l.b16 %v426
    %v2158 = vunpack.c.h.b16 %v426
    %v2159 = vunpack.c.l.b16 %v427
    %v2160 = vunpack.c.h.b16 %v427
    %v2161 = vunpack.c.l.b16 %v428
    %v2162 = vunpack.c.h.b16 %v428
    %v2163 = vunpack.c.l.b16 %v429
    %v2164 = vunpack.c.h.b16 %v429
    %v2165 = vunpack.c.l.b16 %v430
    %v2166 = vunpack.c.h.b16 %v430
    %v2167 = vunpack.c.l.b16 %v431
    %v2168 = vunpack.c.h.b16 %v431
    %v2169 = vunpack.c.l.b16 %v432
    %v2170 = vunpack.c.h.b16 %v432
    %v2171 = vunpack.c.l.b16 %v433
    %v2172 = vunpack.c.h.b16 %v433
    %v2173 = vunpack.c.l.b16 %v434
    %v2174 = vunpack.c.h.b16 %v434
    %v2175 = vunpack.c.l.b16 %v435
    %v2176 = vunpack.c.h.b16 %v435
    %v2177 = vunpack.c.l.b16 %v436
    %v2178 = vunpack.c.h.b16 %v436
    %v2179 = vunpack.c.l.b16 %v437
    %v2180 = vunpack.c.h.b16 %v437
    %v2181 = vunpack.c.l.b16 %v438
    %v2182 = vunpack.c.h.b16 %v438
    %v2183 = vunpack.c.l.b16 %v439
    %v2184 = vunpack.c.h.b16 %v439
    %v2185 = vunpack.c.l.b16 %v440
    %v2186 = vunpack.c.h.b16 %v440
    %v2187 = vunpack.c.l.b16 %v441
    %v2188 = vunpack.c.h.b16 %v441
    %v2189 = vunpack.c.l.b16 %v442
    %v2190 = vunpack.c.h.b16 %v442
    %v2191 = vunpack.c.l.b16 %v443
    %v2192 = vunpack.c.h.b16 %v443
    %v2193 = vunpack.c.l.b16 %v444
    %v2194 = vunpack.c.h.b16 %v444
    %v2195 = vunpack.c.l.b16 %v445
    %v2196 = vunpack.c.h.b16 %v445
    %v2197 = vunpack.c.l.b16 %v446
    %v2198 = vunpack.c.h.b16 %v446
    %v2199 = vunpack.c.l.b16 %v447
    %v2200 = vunpack.c.h.b16 %v447
    %v2201 = vunpack.c.l.b16 %v448
    %v2202 = vunpack.c.h.b16 %v448
    %v2203 = vunpack.c.l.b16 %v449
    %v2204 = vunpack.c.h.b16 %v449
    %v2205 = vunpack.c.l.b16 %v450
    %v2206 = vunpack.c.h.b16 %v450
    %v2207 = vunpack.c.l.b16 %v451
    %v2208 = vunpack.c.h.b16 %v451
    %v2209 = vunpack.c.l.b16 %v452
    %v2210 = vunpack.c.h.b16 %v452
    %v2211 = vunpack.c.l.b16 %v453
    %v2212 = vunpack.c.h.b16 %v453
    %v2213 = vunpack.c.l.b16 %v454
    %v2214 = vunpack.c.h.b16 %v454
    %v2215 = vunpack.c.l.b16 %v455
    %v2216 = vunpack.c.h.b16 %v455
    %v2217 = vunpack.c.l.b16 %v456
    %v2218 = vunpack.c.h.b16 %v456
    %v2219 = vunpack.c.l.b16 %v457
    %v2220 = vunpack.c.h.b16 %v457
    %v2221 = vunpack.c.l.b16 %v458
    %v2222 = vunpack.c.h.b16 %v458
    %v2223 = vunpack.c.l.b16 %v459
    %v2224 = vunpack.c.h.b16 %v459
    %v2225 = vunpack.c.l.b16 %v460
    %v2226 = vunpack.c.h.b16 %v460
    %v2227 = vunpack.c.l.b16 %v461
    %v2228 = vunpack.c.h.b16 %v461
    %v2229 = vunpack.c.l.b16 %v462
    %v2230 = vunpack.c.h.b16 %v462
    %v2231 = vunpack.c.l.b16 %v463
    %v2232 = vunpack.c.h.b16 %v463
    %v2233 = vunpack.c.l.b16 %v464
    %v2234 = vunpack.c.h.b16 %v464
    %v2235 = vunpack.c.l.b16 %v465
    %v2236 = vunpack.c.h.b16 %v465
    %v2237 = vunpack.c.l.b16 %v466
    %v2238 = vunpack.c.h.b16 %v466
    %v2239 = vunpack.c.l.b16 %v467
    %v2240 = vunpack.c.h.b16 %v467
    %v2241 = vunpack.c.l.b16 %v468
    %v2242 = vunpack.c.h.b16 %v468
    %v2243 = vunpack.c.l.b16 %v469
    %v2244 = vunpack.c.h.b16 %v469
    %v2245 = vunpack.c.l.b16 %v470
    %v2246 = vunpack.c.h.b16 %v470
    %v2247 = vunpack.c.l.b16 %v471
    %v2248 = vunpack.c.h.b16 %v471
    %v2249 = vunpack.c.l.b16 %v472
    %v2250 = vunpack.c.h.b16 %v472
    %v2251 = vunpack.c.l.b16 %v473
    %v2252 = vunpack.c.h.b16 %v473
    %v2253 = vunpack.c.l.b16 %v474
    %v2254 = vunpack.c.h.b16 %v474
    %v2255 = vunpack.c.l.b16 %v475
    %v2256 = vunpack.c.h.b16 %v475
    %v2257 = vunpack.c.l.b16 %v476
    %v2258 = vunpack.c.h.b16 %v476
    %v2259 = vunpack.c.l.b16 %v477
    %v2260 = vunpack.c.h.b16 %v477
    %v2261 = vunpack.c.l.b16 %v478
    %v2262 = vunpack.c.h.b16 %v478
    %v2263 = vunpack.c.l.b16 %v479
    %v2264 = vunpack.c.h.b16 %v479
    %v2265 = vunpack.c.l.b16 %v480
    %v2266 = vunpack.c.h.b16 %v480
    %v2267 = vunpack.c.l.b16 %v481
    %v2268 = vunpack.c.h.b16 %v481
    %v2269 = vunpack.c.l.b16 %v482
    %v2270 = vunpack.c.h.b16 %v482
    %v2271 = vunpack.c.l.b16 %v483
    %v2272 = vunpack.c.h.b16 %v483
    %v2273 = vunpack.c.l.b16 %v484
    %v2274 = vunpack.c.h.b16 %v484
    %v2275 = vunpack.c.l.b16 %v485
    %v2276 = vunpack.c.h.b16 %v485
    %v2277 = vunpack.c.l.b16 %v486
    %v2278 = vunpack.c.h.b16 %v486
    %v2279 = vunpack.c.l.b16 %v487
    %v2280 = vunpack.c.h.b16 %v487
    %v2281 = vunpack.c.l.b16 %v488
    %v2282 = vunpack.c.h.b16 %v488
    %v2283 = vunpack.c.l.b16 %v489
    %v2284 = vunpack.c.h.b16 %v489
    %v2285 = vunpack.c.l.b16 %v490
    %v2286 = vunpack.c.h.b16 %v490
    %v2287 = vunpack.c.l.b16 %v491
    %v2288 = vunpack.c.h.b16 %v491
    %v2289 = vunpack.c.l.b16 %v492
    %v2290 = vunpack.c.h.b16 %v492
    %v2291 = vunpack.c.l.b16 %v493
    %v2292 = vunpack.c.h.b16 %v493
    %v2293 = vunpack.c.l.b16 %v494
    %v2294 = vunpack.c.h.b16 %v494
    %v2295 = vunpack.c.l.b16 %v495
    %v2296 = vunpack.c.h.b16 %v495
    %v2297 = vunpack.c.l.b16 %v496
    %v2298 = vunpack.c.h.b16 %v496
    %v2299 = vunpack.c.l.b16 %v497
    %v2300 = vunpack.c.h.b16 %v497
    %v2301 = vunpack.c.l.b16 %v498
    %v2302 = vunpack.c.h.b16 %v498
    %v2303 = vunpack.c.l.b16 %v499
    %v2304 = vunpack.c.h.b16 %v499
    %v2305 = vunpack.c.l.b16 %v500
    %v2306 = vunpack.c.h.b16 %v500
    %v2307 = vunpack.c.l.b16 %v501
    %v2308 = vunpack.c.h.b16 %v501
    %v2309 = vunpack.c.l.b16 %v502
    %v2310 = vunpack.c.h.b16 %v502
    %v2311 = vunpack.c.l.b16 %v503
    %v2312 = vunpack.c.h.b16 %v503
    %v2313 = vunpack.c.l.b16 %v504
    %v2314 = vunpack.c.h.b16 %v504
    %v2315 = vunpack.c.l.b16 %v505
    %v2316 = vunpack.c.h.b16 %v505
    %v2317 = vunpack.c.l.b16 %v506
    %v2318 = vunpack.c.h.b16 %v506
    %v2319 = vunpack.c.l.b16 %v507
    %v2320 = vunpack.c.h.b16 %v507
    %v2321 = vunpack.c.l.b16 %v508
    %v2322 = vunpack.c.h.b16 %v508
    %v2323 = vunpack.c.l.b16 %v509
    %v2324 = vunpack.c.h.b16 %v509
    %v2325 = vunpack.c.l.b16 %v510
    %v2326 = vunpack.c.h.b16 %v510
    %v2327 = vunpack.c.l.b16 %v511
    %v2328 = vunpack.c.h.b16 %v511
    %v2329 = vunpack.c.l.b16 %v512
    %v2330 = vunpack.c.h.b16 %v512
    %v2331 = vunpack.c.l.b16 %v513
    %v2332 = vunpack.c.h.b16 %v513
    %v2333 = vunpack.c.l.b16 %v514
    %v2334 = vunpack.c.h.b16 %v514
    %v2335 = vunpack.c.l.b16 %v515
    %v2336 = vunpack.c.h.b16 %v515
    %v2337 = vunpack.c.l.b16 %v516
    %v2338 = vunpack.c.h.b16 %v516
    %v2339 = vunpack.c.l.b16 %v517
    %v2340 = vunpack.c.h.b16 %v517
    %v2341 = vunpack.c.l.b16 %v518
    %v2342 = vunpack.c.h.b16 %v518
    %v2343 = vunpack.c.l.b16 %v519
    %v2344 = vunpack.c.h.b16 %v519
    %v2345 = vunpack.c.l.b16 %v520
    %v2346 = vunpack.c.h.b16 %v520
    %v2347 = vunpack.c.l.b16 %v521
    %v2348 = vunpack.c.h.b16 %v521
    %v2349 = vunpack.c.l.b16 %v522
    %v2350 = vunpack.c.h.b16 %v522
    %v2351 = vunpack.c.l.b16 %v523
    %v2352 = vunpack.c.h.b16 %v523
    %v2353 = vunpack.c.l.b16 %v524
    %v2354 = vunpack.c.h.b16 %v524
    %v2355 = vunpack.c.l.b16 %v525
    %v2356 = vunpack.c.h.b16 %v525
    %v2357 = vunpack.c.l.b16 %v526
    %v2358 = vunpack.c.h.b16 %v526
    %v2359 = vunpack.c.l.b16 %v527
    %v2360 = vunpack.c.h.b16 %v527
    %v2361 = vunpack.c.l.b16 %v528
    %v2362 = vunpack.c.h.b16 %v528
    %v2363 = vunpack.c.l.b16 %v529
    %v2364 = vunpack.c.h.b16 %v529
    %v2365 = vunpack.c.l.b16 %v530
    %v2366 = vunpack.c.h.b16 %v530
    %v2367 = vunpack.c.l.b16 %v531
    %v2368 = vunpack.c.h.b16 %v531
    %v2369 = vunpack.c.l.b16 %v532
    %v2370 = vunpack.c.h.b16 %v532
    %v2371 = vunpack.c.l.b16 %v533
    %v2372 = vunpack.c.h.b16 %v533
    %v2373 = vunpack.c.l.b16 %v534
    %v2374 = vunpack.c.h.b16 %v534
    %v2375 = vunpack.c.l.b16 %v535
    %v2376 = vunpack.c.h.b16 %v535
    %v2377 = vunpack.c.l.b16 %v536
    %v2378 = vunpack.c.h.b16 %v536
    %v2379 = vunpack.c.l.b16 %v537
    %v2380 = vunpack.c.h.b16 %v537
    %v2381 = vunpack.c.l.b16 %v538
    %v2382 = vunpack.c.h.b16 %v538
    %v2383 = vunpack.c.l.b16 %v539
    %v2384 = vunpack.c.h.b16 %v539
    %v2385 = vunpack.c.l.b16 %v540
    %v2386 = vunpack.c.h.b16 %v540
    %v2387 = vunpack.c.l.b16 %v541
    %v2388 = vunpack.c.h.b16 %v541
    %v2389 = vunpack.c.l.b16 %v542
    %v2390 = vunpack.c.h.b16 %v542
    %v2391 = vunpack.c.l.b16 %v543
    %v2392 = vunpack.c.h.b16 %v543
    %v2393 = vunpack.c.l.b16 %v544
    %v2394 = vunpack.c.h.b16 %v544
    %v2395 = vunpack.c.l.b16 %v545
    %v2396 = vunpack.c.h.b16 %v545
    %v2397 = vunpack.c.l.b16 %v546
    %v2398 = vunpack.c.h.b16 %v546
    %v2399 = vunpack.c.l.b16 %v547
    %v2400 = vunpack.c.h.b16 %v547
    %v2401 = vunpack.c.l.b16 %v548
    %v2402 = vunpack.c.h.b16 %v548
    %v2403 = vunpack.c.l.b16 %v549
    %v2404 = vunpack.c.h.b16 %v549
    %v2405 = vunpack.c.l.b16 %v550
    %v2406 = vunpack.c.h.b16 %v550
    %v2407 = vunpack.c.l.b16 %v551
    %v2408 = vunpack.c.h.b16 %v551
    %v2409 = vunpack.c.l.b16 %v552
    %v2410 = vunpack.c.h.b16 %v552
    %v2411 = vunpack.c.l.b16 %v553
    %v2412 = vunpack.c.h.b16 %v553
    %v2413 = vunpack.c.l.b16 %v554
    %v2414 = vunpack.c.h.b16 %v554
    %v2415 = vunpack.c.l.b16 %v555
    %v2416 = vunpack.c.h.b16 %v555
    %v2417 = vunpack.c.l.b16 %v556
    %v2418 = vunpack.c.h.b16 %v556
    %v2419 = vunpack.c.l.b16 %v557
    %v2420 = vunpack.c.h.b16 %v557
    %v2421 = vunpack.c.l.b16 %v558
    %v2422 = vunpack.c.h.b16 %v558
    %v2423 = vunpack.c.l.b16 %v559
    %v2424 = vunpack.c.h.b16 %v559
    %v2425 = vunpack.c.l.b16 %v560
    %v2426 = vunpack.c.h.b16 %v560
    %v2427 = vunpack.c.l.b16 %v561
    %v2428 = vunpack.c.h.b16 %v561
    %v2429 = vunpack.c.l.b16 %v562
    %v2430 = vunpack.c.h.b16 %v562
    %v2431 = vunpack.c.l.b16 %v563
    %v2432 = vunpack.c.h.b16 %v563
    %v2433 = vunpack.c.l.b16 %v564
    %v2434 = vunpack.c.h.b16 %v564
    %v2435 = vunpack.c.l.b16 %v565
    %v2436 = vunpack.c.h.b16 %v565
    %v2437 = vunpack.c.l.b16 %v566
    %v2438 = vunpack.c.h.b16 %v566
    %v2439 = vunpack.c.l.b16 %v567
    %v2440 = vunpack.c.h.b16 %v567
    %v2441 = vunpack.c.l.b16 %v568
    %v2442 = vunpack.c.h.b16 %v568
    %v2443 = vunpack.c.l.b16 %v569
    %v2444 = vunpack.c.h.b16 %v569
    %v2445 = vunpack.c.l.b16 %v570
    %v2446 = vunpack.c.h.b16 %v570
    %v2447 = vunpack.c.l.b16 %v571
    %v2448 = vunpack.c.h.b16 %v571
    %v2449 = vunpack.c.l.b16 %v572
    %v2450 = vunpack.c.h.b16 %v572
    %v2451 = vunpack.c.l.b16 %v573
    %v2452 = vunpack.c.h.b16 %v573
    %v2453 = vunpack.c.l.b16 %v574
    %v2454 = vunpack.c.h.b16 %v574
    %v2455 = vunpack.c.l.b16 %v575
    %v2456 = vunpack.c.h.b16 %v575
    %v2457 = vunpack.c.l.b16 %v576
    %v2458 = vunpack.c.h.b16 %v576
    %v2459 = vunpack.c.l.b16 %v577
    %v2460 = vunpack.c.h.b16 %v577
    %v2461 = vunpack.c.l.b16 %v578
    %v2462 = vunpack.c.h.b16 %v578
    %v2463 = vunpack.c.l.b16 %v579
    %v2464 = vunpack.c.h.b16 %v579
    %v2465 = vunpack.c.l.b16 %v580
    %v2466 = vunpack.c.h.b16 %v580
    %v2467 = vunpack.c.l.b16 %v581
    %v2468 = vunpack.c.h.b16 %v581
    %v2469 = vunpack.c.l.b16 %v582
    %v2470 = vunpack.c.h.b16 %v582
    %v2471 = vunpack.c.l.b16 %v583
    %v2472 = vunpack.c.h.b16 %v583
    %v2473 = vunpack.c.l.b16 %v584
    %v2474 = vunpack.c.h.b16 %v584
    %v2475 = vunpack.c.l.b16 %v585
    %v2476 = vunpack.c.h.b16 %v585
    %v2477 = vunpack.c.l.b16 %v586
    %v2478 = vunpack.c.h.b16 %v586
    %v2479 = vunpack.c.l.b16 %v587
    %v2480 = vunpack.c.h.b16 %v587
    %v2481 = vunpack.c.l.b16 %v588
    %v2482 = vunpack.c.h.b16 %v588
    %v2483 = vunpack.c.l.b16 %v589
    %v2484 = vunpack.c.h.b16 %v589
    %v2485 = vunpack.c.l.b16 %v590
    %v2486 = vunpack.c.h.b16 %v590
    %v2487 = vunpack.c.l.b16 %v591
    %v2488 = vunpack.c.h.b16 %v591
    %v2489 = vunpack.c.l.b16 %v592
    %v2490 = vunpack.c.h.b16 %v592
    %v2491 = vunpack.c.l.b16 %v593
    %v2492 = vunpack.c.h.b16 %v593
    %v2493 = vunpack.c.l.b16 %v594
    %v2494 = vunpack.c.h.b16 %v594
    %v2495 = vunpack.c.l.b16 %v595
    %v2496 = vunpack.c.h.b16 %v595
    %v2497 = vunpack.c.l.b16 %v596
    %v2498 = vunpack.c.h.b16 %v596
    %v2499 = vunpack.c.l.b16 %v597
    %v2500 = vunpack.c.h.b16 %v597
    %v2501 = vunpack.c.l.b16 %v598
    %v2502 = vunpack.c.h.b16 %v598
    %v2503 = vunpack.c.l.b16 %v599
    %v2504 = vunpack.c.h.b16 %v599
    %v2505 = vunpack.c.l.b16 %v600
    %v2506 = vunpack.c.h.b16 %v600
    %v2507 = vunpack.c.l.b16 %v601
    %v2508 = vunpack.c.h.b16 %v601
    %v2509 = vunpack.c.l.b16 %v602
    %v2510 = vunpack.c.h.b16 %v602
    %v2511 = vunpack.c.l.b16 %v603
    %v2512 = vunpack.c.h.b16 %v603
    %v2513 = vunpack.c.l.b16 %v604
    %v2514 = vunpack.c.h.b16 %v604
    %v2515 = vunpack.c.l.b16 %v605
    %v2516 = vunpack.c.h.b16 %v605
    %v2517 = vunpack.c.l.b16 %v606
    %v2518 = vunpack.c.h.b16 %v606
    %v2519 = vunpack.c.l.b16 %v607
    %v2520 = vunpack.c.h.b16 %v607
    %v2521 = vunpack.c.l.b16 %v608
    %v2522 = vunpack.c.h.b16 %v608
    %v2523 = vunpack.c.l.b16 %v609
    %v2524 = vunpack.c.h.b16 %v609
    %v2525 = vunpack.c.l.b16 %v610
    %v2526 = vunpack.c.h.b16 %v610
    %v2527 = vunpack.c.l.b16 %v611
    %v2528 = vunpack.c.h.b16 %v611
    %v2529 = vunpack.c.l.b16 %v612
    %v2530 = vunpack.c.h.b16 %v612
    %v2531 = vunpack.c.l.b16 %v613
    %v2532 = vunpack.c.h.b16 %v613
    %v2533 = vunpack.c.l.b16 %v614
    %v2534 = vunpack.c.h.b16 %v614
    %v2535 = vunpack.c.l.b16 %v615
    %v2536 = vunpack.c.h.b16 %v615
    %v2537 = vunpack.c.l.b16 %v616
    %v2538 = vunpack.c.h.b16 %v616
    %v2539 = vunpack.c.l.b16 %v617
    %v2540 = vunpack.c.h.b16 %v617
    %v2541 = vunpack.c.l.b16 %v618
    %v2542 = vunpack.c.h.b16 %v618
    %v2543 = vunpack.c.l.b16 %v619
    %v2544 = vunpack.c.h.b16 %v619
    %v2545 = vunpack.c.l.b16 %v620
    %v2546 = vunpack.c.h.b16 %v620
    %v2547 = vunpack.c.l.b16 %v621
    %v2548 = vunpack.c.h.b16 %v621
    %v2549 = vunpack.c.l.b16 %v622
    %v2550 = vunpack.c.h.b16 %v622
    %v2551 = vunpack.c.l.b16 %v623
    %v2552 = vunpack.c.h.b16 %v623
    %v2553 = vunpack.c.l.b16 %v624
    %v2554 = vunpack.c.h.b16 %v624
    %v2555 = vunpack.c.l.b16 %v625
    %v2556 = vunpack.c.h.b16 %v625
    %v2557 = vunpack.c.l.b16 %v626
    %v2558 = vunpack.c.h.b16 %v626
    %v2559 = vunpack.c.l.b16 %v627
    %v2560 = vunpack.c.h.b16 %v627
    %v2561 = vunpack.c.l.b16 %v628
    %v2562 = vunpack.c.h.b16 %v628
    %v2563 = vunpack.c.l.b16 %v629
    %v2564 = vunpack.c.h.b16 %v629
    %v2565 = vunpack.c.l.b16 %v630
    %v2566 = vunpack.c.h.b16 %v630
    %v2567 = vunpack.c.l.b16 %v631
    %v2568 = vunpack.c.h.b16 %v631
    %v2569 = vunpack.c.l.b16 %v632
    %v2570 = vunpack.c.h.b16 %v632
    %v2571 = vunpack.c.l.b16 %v633
    %v2572 = vunpack.c.h.b16 %v633
    %v2573 = vunpack.c.l.b16 %v634
    %v2574 = vunpack.c.h.b16 %v634
    %v2575 = vunpack.c.l.b16 %v635
    %v2576 = vunpack.c.h.b16 %v635
    %v2577 = vunpack.c.l.b16 %v636
    %v2578 = vunpack.c.h.b16 %v636
    %v2579 = vunpack.c.l.b16 %v637
    %v2580 = vunpack.c.h.b16 %v637
    %v2581 = vunpack.c.l.b16 %v638
    %v2582 = vunpack.c.h.b16 %v638
    %v2583 = vunpack.c.l.b16 %v639
    %v2584 = vunpack.c.h.b16 %v639
    %v2585 = vunpack.c.l.b16 %v640
    %v2586 = vunpack.c.h.b16 %v640
    %v2587 = vunpack.c.l.b16 %v641
    %v2588 = vunpack.c.h.b16 %v641
    %v2589 = vunpack.c.l.b16 %v642
    %v2590 = vunpack.c.h.b16 %v642
    %v2591 = vunpack.c.l.b16 %v643
    %v2592 = vunpack.c.h.b16 %v643
    %v2593 = vunpack.c.l.b16 %v644
    %v2594 = vunpack.c.h.b16 %v644
    %v2595 = vunpack.c.l.b16 %v645
    %v2596 = vunpack.c.h.b16 %v645
    %v2597 = vunpack.c.l.b16 %v646
    %v2598 = vunpack.c.h.b16 %v646
    %v2599 = vunpack.c.l.b16 %v647
    %v2600 = vunpack.c.h.b16 %v647
    %v2601 = vunpack.c.l.b16 %v648
    %v2602 = vunpack.c.h.b16 %v648
    %v2603 = vunpack.c.l.b16 %v649
    %v2604 = vunpack.c.h.b16 %v649
    %v2605 = vunpack.c.l.b16 %v650
    %v2606 = vunpack.c.h.b16 %v650
    %v2607 = vunpack.c.l.b16 %v651
    %v2608 = vunpack.c.h.b16 %v651
    %v2609 = vunpack.c.l.b16 %v652
    %v2610 = vunpack.c.h.b16 %v652
    %v2611 = vunpack.c.l.b16 %v653
    %v2612 = vunpack.c.h.b16 %v653
    %v2613 = vunpack.c.l.b16 %v654
    %v2614 = vunpack.c.h.b16 %v654
    %v2615 = vunpack.c.l.b16 %v655
    %v2616 = vunpack.c.h.b16 %v655
    %v2617 = vunpack.c.l.b16 %v656
    %v2618 = vunpack.c.h.b16 %v656
    %v2619 = vunpack.c.l.b16 %v657
    %v2620 = vunpack.c.h.b16 %v657
    %v2621 = vunpack.c.l.b16 %v658
    %v2622 = vunpack.c.h.b16 %v658
    %v2623 = vunpack.c.l.b16 %v659
    %v2624 = vunpack.c.h.b16 %v659
    %v2625 = vunpack.c.l.b16 %v660
    %v2626 = vunpack.c.h.b16 %v660
    %v2627 = vunpack.c.l.b16 %v661
    %v2628 = vunpack.c.h.b16 %v661
    %v2629 = vunpack.c.l.b16 %v662
    %v2630 = vunpack.c.h.b16 %v662
    %v2631 = vunpack.c.l.b16 %v663
    %v2632 = vunpack.c.h.b16 %v663
    %v2633 = vunpack.c.l.b16 %v664
    %v2634 = vunpack.c.h.b16 %v664
    %v2635 = vunpack.c.l.b16 %v665
    %v2636 = vunpack.c.h.b16 %v665
    %v2637 = vunpack.c.l.b16 %v666
    %v2638 = vunpack.c.h.b16 %v666
    %v2639 = vunpack.c.l.b16 %v667
    %v2640 = vunpack.c.h.b16 %v667
    %v2641 = vunpack.c.l.b16 %v668
    %v2642 = vunpack.c.h.b16 %v668
    %v2643 = vunpack.c.l.b16 %v669
    %v2644 = vunpack.c.h.b16 %v669
    %v2645 = vunpack.c.l.b16 %v670
    %v2646 = vunpack.c.h.b16 %v670
    %v2647 = vunpack.c.l.b16 %v671
    %v2648 = vunpack.c.h.b16 %v671
    %v2649 = vunpack.c.l.b16 %v672
    %v2650 = vunpack.c.h.b16 %v672
    %v2651 = vunpack.c.l.b16 %v673
    %v2652 = vunpack.c.h.b16 %v673
    %v2653 = vunpack.c.l.b16 %v674
    %v2654 = vunpack.c.h.b16 %v674
    %v2655 = vunpack.c.l.b16 %v675
    %v2656 = vunpack.c.h.b16 %v675
    %v2657 = vunpack.c.l.b16 %v676
    %v2658 = vunpack.c.h.b16 %v676
    %v2659 = vunpack.c.l.b16 %v677
    %v2660 = vunpack.c.h.b16 %v677
    %v2661 = vunpack.c.l.b16 %v678
    %v2662 = vunpack.c.h.b16 %v678
    %v2663 = vunpack.c.l.b16 %v679
    %v2664 = vunpack.c.h.b16 %v679
    %v2665 = vunpack.c.l.b16 %v680
    %v2666 = vunpack.c.h.b16 %v680
    %v2667 = vunpack.c.l.b16 %v681
    %v2668 = vunpack.c.h.b16 %v681
    %v2669 = vunpack.c.l.b16 %v682
    %v2670 = vunpack.c.h.b16 %v682
    %v2671 = vunpack.c.l.b16 %v683
    %v2672 = vunpack.c.h.b16 %v683
    %v2673 = vunpack.c.l.b16 %v684
    %v2674 = vunpack.c.h.b16 %v684
    %v2675 = vunpack.c.l.b16 %v685
    %v2676 = vunpack.c.h.b16 %v685
    %v2677 = vunpack.c.l.b16 %v686
    %v2678 = vunpack.c.h.b16 %v686
    %v2679 = vunpack.c.l.b16 %v687
    %v2680 = vunpack.c.h.b16 %v687
    %v2681 = vunpack.c.l.b16 %v688
    %v2682 = vunpack.c.h.b16 %v688
    %v2683 = vunpack.c.l.b16 %v689
    %v2684 = vunpack.c.h.b16 %v689
    %v2685 = vunpack.c.l.b16 %v690
    %v2686 = vunpack.c.h.b16 %v690
    %v2687 = vunpack.c.l.b16 %v691
    %v2688 = vunpack.c.h.b16 %v691
    %v2689 = vunpack.c.l.b16 %v692
    %v2690 = vunpack.c.h.b16 %v692
    %v2691 = vunpack.c.l.b16 %v693
    %v2692 = vunpack.c.h.b16 %v693
    %v2693 = vunpack.c.l.b16 %v694
    %v2694 = vunpack.c.h.b16 %v694
    %v2695 = vunpack.c.l.b16 %v695
    %v2696 = vunpack.c.h.b16 %v695
    %v2697 = vunpack.c.l.b16 %v696
    %v2698 = vunpack.c.h.b16 %v696
    %v2699 = vunpack.c.l.b16 %v697
    %v2700 = vunpack.c.h.b16 %v697
    %v2701 = vunpack.c.l.b16 %v698
    %v2702 = vunpack.c.h.b16 %v698
    %v2703 = vunpack.c.l.b16 %v699
    %v2704 = vunpack.c.h.b16 %v699
    %v2705 = vunpack.c.l.b16 %v700
    %v2706 = vunpack.c.h.b16 %v700
    %v2707 = vunpack.c.l.b16 %v701
    %v2708 = vunpack.c.h.b16 %v701
    %v2709 = vunpack.c.l.b16 %v702
    %v2710 = vunpack.c.h.b16 %v702
    %v2711 = vunpack.c.l.b16 %v703
    %v2712 = vunpack.c.h.b16 %v703
    %v2713 = vunpack.c.l.b16 %v704
    %v2714 = vunpack.c.h.b16 %v704
    %v2715 = vunpack.c.l.b16 %v705
    %v2716 = vunpack.c.h.b16 %v705
    %v2717 = vunpack.c.l.b16 %v706
    %v2718 = vunpack.c.h.b16 %v706
    %v2719 = vunpack.c.l.b16 %v707
    %v2720 = vunpack.c.h.b16 %v707
    %v2721 = vunpack.c.l.b16 %v708
    %v2722 = vunpack.c.h.b16 %v708
    %v2723 = vunpack.c.l.b16 %v709
    %v2724 = vunpack.c.h.b16 %v709
    %v2725 = vunpack.c.l.b16 %v710
    %v2726 = vunpack.c.h.b16 %v710
    %v2727 = vunpack.c.l.b16 %v711
    %v2728 = vunpack.c.h.b16 %v711
    %v2729 = vunpack.c.l.b16 %v712
    %v2730 = vunpack.c.h.b16 %v712
    %v2731 = vunpack.c.l.b16 %v713
    %v2732 = vunpack.c.h.b16 %v713
    %v2733 = vunpack.c.l.b16 %v714
    %v2734 = vunpack.c.h.b16 %v714
    %v2735 = vunpack.c.l.b16 %v715
    %v2736 = vunpack.c.h.b16 %v715
    %v2737 = vunpack.c.l.b16 %v716
    %v2738 = vunpack.c.h.b16 %v716
    %v2739 = vpack.c.b16 %v1475, %v1459
    %v2740 = vpack.c.b16 %v1476, %v1460
    %v2741 = vpack.c.b16 %v1477, %v1461
    %v2742 = vpack.c.b16 %v1478, %v1462
    %v2743 = vpack.c.b16 %v1479, %v1463
    %v2744 = vpack.c.b16 %v1480, %v1464
    %v2745 = vpack.c.b16 %v1481, %v1465
    %v2746 = vpack.c.b16 %v1482, %v1466
    %v2747 = vpack.c.b16 %v1483, %v1467
    %v2748 = vpack.c.b16 %v1484, %v1468
    %v2749 = vpack.c.b16 %v1485, %v1469
    %v2750 = vpack.c.b16 %v1486, %v1470
    %v2751 = vpack.c.b16 %v1487, %v1471
    %v2752 = vpack.c.b16 %v1488, %v1472
    %v2753 = vpack.c.b16 %v1489, %v1473
    %v2754 = vpack.c.b16 %v1490, %v1474
    %v2755 = vpack.c.b16 %v1507, %v1491
    %v2756 = vpack.c.b16 %v1508, %v1492
    %v2757 = vpack.c.b16 %v1509, %v1493
    %v2758 = vpack.c.b16 %v1510, %v1494
    %v2759 = vpack.c.b16 %v1511, %v1495
    %v2760 = vpack.c.b16 %v1512, %v1496
    %v2761 = vpack.c.b16 %v1513, %v1497
    %v2762 = vpack.c.b16 %v1514, %v1498
    %v2763 = vpack.c.b16 %v1515, %v1499
    %v2764 = vpack.c.b16 %v1516, %v1500
    %v2765 = vpack.c.b16 %v1517, %v1501
    %v2766 = vpack.c.b16 %v1518, %v1502
    %v2767 = vpack.c.b16 %v1519, %v1503
    %v2768 = vpack.c.b16 %v1520, %v1504
    %v2769 = vpack.c.b16 %v1521, %v1505
    %v2770 = vpack.c.b16 %v1522, %v1506
    %v2771 = vpack.c.b16 %v1539, %v1523
    %v2772 = vpack.c.b16 %v1540, %v1524
    %v2773 = vpack.c.b16 %v1541, %v1525
    %v2774 = vpack.c.b16 %v1542, %v1526
    %v2775 = vpack.c.b16 %v1543, %v1527
    %v2776 = vpack.c.b16 %v1544, %v1528
    %v2777 = vpack.c.b16 %v1545, %v1529
    %v2778 = vpack.c.b16 %v1546, %v1530
    %v2779 = vpack.c.b16 %v1547, %v1531
    %v2780 = vpack.c.b16 %v1548, %v1532
    %v2781 = vpack.c.b16 %v1549, %v1533
    %v2782 = vpack.c.b16 %v1550, %v1534
    %v2783 = vpack.c.b16 %v1551, %v1535
    %v2784 = vpack.c.b16 %v1552, %v1536
    %v2785 = vpack.c.b16 %v1553, %v1537
    %v2786 = vpack.c.b16 %v1554, %v1538
    %v2787 = vpack.c.b16 %v1571, %v1555
    %v2788 = vpack.c.b16 %v1572, %v1556
    %v2789 = vpack.c.b16 %v1573, %v1557
    %v2790 = vpack.c.b16 %v1574, %v1558
    %v2791 = vpack.c.b16 %v1575, %v1559
    %v2792 = vpack.c.b16 %v1576, %v1560
    %v2793 = vpack.c.b16 %v1577, %v1561
    %v2794 = vpack.c.b16 %v1578, %v1562
    %v2795 = vpack.c.b16 %v1579, %v1563
    %v2796 = vpack.c.b16 %v1580, %v1564
    %v2797 = vpack.c.b16 %v1581, %v1565
    %v2798 = vpack.c.b16 %v1582, %v1566
    %v2799 = vpack.c.b16 %v1583, %v1567
    %v2800 = vpack.c.b16 %v1584, %v1568
    %v2801 = vpack.c.b16 %v1585, %v1569
    %v2802 = vpack.c.b16 %v1586, %v1570
    %v2803 = vpack.c.b16 %v1603, %v1587
    %v2804 = vpack.c.b16 %v1604, %v1588
    %v2805 = vpack.c.b16 %v1605, %v1589
    %v2806 = vpack.c.b16 %v1606, %v1590
    %v2807 = vpack.c.b16 %v1607, %v1591
    %v2808 = vpack.c.b16 %v1608, %v1592
    %v2809 = vpack.c.b16 %v1609, %v1593
    %v2810 = vpack.c.b16 %v1610, %v1594
    %v2811 = vpack.c.b16 %v1611, %v1595
    %v2812 = vpack.c.b16 %v1612, %v1596
    %v2813 = vpack.c.b16 %v1613, %v1597
    %v2814 = vpack.c.b16 %v1614, %v1598
    %v2815 = vpack.c.b16 %v1615, %v1599
    %v2816 = vpack.c.b16 %v1616, %v1600
    %v2817 = vpack.c.b16 %v1617, %v1601
    %v2818 = vpack.c.b16 %v1618, %v1602
    %v2819 = vpack.c.b16 %v1635, %v1619
    %v2820 = vpack.c.b16 %v1636, %v1620
    %v2821 = vpack.c.b16 %v1637, %v1621
    %v2822 = vpack.c.b16 %v1638, %v1622
    %v2823 = vpack.c.b16 %v1639, %v1623
    %v2824 = vpack.c.b16 %v1640, %v1624
    %v2825 = vpack.c.b16 %v1641, %v1625
    %v2826 = vpack.c.b16 %v1642, %v1626
    %v2827 = vpack.c.b16 %v1643, %v1627
    %v2828 = vpack.c.b16 %v1644, %v1628
    %v2829 = vpack.c.b16 %v1645, %v1629
    %v2830 = vpack.c.b16 %v1646, %v1630
    %v2831 = vpack.c.b16 %v1647, %v1631
    %v2832 = vpack.c.b16 %v1648, %v1632
    %v2833 = vpack.c.b16 %v1649, %v1633
    %v2834 = vpack.c.b16 %v1650, %v1634
    %v2835 = vpack.c.b16 %v1667, %v1651
    %v2836 = vpack.c.b16 %v1668, %v1652
    %v2837 = vpack.c.b16 %v1669, %v1653
    %v2838 = vpack.c.b16 %v1670, %v1654
    %v2839 = vpack.c.b16 %v1671, %v1655
    %v2840 = vpack.c.b16 %v1672, %v1656
    %v2841 = vpack.c.b16 %v1673, %v1657
    %v2842 = vpack.c.b16 %v1674, %v1658
    %v2843 = vpack.c.b16 %v1675, %v1659
    %v2844 = vpack.c.b16 %v1676, %v1660
    %v2845 = vpack.c.b16 %v1677, %v1661
    %v2846 = vpack.c.b16 %v1678, %v1662
    %v2847 = vpack.c.b16 %v1679, %v1663
    %v2848 = vpack.c.b16 %v1680, %v1664
    %v2849 = vpack.c.b16 %v1681, %v1665
    %v2850 = vpack.c.b16 %v1682, %v1666
    %v2851 = vpack.c.b16 %v1699, %v1683
    %v2852 = vpack.c.b16 %v1700, %v1684
    %v2853 = vpack.c.b16 %v1701, %v1685
    %v2854 = vpack.c.b16 %v1702, %v1686
    %v2855 = vpack.c.b16 %v1703, %v1687
    %v2856 = vpack.c.b16 %v1704, %v1688
    %v2857 = vpack.c.b16 %v1705, %v1689
    %v2858 = vpack.c.b16 %v1706, %v1690
    %v2859 = vpack.c.b16 %v1707, %v1691
    %v2860 = vpack.c.b16 %v1708, %v1692
    %v2861 = vpack.c.b16 %v1709, %v1693
    %v2862 = vpack.c.b16 %v1710, %v1694
    %v2863 = vpack.c.b16 %v1711, %v1695
    %v2864 = vpack.c.b16 %v1712, %v1696
    %v2865 = vpack.c.b16 %v1713, %v1697
    %v2866 = vpack.c.b16 %v1714, %v1698
    %v2867 = vpack.c.b16 %v1731, %v1715
    %v2868 = vpack.c.b16 %v1732, %v1716
    %v2869 = vpack.c.b16 %v1733, %v1717
    %v2870 = vpack.c.b16 %v1734, %v1718
    %v2871 = vpack.c.b16 %v1735, %v1719
    %v2872 = vpack.c.b16 %v1736, %v1720
    %v2873 = vpack.c.b16 %v1737, %v1721
    %v2874 = vpack.c.b16 %v1738, %v1722
    %v2875 = vpack.c.b16 %v1739, %v1723
    %v2876 = vpack.c.b16 %v1740, %v1724
    %v2877 = vpack.c.b16 %v1741, %v1725
    %v2878 = vpack.c.b16 %v1742, %v1726
    %v2879 = vpack.c.b16 %v1743, %v1727
    %v2880 = vpack.c.b16 %v1744, %v1728
    %v2881 = vpack.c.b16 %v1745, %v1729
    %v2882 = vpack.c.b16 %v1746, %v1730
    %v2883 = vpack.c.b16 %v1763, %v1747
    %v2884 = vpack.c.b16 %v1764, %v1748
    %v2885 = vpack.c.b16 %v1765, %v1749
    %v2886 = vpack.c.b16 %v1766, %v1750
    %v2887 = vpack.c.b16 %v1767, %v1751
    %v2888 = vpack.c.b16 %v1768, %v1752
    %v2889 = vpack.c.b16 %v1769, %v1753
    %v2890 = vpack.c.b16 %v1770, %v1754
    %v2891 = vpack.c.b16 %v1771, %v1755
    %v2892 = vpack.c.b16 %v1772, %v1756
    %v2893 = vpack.c.b16 %v1773, %v1757
    %v2894 = vpack.c.b16 %v1774, %v1758
    %v2895 = vpack.c.b16 %v1775, %v1759
    %v2896 = vpack.c.b16 %v1776, %v1760
    %v2897 = vpack.c.b16 %v1777, %v1761
    %v2898 = vpack.c.b16 %v1778, %v1762
    %v2899 = vpack.c.b16 %v1795, %v1779
    %v2900 = vpack.c.b16 %v1796, %v1780
    %v2901 = vpack.c.b16 %v1797, %v1781
    %v2902 = vpack.c.b16 %v1798, %v1782
    %v2903 = vpack.c.b16 %v1799, %v1783
    %v2904 = vpack.c.b16 %v1800, %v1784
    %v2905 = vpack.c.b16 %v1801, %v1785
    %v2906 = vpack.c.b16 %v1802, %v1786
    %v2907 = vpack.c.b16 %v1803, %v1787
    %v2908 = vpack.c.b16 %v1804, %v1788
    %v2909 = vpack.c.b16 %v1805, %v1789
    %v2910 = vpack.c.b16 %v1806, %v1790
    %v2911 = vpack.c.b16 %v1807, %v1791
    %v2912 = vpack.c.b16 %v1808, %v1792
    %v2913 = vpack.c.b16 %v1809, %v1793
    %v2914 = vpack.c.b16 %v1810, %v1794
    %v2915 = vpack.c.b16 %v1827, %v1811
    %v2916 = vpack.c.b16 %v1828, %v1812
    %v2917 = vpack.c.b16 %v1829, %v1813
    %v2918 = vpack.c.b16 %v1830, %v1814
    %v2919 = vpack.c.b16 %v1831, %v1815
    %v2920 = vpack.c.b16 %v1832, %v1816
    %v2921 = vpack.c.b16 %v1833, %v1817
    %v2922 = vpack.c.b16 %v1834, %v1818
    %v2923 = vpack.c.b16 %v1835, %v1819
    %v2924 = vpack.c.b16 %v1836, %v1820
    %v2925 = vpack.c.b16 %v1837, %v1821
    %v2926 = vpack.c.b16 %v1838, %v1822
    %v2927 = vpack.c.b16 %v1839, %v1823
    %v2928 = vpack.c.b16 %v1840, %v1824
    %v2929 = vpack.c.b16 %v1841, %v1825
    %v2930 = vpack.c.b16 %v1842, %v1826
    %v2931 = vpack.c.b16 %v1859, %v1843
    %v2932 = vpack.c.b16 %v1860, %v1844
    %v2933 = vpack.c.b16 %v1861, %v1845
    %v2934 = vpack.c.b16 %v1862, %v1846
    %v2935 = vpack.c.b16 %v1863, %v1847
    %v2936 = vpack.c.b16 %v1864, %v1848
    %v2937 = vpack.c.b16 %v1865, %v1849
    %v2938 = vpack.c.b16 %v1866, %v1850
    %v2939 = vpack.c.b16 %v1867, %v1851
    %v2940 = vpack.c.b16 %v1868, %v1852
    %v2941 = vpack.c.b16 %v1869, %v1853
    %v2942 = vpack.c.b16 %v1870, %v1854
    %v2943 = vpack.c.b16 %v1871, %v1855
    %v2944 = vpack.c.b16 %v1872, %v1856
    %v2945 = vpack.c.b16 %v1873, %v1857
    %v2946 = vpack.c.b16 %v1874, %v1858
    %v2947 = vpack.c.b16 %v1891, %v1875
    %v2948 = vpack.c.b16 %v1892, %v1876
    %v2949 = vpack.c.b16 %v1893, %v1877
    %v2950 = vpack.c.b16 %v1894, %v1878
    %v2951 = vpack.c.b16 %v1895, %v1879
    %v2952 = vpack.c.b16 %v1896, %v1880
    %v2953 = vpack.c.b16 %v1897, %v1881
    %v2954 = vpack.c.b16 %v1898, %v1882
    %v2955 = vpack.c.b16 %v1899, %v1883
    %v2956 = vpack.c.b16 %v1900, %v1884
    %v2957 = vpack.c.b16 %v1901, %v1885
    %v2958 = vpack.c.b16 %v1902, %v1886
    %v2959 = vpack.c.b16 %v1903, %v1887
    %v2960 = vpack.c.b16 %v1904, %v1888
    %v2961 = vpack.c.b16 %v1905, %v1889
    %v2962 = vpack.c.b16 %v1906, %v1890
    %v2963 = vpack.c.b16 %v1923, %v1907
    %v2964 = vpack.c.b16 %v1924, %v1908
    %v2965 = vpack.c.b16 %v1925, %v1909
    %v2966 = vpack.c.b16 %v1926, %v1910
    %v2967 = vpack.c.b16 %v1927, %v1911
    %v2968 = vpack.c.b16 %v1928, %v1912
    %v2969 = vpack.c.b16 %v1929, %v1913
    %v2970 = vpack.c.b16 %v1930, %v1914
    %v2971 = vpack.c.b16 %v1931, %v1915
    %v2972 = vpack.c.b16 %v1932, %v1916
    %v2973 = vpack.c.b16 %v1933, %v1917
    %v2974 = vpack.c.b16 %v1934, %v1918
    %v2975 = vpack.c.b16 %v1935, %v1919
    %v2976 = vpack.c.b16 %v1936, %v1920
    %v2977 = vpack.c.b16 %v1937, %v1921
    %v2978 = vpack.c.b16 %v1938, %v1922
    %v2979 = vpack.c.b16 %v1955, %v1939
    %v2980 = vpack.c.b16 %v1956, %v1940
    %v2981 = vpack.c.b16 %v1957, %v1941
    %v2982 = vpack.c.b16 %v1958, %v1942
    %v2983 = vpack.c.b16 %v1959, %v1943
    %v2984 = vpack.c.b16 %v1960, %v1944
    %v2985 = vpack.c.b16 %v1961, %v1945
    %v2986 = vpack.c.b16 %v1962, %v1946
    %v2987 = vpack.c.b16 %v1963, %v1947
    %v2988 = vpack.c.b16 %v1964, %v1948
    %v2989 = vpack.c.b16 %v1965, %v1949
    %v2990 = vpack.c.b16 %v1966, %v1950
    %v2991 = vpack.c.b16 %v1967, %v1951
    %v2992 = vpack.c.b16 %v1968, %v1952
    %v2993 = vpack.c.b16 %v1969, %v1953
    %v2994 = vpack.c.b16 %v1970, %v1954
    %v2995 = vpack.c.b16 %v1987, %v1971
    %v2996 = vpack.c.b16 %v1988, %v1972
    %v2997 = vpack.c.b16 %v1989, %v1973
    %v2998 = vpack.c.b16 %v1990, %v1974
    %v2999 = vpack.c.b16 %v1991, %v1975
    %v3000 = vpack.c.b16 %v1992, %v1976
    %v3001 = vpack.c.b16 %v1993, %v1977
    %v3002 = vpack.c.b16 %v1994, %v1978
    %v3003 = vpack.c.b16 %v1995, %v1979
    %v3004 = vpack.c.b16 %v1996, %v1980
    %v3005 = vpack.c.b16 %v1997, %v1981
    %v3006 = vpack.c.b16 %v1998, %v1982
    %v3007 = vpack.c.b16 %v1999, %v1983
    %v3008 = vpack.c.b16 %v2000, %v1984
    %v3009 = vpack.c.b16 %v2001, %v1985
    %v3010 = vpack.c.b16 %v2002, %v1986
    %v3011 = vpack.c.b16 %v2019, %v2003
    %v3012 = vpack.c.b16 %v2020, %v2004
    %v3013 = vpack.c.b16 %v2021, %v2005
    %v3014 = vpack.c.b16 %v2022, %v2006
    %v3015 = vpack.c.b16 %v2023, %v2007
    %v3016 = vpack.c.b16 %v2024, %v2008
    %v3017 = vpack.c.b16 %v2025, %v2009
    %v3018 = vpack.c.b16 %v2026, %v2010
    %v3019 = vpack.c.b16 %v2027, %v2011
    %v3020 = vpack.c.b16 %v2028, %v2012
    %v3021 = vpack.c.b16 %v2029, %v2013
    %v3022 = vpack.c.b16 %v2030, %v2014
    %v3023 = vpack.c.b16 %v2031, %v2015
    %v3024 = vpack.c.b16 %v2032, %v2016
    %v3025 = vpack.c.b16 %v2033, %v2017
    %v3026 = vpack.c.b16 %v2034, %v2018
    %v3027 = vpack.c.b16 %v2051, %v2035
    %v3028 = vpack.c.b16 %v2052, %v2036
    %v3029 = vpack.c.b16 %v2053, %v2037
    %v3030 = vpack.c.b16 %v2054, %v2038
    %v3031 = vpack.c.b16 %v2055, %v2039
    %v3032 = vpack.c.b16 %v2056, %v2040
    %v3033 = vpack.c.b16 %v2057, %v2041
    %v3034 = vpack.c.b16 %v2058, %v2042
    %v3035 = vpack.c.b16 %v2059, %v2043
    %v3036 = vpack.c.b16 %v2060, %v2044
    %v3037 = vpack.c.b16 %v2061, %v2045
    %v3038 = vpack.c.b16 %v2062, %v2046
    %v3039 = vpack.c.b16 %v2063, %v2047
    %v3040 = vpack.c.b16 %v2064, %v2048
    %v3041 = vpack.c.b16 %v2065, %v2049
    %v3042 = vpack.c.b16 %v2066, %v2050
    %v3043 = vpack.c.b16 %v2083, %v2067
    %v3044 = vpack.c.b16 %v2084, %v2068
    %v3045 = vpack.c.b16 %v2085, %v2069
    %v3046 = vpack.c.b16 %v2086, %v2070
    %v3047 = vpack.c.b16 %v2087, %v2071
    %v3048 = vpack.c.b16 %v2088, %v2072
    %v3049 = vpack.c.b16 %v2089, %v2073
    %v3050 = vpack.c.b16 %v2090, %v2074
    %v3051 = vpack.c.b16 %v2091, %v2075
    %v3052 = vpack.c.b16 %v2092, %v2076
    %v3053 = vpack.c.b16 %v2093, %v2077
    %v3054 = vpack.c.b16 %v2094, %v2078
    %v3055 = vpack.c.b16 %v2095, %v2079
    %v3056 = vpack.c.b16 %v2096, %v2080
    %v3057 = vpack.c.b16 %v2097, %v2081
    %v3058 = vpack.c.b16 %v2098, %v2082
    %v3059 = vpack.c.b16 %v2115, %v2099
    %v3060 = vpack.c.b16 %v2116, %v2100
    %v3061 = vpack.c.b16 %v2117, %v2101
    %v3062 = vpack.c.b16 %v2118, %v2102
    %v3063 = vpack.c.b16 %v2119, %v2103
    %v3064 = vpack.c.b16 %v2120, %v2104
    %v3065 = vpack.c.b16 %v2121, %v2105
    %v3066 = vpack.c.b16 %v2122, %v2106
    %v3067 = vpack.c.b16 %v2123, %v2107
    %v3068 = vpack.c.b16 %v2124, %v2108
    %v3069 = vpack.c.b16 %v2125, %v2109
    %v3070 = vpack.c.b16 %v2126, %v2110
    %v3071 = vpack.c.b16 %v2127, %v2111
    %v3072 = vpack.c.b16 %v2128, %v2112
    %v3073 = vpack.c.b16 %v2129, %v2113
    %v3074 = vpack.c.b16 %v2130, %v2114
    %v3075 = vpack.c.b16 %v2147, %v2131
    %v3076 = vpack.c.b16 %v2148, %v2132
    %v3077 = vpack.c.b16 %v2149, %v2133
    %v3078 = vpack.c.b16 %v2150, %v2134
    %v3079 = vpack.c.b16 %v2151, %v2135
    %v3080 = vpack.c.b16 %v2152, %v2136
    %v3081 = vpack.c.b16 %v2153, %v2137
    %v3082 = vpack.c.b16 %v2154, %v2138
    %v3083 = vpack.c.b16 %v2155, %v2139
    %v3084 = vpack.c.b16 %v2156, %v2140
    %v3085 = vpack.c.b16 %v2157, %v2141
    %v3086 = vpack.c.b16 %v2158, %v2142
    %v3087 = vpack.c.b16 %v2159, %v2143
    %v3088 = vpack.c.b16 %v2160, %v2144
    %v3089 = vpack.c.b16 %v2161, %v2145
    %v3090 = vpack.c.b16 %v2162, %v2146
    %v3091 = vpack.c.b16 %v2179, %v2163
    %v3092 = vpack.c.b16 %v2180, %v2164
    %v3093 = vpack.c.b16 %v2181, %v2165
    %v3094 = vpack.c.b16 %v2182, %v2166
    %v3095 = vpack.c.b16 %v2183, %v2167
    %v3096 = vpack.c.b16 %v2184, %v2168
    %v3097 = vpack.c.b16 %v2185, %v2169
    %v3098 = vpack.c.b16 %v2186, %v2170
    %v3099 = vpack.c.b16 %v2187, %v2171
    %v3100 = vpack.c.b16 %v2188, %v2172
    %v3101 = vpack.c.b16 %v2189, %v2173
    %v3102 = vpack.c.b16 %v2190, %v2174
    %v3103 = vpack.c.b16 %v2191, %v2175
    %v3104 = vpack.c.b16 %v2192, %v2176
    %v3105 = vpack.c.b16 %v2193, %v2177
    %v3106 = vpack.c.b16 %v2194, %v2178
    %v3107 = vpack.c.b16 %v2211, %v2195
    %v3108 = vpack.c.b16 %v2212, %v2196
    %v3109 = vpack.c.b16 %v2213, %v2197
    %v3110 = vpack.c.b16 %v2214, %v2198
    %v3111 = vpack.c.b16 %v2215, %v2199
    %v3112 = vpack.c.b16 %v2216, %v2200
    %v3113 = vpack.c.b16 %v2217, %v2201
    %v3114 = vpack.c.b16 %v2218, %v2202
    %v3115 = vpack.c.b16 %v2219, %v2203
    %v3116 = vpack.c.b16 %v2220, %v2204
    %v3117 = vpack.c.b16 %v2221, %v2205
    %v3118 = vpack.c.b16 %v2222, %v2206
    %v3119 = vpack.c.b16 %v2223, %v2207
    %v3120 = vpack.c.b16 %v2224, %v2208
    %v3121 = vpack.c.b16 %v2225, %v2209
    %v3122 = vpack.c.b16 %v2226, %v2210
    %v3123 = vpack.c.b16 %v2243, %v2227
    %v3124 = vpack.c.b16 %v2244, %v2228
    %v3125 = vpack.c.b16 %v2245, %v2229
    %v3126 = vpack.c.b16 %v2246, %v2230
    %v3127 = vpack.c.b16 %v2247, %v2231
    %v3128 = vpack.c.b16 %v2248, %v2232
    %v3129 = vpack.c.b16 %v2249, %v2233
    %v3130 = vpack.c.b16 %v2250, %v2234
    %v3131 = vpack.c.b16 %v2251, %v2235
    %v3132 = vpack.c.b16 %v2252, %v2236
    %v3133 = vpack.c.b16 %v2253, %v2237
    %v3134 = vpack.c.b16 %v2254, %v2238
    %v3135 = vpack.c.b16 %v2255, %v2239
    %v3136 = vpack.c.b16 %v2256, %v2240
    %v3137 = vpack.c.b16 %v2257, %v2241
    %v3138 = vpack.c.b16 %v2258, %v2242
    %v3139 = vpack.c.b16 %v2275, %v2259
    %v3140 = vpack.c.b16 %v2276, %v2260
    %v3141 = vpack.c.b16 %v2277, %v2261
    %v3142 = vpack.c.b16 %v2278, %v2262
    %v3143 = vpack.c.b16 %v2279, %v2263
    %v3144 = vpack.c.b16 %v2280, %v2264
    %v3145 = vpack.c.b16 %v2281, %v2265
    %v3146 = vpack.c.b16 %v2282, %v2266
    %v3147 = vpack.c.b16 %v2283, %v2267
    %v3148 = vpack.c.b16 %v2284, %v2268
    %v3149 = vpack.c.b16 %v2285, %v2269
    %v3150 = vpack.c.b16 %v2286, %v2270
    %v3151 = vpack.c.b16 %v2287, %v2271
    %v3152 = vpack.c.b16 %v2288, %v2272
    %v3153 = vpack.c.b16 %v2289, %v2273
    %v3154 = vpack.c.b16 %v2290, %v2274
    %v3155 = vpack.c.b16 %v2307, %v2291
    %v3156 = vpack.c.b16 %v2308, %v2292
    %v3157 = vpack.c.b16 %v2309, %v2293
    %v3158 = vpack.c.b16 %v2310, %v2294
    %v3159 = vpack.c.b16 %v2311, %v2295
    %v3160 = vpack.c.b16 %v2312, %v2296
    %v3161 = vpack.c.b16 %v2313, %v2297
    %v3162 = vpack.c.b16 %v2314, %v2298
    %v3163 = vpack.c.b16 %v2315, %v2299
    %v3164 = vpack.c.b16 %v2316, %v2300
    %v3165 = vpack.c.b16 %v2317, %v2301
    %v3166 = vpack.c.b16 %v2318, %v2302
    %v3167 = vpack.c.b16 %v2319, %v2303
    %v3168 = vpack.c.b16 %v2320, %v2304
    %v3169 = vpack.c.b16 %v2321, %v2305
    %v3170 = vpack.c.b16 %v2322, %v2306
    %v3171 = vpack.c.b16 %v2339, %v2323
    %v3172 = vpack.c.b16 %v2340, %v2324
    %v3173 = vpack.c.b16 %v2341, %v2325
    %v3174 = vpack.c.b16 %v2342, %v2326
    %v3175 = vpack.c.b16 %v2343, %v2327
    %v3176 = vpack.c.b16 %v2344, %v2328
    %v3177 = vpack.c.b16 %v2345, %v2329
    %v3178 = vpack.c.b16 %v2346, %v2330
    %v3179 = vpack.c.b16 %v2347, %v2331
    %v3180 = vpack.c.b16 %v2348, %v2332
    %v3181 = vpack.c.b16 %v2349, %v2333
    %v3182 = vpack.c.b16 %v2350, %v2334
    %v3183 = vpack.c.b16 %v2351, %v2335
    %v3184 = vpack.c.b16 %v2352, %v2336
    %v3185 = vpack.c.b16 %v2353, %v2337
    %v3186 = vpack.c.b16 %v2354, %v2338
    %v3187 = vpack.c.b16 %v2371, %v2355
    %v3188 = vpack.c.b16 %v2372, %v2356
    %v3189 = vpack.c.b16 %v2373, %v2357
    %v3190 = vpack.c.b16 %v2374, %v2358
    %v3191 = vpack.c.b16 %v2375, %v2359
    %v3192 = vpack.c.b16 %v2376, %v2360
    %v3193 = vpack.c.b16 %v2377, %v2361
    %v3194 = vpack.c.b16 %v2378, %v2362
    %v3195 = vpack.c.b16 %v2379, %v2363
    %v3196 = vpack.c.b16 %v2380, %v2364
    %v3197 = vpack.c.b16 %v2381, %v2365
    %v3198 = vpack.c.b16 %v2382, %v2366
    %v3199 = vpack.c.b16 %v2383, %v2367
    %v3200 = vpack.c.b16 %v2384, %v2368
    %v3201 = vpack.c.b16 %v2385, %v2369
    %v3202 = vpack.c.b16 %v2386, %v2370
    %v3203 = vpack.c.b16 %v2403, %v2387
    %v3204 = vpack.c.b16 %v2404, %v2388
    %v3205 = vpack.c.b16 %v2405, %v2389
    %v3206 = vpack.c.b16 %v2406, %v2390
    %v3207 = vpack.c.b16 %v2407, %v2391
    %v3208 = vpack.c.b16 %v2408, %v2392
    %v3209 = vpack.c.b16 %v2409, %v2393
    %v3210 = vpack.c.b16 %v2410, %v2394
    %v3211 = vpack.c.b16 %v2411, %v2395
    %v3212 = vpack.c.b16 %v2412, %v2396
    %v3213 = vpack.c.b16 %v2413, %v2397
    %v3214 = vpack.c.b16 %v2414, %v2398
    %v3215 = vpack.c.b16 %v2415, %v2399
    %v3216 = vpack.c.b16 %v2416, %v2400
    %v3217 = vpack.c.b16 %v2417, %v2401
    %v3218 = vpack.c.b16 %v2418, %v2402
    %v3219 = vpack.c.b16 %v2435, %v2419
    %v3220 = vpack.c.b16 %v2436, %v2420
    %v3221 = vpack.c.b16 %v2437, %v2421
    %v3222 = vpack.c.b16 %v2438, %v2422
    %v3223 = vpack.c.b16 %v2439, %v2423
    %v3224 = vpack.c.b16 %v2440, %v2424
    %v3225 = vpack.c.b16 %v2441, %v2425
    %v3226 = vpack.c.b16 %v2442, %v2426
    %v3227 = vpack.c.b16 %v2443, %v2427
    %v3228 = vpack.c.b16 %v2444, %v2428
    %v3229 = vpack.c.b16 %v2445, %v2429
    %v3230 = vpack.c.b16 %v2446, %v2430
    %v3231 = vpack.c.b16 %v2447, %v2431
    %v3232 = vpack.c.b16 %v2448, %v2432
    %v3233 = vpack.c.b16 %v2449, %v2433
    %v3234 = vpack.c.b16 %v2450, %v2434
    %v3235 = vpack.c.b16 %v2467, %v2451
    %v3236 = vpack.c.b16 %v2468, %v2452
    %v3237 = vpack.c.b16 %v2469, %v2453
    %v3238 = vpack.c.b16 %v2470, %v2454
    %v3239 = vpack.c.b16 %v2471, %v2455
    %v3240 = vpack.c.b16 %v2472, %v2456
    %v3241 = vpack.c.b16 %v2473, %v2457
    %v3242 = vpack.c.b16 %v2474, %v2458
    %v3243 = vpack.c.b16 %v2475, %v2459
    %v3244 = vpack.c.b16 %v2476, %v2460
    %v3245 = vpack.c.b16 %v2477, %v2461
    %v3246 = vpack.c.b16 %v2478, %v2462
    %v3247 = vpack.c.b16 %v2479, %v2463
    %v3248 = vpack.c.b16 %v2480, %v2464
    %v3249 = vpack.c.b16 %v2481, %v2465
    %v3250 = vpack.c.b16 %v2482, %v2466
    %v3251 = vpack.c.b16 %v2499, %v2483
    %v3252 = vpack.c.b16 %v2500, %v2484
    %v3253 = vpack.c.b16 %v2501, %v2485
    %v3254 = vpack.c.b16 %v2502, %v2486
    %v3255 = vpack.c.b16 %v2503, %v2487
    %v3256 = vpack.c.b16 %v2504, %v2488
    %v3257 = vpack.c.b16 %v2505, %v2489
    %v3258 = vpack.c.b16 %v2506, %v2490
    %v3259 = vpack.c.b16 %v2507, %v2491
    %v3260 = vpack.c.b16 %v2508, %v2492
    %v3261 = vpack.c.b16 %v2509, %v2493
    %v3262 = vpack.c.b16 %v2510, %v2494
    %v3263 = vpack.c.b16 %v2511, %v2495
    %v3264 = vpack.c.b16 %v2512, %v2496
    %v3265 = vpack.c.b16 %v2513, %v2497
    %v3266 = vpack.c.b16 %v2514, %v2498
    %v3267 = vpack.c.b16 %v2531, %v2515
    %v3268 = vpack.c.b16 %v2532, %v2516
    %v3269 = vpack.c.b16 %v2533, %v2517
    %v3270 = vpack.c.b16 %v2534, %v2518
    %v3271 = vpack.c.b16 %v2535, %v2519
    %v3272 = vpack.c.b16 %v2536, %v2520
    %v3273 = vpack.c.b16 %v2537, %v2521
    %v3274 = vpack.c.b16 %v2538, %v2522
    %v3275 = vpack.c.b16 %v2539, %v2523
    %v3276 = vpack.c.b16 %v2540, %v2524
    %v3277 = vpack.c.b16 %v2541, %v2525
    %v3278 = vpack.c.b16 %v2542, %v2526
    %v3279 = vpack.c.b16 %v2543, %v2527
    %v3280 = vpack.c.b16 %v2544, %v2528
    %v3281 = vpack.c.b16 %v2545, %v2529
    %v3282 = vpack.c.b16 %v2546, %v2530
    %v3283 = vpack.c.b16 %v2563, %v2547
    %v3284 = vpack.c.b16 %v2564, %v2548
    %v3285 = vpack.c.b16 %v2565, %v2549
    %v3286 = vpack.c.b16 %v2566, %v2550
    %v3287 = vpack.c.b16 %v2567, %v2551
    %v3288 = vpack.c.b16 %v2568, %v2552
    %v3289 = vpack.c.b16 %v2569, %v2553
    %v3290 = vpack.c.b16 %v2570, %v2554
    %v3291 = vpack.c.b16 %v2571, %v2555
    %v3292 = vpack.c.b16 %v2572, %v2556
    %v3293 = vpack.c.b16 %v2573, %v2557
    %v3294 = vpack.c.b16 %v2574, %v2558
    %v3295 = vpack.c.b16 %v2575, %v2559
    %v3296 = vpack.c.b16 %v2576, %v2560
    %v3297 = vpack.c.b16 %v2577, %v2561
    %v3298 = vpack.c.b16 %v2578, %v2562
    %v3299 = vpack.c.b16 %v2595, %v2579
    %v3300 = vpack.c.b16 %v2596, %v2580
    %v3301 = vpack.c.b16 %v2597, %v2581
    %v3302 = vpack.c.b16 %v2598, %v2582
    %v3303 = vpack.c.b16 %v2599, %v2583
    %v3304 = vpack.c.b16 %v2600, %v2584
    %v3305 = vpack.c.b16 %v2601, %v2585
    %v3306 = vpack.c.b16 %v2602, %v2586
    %v3307 = vpack.c.b16 %v2603, %v2587
    %v3308 = vpack.c.b16 %v2604, %v2588
    %v3309 = vpack.c.b16 %v2605, %v2589
    %v3310 = vpack.c.b16 %v2606, %v2590
    %v3311 = vpack.c.b16 %v2607, %v2591
    %v3312 = vpack.c.b16 %v2608, %v2592
    %v3313 = vpack.c.b16 %v2609, %v2593
    %v3314 = vpack.c.b16 %v2610, %v2594
    %v3315 = vpack.c.b16 %v2627, %v2611
    %v3316 = vpack.c.b16 %v2628, %v2612
    %v3317 = vpack.c.b16 %v2629, %v2613
    %v3318 = vpack.c.b16 %v2630, %v2614
    %v3319 = vpack.c.b16 %v2631, %v2615
    %v3320 = vpack.c.b16 %v2632, %v2616
    %v3321 = vpack.c.b16 %v2633, %v2617
    %v3322 = vpack.c.b16 %v2634, %v2618
    %v3323 = vpack.c.b16 %v2635, %v2619
    %v3324 = vpack.c.b16 %v2636, %v2620
    %v3325 = vpack.c.b16 %v2637, %v2621
    %v3326 = vpack.c.b16 %v2638, %v2622
    %v3327 = vpack.c.b16 %v2639, %v2623
    %v3328 = vpack.c.b16 %v2640, %v2624
    %v3329 = vpack.c.b16 %v2641, %v2625
    %v3330 = vpack.c.b16 %v2642, %v2626
    %v3331 = vpack.c.b16 %v2659, %v2643
    %v3332 = vpack.c.b16 %v2660, %v2644
    %v3333 = vpack.c.b16 %v2661, %v2645
    %v3334 = vpack.c.b16 %v2662, %v2646
    %v3335 = vpack.c.b16 %v2663, %v2647
    %v3336 = vpack.c.b16 %v2664, %v2648
    %v3337 = vpack.c.b16 %v2665, %v2649
    %v3338 = vpack.c.b16 %v2666, %v2650
    %v3339 = vpack.c.b16 %v2667, %v2651
    %v3340 = vpack.c.b16 %v2668, %v2652
    %v3341 = vpack.c.b16 %v2669, %v2653
    %v3342 = vpack.c.b16 %v2670, %v2654
    %v3343 = vpack.c.b16 %v2671, %v2655
    %v3344 = vpack.c.b16 %v2672, %v2656
    %v3345 = vpack.c.b16 %v2673, %v2657
    %v3346 = vpack.c.b16 %v2674, %v2658
    %v3347 = vpack.c.b16 %v2691, %v2675
    %v3348 = vpack.c.b16 %v2692, %v2676
    %v3349 = vpack.c.b16 %v2693, %v2677
    %v3350 = vpack.c.b16 %v2694, %v2678
    %v3351 = vpack.c.b16 %v2695, %v2679
    %v3352 = vpack.c.b16 %v2696, %v2680
    %v3353 = vpack.c.b16 %v2697, %v2681
    %v3354 = vpack.c.b16 %v2698, %v2682
    %v3355 = vpack.c.b16 %v2699, %v2683
    %v3356 = vpack.c.b16 %v2700, %v2684
    %v3357 = vpack.c.b16 %v2701, %v2685
    %v3358 = vpack.c.b16 %v2702, %v2686
    %v3359 = vpack.c.b16 %v2703, %v2687
    %v3360 = vpack.c.b16 %v2704, %v2688
    %v3361 = vpack.c.b16 %v2705, %v2689
    %v3362 = vpack.c.b16 %v2706, %v2690
    %v3363 = vpack.c.b16 %v2723, %v2707
    %v3364 = vpack.c.b16 %v2724, %v2708
    %v3365 = vpack.c.b16 %v2725, %v2709
    %v3366 = vpack.c.b16 %v2726, %v2710
    %v3367 = vpack.c.b16 %v2727, %v2711
    %v3368 = vpack.c.b16 %v2728, %v2712
    %v3369 = vpack.c.b16 %v2729, %v2713
    %v3370 = vpack.c.b16 %v2730, %v2714
    %v3371 = vpack.c.b16 %v2731, %v2715
    %v3372 = vpack.c.b16 %v2732, %v2716
    %v3373 = vpack.c.b16 %v2733, %v2717
    %v3374 = vpack.c.b16 %v2734, %v2718
    %v3375 = vpack.c.b16 %v2735, %v2719
    %v3376 = vpack.c.b16 %v2736, %v2720
    %v3377 = vpack.c.b16 %v2737, %v2721
    %v3378 = vpack.c.b16 %v2738, %v2722
    %4019 = vmatprep.subr.bf16.mxu0 %v2852
    %4020 = vmatpush1.bf16.msra.mxu0 %v2851
    %4021 = vmatprep.subr.bf16.mxu0 %v2836
    %4022 = vmatpush1.bf16.msra.mxu0 %v2835
    %4023 = vmatprep.subr.bf16.mxu0 %v2820
    %4024 = vmatpush1.bf16.msra.mxu0 %v2819
    %4025 = vmatprep.subr.bf16.mxu0 %v2804
    %4026 = vmatpush1.bf16.msra.mxu0 %v2803
    %4027 = vmatprep.subr.bf16.mxu0 %v2788
    %4028 = vmatpush1.bf16.msra.mxu0 %v2787
    %4029 = vmatprep.subr.bf16.mxu0 %v2772
    %4030 = vmatpush1.bf16.msra.mxu0 %v2771
    %4031 = vmatprep.subr.bf16.mxu0 %v2756
    %4032 = vmatpush1.bf16.msra.mxu0 %v2755
    %4033 = vmatprep.subr.bf16.mxu0 %v2740
    %4034 = vmatpush1.bf16.msra.mxu0 %v2739
    %4035 = vmatprep.subr.bf16.mxu0 %v2980
    %4036 = vmatpush2.bf16.msra.mxu0 %v2979
    %4037 = vmatprep.subr.bf16.mxu0 %v2964
    %4038 = vmatpush2.bf16.msra.mxu0 %v2963
    %4039 = vmatprep.subr.bf16.mxu0 %v2948
    %4040 = vmatpush2.bf16.msra.mxu0 %v2947
    %4041 = vmatprep.subr.bf16.mxu0 %v2932
    %4042 = vmatpush2.bf16.msra.mxu0 %v2931
    %4043 = vmatprep.subr.bf16.mxu0 %v2916
    %4044 = vmatpush2.bf16.msra.mxu0 %v2915
    %4045 = vmatprep.subr.bf16.mxu0 %v2900
    %4046 = vmatpush2.bf16.msra.mxu0 %v2899
    %4047 = vmatprep.subr.bf16.mxu0 %v2884
    %4048 = vmatpush2.bf16.msra.mxu0 %v2883
    %4049 = vmatprep.subr.bf16.mxu0 %v2868
    %4050 = vmatpush2.bf16.msra.mxu0 %v2867
    %4051 = vmatprep.mubr.bf16.mxu0 %v810
    %4052 = vmatmul.mubr.bf16.gmra.mxu0 %v809
    %v4053 = vpop.f32.mrf.mxu0
    %v4054 = vadd.f32 %v724, %v4053
    %v4055 = vpop.f32.mrf.mxu0
    %v4056 = vadd.f32 %v728, %v4055
    %v4057 = vpop.f32.mrf.mxu0
    %v4058 = vpop.f32.mrf.mxu0
    %4059 = vdwg.mxu0
    %4060 = vmatprep.subr.bf16.mxu0 %v3108
    %4061 = vmatpush1.bf16.msra.mxu0 %v3107
    %4062 = vmatprep.subr.bf16.mxu0 %v3092
    %4063 = vmatpush1.bf16.msra.mxu0 %v3091
    %4064 = vmatprep.subr.bf16.mxu0 %v3076
    %4065 = vmatpush1.bf16.msra.mxu0 %v3075
    %4066 = vmatprep.subr.bf16.mxu0 %v3060
    %4067 = vmatpush1.bf16.msra.mxu0 %v3059
    %4068 = vmatprep.subr.bf16.mxu0 %v3044
    %4069 = vmatpush1.bf16.msra.mxu0 %v3043
    %4070 = vmatprep.subr.bf16.mxu0 %v3028
    %4071 = vmatpush1.bf16.msra.mxu0 %v3027
    %4072 = vmatprep.subr.bf16.mxu0 %v3012
    %4073 = vmatpush1.bf16.msra.mxu0 %v3011
    %4074 = vmatprep.subr.bf16.mxu0 %v2996
    %4075 = vmatpush1.bf16.msra.mxu0 %v2995
    %4076 = vmatprep.subr.bf16.mxu0 %v3236
    %4077 = vmatpush2.bf16.msra.mxu0 %v3235
    %4078 = vmatprep.subr.bf16.mxu0 %v3220
    %4079 = vmatpush2.bf16.msra.mxu0 %v3219
    %4080 = vmatprep.subr.bf16.mxu0 %v3204
    %4081 = vmatpush2.bf16.msra.mxu0 %v3203
    %4082 = vmatprep.subr.bf16.mxu0 %v3188
    %4083 = vmatpush2.bf16.msra.mxu0 %v3187
    %4084 = vmatprep.subr.bf16.mxu0 %v3172
    %4085 = vmatpush2.bf16.msra.mxu0 %v3171
    %4086 = vmatprep.subr.bf16.mxu0 %v3156
    %4087 = vmatpush2.bf16.msra.mxu0 %v3155
    %4088 = vmatprep.subr.bf16.mxu0 %v3140
    %4089 = vmatpush2.bf16.msra.mxu0 %v3139
    %4090 = vmatprep.subr.bf16.mxu0 %v3124
    %4091 = vmatpush2.bf16.msra.mxu0 %v3123
    %4092 = vmatprep.mubr.bf16.mxu0 %v812
    %4093 = vmatmul.mubr.bf16.gmra.mxu0 %v811
    %v4094 = vpop.f32.mrf.mxu0
    %v4095 = vadd.f32 %v4054, %v4094
    %v4096 = vpop.f32.mrf.mxu0
    %v4097 = vadd.f32 %v4056, %v4096
    %v4098 = vpop.f32.mrf.mxu0
    %v4099 = vpop.f32.mrf.mxu0
    %4100 = vdwg.mxu0
    %4101 = vmatprep.subr.bf16.mxu0 %v3364
    %4102 = vmatpush1.bf16.msra.mxu0 %v3363
    %4103 = vmatprep.subr.bf16.mxu0 %v3348
    %4104 = vmatpush1.bf16.msra.mxu0 %v3347
    %4105 = vmatprep.subr.bf16.mxu0 %v3332
    %4106 = vmatpush1.bf16.msra.mxu0 %v3331
    %4107 = vmatprep.subr.bf16.mxu0 %v3316
    %4108 = vmatpush1.bf16.msra.mxu0 %v3315
    %4109 = vmatprep.subr.bf16.mxu0 %v3300
    %4110 = vmatpush1.bf16.msra.mxu0 %v3299
    %4111 = vmatprep.subr.bf16.mxu0 %v3284
    %4112 = vmatpush1.bf16.msra.mxu0 %v3283
    %4113 = vmatprep.subr.bf16.mxu0 %v3268
    %4114 = vmatpush1.bf16.msra.mxu0 %v3267
    %4115 = vmatprep.subr.bf16.mxu0 %v3252
    %4116 = vmatpush1.bf16.msra.mxu0 %v3251
    %4117 = vmatprep.subr.bf16.mxu0 0
    %4118 = vmatpush2.bf16.msra.mxu0 0
    %4119 = vmatprep.subr.bf16.mxu0 0
    %4120 = vmatpush2.bf16.msra.mxu0 0
    %4121 = vmatprep.subr.bf16.mxu0 0
    %4122 = vmatpush2.bf16.msra.mxu0 0
    %4123 = vmatprep.subr.bf16.mxu0 0
    %4124 = vmatpush2.bf16.msra.mxu0 0
    %4125 = vmatprep.subr.bf16.mxu0 0
    %4126 = vmatpush2.bf16.msra.mxu0 0
    %4127 = vmatprep.subr.bf16.mxu0 0
    %4128 = vmatpush2.bf16.msra.mxu0 0
    %4129 = vmatprep.subr.bf16.mxu0 0
    %4130 = vmatpush2.bf16.msra.mxu0 0
    %4131 = vmatprep.subr.bf16.mxu0 0
    %4132 = vmatpush2.bf16.msra.mxu0 0
    %4133 = vmatprep.mubr.bf16.mxu0 0
    %4134 = vmatmul.mubr.bf16.gmra.mxu0 %v813
    %v4135 = vpop.f32.mrf.mxu0
    %v4136 = vadd.f32 %v4095, %v4135
    %v4137 = vpop.f32.mrf.mxu0
    %v4138 = vadd.f32 %v4097, %v4137
    %v4139 = vpop.f32.mrf.mxu0
    %v4140 = vpop.f32.mrf.mxu0
    %4141 = vdwg.mxu0
    %4142 = vmatprep.subr.bf16.mxu0 %v2854
    %4143 = vmatpush1.bf16.msra.mxu0 %v2853
    %4144 = vmatprep.subr.bf16.mxu0 %v2838
    %4145 = vmatpush1.bf16.msra.mxu0 %v2837
    %4146 = vmatprep.subr.bf16.mxu0 %v2822
    %4147 = vmatpush1.bf16.msra.mxu0 %v2821
    %4148 = vmatprep.subr.bf16.mxu0 %v2806
    %4149 = vmatpush1.bf16.msra.mxu0 %v2805
    %4150 = vmatprep.subr.bf16.mxu0 %v2790
    %4151 = vmatpush1.bf16.msra.mxu0 %v2789
    %4152 = vmatprep.subr.bf16.mxu0 %v2774
    %4153 = vmatpush1.bf16.msra.mxu0 %v2773
    %4154 = vmatprep.subr.bf16.mxu0 %v2758
    %4155 = vmatpush1.bf16.msra.mxu0 %v2757
    %4156 = vmatprep.subr.bf16.mxu0 %v2742
    %4157 = vmatpush1.bf16.msra.mxu0 %v2741
    %4158 = vmatprep.subr.bf16.mxu0 %v2982
    %4159 = vmatpush2.bf16.msra.mxu0 %v2981
    %4160 = vmatprep.subr.bf16.mxu0 %v2966
    %4161 = vmatpush2.bf16.msra.mxu0 %v2965
    %4162 = vmatprep.subr.bf16.mxu0 %v2950
    %4163 = vmatpush2.bf16.msra.mxu0 %v2949
    %4164 = vmatprep.subr.bf16.mxu0 %v2934
    %4165 = vmatpush2.bf16.msra.mxu0 %v2933
    %4166 = vmatprep.subr.bf16.mxu0 %v2918
    %4167 = vmatpush2.bf16.msra.mxu0 %v2917
    %4168 = vmatprep.subr.bf16.mxu0 %v2902
    %4169 = vmatpush2.bf16.msra.mxu0 %v2901
    %4170 = vmatprep.subr.bf16.mxu0 %v2886
    %4171 = vmatpush2.bf16.msra.mxu0 %v2885
    %4172 = vmatprep.subr.bf16.mxu0 %v2870
    %4173 = vmatpush2.bf16.msra.mxu0 %v2869
    %4174 = vmatprep.mubr.bf16.mxu0 %v810
    %4175 = vmatmul.mubr.bf16.gmra.mxu0 %v809
    %v4176 = vpop.f32.mrf.mxu0
    %v4177 = vadd.f32 %v732, %v4176
    %v4178 = vpop.f32.mrf.mxu0
    %v4179 = vadd.f32 %v736, %v4178
    %v4180 = vpop.f32.mrf.mxu0
    %v4181 = vpop.f32.mrf.mxu0
    %4182 = vdwg.mxu0
    %4183 = vmatprep.subr.bf16.mxu0 %v3110
    %4184 = vmatpush1.bf16.msra.mxu0 %v3109
    %4185 = vmatprep.subr.bf16.mxu0 %v3094
    %4186 = vmatpush1.bf16.msra.mxu0 %v3093
    %4187 = vmatprep.subr.bf16.mxu0 %v3078
    %4188 = vmatpush1.bf16.msra.mxu0 %v3077
    %4189 = vmatprep.subr.bf16.mxu0 %v3062
    %4190 = vmatpush1.bf16.msra.mxu0 %v3061
    %4191 = vmatprep.subr.bf16.mxu0 %v3046
    %4192 = vmatpush1.bf16.msra.mxu0 %v3045
    %4193 = vmatprep.subr.bf16.mxu0 %v3030
    %4194 = vmatpush1.bf16.msra.mxu0 %v3029
    %4195 = vmatprep.subr.bf16.mxu0 %v3014
    %4196 = vmatpush1.bf16.msra.mxu0 %v3013
    %4197 = vmatprep.subr.bf16.mxu0 %v2998
    %4198 = vmatpush1.bf16.msra.mxu0 %v2997
    %4199 = vmatprep.subr.bf16.mxu0 %v3238
    %4200 = vmatpush2.bf16.msra.mxu0 %v3237
    %4201 = vmatprep.subr.bf16.mxu0 %v3222
    %4202 = vmatpush2.bf16.msra.mxu0 %v3221
    %4203 = vmatprep.subr.bf16.mxu0 %v3206
    %4204 = vmatpush2.bf16.msra.mxu0 %v3205
    %4205 = vmatprep.subr.bf16.mxu0 %v3190
    %4206 = vmatpush2.bf16.msra.mxu0 %v3189
    %4207 = vmatprep.subr.bf16.mxu0 %v3174
    %4208 = vmatpush2.bf16.msra.mxu0 %v3173
    %4209 = vmatprep.subr.bf16.mxu0 %v3158
    %4210 = vmatpush2.bf16.msra.mxu0 %v3157
    %4211 = vmatprep.subr.bf16.mxu0 %v3142
    %4212 = vmatpush2.bf16.msra.mxu0 %v3141
    %4213 = vmatprep.subr.bf16.mxu0 %v3126
    %4214 = vmatpush2.bf16.msra.mxu0 %v3125
    %4215 = vmatprep.mubr.bf16.mxu0 %v812
    %4216 = vmatmul.mubr.bf16.gmra.mxu0 %v811
    %v4217 = vpop.f32.mrf.mxu0
    %v4218 = vadd.f32 %v4177, %v4217
    %v4219 = vpop.f32.mrf.mxu0
    %v4220 = vadd.f32 %v4179, %v4219
    %v4221 = vpop.f32.mrf.mxu0
    %v4222 = vpop.f32.mrf.mxu0
    %4223 = vdwg.mxu0
    %4224 = vmatprep.subr.bf16.mxu0 %v3366
    %4225 = vmatpush1.bf16.msra.mxu0 %v3365
    %4226 = vmatprep.subr.bf16.mxu0 %v3350
    %4227 = vmatpush1.bf16.msra.mxu0 %v3349
    %4228 = vmatprep.subr.bf16.mxu0 %v3334
    %4229 = vmatpush1.bf16.msra.mxu0 %v3333
    %4230 = vmatprep.subr.bf16.mxu0 %v3318
    %4231 = vmatpush1.bf16.msra.mxu0 %v3317
    %4232 = vmatprep.subr.bf16.mxu0 %v3302
    %4233 = vmatpush1.bf16.msra.mxu0 %v3301
    %4234 = vmatprep.subr.bf16.mxu0 %v3286
    %4235 = vmatpush1.bf16.msra.mxu0 %v3285
    %4236 = vmatprep.subr.bf16.mxu0 %v3270
    %4237 = vmatpush1.bf16.msra.mxu0 %v3269
    %4238 = vmatprep.subr.bf16.mxu0 %v3254
    %4239 = vmatpush1.bf16.msra.mxu0 %v3253
    %4240 = vmatprep.subr.bf16.mxu0 0
    %4241 = vmatpush2.bf16.msra.mxu0 0
    %4242 = vmatprep.subr.bf16.mxu0 0
    %4243 = vmatpush2.bf16.msra.mxu0 0
    %4244 = vmatprep.subr.bf16.mxu0 0
    %4245 = vmatpush2.bf16.msra.mxu0 0
    %4246 = vmatprep.subr.bf16.mxu0 0
    %4247 = vmatpush2.bf16.msra.mxu0 0
    %4248 = vmatprep.subr.bf16.mxu0 0
    %4249 = vmatpush2.bf16.msra.mxu0 0
    %4250 = vmatprep.subr.bf16.mxu0 0
    %4251 = vmatpush2.bf16.msra.mxu0 0
    %4252 = vmatprep.subr.bf16.mxu0 0
    %4253 = vmatpush2.bf16.msra.mxu0 0
    %4254 = vmatprep.subr.bf16.mxu0 0
    %4255 = vmatpush2.bf16.msra.mxu0 0
    %4256 = vmatprep.mubr.bf16.mxu0 0
    %4257 = vmatmul.mubr.bf16.gmra.mxu0 %v813
    %v4258 = vpop.f32.mrf.mxu0
    %v4259 = vadd.f32 %v4218, %v4258
    %v4260 = vpop.f32.mrf.mxu0
    %v4261 = vadd.f32 %v4220, %v4260
    %v4262 = vpop.f32.mrf.mxu0
    %v4263 = vpop.f32.mrf.mxu0
    %4264 = vdwg.mxu0
    %4265 = vmatprep.subr.bf16.mxu0 %v2856
    %4266 = vmatpush1.bf16.msra.mxu0 %v2855
    %4267 = vmatprep.subr.bf16.mxu0 %v2840
    %4268 = vmatpush1.bf16.msra.mxu0 %v2839
    %4269 = vmatprep.subr.bf16.mxu0 %v2824
    %4270 = vmatpush1.bf16.msra.mxu0 %v2823
    %4271 = vmatprep.subr.bf16.mxu0 %v2808
    %4272 = vmatpush1.bf16.msra.mxu0 %v2807
    %4273 = vmatprep.subr.bf16.mxu0 %v2792
    %4274 = vmatpush1.bf16.msra.mxu0 %v2791
    %4275 = vmatprep.subr.bf16.mxu0 %v2776
    %4276 = vmatpush1.bf16.msra.mxu0 %v2775
    %4277 = vmatprep.subr.bf16.mxu0 %v2760
    %4278 = vmatpush1.bf16.msra.mxu0 %v2759
    %4279 = vmatprep.subr.bf16.mxu0 %v2744
    %4280 = vmatpush1.bf16.msra.mxu0 %v2743
    %4281 = vmatprep.subr.bf16.mxu0 %v2984
    %4282 = vmatpush2.bf16.msra.mxu0 %v2983
    %4283 = vmatprep.subr.bf16.mxu0 %v2968
    %4284 = vmatpush2.bf16.msra.mxu0 %v2967
    %4285 = vmatprep.subr.bf16.mxu0 %v2952
    %4286 = vmatpush2.bf16.msra.mxu0 %v2951
    %4287 = vmatprep.subr.bf16.mxu0 %v2936
    %4288 = vmatpush2.bf16.msra.mxu0 %v2935
    %4289 = vmatprep.subr.bf16.mxu0 %v2920
    %4290 = vmatpush2.bf16.msra.mxu0 %v2919
    %4291 = vmatprep.subr.bf16.mxu0 %v2904
    %4292 = vmatpush2.bf16.msra.mxu0 %v2903
    %4293 = vmatprep.subr.bf16.mxu0 %v2888
    %4294 = vmatpush2.bf16.msra.mxu0 %v2887
    %4295 = vmatprep.subr.bf16.mxu0 %v2872
    %4296 = vmatpush2.bf16.msra.mxu0 %v2871
    %4297 = vmatprep.mubr.bf16.mxu0 %v810
    %4298 = vmatmul.mubr.bf16.gmra.mxu0 %v809
    %v4299 = vpop.f32.mrf.mxu0
    %v4300 = vadd.f32 %v740, %v4299
    %v4301 = vpop.f32.mrf.mxu0
    %v4302 = vadd.f32 %v744, %v4301
    %v4303 = vpop.f32.mrf.mxu0
    %v4304 = vpop.f32.mrf.mxu0
    %4305 = vdwg.mxu0
    %4306 = vmatprep.subr.bf16.mxu0 %v3112
    %4307 = vmatpush1.bf16.msra.mxu0 %v3111
    %4308 = vmatprep.subr.bf16.mxu0 %v3096
    %4309 = vmatpush1.bf16.msra.mxu0 %v3095
    %4310 = vmatprep.subr.bf16.mxu0 %v3080
    %4311 = vmatpush1.bf16.msra.mxu0 %v3079
    %4312 = vmatprep.subr.bf16.mxu0 %v3064
    %4313 = vmatpush1.bf16.msra.mxu0 %v3063
    %4314 = vmatprep.subr.bf16.mxu0 %v3048
    %4315 = vmatpush1.bf16.msra.mxu0 %v3047
    %4316 = vmatprep.subr.bf16.mxu0 %v3032
    %4317 = vmatpush1.bf16.msra.mxu0 %v3031
    %4318 = vmatprep.subr.bf16.mxu0 %v3016
    %4319 = vmatpush1.bf16.msra.mxu0 %v3015
    %4320 = vmatprep.subr.bf16.mxu0 %v3000
    %4321 = vmatpush1.bf16.msra.mxu0 %v2999
    %4322 = vmatprep.subr.bf16.mxu0 %v3240
    %4323 = vmatpush2.bf16.msra.mxu0 %v3239
    %4324 = vmatprep.subr.bf16.mxu0 %v3224
    %4325 = vmatpush2.bf16.msra.mxu0 %v3223
    %4326 = vmatprep.subr.bf16.mxu0 %v3208
    %4327 = vmatpush2.bf16.msra.mxu0 %v3207
    %4328 = vmatprep.subr.bf16.mxu0 %v3192
    %4329 = vmatpush2.bf16.msra.mxu0 %v3191
    %4330 = vmatprep.subr.bf16.mxu0 %v3176
    %4331 = vmatpush2.bf16.msra.mxu0 %v3175
    %4332 = vmatprep.subr.bf16.mxu0 %v3160
    %4333 = vmatpush2.bf16.msra.mxu0 %v3159
    %4334 = vmatprep.subr.bf16.mxu0 %v3144
    %4335 = vmatpush2.bf16.msra.mxu0 %v3143
    %4336 = vmatprep.subr.bf16.mxu0 %v3128
    %4337 = vmatpush2.bf16.msra.mxu0 %v3127
    %4338 = vmatprep.mubr.bf16.mxu0 %v812
    %4339 = vmatmul.mubr.bf16.gmra.mxu0 %v811
    %v4340 = vpop.f32.mrf.mxu0
    %v4341 = vadd.f32 %v4300, %v4340
    %v4342 = vpop.f32.mrf.mxu0
    %v4343 = vadd.f32 %v4302, %v4342
    %v4344 = vpop.f32.mrf.mxu0
    %v4345 = vpop.f32.mrf.mxu0
    %4346 = vdwg.mxu0
    %4347 = vmatprep.subr.bf16.mxu0 %v3368
    %4348 = vmatpush1.bf16.msra.mxu0 %v3367
    %4349 = vmatprep.subr.bf16.mxu0 %v3352
    %4350 = vmatpush1.bf16.msra.mxu0 %v3351
    %4351 = vmatprep.subr.bf16.mxu0 %v3336
    %4352 = vmatpush1.bf16.msra.mxu0 %v3335
    %4353 = vmatprep.subr.bf16.mxu0 %v3320
    %4354 = vmatpush1.bf16.msra.mxu0 %v3319
    %4355 = vmatprep.subr.bf16.mxu0 %v3304
    %4356 = vmatpush1.bf16.msra.mxu0 %v3303
    %4357 = vmatprep.subr.bf16.mxu0 %v3288
    %4358 = vmatpush1.bf16.msra.mxu0 %v3287
    %4359 = vmatprep.subr.bf16.mxu0 %v3272
    %4360 = vmatpush1.bf16.msra.mxu0 %v3271
    %4361 = vmatprep.subr.bf16.mxu0 %v3256
    %4362 = vmatpush1.bf16.msra.mxu0 %v3255
    %4363 = vmatprep.subr.bf16.mxu0 0
    %4364 = vmatpush2.bf16.msra.mxu0 0
    %4365 = vmatprep.subr.bf16.mxu0 0
    %4366 = vmatpush2.bf16.msra.mxu0 0
    %4367 = vmatprep.subr.bf16.mxu0 0
    %4368 = vmatpush2.bf16.msra.mxu0 0
    %4369 = vmatprep.subr.bf16.mxu0 0
    %4370 = vmatpush2.bf16.msra.mxu0 0
    %4371 = vmatprep.subr.bf16.mxu0 0
    %4372 = vmatpush2.bf16.msra.mxu0 0
    %4373 = vmatprep.subr.bf16.mxu0 0
    %4374 = vmatpush2.bf16.msra.mxu0 0
    %4375 = vmatprep.subr.bf16.mxu0 0
    %4376 = vmatpush2.bf16.msra.mxu0 0
    %4377 = vmatprep.subr.bf16.mxu0 0
    %4378 = vmatpush2.bf16.msra.mxu0 0
    %4379 = vmatprep.mubr.bf16.mxu0 0
    %4380 = vmatmul.mubr.bf16.gmra.mxu0 %v813
    %v4381 = vpop.f32.mrf.mxu0
    %v4382 = vadd.f32 %v4341, %v4381
    %v4383 = vpop.f32.mrf.mxu0
    %v4384 = vadd.f32 %v4343, %v4383
    %v4385 = vpop.f32.mrf.mxu0
    %v4386 = vpop.f32.mrf.mxu0
    %4387 = vdwg.mxu0
    %4388 = vmatprep.subr.bf16.mxu0 %v2858
    %4389 = vmatpush1.bf16.msra.mxu0 %v2857
    %4390 = vmatprep.subr.bf16.mxu0 %v2842
    %4391 = vmatpush1.bf16.msra.mxu0 %v2841
    %4392 = vmatprep.subr.bf16.mxu0 %v2826
    %4393 = vmatpush1.bf16.msra.mxu0 %v2825
    %4394 = vmatprep.subr.bf16.mxu0 %v2810
    %4395 = vmatpush1.bf16.msra.mxu0 %v2809
    %4396 = vmatprep.subr.bf16.mxu0 %v2794
    %4397 = vmatpush1.bf16.msra.mxu0 %v2793
    %4398 = vmatprep.subr.bf16.mxu0 %v2778
    %4399 = vmatpush1.bf16.msra.mxu0 %v2777
    %4400 = vmatprep.subr.bf16.mxu0 %v2762
    %4401 = vmatpush1.bf16.msra.mxu0 %v2761
    %4402 = vmatprep.subr.bf16.mxu0 %v2746
    %4403 = vmatpush1.bf16.msra.mxu0 %v2745
    %4404 = vmatprep.subr.bf16.mxu0 %v2986
    %4405 = vmatpush2.bf16.msra.mxu0 %v2985
    %4406 = vmatprep.subr.bf16.mxu0 %v2970
    %4407 = vmatpush2.bf16.msra.mxu0 %v2969
    %4408 = vmatprep.subr.bf16.mxu0 %v2954
    %4409 = vmatpush2.bf16.msra.mxu0 %v2953
    %4410 = vmatprep.subr.bf16.mxu0 %v2938
    %4411 = vmatpush2.bf16.msra.mxu0 %v2937
    %4412 = vmatprep.subr.bf16.mxu0 %v2922
    %4413 = vmatpush2.bf16.msra.mxu0 %v2921
    %4414 = vmatprep.subr.bf16.mxu0 %v2906
    %4415 = vmatpush2.bf16.msra.mxu0 %v2905
    %4416 = vmatprep.subr.bf16.mxu0 %v2890
    %4417 = vmatpush2.bf16.msra.mxu0 %v2889
    %4418 = vmatprep.subr.bf16.mxu0 %v2874
    %4419 = vmatpush2.bf16.msra.mxu0 %v2873
    %4420 = vmatprep.mubr.bf16.mxu0 %v810
    %4421 = vmatmul.mubr.bf16.gmra.mxu0 %v809
    %v4422 = vpop.f32.mrf.mxu0
    %v4423 = vadd.f32 %v748, %v4422
    %v4424 = vpop.f32.mrf.mxu0
    %v4425 = vadd.f32 %v752, %v4424
    %v4426 = vpop.f32.mrf.mxu0
    %v4427 = vpop.f32.mrf.mxu0
    %4428 = vdwg.mxu0
    %4429 = vmatprep.subr.bf16.mxu0 %v3114
    %4430 = vmatpush1.bf16.msra.mxu0 %v3113
    %4431 = vmatprep.subr.bf16.mxu0 %v3098
    %4432 = vmatpush1.bf16.msra.mxu0 %v3097
    %4433 = vmatprep.subr.bf16.mxu0 %v3082
    %4434 = vmatpush1.bf16.msra.mxu0 %v3081
    %4435 = vmatprep.subr.bf16.mxu0 %v3066
    %4436 = vmatpush1.bf16.msra.mxu0 %v3065
    %4437 = vmatprep.subr.bf16.mxu0 %v3050
    %4438 = vmatpush1.bf16.msra.mxu0 %v3049
    %4439 = vmatprep.subr.bf16.mxu0 %v3034
    %4440 = vmatpush1.bf16.msra.mxu0 %v3033
    %4441 = vmatprep.subr.bf16.mxu0 %v3018
    %4442 = vmatpush1.bf16.msra.mxu0 %v3017
    %4443 = vmatprep.subr.bf16.mxu0 %v3002
    %4444 = vmatpush1.bf16.msra.mxu0 %v3001
    %4445 = vmatprep.subr.bf16.mxu0 %v3242
    %4446 = vmatpush2.bf16.msra.mxu0 %v3241
    %4447 = vmatprep.subr.bf16.mxu0 %v3226
    %4448 = vmatpush2.bf16.msra.mxu0 %v3225
    %4449 = vmatprep.subr.bf16.mxu0 %v3210
    %4450 = vmatpush2.bf16.msra.mxu0 %v3209
    %4451 = vmatprep.subr.bf16.mxu0 %v3194
    %4452 = vmatpush2.bf16.msra.mxu0 %v3193
    %4453 = vmatprep.subr.bf16.mxu0 %v3178
    %4454 = vmatpush2.bf16.msra.mxu0 %v3177
    %4455 = vmatprep.subr.bf16.mxu0 %v3162
    %4456 = vmatpush2.bf16.msra.mxu0 %v3161
    %4457 = vmatprep.subr.bf16.mxu0 %v3146
    %4458 = vmatpush2.bf16.msra.mxu0 %v3145
    %4459 = vmatprep.subr.bf16.mxu0 %v3130
    %4460 = vmatpush2.bf16.msra.mxu0 %v3129
    %4461 = vmatprep.mubr.bf16.mxu0 %v812
    %4462 = vmatmul.mubr.bf16.gmra.mxu0 %v811
    %v4463 = vpop.f32.mrf.mxu0
    %v4464 = vadd.f32 %v4423, %v4463
    %v4465 = vpop.f32.mrf.mxu0
    %v4466 = vadd.f32 %v4425, %v4465
    %v4467 = vpop.f32.mrf.mxu0
    %v4468 = vpop.f32.mrf.mxu0
    %4469 = vdwg.mxu0
    %4470 = vmatprep.subr.bf16.mxu0 %v3370
    %4471 = vmatpush1.bf16.msra.mxu0 %v3369
    %4472 = vmatprep.subr.bf16.mxu0 %v3354
    %4473 = vmatpush1.bf16.msra.mxu0 %v3353
    %4474 = vmatprep.subr.bf16.mxu0 %v3338
    %4475 = vmatpush1.bf16.msra.mxu0 %v3337
    %4476 = vmatprep.subr.bf16.mxu0 %v3322
    %4477 = vmatpush1.bf16.msra.mxu0 %v3321
    %4478 = vmatprep.subr.bf16.mxu0 %v3306
    %4479 = vmatpush1.bf16.msra.mxu0 %v3305
    %4480 = vmatprep.subr.bf16.mxu0 %v3290
    %4481 = vmatpush1.bf16.msra.mxu0 %v3289
    %4482 = vmatprep.subr.bf16.mxu0 %v3274
    %4483 = vmatpush1.bf16.msra.mxu0 %v3273
    %4484 = vmatprep.subr.bf16.mxu0 %v3258
    %4485 = vmatpush1.bf16.msra.mxu0 %v3257
    %4486 = vmatprep.subr.bf16.mxu0 0
    %4487 = vmatpush2.bf16.msra.mxu0 0
    %4488 = vmatprep.subr.bf16.mxu0 0
    %4489 = vmatpush2.bf16.msra.mxu0 0
    %4490 = vmatprep.subr.bf16.mxu0 0
    %4491 = vmatpush2.bf16.msra.mxu0 0
    %4492 = vmatprep.subr.bf16.mxu0 0
    %4493 = vmatpush2.bf16.msra.mxu0 0
    %4494 = vmatprep.subr.bf16.mxu0 0
    %4495 = vmatpush2.bf16.msra.mxu0 0
    %4496 = vmatprep.subr.bf16.mxu0 0
    %4497 = vmatpush2.bf16.msra.mxu0 0
    %4498 = vmatprep.subr.bf16.mxu0 0
    %4499 = vmatpush2.bf16.msra.mxu0 0
    %4500 = vmatprep.subr.bf16.mxu0 0
    %4501 = vmatpush2.bf16.msra.mxu0 0
    %4502 = vmatprep.mubr.bf16.mxu0 0
    %4503 = vmatmul.mubr.bf16.gmra.mxu0 %v813
    %v4504 = vpop.f32.mrf.mxu0
    %v4505 = vadd.f32 %v4464, %v4504
    %v4506 = vpop.f32.mrf.mxu0
    %v4507 = vadd.f32 %v4466, %v4506
    %v4508 = vpop.f32.mrf.mxu0
    %v4509 = vpop.f32.mrf.mxu0
    %4510 = vdwg.mxu0
    %4511 = vmatprep.subr.bf16.mxu0 %v2860
    %4512 = vmatpush1.bf16.msra.mxu0 %v2859
    %4513 = vmatprep.subr.bf16.mxu0 %v2844
    %4514 = vmatpush1.bf16.msra.mxu0 %v2843
    %4515 = vmatprep.subr.bf16.mxu0 %v2828
    %4516 = vmatpush1.bf16.msra.mxu0 %v2827
    %4517 = vmatprep.subr.bf16.mxu0 %v2812
    %4518 = vmatpush1.bf16.msra.mxu0 %v2811
    %4519 = vmatprep.subr.bf16.mxu0 %v2796
    %4520 = vmatpush1.bf16.msra.mxu0 %v2795
    %4521 = vmatprep.subr.bf16.mxu0 %v2780
    %4522 = vmatpush1.bf16.msra.mxu0 %v2779
    %4523 = vmatprep.subr.bf16.mxu0 %v2764
    %4524 = vmatpush1.bf16.msra.mxu0 %v2763
    %4525 = vmatprep.subr.bf16.mxu0 %v2748
    %4526 = vmatpush1.bf16.msra.mxu0 %v2747
    %4527 = vmatprep.subr.bf16.mxu0 %v2988
    %4528 = vmatpush2.bf16.msra.mxu0 %v2987
    %4529 = vmatprep.subr.bf16.mxu0 %v2972
    %4530 = vmatpush2.bf16.msra.mxu0 %v2971
    %4531 = vmatprep.subr.bf16.mxu0 %v2956
    %4532 = vmatpush2.bf16.msra.mxu0 %v2955
    %4533 = vmatprep.subr.bf16.mxu0 %v2940
    %4534 = vmatpush2.bf16.msra.mxu0 %v2939
    %4535 = vmatprep.subr.bf16.mxu0 %v2924
    %4536 = vmatpush2.bf16.msra.mxu0 %v2923
    %4537 = vmatprep.subr.bf16.mxu0 %v2908
    %4538 = vmatpush2.bf16.msra.mxu0 %v2907
    %4539 = vmatprep.subr.bf16.mxu0 %v2892
    %4540 = vmatpush2.bf16.msra.mxu0 %v2891
    %4541 = vmatprep.subr.bf16.mxu0 %v2876
    %4542 = vmatpush2.bf16.msra.mxu0 %v2875
    %4543 = vmatprep.mubr.bf16.mxu0 %v810
    %4544 = vmatmul.mubr.bf16.gmra.mxu0 %v809
    %v4545 = vpop.f32.mrf.mxu0
    %v4546 = vadd.f32 %v756, %v4545
    %v4547 = vpop.f32.mrf.mxu0
    %v4548 = vadd.f32 %v760, %v4547
    %v4549 = vpop.f32.mrf.mxu0
    %v4550 = vpop.f32.mrf.mxu0
    %4551 = vdwg.mxu0
    %4552 = vmatprep.subr.bf16.mxu0 %v3116
    %4553 = vmatpush1.bf16.msra.mxu0 %v3115
    %4554 = vmatprep.subr.bf16.mxu0 %v3100
    %4555 = vmatpush1.bf16.msra.mxu0 %v3099
    %4556 = vmatprep.subr.bf16.mxu0 %v3084
    %4557 = vmatpush1.bf16.msra.mxu0 %v3083
    %4558 = vmatprep.subr.bf16.mxu0 %v3068
    %4559 = vmatpush1.bf16.msra.mxu0 %v3067
    %4560 = vmatprep.subr.bf16.mxu0 %v3052
    %4561 = vmatpush1.bf16.msra.mxu0 %v3051
    %4562 = vmatprep.subr.bf16.mxu0 %v3036
    %4563 = vmatpush1.bf16.msra.mxu0 %v3035
    %4564 = vmatprep.subr.bf16.mxu0 %v3020
    %4565 = vmatpush1.bf16.msra.mxu0 %v3019
    %4566 = vmatprep.subr.bf16.mxu0 %v3004
    %4567 = vmatpush1.bf16.msra.mxu0 %v3003
    %4568 = vmatprep.subr.bf16.mxu0 %v3244
    %4569 = vmatpush2.bf16.msra.mxu0 %v3243
    %4570 = vmatprep.subr.bf16.mxu0 %v3228
    %4571 = vmatpush2.bf16.msra.mxu0 %v3227
    %4572 = vmatprep.subr.bf16.mxu0 %v3212
    %4573 = vmatpush2.bf16.msra.mxu0 %v3211
    %4574 = vmatprep.subr.bf16.mxu0 %v3196
    %4575 = vmatpush2.bf16.msra.mxu0 %v3195
    %4576 = vmatprep.subr.bf16.mxu0 %v3180
    %4577 = vmatpush2.bf16.msra.mxu0 %v3179
    %4578 = vmatprep.subr.bf16.mxu0 %v3164
    %4579 = vmatpush2.bf16.msra.mxu0 %v3163
    %4580 = vmatprep.subr.bf16.mxu0 %v3148
    %4581 = vmatpush2.bf16.msra.mxu0 %v3147
    %4582 = vmatprep.subr.bf16.mxu0 %v3132
    %4583 = vmatpush2.bf16.msra.mxu0 %v3131
    %4584 = vmatprep.mubr.bf16.mxu0 %v812
    %4585 = vmatmul.mubr.bf16.gmra.mxu0 %v811
    %v4586 = vpop.f32.mrf.mxu0
    %v4587 = vadd.f32 %v4546, %v4586
    %v4588 = vpop.f32.mrf.mxu0
    %v4589 = vadd.f32 %v4548, %v4588
    %v4590 = vpop.f32.mrf.mxu0
    %v4591 = vpop.f32.mrf.mxu0
    %4592 = vdwg.mxu0
    %4593 = vmatprep.subr.bf16.mxu0 %v3372
    %4594 = vmatpush1.bf16.msra.mxu0 %v3371
    %4595 = vmatprep.subr.bf16.mxu0 %v3356
    %4596 = vmatpush1.bf16.msra.mxu0 %v3355
    %4597 = vmatprep.subr.bf16.mxu0 %v3340
    %4598 = vmatpush1.bf16.msra.mxu0 %v3339
    %4599 = vmatprep.subr.bf16.mxu0 %v3324
    %4600 = vmatpush1.bf16.msra.mxu0 %v3323
    %4601 = vmatprep.subr.bf16.mxu0 %v3308
    %4602 = vmatpush1.bf16.msra.mxu0 %v3307
    %4603 = vmatprep.subr.bf16.mxu0 %v3292
    %4604 = vmatpush1.bf16.msra.mxu0 %v3291
    %4605 = vmatprep.subr.bf16.mxu0 %v3276
    %4606 = vmatpush1.bf16.msra.mxu0 %v3275
    %4607 = vmatprep.subr.bf16.mxu0 %v3260
    %4608 = vmatpush1.bf16.msra.mxu0 %v3259
    %4609 = vmatprep.subr.bf16.mxu0 0
    %4610 = vmatpush2.bf16.msra.mxu0 0
    %4611 = vmatprep.subr.bf16.mxu0 0
    %4612 = vmatpush2.bf16.msra.mxu0 0
    %4613 = vmatprep.subr.bf16.mxu0 0
    %4614 = vmatpush2.bf16.msra.mxu0 0
    %4615 = vmatprep.subr.bf16.mxu0 0
    %4616 = vmatpush2.bf16.msra.mxu0 0
    %4617 = vmatprep.subr.bf16.mxu0 0
    %4618 = vmatpush2.bf16.msra.mxu0 0
    %4619 = vmatprep.subr.bf16.mxu0 0
    %4620 = vmatpush2.bf16.msra.mxu0 0
    %4621 = vmatprep.subr.bf16.mxu0 0
    %4622 = vmatpush2.bf16.msra.mxu0 0
    %4623 = vmatprep.subr.bf16.mxu0 0
    %4624 = vmatpush2.bf16.msra.mxu0 0
    %4625 = vmatprep.mubr.bf16.mxu0 0
    %4626 = vmatmul.mubr.bf16.gmra.mxu0 %v813
    %v4627 = vpop.f32.mrf.mxu0
    %v4628 = vadd.f32 %v4587, %v4627
    %v4629 = vpop.f32.mrf.mxu0
    %v4630 = vadd.f32 %v4589, %v4629
    %v4631 = vpop.f32.mrf.mxu0
    %v4632 = vpop.f32.mrf.mxu0
    %4633 = vdwg.mxu0
    %4634 = vmatprep.subr.bf16.mxu0 %v2862
    %4635 = vmatpush1.bf16.msra.mxu0 %v2861
    %4636 = vmatprep.subr.bf16.mxu0 %v2846
    %4637 = vmatpush1.bf16.msra.mxu0 %v2845
    %4638 = vmatprep.subr.bf16.mxu0 %v2830
    %4639 = vmatpush1.bf16.msra.mxu0 %v2829
    %4640 = vmatprep.subr.bf16.mxu0 %v2814
    %4641 = vmatpush1.bf16.msra.mxu0 %v2813
    %4642 = vmatprep.subr.bf16.mxu0 %v2798
    %4643 = vmatpush1.bf16.msra.mxu0 %v2797
    %4644 = vmatprep.subr.bf16.mxu0 %v2782
    %4645 = vmatpush1.bf16.msra.mxu0 %v2781
    %4646 = vmatprep.subr.bf16.mxu0 %v2766
    %4647 = vmatpush1.bf16.msra.mxu0 %v2765
    %4648 = vmatprep.subr.bf16.mxu0 %v2750
    %4649 = vmatpush1.bf16.msra.mxu0 %v2749
    %4650 = vmatprep.subr.bf16.mxu0 %v2990
    %4651 = vmatpush2.bf16.msra.mxu0 %v2989
    %4652 = vmatprep.subr.bf16.mxu0 %v2974
    %4653 = vmatpush2.bf16.msra.mxu0 %v2973
    %4654 = vmatprep.subr.bf16.mxu0 %v2958
    %4655 = vmatpush2.bf16.msra.mxu0 %v2957
    %4656 = vmatprep.subr.bf16.mxu0 %v2942
    %4657 = vmatpush2.bf16.msra.mxu0 %v2941
    %4658 = vmatprep.subr.bf16.mxu0 %v2926
    %4659 = vmatpush2.bf16.msra.mxu0 %v2925
    %4660 = vmatprep.subr.bf16.mxu0 %v2910
    %4661 = vmatpush2.bf16.msra.mxu0 %v2909
    %4662 = vmatprep.subr.bf16.mxu0 %v2894
    %4663 = vmatpush2.bf16.msra.mxu0 %v2893
    %4664 = vmatprep.subr.bf16.mxu0 %v2878
    %4665 = vmatpush2.bf16.msra.mxu0 %v2877
    %4666 = vmatprep.mubr.bf16.mxu0 %v810
    %4667 = vmatmul.mubr.bf16.gmra.mxu0 %v809
    %v4668 = vpop.f32.mrf.mxu0
    %v4669 = vadd.f32 %v764, %v4668
    %v4670 = vpop.f32.mrf.mxu0
    %v4671 = vadd.f32 %v768, %v4670
    %v4672 = vpop.f32.mrf.mxu0
    %v4673 = vpop.f32.mrf.mxu0
    %4674 = vdwg.mxu0
    %4675 = vmatprep.subr.bf16.mxu0 %v3118
    %4676 = vmatpush1.bf16.msra.mxu0 %v3117
    %4677 = vmatprep.subr.bf16.mxu0 %v3102
    %4678 = vmatpush1.bf16.msra.mxu0 %v3101
    %4679 = vmatprep.subr.bf16.mxu0 %v3086
    %4680 = vmatpush1.bf16.msra.mxu0 %v3085
    %4681 = vmatprep.subr.bf16.mxu0 %v3070
    %4682 = vmatpush1.bf16.msra.mxu0 %v3069
    %4683 = vmatprep.subr.bf16.mxu0 %v3054
    %4684 = vmatpush1.bf16.msra.mxu0 %v3053
    %4685 = vmatprep.subr.bf16.mxu0 %v3038
    %4686 = vmatpush1.bf16.msra.mxu0 %v3037
    %4687 = vmatprep.subr.bf16.mxu0 %v3022
    %4688 = vmatpush1.bf16.msra.mxu0 %v3021
    %4689 = vmatprep.subr.bf16.mxu0 %v3006
    %4690 = vmatpush1.bf16.msra.mxu0 %v3005
    %4691 = vmatprep.subr.bf16.mxu0 %v3246
    %4692 = vmatpush2.bf16.msra.mxu0 %v3245
    %4693 = vmatprep.subr.bf16.mxu0 %v3230
    %4694 = vmatpush2.bf16.msra.mxu0 %v3229
    %4695 = vmatprep.subr.bf16.mxu0 %v3214
    %4696 = vmatpush2.bf16.msra.mxu0 %v3213
    %4697 = vmatprep.subr.bf16.mxu0 %v3198
    %4698 = vmatpush2.bf16.msra.mxu0 %v3197
    %4699 = vmatprep.subr.bf16.mxu0 %v3182
    %4700 = vmatpush2.bf16.msra.mxu0 %v3181
    %4701 = vmatprep.subr.bf16.mxu0 %v3166
    %4702 = vmatpush2.bf16.msra.mxu0 %v3165
    %4703 = vmatprep.subr.bf16.mxu0 %v3150
    %4704 = vmatpush2.bf16.msra.mxu0 %v3149
    %4705 = vmatprep.subr.bf16.mxu0 %v3134
    %4706 = vmatpush2.bf16.msra.mxu0 %v3133
    %4707 = vmatprep.mubr.bf16.mxu0 %v812
    %4708 = vmatmul.mubr.bf16.gmra.mxu0 %v811
    %v4709 = vpop.f32.mrf.mxu0
    %v4710 = vadd.f32 %v4669, %v4709
    %v4711 = vpop.f32.mrf.mxu0
    %v4712 = vadd.f32 %v4671, %v4711
    %v4713 = vpop.f32.mrf.mxu0
    %v4714 = vpop.f32.mrf.mxu0
    %4715 = vdwg.mxu0
    %4716 = vmatprep.subr.bf16.mxu0 %v3374
    %4717 = vmatpush1.bf16.msra.mxu0 %v3373
    %4718 = vmatprep.subr.bf16.mxu0 %v3358
    %4719 = vmatpush1.bf16.msra.mxu0 %v3357
    %4720 = vmatprep.subr.bf16.mxu0 %v3342
    %4721 = vmatpush1.bf16.msra.mxu0 %v3341
    %4722 = vmatprep.subr.bf16.mxu0 %v3326
    %4723 = vmatpush1.bf16.msra.mxu0 %v3325
    %4724 = vmatprep.subr.bf16.mxu0 %v3310
    %4725 = vmatpush1.bf16.msra.mxu0 %v3309
    %4726 = vmatprep.subr.bf16.mxu0 %v3294
    %4727 = vmatpush1.bf16.msra.mxu0 %v3293
    %4728 = vmatprep.subr.bf16.mxu0 %v3278
    %4729 = vmatpush1.bf16.msra.mxu0 %v3277
    %4730 = vmatprep.subr.bf16.mxu0 %v3262
    %4731 = vmatpush1.bf16.msra.mxu0 %v3261
    %4732 = vmatprep.subr.bf16.mxu0 0
    %4733 = vmatpush2.bf16.msra.mxu0 0
    %4734 = vmatprep.subr.bf16.mxu0 0
    %4735 = vmatpush2.bf16.msra.mxu0 0
    %4736 = vmatprep.subr.bf16.mxu0 0
    %4737 = vmatpush2.bf16.msra.mxu0 0
    %4738 = vmatprep.subr.bf16.mxu0 0
    %4739 = vmatpush2.bf16.msra.mxu0 0
    %4740 = vmatprep.subr.bf16.mxu0 0
    %4741 = vmatpush2.bf16.msra.mxu0 0
    %4742 = vmatprep.subr.bf16.mxu0 0
    %4743 = vmatpush2.bf16.msra.mxu0 0
    %4744 = vmatprep.subr.bf16.mxu0 0
    %4745 = vmatpush2.bf16.msra.mxu0 0
    %4746 = vmatprep.subr.bf16.mxu0 0
    %4747 = vmatpush2.bf16.msra.mxu0 0
    %4748 = vmatprep.mubr.bf16.mxu0 0
    %4749 = vmatmul.mubr.bf16.gmra.mxu0 %v813
    %v4750 = vpop.f32.mrf.mxu0
    %v4751 = vadd.f32 %v4710, %v4750
    %v4752 = vpop.f32.mrf.mxu0
    %v4753 = vadd.f32 %v4712, %v4752
    %v4754 = vpop.f32.mrf.mxu0
    %v4755 = vpop.f32.mrf.mxu0
    %4756 = vdwg.mxu0
    %4757 = vmatprep.subr.bf16.mxu0 %v2864
    %4758 = vmatpush1.bf16.msra.mxu0 %v2863
    %4759 = vmatprep.subr.bf16.mxu0 %v2848
    %4760 = vmatpush1.bf16.msra.mxu0 %v2847
    %4761 = vmatprep.subr.bf16.mxu0 %v2832
    %4762 = vmatpush1.bf16.msra.mxu0 %v2831
    %4763 = vmatprep.subr.bf16.mxu0 %v2816
    %4764 = vmatpush1.bf16.msra.mxu0 %v2815
    %4765 = vmatprep.subr.bf16.mxu0 %v2800
    %4766 = vmatpush1.bf16.msra.mxu0 %v2799
    %4767 = vmatprep.subr.bf16.mxu0 %v2784
    %4768 = vmatpush1.bf16.msra.mxu0 %v2783
    %4769 = vmatprep.subr.bf16.mxu0 %v2768
    %4770 = vmatpush1.bf16.msra.mxu0 %v2767
    %4771 = vmatprep.subr.bf16.mxu0 %v2752
    %4772 = vmatpush1.bf16.msra.mxu0 %v2751
    %4773 = vmatprep.subr.bf16.mxu0 %v2992
    %4774 = vmatpush2.bf16.msra.mxu0 %v2991
    %4775 = vmatprep.subr.bf16.mxu0 %v2976
    %4776 = vmatpush2.bf16.msra.mxu0 %v2975
    %4777 = vmatprep.subr.bf16.mxu0 %v2960
    %4778 = vmatpush2.bf16.msra.mxu0 %v2959
    %4779 = vmatprep.subr.bf16.mxu0 %v2944
    %4780 = vmatpush2.bf16.msra.mxu0 %v2943
    %4781 = vmatprep.subr.bf16.mxu0 %v2928
    %4782 = vmatpush2.bf16.msra.mxu0 %v2927
    %4783 = vmatprep.subr.bf16.mxu0 %v2912
    %4784 = vmatpush2.bf16.msra.mxu0 %v2911
    %4785 = vmatprep.subr.bf16.mxu0 %v2896
    %4786 = vmatpush2.bf16.msra.mxu0 %v2895
    %4787 = vmatprep.subr.bf16.mxu0 %v2880
    %4788 = vmatpush2.bf16.msra.mxu0 %v2879
    %4789 = vmatprep.mubr.bf16.mxu0 %v810
    %4790 = vmatmul.mubr.bf16.gmra.mxu0 %v809
    %v4791 = vpop.f32.mrf.mxu0
    %v4792 = vadd.f32 %v772, %v4791
    %v4793 = vpop.f32.mrf.mxu0
    %v4794 = vadd.f32 %v776, %v4793
    %v4795 = vpop.f32.mrf.mxu0
    %v4796 = vpop.f32.mrf.mxu0
    %4797 = vdwg.mxu0
    %4798 = vmatprep.subr.bf16.mxu0 %v3120
    %4799 = vmatpush1.bf16.msra.mxu0 %v3119
    %4800 = vmatprep.subr.bf16.mxu0 %v3104
    %4801 = vmatpush1.bf16.msra.mxu0 %v3103
    %4802 = vmatprep.subr.bf16.mxu0 %v3088
    %4803 = vmatpush1.bf16.msra.mxu0 %v3087
    %4804 = vmatprep.subr.bf16.mxu0 %v3072
    %4805 = vmatpush1.bf16.msra.mxu0 %v3071
    %4806 = vmatprep.subr.bf16.mxu0 %v3056
    %4807 = vmatpush1.bf16.msra.mxu0 %v3055
    %4808 = vmatprep.subr.bf16.mxu0 %v3040
    %4809 = vmatpush1.bf16.msra.mxu0 %v3039
    %4810 = vmatprep.subr.bf16.mxu0 %v3024
    %4811 = vmatpush1.bf16.msra.mxu0 %v3023
    %4812 = vmatprep.subr.bf16.mxu0 %v3008
    %4813 = vmatpush1.bf16.msra.mxu0 %v3007
    %4814 = vmatprep.subr.bf16.mxu0 %v3248
    %4815 = vmatpush2.bf16.msra.mxu0 %v3247
    %4816 = vmatprep.subr.bf16.mxu0 %v3232
    %4817 = vmatpush2.bf16.msra.mxu0 %v3231
    %4818 = vmatprep.subr.bf16.mxu0 %v3216
    %4819 = vmatpush2.bf16.msra.mxu0 %v3215
    %4820 = vmatprep.subr.bf16.mxu0 %v3200
    %4821 = vmatpush2.bf16.msra.mxu0 %v3199
    %4822 = vmatprep.subr.bf16.mxu0 %v3184
    %4823 = vmatpush2.bf16.msra.mxu0 %v3183
    %4824 = vmatprep.subr.bf16.mxu0 %v3168
    %4825 = vmatpush2.bf16.msra.mxu0 %v3167
    %4826 = vmatprep.subr.bf16.mxu0 %v3152
    %4827 = vmatpush2.bf16.msra.mxu0 %v3151
    %4828 = vmatprep.subr.bf16.mxu0 %v3136
    %4829 = vmatpush2.bf16.msra.mxu0 %v3135
    %4830 = vmatprep.mubr.bf16.mxu0 %v812
    %4831 = vmatmul.mubr.bf16.gmra.mxu0 %v811
    %v4832 = vpop.f32.mrf.mxu0
    %v4833 = vadd.f32 %v4792, %v4832
    %v4834 = vpop.f32.mrf.mxu0
    %v4835 = vadd.f32 %v4794, %v4834
    %v4836 = vpop.f32.mrf.mxu0
    %v4837 = vpop.f32.mrf.mxu0
    %4838 = vdwg.mxu0
    %4839 = vmatprep.subr.bf16.mxu0 %v3376
    %4840 = vmatpush1.bf16.msra.mxu0 %v3375
    %4841 = vmatprep.subr.bf16.mxu0 %v3360
    %4842 = vmatpush1.bf16.msra.mxu0 %v3359
    %4843 = vmatprep.subr.bf16.mxu0 %v3344
    %4844 = vmatpush1.bf16.msra.mxu0 %v3343
    %4845 = vmatprep.subr.bf16.mxu0 %v3328
    %4846 = vmatpush1.bf16.msra.mxu0 %v3327
    %4847 = vmatprep.subr.bf16.mxu0 %v3312
    %4848 = vmatpush1.bf16.msra.mxu0 %v3311
    %4849 = vmatprep.subr.bf16.mxu0 %v3296
    %4850 = vmatpush1.bf16.msra.mxu0 %v3295
    %4851 = vmatprep.subr.bf16.mxu0 %v3280
    %4852 = vmatpush1.bf16.msra.mxu0 %v3279
    %4853 = vmatprep.subr.bf16.mxu0 %v3264
    %4854 = vmatpush1.bf16.msra.mxu0 %v3263
    %4855 = vmatprep.subr.bf16.mxu0 0
    %4856 = vmatpush2.bf16.msra.mxu0 0
    %4857 = vmatprep.subr.bf16.mxu0 0
    %4858 = vmatpush2.bf16.msra.mxu0 0
    %4859 = vmatprep.subr.bf16.mxu0 0
    %4860 = vmatpush2.bf16.msra.mxu0 0
    %4861 = vmatprep.subr.bf16.mxu0 0
    %4862 = vmatpush2.bf16.msra.mxu0 0
    %4863 = vmatprep.subr.bf16.mxu0 0
    %4864 = vmatpush2.bf16.msra.mxu0 0
    %4865 = vmatprep.subr.bf16.mxu0 0
    %4866 = vmatpush2.bf16.msra.mxu0 0
    %4867 = vmatprep.subr.bf16.mxu0 0
    %4868 = vmatpush2.bf16.msra.mxu0 0
    %4869 = vmatprep.subr.bf16.mxu0 0
    %4870 = vmatpush2.bf16.msra.mxu0 0
    %4871 = vmatprep.mubr.bf16.mxu0 0
    %4872 = vmatmul.mubr.bf16.gmra.mxu0 %v813
    %v4873 = vpop.f32.mrf.mxu0
    %v4874 = vadd.f32 %v4833, %v4873
    %v4875 = vpop.f32.mrf.mxu0
    %v4876 = vadd.f32 %v4835, %v4875
    %v4877 = vpop.f32.mrf.mxu0
    %v4878 = vpop.f32.mrf.mxu0
    %4879 = vdwg.mxu0
    %4880 = vmatprep.subr.bf16.mxu0 %v2866
    %4881 = vmatpush1.bf16.msra.mxu0 %v2865
    %4882 = vmatprep.subr.bf16.mxu0 %v2850
    %4883 = vmatpush1.bf16.msra.mxu0 %v2849
    %4884 = vmatprep.subr.bf16.mxu0 %v2834
    %4885 = vmatpush1.bf16.msra.mxu0 %v2833
    %4886 = vmatprep.subr.bf16.mxu0 %v2818
    %4887 = vmatpush1.bf16.msra.mxu0 %v2817
    %4888 = vmatprep.subr.bf16.mxu0 %v2802
    %4889 = vmatpush1.bf16.msra.mxu0 %v2801
    %4890 = vmatprep.subr.bf16.mxu0 %v2786
    %4891 = vmatpush1.bf16.msra.mxu0 %v2785
    %4892 = vmatprep.subr.bf16.mxu0 %v2770
    %4893 = vmatpush1.bf16.msra.mxu0 %v2769
    %4894 = vmatprep.subr.bf16.mxu0 %v2754
    %4895 = vmatpush1.bf16.msra.mxu0 %v2753
    %4896 = vmatprep.subr.bf16.mxu0 %v2994
    %4897 = vmatpush2.bf16.msra.mxu0 %v2993
    %4898 = vmatprep.subr.bf16.mxu0 %v2978
    %4899 = vmatpush2.bf16.msra.mxu0 %v2977
    %4900 = vmatprep.subr.bf16.mxu0 %v2962
    %4901 = vmatpush2.bf16.msra.mxu0 %v2961
    %4902 = vmatprep.subr.bf16.mxu0 %v2946
    %4903 = vmatpush2.bf16.msra.mxu0 %v2945
    %4904 = vmatprep.subr.bf16.mxu0 %v2930
    %4905 = vmatpush2.bf16.msra.mxu0 %v2929
    %4906 = vmatprep.subr.bf16.mxu0 %v2914
    %4907 = vmatpush2.bf16.msra.mxu0 %v2913
    %4908 = vmatprep.subr.bf16.mxu0 %v2898
    %4909 = vmatpush2.bf16.msra.mxu0 %v2897
    %4910 = vmatprep.subr.bf16.mxu0 %v2882
    %4911 = vmatpush2.bf16.msra.mxu0 %v2881
    %4912 = vmatprep.mubr.bf16.mxu0 %v810
    %4913 = vmatmul.mubr.bf16.gmra.mxu0 %v809
    %v4914 = vpop.f32.mrf.mxu0
    %v4915 = vadd.f32 %v780, %v4914
    %v4916 = vpop.f32.mrf.mxu0
    %v4917 = vadd.f32 %v784, %v4916
    %v4918 = vpop.f32.mrf.mxu0
    %v4919 = vpop.f32.mrf.mxu0
    %4920 = vdwg.mxu0
    %4921 = vmatprep.subr.bf16.mxu0 %v3122
    %4922 = vmatpush1.bf16.msra.mxu0 %v3121
    %4923 = vmatprep.subr.bf16.mxu0 %v3106
    %4924 = vmatpush1.bf16.msra.mxu0 %v3105
    %4925 = vmatprep.subr.bf16.mxu0 %v3090
    %4926 = vmatpush1.bf16.msra.mxu0 %v3089
    %4927 = vmatprep.subr.bf16.mxu0 %v3074
    %4928 = vmatpush1.bf16.msra.mxu0 %v3073
    %4929 = vmatprep.subr.bf16.mxu0 %v3058
    %4930 = vmatpush1.bf16.msra.mxu0 %v3057
    %4931 = vmatprep.subr.bf16.mxu0 %v3042
    %4932 = vmatpush1.bf16.msra.mxu0 %v3041
    %4933 = vmatprep.subr.bf16.mxu0 %v3026
    %4934 = vmatpush1.bf16.msra.mxu0 %v3025
    %4935 = vmatprep.subr.bf16.mxu0 %v3010
    %4936 = vmatpush1.bf16.msra.mxu0 %v3009
    %4937 = vmatprep.subr.bf16.mxu0 %v3250
    %4938 = vmatpush2.bf16.msra.mxu0 %v3249
    %4939 = vmatprep.subr.bf16.mxu0 %v3234
    %4940 = vmatpush2.bf16.msra.mxu0 %v3233
    %4941 = vmatprep.subr.bf16.mxu0 %v3218
    %4942 = vmatpush2.bf16.msra.mxu0 %v3217
    %4943 = vmatprep.subr.bf16.mxu0 %v3202
    %4944 = vmatpush2.bf16.msra.mxu0 %v3201
    %4945 = vmatprep.subr.bf16.mxu0 %v3186
    %4946 = vmatpush2.bf16.msra.mxu0 %v3185
    %4947 = vmatprep.subr.bf16.mxu0 %v3170
    %4948 = vmatpush2.bf16.msra.mxu0 %v3169
    %4949 = vmatprep.subr.bf16.mxu0 %v3154
    %4950 = vmatpush2.bf16.msra.mxu0 %v3153
    %4951 = vmatprep.subr.bf16.mxu0 %v3138
    %4952 = vmatpush2.bf16.msra.mxu0 %v3137
    %4953 = vmatprep.mubr.bf16.mxu0 %v812
    %4954 = vmatmul.mubr.bf16.gmra.mxu0 %v811
    %v4955 = vpop.f32.mrf.mxu0
    %v4956 = vadd.f32 %v4915, %v4955
    %v4957 = vpop.f32.mrf.mxu0
    %v4958 = vadd.f32 %v4917, %v4957
    %v4959 = vpop.f32.mrf.mxu0
    %v4960 = vpop.f32.mrf.mxu0
    %4961 = vdwg.mxu0
    %4962 = vmatprep.subr.bf16.mxu0 %v3378
    %4963 = vmatpush1.bf16.msra.mxu0 %v3377
    %4964 = vmatprep.subr.bf16.mxu0 %v3362
    %4965 = vmatpush1.bf16.msra.mxu0 %v3361
    %4966 = vmatprep.subr.bf16.mxu0 %v3346
    %4967 = vmatpush1.bf16.msra.mxu0 %v3345
    %4968 = vmatprep.subr.bf16.mxu0 %v3330
    %4969 = vmatpush1.bf16.msra.mxu0 %v3329
    %4970 = vmatprep.subr.bf16.mxu0 %v3314
    %4971 = vmatpush1.bf16.msra.mxu0 %v3313
    %4972 = vmatprep.subr.bf16.mxu0 %v3298
    %4973 = vmatpush1.bf16.msra.mxu0 %v3297
    %4974 = vmatprep.subr.bf16.mxu0 %v3282
    %4975 = vmatpush1.bf16.msra.mxu0 %v3281
    %4976 = vmatprep.subr.bf16.mxu0 %v3266
    %4977 = vmatpush1.bf16.msra.mxu0 %v3265
    %4978 = vmatprep.subr.bf16.mxu0 0
    %4979 = vmatpush2.bf16.msra.mxu0 0
    %4980 = vmatprep.subr.bf16.mxu0 0
    %4981 = vmatpush2.bf16.msra.mxu0 0
    %4982 = vmatprep.subr.bf16.mxu0 0
    %4983 = vmatpush2.bf16.msra.mxu0 0
    %4984 = vmatprep.subr.bf16.mxu0 0
    %4985 = vmatpush2.bf16.msra.mxu0 0
    %4986 = vmatprep.subr.bf16.mxu0 0
    %4987 = vmatpush2.bf16.msra.mxu0 0
    %4988 = vmatprep.subr.bf16.mxu0 0
    %4989 = vmatpush2.bf16.msra.mxu0 0
    %4990 = vmatprep.subr.bf16.mxu0 0
    %4991 = vmatpush2.bf16.msra.mxu0 0
    %4992 = vmatprep.subr.bf16.mxu0 0
    %4993 = vmatpush2.bf16.msra.mxu0 0
    %4994 = vmatprep.mubr.bf16.mxu0 0
    %4995 = vmatmul.mubr.bf16.gmra.mxu0 %v813
    %v4996 = vpop.f32.mrf.mxu0
    %v4997 = vadd.f32 %v4956, %v4996
    %v4998 = vpop.f32.mrf.mxu0
    %v4999 = vadd.f32 %v4958, %v4998
    %v5000 = vpop.f32.mrf.mxu0
    %v5001 = vpop.f32.mrf.mxu0
    %5002 = vdwg.mxu0
    %vm5003 = vcmp.gt.f32.partialorder %v4136, 0.0
    %vm5004 = vcmp.gt.f32.partialorder %v4138, 0.0
    %vm5005 = vcmp.gt.f32.partialorder %v4259, 0.0
    %vm5006 = vcmp.gt.f32.partialorder %v4261, 0.0
    %vm5007 = vcmp.gt.f32.partialorder %v4382, 0.0
    %vm5008 = vcmp.gt.f32.partialorder %v4384, 0.0
    %vm5009 = vcmp.gt.f32.partialorder %v4505, 0.0
    %vm5010 = vcmp.gt.f32.partialorder %v4507, 0.0
    %vm5011 = vcmp.gt.f32.partialorder %v4628, 0.0
    %vm5012 = vcmp.gt.f32.partialorder %v4630, 0.0
    %vm5013 = vcmp.gt.f32.partialorder %v4751, 0.0
    %vm5014 = vcmp.gt.f32.partialorder %v4753, 0.0
    %vm5015 = vcmp.gt.f32.partialorder %v4874, 0.0
    %vm5016 = vcmp.gt.f32.partialorder %v4876, 0.0
    %vm5017 = vcmp.gt.f32.partialorder %v4997, 0.0
    %vm5018 = vcmp.gt.f32.partialorder %v4999, 0.0
    %v5019 = vmin.f32 %v4136, 0.0
    %v5020 = vmin.f32 %v4138, 0.0
    %v5021 = vmin.f32 %v4259, 0.0
    %v5022 = vmin.f32 %v4261, 0.0
    %v5023 = vmin.f32 %v4382, 0.0
    %v5024 = vmin.f32 %v4384, 0.0
    %v5025 = vmin.f32 %v4505, 0.0
    %v5026 = vmin.f32 %v4507, 0.0
    %v5027 = vmin.f32 %v4628, 0.0
    %v5028 = vmin.f32 %v4630, 0.0
    %v5029 = vmin.f32 %v4751, 0.0
    %v5030 = vmin.f32 %v4753, 0.0
    %v5031 = vmin.f32 %v4874, 0.0
    %v5032 = vmin.f32 %v4876, 0.0
    %v5033 = vmin.f32 %v4997, 0.0
    %v5034 = vmin.f32 %v4999, 0.0
    %v5035 = vmul.f32 %v5019, 1.442695
    %v5036 = vpow.pop %v5035
    %v5037 = vmul.f32 %v5020, 1.442695
    %v5038 = vpow.pop %v5037
    %v5039 = vmul.f32 %v5021, 1.442695
    %v5040 = vpow.pop %v5039
    %v5041 = vmul.f32 %v5022, 1.442695
    %v5042 = vpow.pop %v5041
    %v5043 = vmul.f32 %v5023, 1.442695
    %v5044 = vpow.pop %v5043
    %v5045 = vmul.f32 %v5024, 1.442695
    %v5046 = vpow.pop %v5045
    %v5047 = vmul.f32 %v5025, 1.442695
    %v5048 = vpow.pop %v5047
    %v5049 = vmul.f32 %v5026, 1.442695
    %v5050 = vpow.pop %v5049
    %v5051 = vmul.f32 %v5027, 1.442695
    %v5052 = vpow.pop %v5051
    %v5053 = vmul.f32 %v5028, 1.442695
    %v5054 = vpow.pop %v5053
    %v5055 = vmul.f32 %v5029, 1.442695
    %v5056 = vpow.pop %v5055
    %v5057 = vmul.f32 %v5030, 1.442695
    %v5058 = vpow.pop %v5057
    %v5059 = vmul.f32 %v5031, 1.442695
    %v5060 = vpow.pop %v5059
    %v5061 = vmul.f32 %v5032, 1.442695
    %v5062 = vpow.pop %v5061
    %v5063 = vmul.f32 %v5033, 1.442695
    %v5064 = vpow.pop %v5063
    %v5065 = vmul.f32 %v5034, 1.442695
    %v5066 = vpow.pop %v5065
    %v5067 = vsub.f32 %v5036, 1.0
    %v5068 = vsub.f32 %v5038, 1.0
    %v5069 = vsub.f32 %v5040, 1.0
    %v5070 = vsub.f32 %v5042, 1.0
    %v5071 = vsub.f32 %v5044, 1.0
    %v5072 = vsub.f32 %v5046, 1.0
    %v5073 = vsub.f32 %v5048, 1.0
    %v5074 = vsub.f32 %v5050, 1.0
    %v5075 = vsub.f32 %v5052, 1.0
    %v5076 = vsub.f32 %v5054, 1.0
    %v5077 = vsub.f32 %v5056, 1.0
    %v5078 = vsub.f32 %v5058, 1.0
    %v5079 = vsub.f32 %v5060, 1.0
    %v5080 = vsub.f32 %v5062, 1.0
    %v5081 = vsub.f32 %v5064, 1.0
    %v5082 = vsub.f32 %v5066, 1.0
    %v5083 = vsel %vm5003, %v4136, %v5067
    %v5084 = vsel %vm5004, %v4138, %v5068
    %v5085 = vsel %vm5005, %v4259, %v5069
    %v5086 = vsel %vm5006, %v4261, %v5070
    %v5087 = vsel %vm5007, %v4382, %v5071
    %v5088 = vsel %vm5008, %v4384, %v5072
    %v5089 = vsel %vm5009, %v4505, %v5073
    %v5090 = vsel %vm5010, %v4507, %v5074
    %v5091 = vsel %vm5011, %v4628, %v5075
    %v5092 = vsel %vm5012, %v4630, %v5076
    %v5093 = vsel %vm5013, %v4751, %v5077
    %v5094 = vsel %vm5014, %v4753, %v5078
    %v5095 = vsel %vm5015, %v4874, %v5079
    %v5096 = vsel %vm5016, %v4876, %v5080
    %v5097 = vsel %vm5017, %v4997, %v5081
    %v5098 = vsel %vm5018, %v4999, %v5082
    %v5099 = vpack.c.bf16 %v5083, %v5083
    %v5100 = vpack.c.bf16 %v5084, %v5084
    %v5101 = vpack.c.bf16 %v5085, %v5085
    %v5102 = vpack.c.bf16 %v5086, %v5086
    %v5103 = vpack.c.bf16 %v5087, %v5087
    %v5104 = vpack.c.bf16 %v5088, %v5088
    %v5105 = vpack.c.bf16 %v5089, %v5089
    %v5106 = vpack.c.bf16 %v5090, %v5090
    %v5107 = vpack.c.bf16 %v5091, %v5091
    %v5108 = vpack.c.bf16 %v5092, %v5092
    %v5109 = vpack.c.bf16 %v5093, %v5093
    %v5110 = vpack.c.bf16 %v5094, %v5094
    %v5111 = vpack.c.bf16 %v5095, %v5095
    %v5112 = vpack.c.bf16 %v5096, %v5096
    %v5113 = vpack.c.bf16 %v5097, %v5097
    %v5114 = vpack.c.bf16 %v5098, %v5098
    %v5115 = vld [vmem:[#allocation4] sm:$0xff]
    %v5116 = vld [vmem:[#allocation4 + $0x8] sm:$0xff]
    %v5117 = vld [vmem:[#allocation4 + $0x10] sm:$0xff]
    %v5118 = vld [vmem:[#allocation4 + $0x18] sm:$0xff]
    %v5119 = vld [vmem:[#allocation4 + $0x20] sm:$0xff]
    %v5120 = vld [vmem:[#allocation4 + $0x28] sm:$0xff]
    %v5121 = vld [vmem:[#allocation4 + $0x30] sm:$0xff]
    %v5122 = vld [vmem:[#allocation4 + $0x38] sm:$0xff]
    %v5123 = vld [vmem:[#allocation4 + $0x40] sm:$0xff]
    %v5124 = vld [vmem:[#allocation4 + $0x48] sm:$0xff]
    %v5125 = vld [vmem:[#allocation4 + $0x50] sm:$0xff]
    %v5126 = vld [vmem:[#allocation4 + $0x58] sm:$0xff]
    %v5127 = vld [vmem:[#allocation4 + $0x60] sm:$0xff]
    %v5128 = vld [vmem:[#allocation4 + $0x68] sm:$0xff]
    %v5129 = vld [vmem:[#allocation4 + $0x70] sm:$0xff]
    %v5130 = vld [vmem:[#allocation4 + $0x78] sm:$0xff]
    %v5131 = vld [vmem:[#allocation4 + $0x80] sm:$0xff]
    %v5132 = vld [vmem:[#allocation4 + $0x88] sm:$0xff]
    %v5133 = vld [vmem:[#allocation4 + $0x90] sm:$0xff]
    %v5134 = vld [vmem:[#allocation4 + $0x98] sm:$0xff]
    %v5135 = vld [vmem:[#allocation4 + $0xa0] sm:$0xff]
    %v5136 = vld [vmem:[#allocation4 + $0xa8] sm:$0xff]
    %v5137 = vld [vmem:[#allocation4 + $0xb0] sm:$0xff]
    %v5138 = vld [vmem:[#allocation4 + $0xb8] sm:$0xff]
    %v5139 = vld [vmem:[#allocation4 + $0xc0] sm:$0xff]
    %v5140 = vld [vmem:[#allocation4 + $0xc8] sm:$0xff]
    %v5141 = vld [vmem:[#allocation4 + $0xd0] sm:$0xff]
    %v5142 = vld [vmem:[#allocation4 + $0xd8] sm:$0xff]
    %v5143 = vld [vmem:[#allocation4 + $0xe0] sm:$0xff]
    %v5144 = vld [vmem:[#allocation4 + $0xe8] sm:$0xff]
    %v5145 = vld [vmem:[#allocation4 + $0xf0] sm:$0xff]
    %v5146 = vld [vmem:[#allocation4 + $0xf8] sm:$0xff]
    %v5147 = vld [vmem:[#allocation4 + $0x100] sm:$0xff]
    %v5148 = vld [vmem:[#allocation4 + $0x108] sm:$0xff]
    %v5149 = vld [vmem:[#allocation4 + $0x110] sm:$0xff]
    %v5150 = vld [vmem:[#allocation4 + $0x118] sm:$0xff]
    %v5151 = vld [vmem:[#allocation4 + $0x120] sm:$0xff]
    %v5152 = vld [vmem:[#allocation4 + $0x128] sm:$0xff]
    %v5153 = vld [vmem:[#allocation4 + $0x130] sm:$0xff]
    %v5154 = vld [vmem:[#allocation4 + $0x138] sm:$0xff]
    %v5155 = vld [vmem:[#allocation4 + $0x140] sm:$0xff]
    %v5156 = vld [vmem:[#allocation4 + $0x148] sm:$0xff]
    %v5157 = vld [vmem:[#allocation4 + $0x150] sm:$0xff]
    %v5158 = vld [vmem:[#allocation4 + $0x158] sm:$0xff]
    %v5159 = vld [vmem:[#allocation4 + $0x160] sm:$0xff]
    %v5160 = vld [vmem:[#allocation4 + $0x168] sm:$0xff]
    %v5161 = vld [vmem:[#allocation4 + $0x170] sm:$0xff]
    %v5162 = vld [vmem:[#allocation4 + $0x178] sm:$0xff]
    %v5163 = vld [vmem:[#allocation4 + $0x180] sm:$0xff]
    %v5164 = vld [vmem:[#allocation4 + $0x188] sm:$0xff]
    %v5165 = vld [vmem:[#allocation4 + $0x190] sm:$0xff]
    %v5166 = vld [vmem:[#allocation4 + $0x198] sm:$0xff]
    %v5167 = vld [vmem:[#allocation4 + $0x1a0] sm:$0xff]
    %v5168 = vld [vmem:[#allocation4 + $0x1a8] sm:$0xff]
    %v5169 = vld [vmem:[#allocation4 + $0x1b0] sm:$0xff]
    %v5170 = vld [vmem:[#allocation4 + $0x1b8] sm:$0xff]
    %v5171 = vld [vmem:[#allocation4 + $0x1c0] sm:$0xff]
    %v5172 = vld [vmem:[#allocation4 + $0x1c8] sm:$0xff]
    %v5173 = vld [vmem:[#allocation4 + $0x1d0] sm:$0xff]
    %v5174 = vld [vmem:[#allocation4 + $0x1d8] sm:$0xff]
    %v5175 = vld [vmem:[#allocation4 + $0x1e0] sm:$0xff]
    %v5176 = vld [vmem:[#allocation4 + $0x1e8] sm:$0xff]
    %v5177 = vld [vmem:[#allocation4 + $0x1f0] sm:$0xff]
    %v5178 = vld [vmem:[#allocation4 + $0x1f8] sm:$0xff]
    %v5179 = vld [vmem:[#allocation4 + $0x200] sm:$0xff]
    %v5180 = vld [vmem:[#allocation4 + $0x208] sm:$0xff]
    %v5181 = vld [vmem:[#allocation4 + $0x210] sm:$0xff]
    %v5182 = vld [vmem:[#allocation4 + $0x218] sm:$0xff]
    %v5183 = vld [vmem:[#allocation4 + $0x220] sm:$0xff]
    %v5184 = vld [vmem:[#allocation4 + $0x228] sm:$0xff]
    %v5185 = vld [vmem:[#allocation4 + $0x230] sm:$0xff]
    %v5186 = vld [vmem:[#allocation4 + $0x238] sm:$0xff]
    %v5187 = vld [vmem:[#allocation4 + $0x240] sm:$0xff]
    %v5188 = vld [vmem:[#allocation4 + $0x248] sm:$0xff]
    %v5189 = vld [vmem:[#allocation4 + $0x250] sm:$0xff]
    %v5190 = vld [vmem:[#allocation4 + $0x258] sm:$0xff]
    %v5191 = vld [vmem:[#allocation4 + $0x260] sm:$0xff]
    %v5192 = vld [vmem:[#allocation4 + $0x268] sm:$0xff]
    %v5193 = vld [vmem:[#allocation4 + $0x270] sm:$0xff]
    %v5194 = vld [vmem:[#allocation4 + $0x278] sm:$0xff]
    %v5195 = vld [vmem:[#allocation4 + $0x280] sm:$0xff]
    %v5196 = vld [vmem:[#allocation4 + $0x288] sm:$0xff]
    %v5197 = vld [vmem:[#allocation4 + $0x290] sm:$0xff]
    %v5198 = vld [vmem:[#allocation4 + $0x298] sm:$0xff]
    %v5199 = vld [vmem:[#allocation4 + $0x2a0] sm:$0xff]
    %v5200 = vld [vmem:[#allocation4 + $0x2a8] sm:$0xff]
    %v5201 = vld [vmem:[#allocation4 + $0x2b0] sm:$0xff]
    %v5202 = vld [vmem:[#allocation4 + $0x2b8] sm:$0xff]
    %v5203 = vld [vmem:[#allocation4 + $0x2c0] sm:$0xff]
    %v5204 = vld [vmem:[#allocation4 + $0x2c8] sm:$0xff]
    %v5205 = vld [vmem:[#allocation4 + $0x2d0] sm:$0xff]
    %v5206 = vld [vmem:[#allocation4 + $0x2d8] sm:$0xff]
    %v5207 = vld [vmem:[#allocation4 + $0x2e0] sm:$0xff]
    %v5208 = vld [vmem:[#allocation4 + $0x2e8] sm:$0xff]
    %v5209 = vld [vmem:[#allocation4 + $0x2f0] sm:$0xff]
    %v5210 = vld [vmem:[#allocation4 + $0x2f8] sm:$0xff]
    %v5211 = vld [vmem:[#allocation4 + $0x300] sm:$0xff]
    %v5212 = vld [vmem:[#allocation4 + $0x308] sm:$0xff]
    %v5213 = vld [vmem:[#allocation4 + $0x310] sm:$0xff]
    %v5214 = vld [vmem:[#allocation4 + $0x318] sm:$0xff]
    %v5215 = vld [vmem:[#allocation4 + $0x320] sm:$0xff]
    %v5216 = vld [vmem:[#allocation4 + $0x328] sm:$0xff]
    %v5217 = vld [vmem:[#allocation4 + $0x330] sm:$0xff]
    %v5218 = vld [vmem:[#allocation4 + $0x338] sm:$0xff]
    %v5219 = vld [vmem:[#allocation4 + $0x340] sm:$0xff]
    %v5220 = vld [vmem:[#allocation4 + $0x348] sm:$0xff]
    %v5221 = vld [vmem:[#allocation4 + $0x350] sm:$0xff]
    %v5222 = vld [vmem:[#allocation4 + $0x358] sm:$0xff]
    %v5223 = vld [vmem:[#allocation4 + $0x360] sm:$0xff]
    %v5224 = vld [vmem:[#allocation4 + $0x368] sm:$0xff]
    %v5225 = vld [vmem:[#allocation4 + $0x370] sm:$0xff]
    %v5226 = vld [vmem:[#allocation4 + $0x378] sm:$0xff]
    %v5227 = vld [vmem:[#allocation4 + $0x380] sm:$0xff]
    %v5228 = vld [vmem:[#allocation4 + $0x388] sm:$0xff]
    %v5229 = vld [vmem:[#allocation4 + $0x390] sm:$0xff]
    %v5230 = vld [vmem:[#allocation4 + $0x398] sm:$0xff]
    %v5231 = vld [vmem:[#allocation4 + $0x3a0] sm:$0xff]
    %v5232 = vld [vmem:[#allocation4 + $0x3a8] sm:$0xff]
    %v5233 = vld [vmem:[#allocation4 + $0x3b0] sm:$0xff]
    %v5234 = vld [vmem:[#allocation4 + $0x3b8] sm:$0xff]
    %v5235 = vld [vmem:[#allocation4 + $0x3c0] sm:$0xff]
    %v5236 = vld [vmem:[#allocation4 + $0x3c8] sm:$0xff]
    %v5237 = vld [vmem:[#allocation4 + $0x3d0] sm:$0xff]
    %v5238 = vld [vmem:[#allocation4 + $0x3d8] sm:$0xff]
    %v5239 = vld [vmem:[#allocation4 + $0x3e0] sm:$0xff]
    %v5240 = vld [vmem:[#allocation4 + $0x3e8] sm:$0xff]
    %v5241 = vld [vmem:[#allocation4 + $0x3f0] sm:$0xff]
    %v5242 = vld [vmem:[#allocation4 + $0x3f8] sm:$0xff]
    %v5243 = vld [vmem:[#allocation4 + $0x400] sm:$0xff]
    %v5244 = vld [vmem:[#allocation4 + $0x408] sm:$0xff]
    %v5245 = vld [vmem:[#allocation4 + $0x410] sm:$0xff]
    %v5246 = vld [vmem:[#allocation4 + $0x418] sm:$0xff]
    %v5247 = vld [vmem:[#allocation4 + $0x420] sm:$0xff]
    %v5248 = vld [vmem:[#allocation4 + $0x428] sm:$0xff]
    %v5249 = vld [vmem:[#allocation4 + $0x430] sm:$0xff]
    %v5250 = vld [vmem:[#allocation4 + $0x438] sm:$0xff]
    %v5251 = vld [vmem:[#allocation4 + $0x440] sm:$0xff]
    %v5252 = vld [vmem:[#allocation4 + $0x448] sm:$0xff]
    %v5253 = vld [vmem:[#allocation4 + $0x450] sm:$0xff]
    %v5254 = vld [vmem:[#allocation4 + $0x458] sm:$0xff]
    %v5255 = vld [vmem:[#allocation4 + $0x460] sm:$0xff]
    %v5256 = vld [vmem:[#allocation4 + $0x468] sm:$0xff]
    %v5257 = vld [vmem:[#allocation4 + $0x470] sm:$0xff]
    %v5258 = vld [vmem:[#allocation4 + $0x478] sm:$0xff]
    %v5259 = vld [vmem:[#allocation4 + $0x480] sm:$0xff]
    %v5260 = vld [vmem:[#allocation4 + $0x488] sm:$0xff]
    %v5261 = vld [vmem:[#allocation4 + $0x490] sm:$0xff]
    %v5262 = vld [vmem:[#allocation4 + $0x498] sm:$0xff]
    %v5263 = vld [vmem:[#allocation4 + $0x4a0] sm:$0xff]
    %v5264 = vld [vmem:[#allocation4 + $0x4a8] sm:$0xff]
    %v5265 = vld [vmem:[#allocation4 + $0x4b0] sm:$0xff]
    %v5266 = vld [vmem:[#allocation4 + $0x4b8] sm:$0xff]
    %v5267 = vld [vmem:[#allocation4 + $0x4c0] sm:$0xff]
    %v5268 = vld [vmem:[#allocation4 + $0x4c8] sm:$0xff]
    %v5269 = vld [vmem:[#allocation4 + $0x4d0] sm:$0xff]
    %v5270 = vld [vmem:[#allocation4 + $0x4d8] sm:$0xff]
    %v5271 = vld [vmem:[#allocation4 + $0x4e0] sm:$0xff]
    %v5272 = vld [vmem:[#allocation4 + $0x4e8] sm:$0xff]
    %v5273 = vld [vmem:[#allocation4 + $0x4f0] sm:$0xff]
    %v5274 = vld [vmem:[#allocation4 + $0x4f8] sm:$0xff]
    %v5275 = vld [vmem:[#allocation4 + $0x500] sm:$0xff]
    %v5276 = vld [vmem:[#allocation4 + $0x508] sm:$0xff]
    %v5277 = vld [vmem:[#allocation4 + $0x510] sm:$0xff]
    %v5278 = vld [vmem:[#allocation4 + $0x518] sm:$0xff]
    %v5279 = vld [vmem:[#allocation4 + $0x520] sm:$0xff]
    %v5280 = vld [vmem:[#allocation4 + $0x528] sm:$0xff]
    %v5281 = vld [vmem:[#allocation4 + $0x530] sm:$0xff]
    %v5282 = vld [vmem:[#allocation4 + $0x538] sm:$0xff]
    %v5283 = vld [vmem:[#allocation4 + $0x540] sm:$0xff]
    %v5284 = vld [vmem:[#allocation4 + $0x548] sm:$0xff]
    %v5285 = vld [vmem:[#allocation4 + $0x550] sm:$0xff]
    %v5286 = vld [vmem:[#allocation4 + $0x558] sm:$0xff]
    %v5287 = vld [vmem:[#allocation4 + $0x560] sm:$0xff]
    %v5288 = vld [vmem:[#allocation4 + $0x568] sm:$0xff]
    %v5289 = vld [vmem:[#allocation4 + $0x570] sm:$0xff]
    %v5290 = vld [vmem:[#allocation4 + $0x578] sm:$0xff]
    %v5291 = vld [vmem:[#allocation4 + $0x580] sm:$0xff]
    %v5292 = vld [vmem:[#allocation4 + $0x588] sm:$0xff]
    %v5293 = vld [vmem:[#allocation4 + $0x590] sm:$0xff]
    %v5294 = vld [vmem:[#allocation4 + $0x598] sm:$0xff]
    %v5295 = vld [vmem:[#allocation4 + $0x5a0] sm:$0xff]
    %v5296 = vld [vmem:[#allocation4 + $0x5a8] sm:$0xff]
    %v5297 = vld [vmem:[#allocation4 + $0x5b0] sm:$0xff]
    %v5298 = vld [vmem:[#allocation4 + $0x5b8] sm:$0xff]
    %v5299 = vld [vmem:[#allocation4 + $0x5c0] sm:$0xff]
    %v5300 = vld [vmem:[#allocation4 + $0x5c8] sm:$0xff]
    %v5301 = vld [vmem:[#allocation4 + $0x5d0] sm:$0xff]
    %v5302 = vld [vmem:[#allocation4 + $0x5d8] sm:$0xff]
    %v5303 = vld [vmem:[#allocation4 + $0x5e0] sm:$0xff]
    %v5304 = vld [vmem:[#allocation4 + $0x5e8] sm:$0xff]
    %v5305 = vld [vmem:[#allocation4 + $0x5f0] sm:$0xff]
    %v5306 = vld [vmem:[#allocation4 + $0x5f8] sm:$0xff]
    %v5307 = vld [vmem:[#allocation4 + $0x600] sm:$0xff]
    %v5308 = vld [vmem:[#allocation4 + $0x608] sm:$0xff]
    %v5309 = vld [vmem:[#allocation4 + $0x610] sm:$0xff]
    %v5310 = vld [vmem:[#allocation4 + $0x618] sm:$0xff]
    %v5311 = vld [vmem:[#allocation4 + $0x620] sm:$0xff]
    %v5312 = vld [vmem:[#allocation4 + $0x628] sm:$0xff]
    %v5313 = vld [vmem:[#allocation4 + $0x630] sm:$0xff]
    %v5314 = vld [vmem:[#allocation4 + $0x638] sm:$0xff]
    %v5315 = vld [vmem:[#allocation4 + $0x640] sm:$0xff]
    %v5316 = vld [vmem:[#allocation4 + $0x648] sm:$0xff]
    %v5317 = vld [vmem:[#allocation4 + $0x650] sm:$0xff]
    %v5318 = vld [vmem:[#allocation4 + $0x658] sm:$0xff]
    %v5319 = vld [vmem:[#allocation4 + $0x660] sm:$0xff]
    %v5320 = vld [vmem:[#allocation4 + $0x668] sm:$0xff]
    %v5321 = vld [vmem:[#allocation4 + $0x670] sm:$0xff]
    %v5322 = vld [vmem:[#allocation4 + $0x678] sm:$0xff]
    %v5323 = vld [vmem:[#allocation4 + $0x680] sm:$0xff]
    %v5324 = vld [vmem:[#allocation4 + $0x688] sm:$0xff]
    %v5325 = vld [vmem:[#allocation4 + $0x690] sm:$0xff]
    %v5326 = vld [vmem:[#allocation4 + $0x698] sm:$0xff]
    %v5327 = vld [vmem:[#allocation4 + $0x6a0] sm:$0xff]
    %v5328 = vld [vmem:[#allocation4 + $0x6a8] sm:$0xff]
    %v5329 = vld [vmem:[#allocation4 + $0x6b0] sm:$0xff]
    %v5330 = vld [vmem:[#allocation4 + $0x6b8] sm:$0xff]
    %v5331 = vld [vmem:[#allocation4 + $0x6c0] sm:$0xff]
    %v5332 = vld [vmem:[#allocation4 + $0x6c8] sm:$0xff]
    %v5333 = vld [vmem:[#allocation4 + $0x6d0] sm:$0xff]
    %v5334 = vld [vmem:[#allocation4 + $0x6d8] sm:$0xff]
    %v5335 = vld [vmem:[#allocation4 + $0x6e0] sm:$0xff]
    %v5336 = vld [vmem:[#allocation4 + $0x6e8] sm:$0xff]
    %v5337 = vld [vmem:[#allocation4 + $0x6f0] sm:$0xff]
    %v5338 = vld [vmem:[#allocation4 + $0x6f8] sm:$0xff]
    %v5339 = vld [vmem:[#allocation4 + $0x700] sm:$0xff]
    %v5340 = vld [vmem:[#allocation4 + $0x708] sm:$0xff]
    %v5341 = vld [vmem:[#allocation4 + $0x710] sm:$0xff]
    %v5342 = vld [vmem:[#allocation4 + $0x718] sm:$0xff]
    %v5343 = vld [vmem:[#allocation4 + $0x720] sm:$0xff]
    %v5344 = vld [vmem:[#allocation4 + $0x728] sm:$0xff]
    %v5345 = vld [vmem:[#allocation4 + $0x730] sm:$0xff]
    %v5346 = vld [vmem:[#allocation4 + $0x738] sm:$0xff]
    %v5347 = vld [vmem:[#allocation4 + $0x740] sm:$0xff]
    %v5348 = vld [vmem:[#allocation4 + $0x748] sm:$0xff]
    %v5349 = vld [vmem:[#allocation4 + $0x750] sm:$0xff]
    %v5350 = vld [vmem:[#allocation4 + $0x758] sm:$0xff]
    %v5351 = vld [vmem:[#allocation4 + $0x760] sm:$0xff]
    %v5352 = vld [vmem:[#allocation4 + $0x768] sm:$0xff]
    %v5353 = vld [vmem:[#allocation4 + $0x770] sm:$0xff]
    %v5354 = vld [vmem:[#allocation4 + $0x778] sm:$0xff]
    %v5355 = vld [vmem:[#allocation4 + $0x780] sm:$0xff]
    %v5356 = vld [vmem:[#allocation4 + $0x788] sm:$0xff]
    %v5357 = vld [vmem:[#allocation4 + $0x790] sm:$0xff]
    %v5358 = vld [vmem:[#allocation4 + $0x798] sm:$0xff]
    %v5359 = vld [vmem:[#allocation4 + $0x7a0] sm:$0xff]
    %v5360 = vld [vmem:[#allocation4 + $0x7a8] sm:$0xff]
    %v5361 = vld [vmem:[#allocation4 + $0x7b0] sm:$0xff]
    %v5362 = vld [vmem:[#allocation4 + $0x7b8] sm:$0xff]
    %v5363 = vld [vmem:[#allocation4 + $0x7c0] sm:$0xff]
    %v5364 = vld [vmem:[#allocation4 + $0x7c8] sm:$0xff]
    %v5365 = vld [vmem:[#allocation4 + $0x7d0] sm:$0xff]
    %v5366 = vld [vmem:[#allocation4 + $0x7d8] sm:$0xff]
    %v5367 = vld [vmem:[#allocation4 + $0x7e0] sm:$0xff]
    %v5368 = vld [vmem:[#allocation4 + $0x7e8] sm:$0xff]
    %v5369 = vld [vmem:[#allocation4 + $0x7f0] sm:$0xff]
    %v5370 = vld [vmem:[#allocation4 + $0x7f8] sm:$0xff]
    %v5371 = vld [vmem:[#allocation4 + $0x800] sm:$0xff]
    %v5372 = vld [vmem:[#allocation4 + $0x808] sm:$0xff]
    %v5373 = vld [vmem:[#allocation4 + $0x810] sm:$0xff]
    %v5374 = vld [vmem:[#allocation4 + $0x818] sm:$0xff]
    %v5375 = vld [vmem:[#allocation4 + $0x820] sm:$0xff]
    %v5376 = vld [vmem:[#allocation4 + $0x828] sm:$0xff]
    %v5377 = vld [vmem:[#allocation4 + $0x830] sm:$0xff]
    %v5378 = vld [vmem:[#allocation4 + $0x838] sm:$0xff]
    %v5379 = vld [vmem:[#allocation4 + $0x840] sm:$0xff]
    %v5380 = vld [vmem:[#allocation4 + $0x848] sm:$0xff]
    %v5381 = vld [vmem:[#allocation4 + $0x850] sm:$0xff]
    %v5382 = vld [vmem:[#allocation4 + $0x858] sm:$0xff]
    %v5383 = vld [vmem:[#allocation4 + $0x860] sm:$0xff]
    %v5384 = vld [vmem:[#allocation4 + $0x868] sm:$0xff]
    %v5385 = vld [vmem:[#allocation4 + $0x870] sm:$0xff]
    %v5386 = vld [vmem:[#allocation4 + $0x878] sm:$0xff]
    %v5387 = vld [vmem:[#allocation4 + $0x880] sm:$0xff]
    %v5388 = vld [vmem:[#allocation4 + $0x888] sm:$0xff]
    %v5389 = vld [vmem:[#allocation4 + $0x890] sm:$0xff]
    %v5390 = vld [vmem:[#allocation4 + $0x898] sm:$0xff]
    %v5391 = vld [vmem:[#allocation4 + $0x8a0] sm:$0xff]
    %v5392 = vld [vmem:[#allocation4 + $0x8a8] sm:$0xff]
    %v5393 = vld [vmem:[#allocation4 + $0x8b0] sm:$0xff]
    %v5394 = vld [vmem:[#allocation4 + $0x8b8] sm:$0xff]
    %v5395 = vld [vmem:[#allocation4 + $0x8c0] sm:$0xff]
    %v5396 = vld [vmem:[#allocation4 + $0x8c8] sm:$0xff]
    %v5397 = vld [vmem:[#allocation4 + $0x8d0] sm:$0xff]
    %v5398 = vld [vmem:[#allocation4 + $0x8d8] sm:$0xff]
    %v5399 = vld [vmem:[#allocation4 + $0x8e0] sm:$0xff]
    %v5400 = vld [vmem:[#allocation4 + $0x8e8] sm:$0xff]
    %v5401 = vld [vmem:[#allocation4 + $0x8f0] sm:$0xff]
    %v5402 = vld [vmem:[#allocation4 + $0x8f8] sm:$0xff]
    %v5403 = vld [vmem:[#allocation4 + $0x900] sm:$0xff]
    %v5404 = vld [vmem:[#allocation4 + $0x908] sm:$0xff]
    %v5405 = vld [vmem:[#allocation4 + $0x910] sm:$0xff]
    %v5406 = vld [vmem:[#allocation4 + $0x918] sm:$0xff]
    %v5407 = vld [vmem:[#allocation4 + $0x920] sm:$0xff]
    %v5408 = vld [vmem:[#allocation4 + $0x928] sm:$0xff]
    %v5409 = vld [vmem:[#allocation4 + $0x930] sm:$0xff]
    %v5410 = vld [vmem:[#allocation4 + $0x938] sm:$0xff]
    %v5411 = vld [vmem:[#allocation4 + $0x940] sm:$0xff]
    %v5412 = vld [vmem:[#allocation4 + $0x948] sm:$0xff]
    %v5413 = vld [vmem:[#allocation4 + $0x950] sm:$0xff]
    %v5414 = vld [vmem:[#allocation4 + $0x958] sm:$0xff]
    %v5415 = vld [vmem:[#allocation4 + $0x960] sm:$0xff]
    %v5416 = vld [vmem:[#allocation4 + $0x968] sm:$0xff]
    %v5417 = vld [vmem:[#allocation4 + $0x970] sm:$0xff]
    %v5418 = vld [vmem:[#allocation4 + $0x978] sm:$0xff]
    %v5419 = vld [vmem:[#allocation4 + $0x980] sm:$0xff]
    %v5420 = vld [vmem:[#allocation4 + $0x988] sm:$0xff]
    %v5421 = vld [vmem:[#allocation4 + $0x990] sm:$0xff]
    %v5422 = vld [vmem:[#allocation4 + $0x998] sm:$0xff]
    %v5423 = vld [vmem:[#allocation4 + $0x9a0] sm:$0xff]
    %v5424 = vld [vmem:[#allocation4 + $0x9a8] sm:$0xff]
    %v5425 = vld [vmem:[#allocation4 + $0x9b0] sm:$0xff]
    %v5426 = vld [vmem:[#allocation4 + $0x9b8] sm:$0xff]
    %v5427 = vld [vmem:[#allocation4 + $0x9c0] sm:$0xff]
    %v5428 = vld [vmem:[#allocation4 + $0x9c8] sm:$0xff]
    %v5429 = vld [vmem:[#allocation4 + $0x9d0] sm:$0xff]
    %v5430 = vld [vmem:[#allocation4 + $0x9d8] sm:$0xff]
    %v5431 = vld [vmem:[#allocation4 + $0x9e0] sm:$0xff]
    %v5432 = vld [vmem:[#allocation4 + $0x9e8] sm:$0xff]
    %v5433 = vld [vmem:[#allocation4 + $0x9f0] sm:$0xff]
    %v5434 = vld [vmem:[#allocation4 + $0x9f8] sm:$0xff]
    %v5435 = vld [vmem:[#allocation4 + $0xa00] sm:$0xff]
    %v5436 = vld [vmem:[#allocation4 + $0xa08] sm:$0xff]
    %v5437 = vld [vmem:[#allocation4 + $0xa10] sm:$0xff]
    %v5438 = vld [vmem:[#allocation4 + $0xa18] sm:$0xff]
    %v5439 = vld [vmem:[#allocation4 + $0xa20] sm:$0xff]
    %v5440 = vld [vmem:[#allocation4 + $0xa28] sm:$0xff]
    %v5441 = vld [vmem:[#allocation4 + $0xa30] sm:$0xff]
    %v5442 = vld [vmem:[#allocation4 + $0xa38] sm:$0xff]
    %v5443 = vld [vmem:[#allocation4 + $0xa40] sm:$0xff]
    %v5444 = vld [vmem:[#allocation4 + $0xa48] sm:$0xff]
    %v5445 = vld [vmem:[#allocation4 + $0xa50] sm:$0xff]
    %v5446 = vld [vmem:[#allocation4 + $0xa58] sm:$0xff]
    %v5447 = vld [vmem:[#allocation4 + $0xa60] sm:$0xff]
    %v5448 = vld [vmem:[#allocation4 + $0xa68] sm:$0xff]
    %v5449 = vld [vmem:[#allocation4 + $0xa70] sm:$0xff]
    %v5450 = vld [vmem:[#allocation4 + $0xa78] sm:$0xff]
    %v5451 = vld [vmem:[#allocation4 + $0xa80] sm:$0xff]
    %v5452 = vld [vmem:[#allocation4 + $0xa88] sm:$0xff]
    %v5453 = vld [vmem:[#allocation4 + $0xa90] sm:$0xff]
    %v5454 = vld [vmem:[#allocation4 + $0xa98] sm:$0xff]
    %v5455 = vld [vmem:[#allocation4 + $0xaa0] sm:$0xff]
    %v5456 = vld [vmem:[#allocation4 + $0xaa8] sm:$0xff]
    %v5457 = vld [vmem:[#allocation4 + $0xab0] sm:$0xff]
    %v5458 = vld [vmem:[#allocation4 + $0xab8] sm:$0xff]
    %v5459 = vld [vmem:[#allocation4 + $0xac0] sm:$0xff]
    %v5460 = vld [vmem:[#allocation4 + $0xac8] sm:$0xff]
    %v5461 = vld [vmem:[#allocation4 + $0xad0] sm:$0xff]
    %v5462 = vld [vmem:[#allocation4 + $0xad8] sm:$0xff]
    %v5463 = vld [vmem:[#allocation4 + $0xae0] sm:$0xff]
    %v5464 = vld [vmem:[#allocation4 + $0xae8] sm:$0xff]
    %v5465 = vld [vmem:[#allocation4 + $0xaf0] sm:$0xff]
    %v5466 = vld [vmem:[#allocation4 + $0xaf8] sm:$0xff]
    %v5467 = vld [vmem:[#allocation4 + $0xb00] sm:$0xff]
    %v5468 = vld [vmem:[#allocation4 + $0xb08] sm:$0xff]
    %v5469 = vld [vmem:[#allocation4 + $0xb10] sm:$0xff]
    %v5470 = vld [vmem:[#allocation4 + $0xb18] sm:$0xff]
    %v5471 = vld [vmem:[#allocation4 + $0xb20] sm:$0xff]
    %v5472 = vld [vmem:[#allocation4 + $0xb28] sm:$0xff]
    %v5473 = vld [vmem:[#allocation4 + $0xb30] sm:$0xff]
    %v5474 = vld [vmem:[#allocation4 + $0xb38] sm:$0xff]
    %v5475 = vld [vmem:[#allocation4 + $0xb40] sm:$0xff]
    %v5476 = vld [vmem:[#allocation4 + $0xb48] sm:$0xff]
    %v5477 = vld [vmem:[#allocation4 + $0xb50] sm:$0xff]
    %v5478 = vld [vmem:[#allocation4 + $0xb58] sm:$0xff]
    %v5479 = vld [vmem:[#allocation4 + $0xb60] sm:$0xff]
    %v5480 = vld [vmem:[#allocation4 + $0xb68] sm:$0xff]
    %v5481 = vld [vmem:[#allocation4 + $0xb70] sm:$0xff]
    %v5482 = vld [vmem:[#allocation4 + $0xb78] sm:$0xff]
    %v5483 = vld [vmem:[#allocation4 + $0xb80] sm:$0xff]
    %v5484 = vld [vmem:[#allocation4 + $0xb88] sm:$0xff]
    %v5485 = vld [vmem:[#allocation4 + $0xb90] sm:$0xff]
    %v5486 = vld [vmem:[#allocation4 + $0xb98] sm:$0xff]
    %v5487 = vld [vmem:[#allocation4 + $0xba0] sm:$0xff]
    %v5488 = vld [vmem:[#allocation4 + $0xba8] sm:$0xff]
    %v5489 = vld [vmem:[#allocation4 + $0xbb0] sm:$0xff]
    %v5490 = vld [vmem:[#allocation4 + $0xbb8] sm:$0xff]
    %v5491 = vld [vmem:[#allocation4 + $0xbc0] sm:$0xff]
    %v5492 = vld [vmem:[#allocation4 + $0xbc8] sm:$0xff]
    %v5493 = vld [vmem:[#allocation4 + $0xbd0] sm:$0xff]
    %v5494 = vld [vmem:[#allocation4 + $0xbd8] sm:$0xff]
    %v5495 = vld [vmem:[#allocation4 + $0xbe0] sm:$0xff]
    %v5496 = vld [vmem:[#allocation4 + $0xbe8] sm:$0xff]
    %v5497 = vld [vmem:[#allocation4 + $0xbf0] sm:$0xff]
    %v5498 = vld [vmem:[#allocation4 + $0xbf8] sm:$0xff]
    %v5499 = vld [vmem:[#allocation4 + $0xc00] sm:$0xff]
    %v5500 = vld [vmem:[#allocation4 + $0xc08] sm:$0xff]
    %v5501 = vld [vmem:[#allocation4 + $0xc10] sm:$0xff]
    %v5502 = vld [vmem:[#allocation4 + $0xc18] sm:$0xff]
    %v5503 = vld [vmem:[#allocation4 + $0xc20] sm:$0xff]
    %v5504 = vld [vmem:[#allocation4 + $0xc28] sm:$0xff]
    %v5505 = vld [vmem:[#allocation4 + $0xc30] sm:$0xff]
    %v5506 = vld [vmem:[#allocation4 + $0xc38] sm:$0xff]
    %v5507 = vld [vmem:[#allocation4 + $0xc40] sm:$0xff]
    %v5508 = vld [vmem:[#allocation4 + $0xc48] sm:$0xff]
    %v5509 = vld [vmem:[#allocation4 + $0xc50] sm:$0xff]
    %v5510 = vld [vmem:[#allocation4 + $0xc58] sm:$0xff]
    %v5511 = vld [vmem:[#allocation4 + $0xc60] sm:$0xff]
    %v5512 = vld [vmem:[#allocation4 + $0xc68] sm:$0xff]
    %v5513 = vld [vmem:[#allocation4 + $0xc70] sm:$0xff]
    %v5514 = vld [vmem:[#allocation4 + $0xc78] sm:$0xff]
    %v5515 = vld [vmem:[#allocation4 + $0xc80] sm:$0xff]
    %v5516 = vld [vmem:[#allocation4 + $0xc88] sm:$0xff]
    %v5517 = vld [vmem:[#allocation4 + $0xc90] sm:$0xff]
    %v5518 = vld [vmem:[#allocation4 + $0xc98] sm:$0xff]
    %v5519 = vld [vmem:[#allocation4 + $0xca0] sm:$0xff]
    %v5520 = vld [vmem:[#allocation4 + $0xca8] sm:$0xff]
    %v5521 = vld [vmem:[#allocation4 + $0xcb0] sm:$0xff]
    %v5522 = vld [vmem:[#allocation4 + $0xcb8] sm:$0xff]
    %v5523 = vld [vmem:[#allocation4 + $0xcc0] sm:$0xff]
    %v5524 = vld [vmem:[#allocation4 + $0xcc8] sm:$0xff]
    %v5525 = vld [vmem:[#allocation4 + $0xcd0] sm:$0xff]
    %v5526 = vld [vmem:[#allocation4 + $0xcd8] sm:$0xff]
    %v5527 = vld [vmem:[#allocation4 + $0xce0] sm:$0xff]
    %v5528 = vld [vmem:[#allocation4 + $0xce8] sm:$0xff]
    %v5529 = vld [vmem:[#allocation4 + $0xcf0] sm:$0xff]
    %v5530 = vld [vmem:[#allocation4 + $0xcf8] sm:$0xff]
    %v5531 = vld [vmem:[#allocation4 + $0xd00] sm:$0xff]
    %v5532 = vld [vmem:[#allocation4 + $0xd08] sm:$0xff]
    %v5533 = vld [vmem:[#allocation4 + $0xd10] sm:$0xff]
    %v5534 = vld [vmem:[#allocation4 + $0xd18] sm:$0xff]
    %v5535 = vld [vmem:[#allocation4 + $0xd20] sm:$0xff]
    %v5536 = vld [vmem:[#allocation4 + $0xd28] sm:$0xff]
    %v5537 = vld [vmem:[#allocation4 + $0xd30] sm:$0xff]
    %v5538 = vld [vmem:[#allocation4 + $0xd38] sm:$0xff]
    %v5539 = vld [vmem:[#allocation4 + $0xd40] sm:$0xff]
    %v5540 = vld [vmem:[#allocation4 + $0xd48] sm:$0xff]
    %v5541 = vld [vmem:[#allocation4 + $0xd50] sm:$0xff]
    %v5542 = vld [vmem:[#allocation4 + $0xd58] sm:$0xff]
    %v5543 = vld [vmem:[#allocation4 + $0xd60] sm:$0xff]
    %v5544 = vld [vmem:[#allocation4 + $0xd68] sm:$0xff]
    %v5545 = vld [vmem:[#allocation4 + $0xd70] sm:$0xff]
    %v5546 = vld [vmem:[#allocation4 + $0xd78] sm:$0xff]
    %v5547 = vld [vmem:[#allocation4 + $0xd80] sm:$0xff]
    %v5548 = vld [vmem:[#allocation4 + $0xd88] sm:$0xff]
    %v5549 = vld [vmem:[#allocation4 + $0xd90] sm:$0xff]
    %v5550 = vld [vmem:[#allocation4 + $0xd98] sm:$0xff]
    %v5551 = vld [vmem:[#allocation4 + $0xda0] sm:$0xff]
    %v5552 = vld [vmem:[#allocation4 + $0xda8] sm:$0xff]
    %v5553 = vld [vmem:[#allocation4 + $0xdb0] sm:$0xff]
    %v5554 = vld [vmem:[#allocation4 + $0xdb8] sm:$0xff]
    %v5555 = vld [vmem:[#allocation4 + $0xdc0] sm:$0xff]
    %v5556 = vld [vmem:[#allocation4 + $0xdc8] sm:$0xff]
    %v5557 = vld [vmem:[#allocation4 + $0xdd0] sm:$0xff]
    %v5558 = vld [vmem:[#allocation4 + $0xdd8] sm:$0xff]
    %v5559 = vld [vmem:[#allocation4 + $0xde0] sm:$0xff]
    %v5560 = vld [vmem:[#allocation4 + $0xde8] sm:$0xff]
    %v5561 = vld [vmem:[#allocation4 + $0xdf0] sm:$0xff]
    %v5562 = vld [vmem:[#allocation4 + $0xdf8] sm:$0xff]
    %v5563 = vld [vmem:[#allocation4 + $0xe00] sm:$0xff]
    %v5564 = vld [vmem:[#allocation4 + $0xe08] sm:$0xff]
    %v5565 = vld [vmem:[#allocation4 + $0xe10] sm:$0xff]
    %v5566 = vld [vmem:[#allocation4 + $0xe18] sm:$0xff]
    %v5567 = vld [vmem:[#allocation4 + $0xe20] sm:$0xff]
    %v5568 = vld [vmem:[#allocation4 + $0xe28] sm:$0xff]
    %v5569 = vld [vmem:[#allocation4 + $0xe30] sm:$0xff]
    %v5570 = vld [vmem:[#allocation4 + $0xe38] sm:$0xff]
    %v5571 = vld [vmem:[#allocation4 + $0xe40] sm:$0xff]
    %v5572 = vld [vmem:[#allocation4 + $0xe48] sm:$0xff]
    %v5573 = vld [vmem:[#allocation4 + $0xe50] sm:$0xff]
    %v5574 = vld [vmem:[#allocation4 + $0xe58] sm:$0xff]
    %v5575 = vld [vmem:[#allocation4 + $0xe60] sm:$0xff]
    %v5576 = vld [vmem:[#allocation4 + $0xe68] sm:$0xff]
    %v5577 = vld [vmem:[#allocation4 + $0xe70] sm:$0xff]
    %v5578 = vld [vmem:[#allocation4 + $0xe78] sm:$0xff]
    %v5579 = vld [vmem:[#allocation4 + $0xe80] sm:$0xff]
    %v5580 = vld [vmem:[#allocation4 + $0xe88] sm:$0xff]
    %v5581 = vld [vmem:[#allocation4 + $0xe90] sm:$0xff]
    %v5582 = vld [vmem:[#allocation4 + $0xe98] sm:$0xff]
    %v5583 = vld [vmem:[#allocation4 + $0xea0] sm:$0xff]
    %v5584 = vld [vmem:[#allocation4 + $0xea8] sm:$0xff]
    %v5585 = vld [vmem:[#allocation4 + $0xeb0] sm:$0xff]
    %v5586 = vld [vmem:[#allocation4 + $0xeb8] sm:$0xff]
    %v5587 = vld [vmem:[#allocation4 + $0xec0] sm:$0xff]
    %v5588 = vld [vmem:[#allocation4 + $0xec8] sm:$0xff]
    %v5589 = vld [vmem:[#allocation4 + $0xed0] sm:$0xff]
    %v5590 = vld [vmem:[#allocation4 + $0xed8] sm:$0xff]
    %v5591 = vld [vmem:[#allocation4 + $0xee0] sm:$0xff]
    %v5592 = vld [vmem:[#allocation4 + $0xee8] sm:$0xff]
    %v5593 = vld [vmem:[#allocation4 + $0xef0] sm:$0xff]
    %v5594 = vld [vmem:[#allocation4 + $0xef8] sm:$0xff]
    %v5595 = vld [vmem:[#allocation4 + $0xf00] sm:$0xff]
    %v5596 = vld [vmem:[#allocation4 + $0xf08] sm:$0xff]
    %v5597 = vld [vmem:[#allocation4 + $0xf10] sm:$0xff]
    %v5598 = vld [vmem:[#allocation4 + $0xf18] sm:$0xff]
    %v5599 = vld [vmem:[#allocation4 + $0xf20] sm:$0xff]
    %v5600 = vld [vmem:[#allocation4 + $0xf28] sm:$0xff]
    %v5601 = vld [vmem:[#allocation4 + $0xf30] sm:$0xff]
    %v5602 = vld [vmem:[#allocation4 + $0xf38] sm:$0xff]
    %v5603 = vld [vmem:[#allocation4 + $0xf40] sm:$0xff]
    %v5604 = vld [vmem:[#allocation4 + $0xf48] sm:$0xff]
    %v5605 = vld [vmem:[#allocation4 + $0xf50] sm:$0xff]
    %v5606 = vld [vmem:[#allocation4 + $0xf58] sm:$0xff]
    %v5607 = vld [vmem:[#allocation4 + $0xf60] sm:$0xff]
    %v5608 = vld [vmem:[#allocation4 + $0xf68] sm:$0xff]
    %v5609 = vld [vmem:[#allocation4 + $0xf70] sm:$0xff]
    %v5610 = vld [vmem:[#allocation4 + $0xf78] sm:$0xff]
    %v5611 = vld [vmem:[#allocation4 + $0xf80] sm:$0xff]
    %v5612 = vld [vmem:[#allocation4 + $0xf88] sm:$0xff]
    %v5613 = vld [vmem:[#allocation4 + $0xf90] sm:$0xff]
    %v5614 = vld [vmem:[#allocation4 + $0xf98] sm:$0xff]
    %v5615 = vld [vmem:[#allocation4 + $0xfa0] sm:$0xff]
    %v5616 = vld [vmem:[#allocation4 + $0xfa8] sm:$0xff]
    %v5617 = vld [vmem:[#allocation4 + $0xfb0] sm:$0xff]
    %v5618 = vld [vmem:[#allocation4 + $0xfb8] sm:$0xff]
    %v5619 = vld [vmem:[#allocation4 + $0xfc0] sm:$0xff]
    %v5620 = vld [vmem:[#allocation4 + $0xfc8] sm:$0xff]
    %v5621 = vld [vmem:[#allocation4 + $0xfd0] sm:$0xff]
    %v5622 = vld [vmem:[#allocation4 + $0xfd8] sm:$0xff]
    %v5623 = vld [vmem:[#allocation4 + $0xfe0] sm:$0xff]
    %v5624 = vld [vmem:[#allocation4 + $0xfe8] sm:$0xff]
    %v5625 = vld [vmem:[#allocation4 + $0xff0] sm:$0xff]
    %v5626 = vld [vmem:[#allocation4 + $0xff8] sm:$0xff]
    %v5627 = vld [vmem:[#allocation7 + $0x10] sm:$0xf]
    %v5629 = vlaneseq
    %v5630 = vshrl.u32 %v5629, 7
    %v5631 = vsub.s32 0, %v5630
    %v5632 = vrot.slane %v5627, %v5631
    %v5633 = vlaneseq
    %v5634 = vshrl.u32 %v5633, 7
    %v5635 = vsub.s32 1, %v5634
    %v5636 = vrot.slane %v5627, %v5635
    %v5637 = vlaneseq
    %v5638 = vshrl.u32 %v5637, 7
    %v5639 = vsub.s32 2, %v5638
    %v5640 = vrot.slane %v5627, %v5639
    %v5641 = vlaneseq
    %v5642 = vshrl.u32 %v5641, 7
    %v5643 = vsub.s32 3, %v5642
    %v5644 = vrot.slane %v5627, %v5643
    %v6161 = vunpack.c.l.b16 %v5115
    %v6162 = vunpack.c.h.b16 %v5115
    %v6163 = vunpack.c.l.b16 %v5116
    %v6164 = vunpack.c.h.b16 %v5116
    %v6165 = vunpack.c.l.b16 %v5117
    %v6166 = vunpack.c.h.b16 %v5117
    %v6167 = vunpack.c.l.b16 %v5118
    %v6168 = vunpack.c.h.b16 %v5118
    %v6169 = vunpack.c.l.b16 %v5119
    %v6170 = vunpack.c.h.b16 %v5119
    %v6171 = vunpack.c.l.b16 %v5120
    %v6172 = vunpack.c.h.b16 %v5120
    %v6173 = vunpack.c.l.b16 %v5121
    %v6174 = vunpack.c.h.b16 %v5121
    %v6175 = vunpack.c.l.b16 %v5122
    %v6176 = vunpack.c.h.b16 %v5122
    %v6177 = vunpack.c.l.b16 %v5123
    %v6178 = vunpack.c.h.b16 %v5123
    %v6179 = vunpack.c.l.b16 %v5124
    %v6180 = vunpack.c.h.b16 %v5124
    %v6181 = vunpack.c.l.b16 %v5125
    %v6182 = vunpack.c.h.b16 %v5125
    %v6183 = vunpack.c.l.b16 %v5126
    %v6184 = vunpack.c.h.b16 %v5126
    %v6185 = vunpack.c.l.b16 %v5127
    %v6186 = vunpack.c.h.b16 %v5127
    %v6187 = vunpack.c.l.b16 %v5128
    %v6188 = vunpack.c.h.b16 %v5128
    %v6189 = vunpack.c.l.b16 %v5129
    %v6190 = vunpack.c.h.b16 %v5129
    %v6191 = vunpack.c.l.b16 %v5130
    %v6192 = vunpack.c.h.b16 %v5130
    %v6193 = vunpack.c.l.b16 %v5131
    %v6194 = vunpack.c.h.b16 %v5131
    %v6195 = vunpack.c.l.b16 %v5132
    %v6196 = vunpack.c.h.b16 %v5132
    %v6197 = vunpack.c.l.b16 %v5133
    %v6198 = vunpack.c.h.b16 %v5133
    %v6199 = vunpack.c.l.b16 %v5134
    %v6200 = vunpack.c.h.b16 %v5134
    %v6201 = vunpack.c.l.b16 %v5135
    %v6202 = vunpack.c.h.b16 %v5135
    %v6203 = vunpack.c.l.b16 %v5136
    %v6204 = vunpack.c.h.b16 %v5136
    %v6205 = vunpack.c.l.b16 %v5137
    %v6206 = vunpack.c.h.b16 %v5137
    %v6207 = vunpack.c.l.b16 %v5138
    %v6208 = vunpack.c.h.b16 %v5138
    %v6209 = vunpack.c.l.b16 %v5139
    %v6210 = vunpack.c.h.b16 %v5139
    %v6211 = vunpack.c.l.b16 %v5140
    %v6212 = vunpack.c.h.b16 %v5140
    %v6213 = vunpack.c.l.b16 %v5141
    %v6214 = vunpack.c.h.b16 %v5141
    %v6215 = vunpack.c.l.b16 %v5142
    %v6216 = vunpack.c.h.b16 %v5142
    %v6217 = vunpack.c.l.b16 %v5143
    %v6218 = vunpack.c.h.b16 %v5143
    %v6219 = vunpack.c.l.b16 %v5144
    %v6220 = vunpack.c.h.b16 %v5144
    %v6221 = vunpack.c.l.b16 %v5145
    %v6222 = vunpack.c.h.b16 %v5145
    %v6223 = vunpack.c.l.b16 %v5146
    %v6224 = vunpack.c.h.b16 %v5146
    %v6225 = vunpack.c.l.b16 %v5147
    %v6226 = vunpack.c.h.b16 %v5147
    %v6227 = vunpack.c.l.b16 %v5148
    %v6228 = vunpack.c.h.b16 %v5148
    %v6229 = vunpack.c.l.b16 %v5149
    %v6230 = vunpack.c.h.b16 %v5149
    %v6231 = vunpack.c.l.b16 %v5150
    %v6232 = vunpack.c.h.b16 %v5150
    %v6233 = vunpack.c.l.b16 %v5151
    %v6234 = vunpack.c.h.b16 %v5151
    %v6235 = vunpack.c.l.b16 %v5152
    %v6236 = vunpack.c.h.b16 %v5152
    %v6237 = vunpack.c.l.b16 %v5153
    %v6238 = vunpack.c.h.b16 %v5153
    %v6239 = vunpack.c.l.b16 %v5154
    %v6240 = vunpack.c.h.b16 %v5154
    %v6241 = vunpack.c.l.b16 %v5155
    %v6242 = vunpack.c.h.b16 %v5155
    %v6243 = vunpack.c.l.b16 %v5156
    %v6244 = vunpack.c.h.b16 %v5156
    %v6245 = vunpack.c.l.b16 %v5157
    %v6246 = vunpack.c.h.b16 %v5157
    %v6247 = vunpack.c.l.b16 %v5158
    %v6248 = vunpack.c.h.b16 %v5158
    %v6249 = vunpack.c.l.b16 %v5159
    %v6250 = vunpack.c.h.b16 %v5159
    %v6251 = vunpack.c.l.b16 %v5160
    %v6252 = vunpack.c.h.b16 %v5160
    %v6253 = vunpack.c.l.b16 %v5161
    %v6254 = vunpack.c.h.b16 %v5161
    %v6255 = vunpack.c.l.b16 %v5162
    %v6256 = vunpack.c.h.b16 %v5162
    %v6257 = vunpack.c.l.b16 %v5163
    %v6258 = vunpack.c.h.b16 %v5163
    %v6259 = vunpack.c.l.b16 %v5164
    %v6260 = vunpack.c.h.b16 %v5164
    %v6261 = vunpack.c.l.b16 %v5165
    %v6262 = vunpack.c.h.b16 %v5165
    %v6263 = vunpack.c.l.b16 %v5166
    %v6264 = vunpack.c.h.b16 %v5166
    %v6265 = vunpack.c.l.b16 %v5167
    %v6266 = vunpack.c.h.b16 %v5167
    %v6267 = vunpack.c.l.b16 %v5168
    %v6268 = vunpack.c.h.b16 %v5168
    %v6269 = vunpack.c.l.b16 %v5169
    %v6270 = vunpack.c.h.b16 %v5169
    %v6271 = vunpack.c.l.b16 %v5170
    %v6272 = vunpack.c.h.b16 %v5170
    %v6273 = vunpack.c.l.b16 %v5171
    %v6274 = vunpack.c.h.b16 %v5171
    %v6275 = vunpack.c.l.b16 %v5172
    %v6276 = vunpack.c.h.b16 %v5172
    %v6277 = vunpack.c.l.b16 %v5173
    %v6278 = vunpack.c.h.b16 %v5173
    %v6279 = vunpack.c.l.b16 %v5174
    %v6280 = vunpack.c.h.b16 %v5174
    %v6281 = vunpack.c.l.b16 %v5175
    %v6282 = vunpack.c.h.b16 %v5175
    %v6283 = vunpack.c.l.b16 %v5176
    %v6284 = vunpack.c.h.b16 %v5176
    %v6285 = vunpack.c.l.b16 %v5177
    %v6286 = vunpack.c.h.b16 %v5177
    %v6287 = vunpack.c.l.b16 %v5178
    %v6288 = vunpack.c.h.b16 %v5178
    %v6289 = vunpack.c.l.b16 %v5179
    %v6290 = vunpack.c.h.b16 %v5179
    %v6291 = vunpack.c.l.b16 %v5180
    %v6292 = vunpack.c.h.b16 %v5180
    %v6293 = vunpack.c.l.b16 %v5181
    %v6294 = vunpack.c.h.b16 %v5181
    %v6295 = vunpack.c.l.b16 %v5182
    %v6296 = vunpack.c.h.b16 %v5182
    %v6297 = vunpack.c.l.b16 %v5183
    %v6298 = vunpack.c.h.b16 %v5183
    %v6299 = vunpack.c.l.b16 %v5184
    %v6300 = vunpack.c.h.b16 %v5184
    %v6301 = vunpack.c.l.b16 %v5185
    %v6302 = vunpack.c.h.b16 %v5185
    %v6303 = vunpack.c.l.b16 %v5186
    %v6304 = vunpack.c.h.b16 %v5186
    %v6305 = vunpack.c.l.b16 %v5187
    %v6306 = vunpack.c.h.b16 %v5187
    %v6307 = vunpack.c.l.b16 %v5188
    %v6308 = vunpack.c.h.b16 %v5188
    %v6309 = vunpack.c.l.b16 %v5189
    %v6310 = vunpack.c.h.b16 %v5189
    %v6311 = vunpack.c.l.b16 %v5190
    %v6312 = vunpack.c.h.b16 %v5190
    %v6313 = vunpack.c.l.b16 %v5191
    %v6314 = vunpack.c.h.b16 %v5191
    %v6315 = vunpack.c.l.b16 %v5192
    %v6316 = vunpack.c.h.b16 %v5192
    %v6317 = vunpack.c.l.b16 %v5193
    %v6318 = vunpack.c.h.b16 %v5193
    %v6319 = vunpack.c.l.b16 %v5194
    %v6320 = vunpack.c.h.b16 %v5194
    %v6321 = vunpack.c.l.b16 %v5195
    %v6322 = vunpack.c.h.b16 %v5195
    %v6323 = vunpack.c.l.b16 %v5196
    %v6324 = vunpack.c.h.b16 %v5196
    %v6325 = vunpack.c.l.b16 %v5197
    %v6326 = vunpack.c.h.b16 %v5197
    %v6327 = vunpack.c.l.b16 %v5198
    %v6328 = vunpack.c.h.b16 %v5198
    %v6329 = vunpack.c.l.b16 %v5199
    %v6330 = vunpack.c.h.b16 %v5199
    %v6331 = vunpack.c.l.b16 %v5200
    %v6332 = vunpack.c.h.b16 %v5200
    %v6333 = vunpack.c.l.b16 %v5201
    %v6334 = vunpack.c.h.b16 %v5201
    %v6335 = vunpack.c.l.b16 %v5202
    %v6336 = vunpack.c.h.b16 %v5202
    %v6337 = vunpack.c.l.b16 %v5203
    %v6338 = vunpack.c.h.b16 %v5203
    %v6339 = vunpack.c.l.b16 %v5204
    %v6340 = vunpack.c.h.b16 %v5204
    %v6341 = vunpack.c.l.b16 %v5205
    %v6342 = vunpack.c.h.b16 %v5205
    %v6343 = vunpack.c.l.b16 %v5206
    %v6344 = vunpack.c.h.b16 %v5206
    %v6345 = vunpack.c.l.b16 %v5207
    %v6346 = vunpack.c.h.b16 %v5207
    %v6347 = vunpack.c.l.b16 %v5208
    %v6348 = vunpack.c.h.b16 %v5208
    %v6349 = vunpack.c.l.b16 %v5209
    %v6350 = vunpack.c.h.b16 %v5209
    %v6351 = vunpack.c.l.b16 %v5210
    %v6352 = vunpack.c.h.b16 %v5210
    %v6353 = vunpack.c.l.b16 %v5211
    %v6354 = vunpack.c.h.b16 %v5211
    %v6355 = vunpack.c.l.b16 %v5212
    %v6356 = vunpack.c.h.b16 %v5212
    %v6357 = vunpack.c.l.b16 %v5213
    %v6358 = vunpack.c.h.b16 %v5213
    %v6359 = vunpack.c.l.b16 %v5214
    %v6360 = vunpack.c.h.b16 %v5214
    %v6361 = vunpack.c.l.b16 %v5215
    %v6362 = vunpack.c.h.b16 %v5215
    %v6363 = vunpack.c.l.b16 %v5216
    %v6364 = vunpack.c.h.b16 %v5216
    %v6365 = vunpack.c.l.b16 %v5217
    %v6366 = vunpack.c.h.b16 %v5217
    %v6367 = vunpack.c.l.b16 %v5218
    %v6368 = vunpack.c.h.b16 %v5218
    %v6369 = vunpack.c.l.b16 %v5219
    %v6370 = vunpack.c.h.b16 %v5219
    %v6371 = vunpack.c.l.b16 %v5220
    %v6372 = vunpack.c.h.b16 %v5220
    %v6373 = vunpack.c.l.b16 %v5221
    %v6374 = vunpack.c.h.b16 %v5221
    %v6375 = vunpack.c.l.b16 %v5222
    %v6376 = vunpack.c.h.b16 %v5222
    %v6377 = vunpack.c.l.b16 %v5223
    %v6378 = vunpack.c.h.b16 %v5223
    %v6379 = vunpack.c.l.b16 %v5224
    %v6380 = vunpack.c.h.b16 %v5224
    %v6381 = vunpack.c.l.b16 %v5225
    %v6382 = vunpack.c.h.b16 %v5225
    %v6383 = vunpack.c.l.b16 %v5226
    %v6384 = vunpack.c.h.b16 %v5226
    %v6385 = vunpack.c.l.b16 %v5227
    %v6386 = vunpack.c.h.b16 %v5227
    %v6387 = vunpack.c.l.b16 %v5228
    %v6388 = vunpack.c.h.b16 %v5228
    %v6389 = vunpack.c.l.b16 %v5229
    %v6390 = vunpack.c.h.b16 %v5229
    %v6391 = vunpack.c.l.b16 %v5230
    %v6392 = vunpack.c.h.b16 %v5230
    %v6393 = vunpack.c.l.b16 %v5231
    %v6394 = vunpack.c.h.b16 %v5231
    %v6395 = vunpack.c.l.b16 %v5232
    %v6396 = vunpack.c.h.b16 %v5232
    %v6397 = vunpack.c.l.b16 %v5233
    %v6398 = vunpack.c.h.b16 %v5233
    %v6399 = vunpack.c.l.b16 %v5234
    %v6400 = vunpack.c.h.b16 %v5234
    %v6401 = vunpack.c.l.b16 %v5235
    %v6402 = vunpack.c.h.b16 %v5235
    %v6403 = vunpack.c.l.b16 %v5236
    %v6404 = vunpack.c.h.b16 %v5236
    %v6405 = vunpack.c.l.b16 %v5237
    %v6406 = vunpack.c.h.b16 %v5237
    %v6407 = vunpack.c.l.b16 %v5238
    %v6408 = vunpack.c.h.b16 %v5238
    %v6409 = vunpack.c.l.b16 %v5239
    %v6410 = vunpack.c.h.b16 %v5239
    %v6411 = vunpack.c.l.b16 %v5240
    %v6412 = vunpack.c.h.b16 %v5240
    %v6413 = vunpack.c.l.b16 %v5241
    %v6414 = vunpack.c.h.b16 %v5241
    %v6415 = vunpack.c.l.b16 %v5242
    %v6416 = vunpack.c.h.b16 %v5242
    %v6417 = vunpack.c.l.b16 %v5243
    %v6418 = vunpack.c.h.b16 %v5243
    %v6419 = vunpack.c.l.b16 %v5244
    %v6420 = vunpack.c.h.b16 %v5244
    %v6421 = vunpack.c.l.b16 %v5245
    %v6422 = vunpack.c.h.b16 %v5245
    %v6423 = vunpack.c.l.b16 %v5246
    %v6424 = vunpack.c.h.b16 %v5246
    %v6425 = vunpack.c.l.b16 %v5247
    %v6426 = vunpack.c.h.b16 %v5247
    %v6427 = vunpack.c.l.b16 %v5248
    %v6428 = vunpack.c.h.b16 %v5248
    %v6429 = vunpack.c.l.b16 %v5249
    %v6430 = vunpack.c.h.b16 %v5249
    %v6431 = vunpack.c.l.b16 %v5250
    %v6432 = vunpack.c.h.b16 %v5250
    %v6433 = vunpack.c.l.b16 %v5251
    %v6434 = vunpack.c.h.b16 %v5251
    %v6435 = vunpack.c.l.b16 %v5252
    %v6436 = vunpack.c.h.b16 %v5252
    %v6437 = vunpack.c.l.b16 %v5253
    %v6438 = vunpack.c.h.b16 %v5253
    %v6439 = vunpack.c.l.b16 %v5254
    %v6440 = vunpack.c.h.b16 %v5254
    %v6441 = vunpack.c.l.b16 %v5255
    %v6442 = vunpack.c.h.b16 %v5255
    %v6443 = vunpack.c.l.b16 %v5256
    %v6444 = vunpack.c.h.b16 %v5256
    %v6445 = vunpack.c.l.b16 %v5257
    %v6446 = vunpack.c.h.b16 %v5257
    %v6447 = vunpack.c.l.b16 %v5258
    %v6448 = vunpack.c.h.b16 %v5258
    %v6449 = vunpack.c.l.b16 %v5259
    %v6450 = vunpack.c.h.b16 %v5259
    %v6451 = vunpack.c.l.b16 %v5260
    %v6452 = vunpack.c.h.b16 %v5260
    %v6453 = vunpack.c.l.b16 %v5261
    %v6454 = vunpack.c.h.b16 %v5261
    %v6455 = vunpack.c.l.b16 %v5262
    %v6456 = vunpack.c.h.b16 %v5262
    %v6457 = vunpack.c.l.b16 %v5263
    %v6458 = vunpack.c.h.b16 %v5263
    %v6459 = vunpack.c.l.b16 %v5264
    %v6460 = vunpack.c.h.b16 %v5264
    %v6461 = vunpack.c.l.b16 %v5265
    %v6462 = vunpack.c.h.b16 %v5265
    %v6463 = vunpack.c.l.b16 %v5266
    %v6464 = vunpack.c.h.b16 %v5266
    %v6465 = vunpack.c.l.b16 %v5267
    %v6466 = vunpack.c.h.b16 %v5267
    %v6467 = vunpack.c.l.b16 %v5268
    %v6468 = vunpack.c.h.b16 %v5268
    %v6469 = vunpack.c.l.b16 %v5269
    %v6470 = vunpack.c.h.b16 %v5269
    %v6471 = vunpack.c.l.b16 %v5270
    %v6472 = vunpack.c.h.b16 %v5270
    %v6473 = vunpack.c.l.b16 %v5271
    %v6474 = vunpack.c.h.b16 %v5271
    %v6475 = vunpack.c.l.b16 %v5272
    %v6476 = vunpack.c.h.b16 %v5272
    %v6477 = vunpack.c.l.b16 %v5273
    %v6478 = vunpack.c.h.b16 %v5273
    %v6479 = vunpack.c.l.b16 %v5274
    %v6480 = vunpack.c.h.b16 %v5274
    %v6481 = vunpack.c.l.b16 %v5275
    %v6482 = vunpack.c.h.b16 %v5275
    %v6483 = vunpack.c.l.b16 %v5276
    %v6484 = vunpack.c.h.b16 %v5276
    %v6485 = vunpack.c.l.b16 %v5277
    %v6486 = vunpack.c.h.b16 %v5277
    %v6487 = vunpack.c.l.b16 %v5278
    %v6488 = vunpack.c.h.b16 %v5278
    %v6489 = vunpack.c.l.b16 %v5279
    %v6490 = vunpack.c.h.b16 %v5279
    %v6491 = vunpack.c.l.b16 %v5280
    %v6492 = vunpack.c.h.b16 %v5280
    %v6493 = vunpack.c.l.b16 %v5281
    %v6494 = vunpack.c.h.b16 %v5281
    %v6495 = vunpack.c.l.b16 %v5282
    %v6496 = vunpack.c.h.b16 %v5282
    %v6497 = vunpack.c.l.b16 %v5283
    %v6498 = vunpack.c.h.b16 %v5283
    %v6499 = vunpack.c.l.b16 %v5284
    %v6500 = vunpack.c.h.b16 %v5284
    %v6501 = vunpack.c.l.b16 %v5285
    %v6502 = vunpack.c.h.b16 %v5285
    %v6503 = vunpack.c.l.b16 %v5286
    %v6504 = vunpack.c.h.b16 %v5286
    %v6505 = vunpack.c.l.b16 %v5287
    %v6506 = vunpack.c.h.b16 %v5287
    %v6507 = vunpack.c.l.b16 %v5288
    %v6508 = vunpack.c.h.b16 %v5288
    %v6509 = vunpack.c.l.b16 %v5289
    %v6510 = vunpack.c.h.b16 %v5289
    %v6511 = vunpack.c.l.b16 %v5290
    %v6512 = vunpack.c.h.b16 %v5290
    %v6513 = vunpack.c.l.b16 %v5291
    %v6514 = vunpack.c.h.b16 %v5291
    %v6515 = vunpack.c.l.b16 %v5292
    %v6516 = vunpack.c.h.b16 %v5292
    %v6517 = vunpack.c.l.b16 %v5293
    %v6518 = vunpack.c.h.b16 %v5293
    %v6519 = vunpack.c.l.b16 %v5294
    %v6520 = vunpack.c.h.b16 %v5294
    %v6521 = vunpack.c.l.b16 %v5295
    %v6522 = vunpack.c.h.b16 %v5295
    %v6523 = vunpack.c.l.b16 %v5296
    %v6524 = vunpack.c.h.b16 %v5296
    %v6525 = vunpack.c.l.b16 %v5297
    %v6526 = vunpack.c.h.b16 %v5297
    %v6527 = vunpack.c.l.b16 %v5298
    %v6528 = vunpack.c.h.b16 %v5298
    %v6529 = vunpack.c.l.b16 %v5299
    %v6530 = vunpack.c.h.b16 %v5299
    %v6531 = vunpack.c.l.b16 %v5300
    %v6532 = vunpack.c.h.b16 %v5300
    %v6533 = vunpack.c.l.b16 %v5301
    %v6534 = vunpack.c.h.b16 %v5301
    %v6535 = vunpack.c.l.b16 %v5302
    %v6536 = vunpack.c.h.b16 %v5302
    %v6537 = vunpack.c.l.b16 %v5303
    %v6538 = vunpack.c.h.b16 %v5303
    %v6539 = vunpack.c.l.b16 %v5304
    %v6540 = vunpack.c.h.b16 %v5304
    %v6541 = vunpack.c.l.b16 %v5305
    %v6542 = vunpack.c.h.b16 %v5305
    %v6543 = vunpack.c.l.b16 %v5306
    %v6544 = vunpack.c.h.b16 %v5306
    %v6545 = vunpack.c.l.b16 %v5307
    %v6546 = vunpack.c.h.b16 %v5307
    %v6547 = vunpack.c.l.b16 %v5308
    %v6548 = vunpack.c.h.b16 %v5308
    %v6549 = vunpack.c.l.b16 %v5309
    %v6550 = vunpack.c.h.b16 %v5309
    %v6551 = vunpack.c.l.b16 %v5310
    %v6552 = vunpack.c.h.b16 %v5310
    %v6553 = vunpack.c.l.b16 %v5311
    %v6554 = vunpack.c.h.b16 %v5311
    %v6555 = vunpack.c.l.b16 %v5312
    %v6556 = vunpack.c.h.b16 %v5312
    %v6557 = vunpack.c.l.b16 %v5313
    %v6558 = vunpack.c.h.b16 %v5313
    %v6559 = vunpack.c.l.b16 %v5314
    %v6560 = vunpack.c.h.b16 %v5314
    %v6561 = vunpack.c.l.b16 %v5315
    %v6562 = vunpack.c.h.b16 %v5315
    %v6563 = vunpack.c.l.b16 %v5316
    %v6564 = vunpack.c.h.b16 %v5316
    %v6565 = vunpack.c.l.b16 %v5317
    %v6566 = vunpack.c.h.b16 %v5317
    %v6567 = vunpack.c.l.b16 %v5318
    %v6568 = vunpack.c.h.b16 %v5318
    %v6569 = vunpack.c.l.b16 %v5319
    %v6570 = vunpack.c.h.b16 %v5319
    %v6571 = vunpack.c.l.b16 %v5320
    %v6572 = vunpack.c.h.b16 %v5320
    %v6573 = vunpack.c.l.b16 %v5321
    %v6574 = vunpack.c.h.b16 %v5321
    %v6575 = vunpack.c.l.b16 %v5322
    %v6576 = vunpack.c.h.b16 %v5322
    %v6577 = vunpack.c.l.b16 %v5323
    %v6578 = vunpack.c.h.b16 %v5323
    %v6579 = vunpack.c.l.b16 %v5324
    %v6580 = vunpack.c.h.b16 %v5324
    %v6581 = vunpack.c.l.b16 %v5325
    %v6582 = vunpack.c.h.b16 %v5325
    %v6583 = vunpack.c.l.b16 %v5326
    %v6584 = vunpack.c.h.b16 %v5326
    %v6585 = vunpack.c.l.b16 %v5327
    %v6586 = vunpack.c.h.b16 %v5327
    %v6587 = vunpack.c.l.b16 %v5328
    %v6588 = vunpack.c.h.b16 %v5328
    %v6589 = vunpack.c.l.b16 %v5329
    %v6590 = vunpack.c.h.b16 %v5329
    %v6591 = vunpack.c.l.b16 %v5330
    %v6592 = vunpack.c.h.b16 %v5330
    %v6593 = vunpack.c.l.b16 %v5331
    %v6594 = vunpack.c.h.b16 %v5331
    %v6595 = vunpack.c.l.b16 %v5332
    %v6596 = vunpack.c.h.b16 %v5332
    %v6597 = vunpack.c.l.b16 %v5333
    %v6598 = vunpack.c.h.b16 %v5333
    %v6599 = vunpack.c.l.b16 %v5334
    %v6600 = vunpack.c.h.b16 %v5334
    %v6601 = vunpack.c.l.b16 %v5335
    %v6602 = vunpack.c.h.b16 %v5335
    %v6603 = vunpack.c.l.b16 %v5336
    %v6604 = vunpack.c.h.b16 %v5336
    %v6605 = vunpack.c.l.b16 %v5337
    %v6606 = vunpack.c.h.b16 %v5337
    %v6607 = vunpack.c.l.b16 %v5338
    %v6608 = vunpack.c.h.b16 %v5338
    %v6609 = vunpack.c.l.b16 %v5339
    %v6610 = vunpack.c.h.b16 %v5339
    %v6611 = vunpack.c.l.b16 %v5340
    %v6612 = vunpack.c.h.b16 %v5340
    %v6613 = vunpack.c.l.b16 %v5341
    %v6614 = vunpack.c.h.b16 %v5341
    %v6615 = vunpack.c.l.b16 %v5342
    %v6616 = vunpack.c.h.b16 %v5342
    %v6617 = vunpack.c.l.b16 %v5343
    %v6618 = vunpack.c.h.b16 %v5343
    %v6619 = vunpack.c.l.b16 %v5344
    %v6620 = vunpack.c.h.b16 %v5344
    %v6621 = vunpack.c.l.b16 %v5345
    %v6622 = vunpack.c.h.b16 %v5345
    %v6623 = vunpack.c.l.b16 %v5346
    %v6624 = vunpack.c.h.b16 %v5346
    %v6625 = vunpack.c.l.b16 %v5347
    %v6626 = vunpack.c.h.b16 %v5347
    %v6627 = vunpack.c.l.b16 %v5348
    %v6628 = vunpack.c.h.b16 %v5348
    %v6629 = vunpack.c.l.b16 %v5349
    %v6630 = vunpack.c.h.b16 %v5349
    %v6631 = vunpack.c.l.b16 %v5350
    %v6632 = vunpack.c.h.b16 %v5350
    %v6633 = vunpack.c.l.b16 %v5351
    %v6634 = vunpack.c.h.b16 %v5351
    %v6635 = vunpack.c.l.b16 %v5352
    %v6636 = vunpack.c.h.b16 %v5352
    %v6637 = vunpack.c.l.b16 %v5353
    %v6638 = vunpack.c.h.b16 %v5353
    %v6639 = vunpack.c.l.b16 %v5354
    %v6640 = vunpack.c.h.b16 %v5354
    %v6641 = vunpack.c.l.b16 %v5355
    %v6642 = vunpack.c.h.b16 %v5355
    %v6643 = vunpack.c.l.b16 %v5356
    %v6644 = vunpack.c.h.b16 %v5356
    %v6645 = vunpack.c.l.b16 %v5357
    %v6646 = vunpack.c.h.b16 %v5357
    %v6647 = vunpack.c.l.b16 %v5358
    %v6648 = vunpack.c.h.b16 %v5358
    %v6649 = vunpack.c.l.b16 %v5359
    %v6650 = vunpack.c.h.b16 %v5359
    %v6651 = vunpack.c.l.b16 %v5360
    %v6652 = vunpack.c.h.b16 %v5360
    %v6653 = vunpack.c.l.b16 %v5361
    %v6654 = vunpack.c.h.b16 %v5361
    %v6655 = vunpack.c.l.b16 %v5362
    %v6656 = vunpack.c.h.b16 %v5362
    %v6657 = vunpack.c.l.b16 %v5363
    %v6658 = vunpack.c.h.b16 %v5363
    %v6659 = vunpack.c.l.b16 %v5364
    %v6660 = vunpack.c.h.b16 %v5364
    %v6661 = vunpack.c.l.b16 %v5365
    %v6662 = vunpack.c.h.b16 %v5365
    %v6663 = vunpack.c.l.b16 %v5366
    %v6664 = vunpack.c.h.b16 %v5366
    %v6665 = vunpack.c.l.b16 %v5367
    %v6666 = vunpack.c.h.b16 %v5367
    %v6667 = vunpack.c.l.b16 %v5368
    %v6668 = vunpack.c.h.b16 %v5368
    %v6669 = vunpack.c.l.b16 %v5369
    %v6670 = vunpack.c.h.b16 %v5369
    %v6671 = vunpack.c.l.b16 %v5370
    %v6672 = vunpack.c.h.b16 %v5370
    %v6673 = vunpack.c.l.b16 %v5371
    %v6674 = vunpack.c.h.b16 %v5371
    %v6675 = vunpack.c.l.b16 %v5372
    %v6676 = vunpack.c.h.b16 %v5372
    %v6677 = vunpack.c.l.b16 %v5373
    %v6678 = vunpack.c.h.b16 %v5373
    %v6679 = vunpack.c.l.b16 %v5374
    %v6680 = vunpack.c.h.b16 %v5374
    %v6681 = vunpack.c.l.b16 %v5375
    %v6682 = vunpack.c.h.b16 %v5375
    %v6683 = vunpack.c.l.b16 %v5376
    %v6684 = vunpack.c.h.b16 %v5376
    %v6685 = vunpack.c.l.b16 %v5377
    %v6686 = vunpack.c.h.b16 %v5377
    %v6687 = vunpack.c.l.b16 %v5378
    %v6688 = vunpack.c.h.b16 %v5378
    %v6689 = vunpack.c.l.b16 %v5379
    %v6690 = vunpack.c.h.b16 %v5379
    %v6691 = vunpack.c.l.b16 %v5380
    %v6692 = vunpack.c.h.b16 %v5380
    %v6693 = vunpack.c.l.b16 %v5381
    %v6694 = vunpack.c.h.b16 %v5381
    %v6695 = vunpack.c.l.b16 %v5382
    %v6696 = vunpack.c.h.b16 %v5382
    %v6697 = vunpack.c.l.b16 %v5383
    %v6698 = vunpack.c.h.b16 %v5383
    %v6699 = vunpack.c.l.b16 %v5384
    %v6700 = vunpack.c.h.b16 %v5384
    %v6701 = vunpack.c.l.b16 %v5385
    %v6702 = vunpack.c.h.b16 %v5385
    %v6703 = vunpack.c.l.b16 %v5386
    %v6704 = vunpack.c.h.b16 %v5386
    %v6705 = vunpack.c.l.b16 %v5387
    %v6706 = vunpack.c.h.b16 %v5387
    %v6707 = vunpack.c.l.b16 %v5388
    %v6708 = vunpack.c.h.b16 %v5388
    %v6709 = vunpack.c.l.b16 %v5389
    %v6710 = vunpack.c.h.b16 %v5389
    %v6711 = vunpack.c.l.b16 %v5390
    %v6712 = vunpack.c.h.b16 %v5390
    %v6713 = vunpack.c.l.b16 %v5391
    %v6714 = vunpack.c.h.b16 %v5391
    %v6715 = vunpack.c.l.b16 %v5392
    %v6716 = vunpack.c.h.b16 %v5392
    %v6717 = vunpack.c.l.b16 %v5393
    %v6718 = vunpack.c.h.b16 %v5393
    %v6719 = vunpack.c.l.b16 %v5394
    %v6720 = vunpack.c.h.b16 %v5394
    %v6721 = vunpack.c.l.b16 %v5395
    %v6722 = vunpack.c.h.b16 %v5395
    %v6723 = vunpack.c.l.b16 %v5396
    %v6724 = vunpack.c.h.b16 %v5396
    %v6725 = vunpack.c.l.b16 %v5397
    %v6726 = vunpack.c.h.b16 %v5397
    %v6727 = vunpack.c.l.b16 %v5398
    %v6728 = vunpack.c.h.b16 %v5398
    %v6729 = vunpack.c.l.b16 %v5399
    %v6730 = vunpack.c.h.b16 %v5399
    %v6731 = vunpack.c.l.b16 %v5400
    %v6732 = vunpack.c.h.b16 %v5400
    %v6733 = vunpack.c.l.b16 %v5401
    %v6734 = vunpack.c.h.b16 %v5401
    %v6735 = vunpack.c.l.b16 %v5402
    %v6736 = vunpack.c.h.b16 %v5402
    %v6737 = vunpack.c.l.b16 %v5403
    %v6738 = vunpack.c.h.b16 %v5403
    %v6739 = vunpack.c.l.b16 %v5404
    %v6740 = vunpack.c.h.b16 %v5404
    %v6741 = vunpack.c.l.b16 %v5405
    %v6742 = vunpack.c.h.b16 %v5405
    %v6743 = vunpack.c.l.b16 %v5406
    %v6744 = vunpack.c.h.b16 %v5406
    %v6745 = vunpack.c.l.b16 %v5407
    %v6746 = vunpack.c.h.b16 %v5407
    %v6747 = vunpack.c.l.b16 %v5408
    %v6748 = vunpack.c.h.b16 %v5408
    %v6749 = vunpack.c.l.b16 %v5409
    %v6750 = vunpack.c.h.b16 %v5409
    %v6751 = vunpack.c.l.b16 %v5410
    %v6752 = vunpack.c.h.b16 %v5410
    %v6753 = vunpack.c.l.b16 %v5411
    %v6754 = vunpack.c.h.b16 %v5411
    %v6755 = vunpack.c.l.b16 %v5412
    %v6756 = vunpack.c.h.b16 %v5412
    %v6757 = vunpack.c.l.b16 %v5413
    %v6758 = vunpack.c.h.b16 %v5413
    %v6759 = vunpack.c.l.b16 %v5414
    %v6760 = vunpack.c.h.b16 %v5414
    %v6761 = vunpack.c.l.b16 %v5415
    %v6762 = vunpack.c.h.b16 %v5415
    %v6763 = vunpack.c.l.b16 %v5416
    %v6764 = vunpack.c.h.b16 %v5416
    %v6765 = vunpack.c.l.b16 %v5417
    %v6766 = vunpack.c.h.b16 %v5417
    %v6767 = vunpack.c.l.b16 %v5418
    %v6768 = vunpack.c.h.b16 %v5418
    %v6769 = vunpack.c.l.b16 %v5419
    %v6770 = vunpack.c.h.b16 %v5419
    %v6771 = vunpack.c.l.b16 %v5420
    %v6772 = vunpack.c.h.b16 %v5420
    %v6773 = vunpack.c.l.b16 %v5421
    %v6774 = vunpack.c.h.b16 %v5421
    %v6775 = vunpack.c.l.b16 %v5422
    %v6776 = vunpack.c.h.b16 %v5422
    %v6777 = vunpack.c.l.b16 %v5423
    %v6778 = vunpack.c.h.b16 %v5423
    %v6779 = vunpack.c.l.b16 %v5424
    %v6780 = vunpack.c.h.b16 %v5424
    %v6781 = vunpack.c.l.b16 %v5425
    %v6782 = vunpack.c.h.b16 %v5425
    %v6783 = vunpack.c.l.b16 %v5426
    %v6784 = vunpack.c.h.b16 %v5426
    %v6785 = vunpack.c.l.b16 %v5427
    %v6786 = vunpack.c.h.b16 %v5427
    %v6787 = vunpack.c.l.b16 %v5428
    %v6788 = vunpack.c.h.b16 %v5428
    %v6789 = vunpack.c.l.b16 %v5429
    %v6790 = vunpack.c.h.b16 %v5429
    %v6791 = vunpack.c.l.b16 %v5430
    %v6792 = vunpack.c.h.b16 %v5430
    %v6793 = vunpack.c.l.b16 %v5431
    %v6794 = vunpack.c.h.b16 %v5431
    %v6795 = vunpack.c.l.b16 %v5432
    %v6796 = vunpack.c.h.b16 %v5432
    %v6797 = vunpack.c.l.b16 %v5433
    %v6798 = vunpack.c.h.b16 %v5433
    %v6799 = vunpack.c.l.b16 %v5434
    %v6800 = vunpack.c.h.b16 %v5434
    %v6801 = vunpack.c.l.b16 %v5435
    %v6802 = vunpack.c.h.b16 %v5435
    %v6803 = vunpack.c.l.b16 %v5436
    %v6804 = vunpack.c.h.b16 %v5436
    %v6805 = vunpack.c.l.b16 %v5437
    %v6806 = vunpack.c.h.b16 %v5437
    %v6807 = vunpack.c.l.b16 %v5438
    %v6808 = vunpack.c.h.b16 %v5438
    %v6809 = vunpack.c.l.b16 %v5439
    %v6810 = vunpack.c.h.b16 %v5439
    %v6811 = vunpack.c.l.b16 %v5440
    %v6812 = vunpack.c.h.b16 %v5440
    %v6813 = vunpack.c.l.b16 %v5441
    %v6814 = vunpack.c.h.b16 %v5441
    %v6815 = vunpack.c.l.b16 %v5442
    %v6816 = vunpack.c.h.b16 %v5442
    %v6817 = vunpack.c.l.b16 %v5443
    %v6818 = vunpack.c.h.b16 %v5443
    %v6819 = vunpack.c.l.b16 %v5444
    %v6820 = vunpack.c.h.b16 %v5444
    %v6821 = vunpack.c.l.b16 %v5445
    %v6822 = vunpack.c.h.b16 %v5445
    %v6823 = vunpack.c.l.b16 %v5446
    %v6824 = vunpack.c.h.b16 %v5446
    %v6825 = vunpack.c.l.b16 %v5447
    %v6826 = vunpack.c.h.b16 %v5447
    %v6827 = vunpack.c.l.b16 %v5448
    %v6828 = vunpack.c.h.b16 %v5448
    %v6829 = vunpack.c.l.b16 %v5449
    %v6830 = vunpack.c.h.b16 %v5449
    %v6831 = vunpack.c.l.b16 %v5450
    %v6832 = vunpack.c.h.b16 %v5450
    %v6833 = vunpack.c.l.b16 %v5451
    %v6834 = vunpack.c.h.b16 %v5451
    %v6835 = vunpack.c.l.b16 %v5452
    %v6836 = vunpack.c.h.b16 %v5452
    %v6837 = vunpack.c.l.b16 %v5453
    %v6838 = vunpack.c.h.b16 %v5453
    %v6839 = vunpack.c.l.b16 %v5454
    %v6840 = vunpack.c.h.b16 %v5454
    %v6841 = vunpack.c.l.b16 %v5455
    %v6842 = vunpack.c.h.b16 %v5455
    %v6843 = vunpack.c.l.b16 %v5456
    %v6844 = vunpack.c.h.b16 %v5456
    %v6845 = vunpack.c.l.b16 %v5457
    %v6846 = vunpack.c.h.b16 %v5457
    %v6847 = vunpack.c.l.b16 %v5458
    %v6848 = vunpack.c.h.b16 %v5458
    %v6849 = vunpack.c.l.b16 %v5459
    %v6850 = vunpack.c.h.b16 %v5459
    %v6851 = vunpack.c.l.b16 %v5460
    %v6852 = vunpack.c.h.b16 %v5460
    %v6853 = vunpack.c.l.b16 %v5461
    %v6854 = vunpack.c.h.b16 %v5461
    %v6855 = vunpack.c.l.b16 %v5462
    %v6856 = vunpack.c.h.b16 %v5462
    %v6857 = vunpack.c.l.b16 %v5463
    %v6858 = vunpack.c.h.b16 %v5463
    %v6859 = vunpack.c.l.b16 %v5464
    %v6860 = vunpack.c.h.b16 %v5464
    %v6861 = vunpack.c.l.b16 %v5465
    %v6862 = vunpack.c.h.b16 %v5465
    %v6863 = vunpack.c.l.b16 %v5466
    %v6864 = vunpack.c.h.b16 %v5466
    %v6865 = vunpack.c.l.b16 %v5467
    %v6866 = vunpack.c.h.b16 %v5467
    %v6867 = vunpack.c.l.b16 %v5468
    %v6868 = vunpack.c.h.b16 %v5468
    %v6869 = vunpack.c.l.b16 %v5469
    %v6870 = vunpack.c.h.b16 %v5469
    %v6871 = vunpack.c.l.b16 %v5470
    %v6872 = vunpack.c.h.b16 %v5470
    %v6873 = vunpack.c.l.b16 %v5471
    %v6874 = vunpack.c.h.b16 %v5471
    %v6875 = vunpack.c.l.b16 %v5472
    %v6876 = vunpack.c.h.b16 %v5472
    %v6877 = vunpack.c.l.b16 %v5473
    %v6878 = vunpack.c.h.b16 %v5473
    %v6879 = vunpack.c.l.b16 %v5474
    %v6880 = vunpack.c.h.b16 %v5474
    %v6881 = vunpack.c.l.b16 %v5475
    %v6882 = vunpack.c.h.b16 %v5475
    %v6883 = vunpack.c.l.b16 %v5476
    %v6884 = vunpack.c.h.b16 %v5476
    %v6885 = vunpack.c.l.b16 %v5477
    %v6886 = vunpack.c.h.b16 %v5477
    %v6887 = vunpack.c.l.b16 %v5478
    %v6888 = vunpack.c.h.b16 %v5478
    %v6889 = vunpack.c.l.b16 %v5479
    %v6890 = vunpack.c.h.b16 %v5479
    %v6891 = vunpack.c.l.b16 %v5480
    %v6892 = vunpack.c.h.b16 %v5480
    %v6893 = vunpack.c.l.b16 %v5481
    %v6894 = vunpack.c.h.b16 %v5481
    %v6895 = vunpack.c.l.b16 %v5482
    %v6896 = vunpack.c.h.b16 %v5482
    %v6897 = vunpack.c.l.b16 %v5483
    %v6898 = vunpack.c.h.b16 %v5483
    %v6899 = vunpack.c.l.b16 %v5484
    %v6900 = vunpack.c.h.b16 %v5484
    %v6901 = vunpack.c.l.b16 %v5485
    %v6902 = vunpack.c.h.b16 %v5485
    %v6903 = vunpack.c.l.b16 %v5486
    %v6904 = vunpack.c.h.b16 %v5486
    %v6905 = vunpack.c.l.b16 %v5487
    %v6906 = vunpack.c.h.b16 %v5487
    %v6907 = vunpack.c.l.b16 %v5488
    %v6908 = vunpack.c.h.b16 %v5488
    %v6909 = vunpack.c.l.b16 %v5489
    %v6910 = vunpack.c.h.b16 %v5489
    %v6911 = vunpack.c.l.b16 %v5490
    %v6912 = vunpack.c.h.b16 %v5490
    %v6913 = vunpack.c.l.b16 %v5491
    %v6914 = vunpack.c.h.b16 %v5491
    %v6915 = vunpack.c.l.b16 %v5492
    %v6916 = vunpack.c.h.b16 %v5492
    %v6917 = vunpack.c.l.b16 %v5493
    %v6918 = vunpack.c.h.b16 %v5493
    %v6919 = vunpack.c.l.b16 %v5494
    %v6920 = vunpack.c.h.b16 %v5494
    %v6921 = vunpack.c.l.b16 %v5495
    %v6922 = vunpack.c.h.b16 %v5495
    %v6923 = vunpack.c.l.b16 %v5496
    %v6924 = vunpack.c.h.b16 %v5496
    %v6925 = vunpack.c.l.b16 %v5497
    %v6926 = vunpack.c.h.b16 %v5497
    %v6927 = vunpack.c.l.b16 %v5498
    %v6928 = vunpack.c.h.b16 %v5498
    %v6929 = vunpack.c.l.b16 %v5499
    %v6930 = vunpack.c.h.b16 %v5499
    %v6931 = vunpack.c.l.b16 %v5500
    %v6932 = vunpack.c.h.b16 %v5500
    %v6933 = vunpack.c.l.b16 %v5501
    %v6934 = vunpack.c.h.b16 %v5501
    %v6935 = vunpack.c.l.b16 %v5502
    %v6936 = vunpack.c.h.b16 %v5502
    %v6937 = vunpack.c.l.b16 %v5503
    %v6938 = vunpack.c.h.b16 %v5503
    %v6939 = vunpack.c.l.b16 %v5504
    %v6940 = vunpack.c.h.b16 %v5504
    %v6941 = vunpack.c.l.b16 %v5505
    %v6942 = vunpack.c.h.b16 %v5505
    %v6943 = vunpack.c.l.b16 %v5506
    %v6944 = vunpack.c.h.b16 %v5506
    %v6945 = vunpack.c.l.b16 %v5507
    %v6946 = vunpack.c.h.b16 %v5507
    %v6947 = vunpack.c.l.b16 %v5508
    %v6948 = vunpack.c.h.b16 %v5508
    %v6949 = vunpack.c.l.b16 %v5509
    %v6950 = vunpack.c.h.b16 %v5509
    %v6951 = vunpack.c.l.b16 %v5510
    %v6952 = vunpack.c.h.b16 %v5510
    %v6953 = vunpack.c.l.b16 %v5511
    %v6954 = vunpack.c.h.b16 %v5511
    %v6955 = vunpack.c.l.b16 %v5512
    %v6956 = vunpack.c.h.b16 %v5512
    %v6957 = vunpack.c.l.b16 %v5513
    %v6958 = vunpack.c.h.b16 %v5513
    %v6959 = vunpack.c.l.b16 %v5514
    %v6960 = vunpack.c.h.b16 %v5514
    %v6961 = vunpack.c.l.b16 %v5515
    %v6962 = vunpack.c.h.b16 %v5515
    %v6963 = vunpack.c.l.b16 %v5516
    %v6964 = vunpack.c.h.b16 %v5516
    %v6965 = vunpack.c.l.b16 %v5517
    %v6966 = vunpack.c.h.b16 %v5517
    %v6967 = vunpack.c.l.b16 %v5518
    %v6968 = vunpack.c.h.b16 %v5518
    %v6969 = vunpack.c.l.b16 %v5519
    %v6970 = vunpack.c.h.b16 %v5519
    %v6971 = vunpack.c.l.b16 %v5520
    %v6972 = vunpack.c.h.b16 %v5520
    %v6973 = vunpack.c.l.b16 %v5521
    %v6974 = vunpack.c.h.b16 %v5521
    %v6975 = vunpack.c.l.b16 %v5522
    %v6976 = vunpack.c.h.b16 %v5522
    %v6977 = vunpack.c.l.b16 %v5523
    %v6978 = vunpack.c.h.b16 %v5523
    %v6979 = vunpack.c.l.b16 %v5524
    %v6980 = vunpack.c.h.b16 %v5524
    %v6981 = vunpack.c.l.b16 %v5525
    %v6982 = vunpack.c.h.b16 %v5525
    %v6983 = vunpack.c.l.b16 %v5526
    %v6984 = vunpack.c.h.b16 %v5526
    %v6985 = vunpack.c.l.b16 %v5527
    %v6986 = vunpack.c.h.b16 %v5527
    %v6987 = vunpack.c.l.b16 %v5528
    %v6988 = vunpack.c.h.b16 %v5528
    %v6989 = vunpack.c.l.b16 %v5529
    %v6990 = vunpack.c.h.b16 %v5529
    %v6991 = vunpack.c.l.b16 %v5530
    %v6992 = vunpack.c.h.b16 %v5530
    %v6993 = vunpack.c.l.b16 %v5531
    %v6994 = vunpack.c.h.b16 %v5531
    %v6995 = vunpack.c.l.b16 %v5532
    %v6996 = vunpack.c.h.b16 %v5532
    %v6997 = vunpack.c.l.b16 %v5533
    %v6998 = vunpack.c.h.b16 %v5533
    %v6999 = vunpack.c.l.b16 %v5534
    %v7000 = vunpack.c.h.b16 %v5534
    %v7001 = vunpack.c.l.b16 %v5535
    %v7002 = vunpack.c.h.b16 %v5535
    %v7003 = vunpack.c.l.b16 %v5536
    %v7004 = vunpack.c.h.b16 %v5536
    %v7005 = vunpack.c.l.b16 %v5537
    %v7006 = vunpack.c.h.b16 %v5537
    %v7007 = vunpack.c.l.b16 %v5538
    %v7008 = vunpack.c.h.b16 %v5538
    %v7009 = vunpack.c.l.b16 %v5539
    %v7010 = vunpack.c.h.b16 %v5539
    %v7011 = vunpack.c.l.b16 %v5540
    %v7012 = vunpack.c.h.b16 %v5540
    %v7013 = vunpack.c.l.b16 %v5541
    %v7014 = vunpack.c.h.b16 %v5541
    %v7015 = vunpack.c.l.b16 %v5542
    %v7016 = vunpack.c.h.b16 %v5542
    %v7017 = vunpack.c.l.b16 %v5543
    %v7018 = vunpack.c.h.b16 %v5543
    %v7019 = vunpack.c.l.b16 %v5544
    %v7020 = vunpack.c.h.b16 %v5544
    %v7021 = vunpack.c.l.b16 %v5545
    %v7022 = vunpack.c.h.b16 %v5545
    %v7023 = vunpack.c.l.b16 %v5546
    %v7024 = vunpack.c.h.b16 %v5546
    %v7025 = vunpack.c.l.b16 %v5547
    %v7026 = vunpack.c.h.b16 %v5547
    %v7027 = vunpack.c.l.b16 %v5548
    %v7028 = vunpack.c.h.b16 %v5548
    %v7029 = vunpack.c.l.b16 %v5549
    %v7030 = vunpack.c.h.b16 %v5549
    %v7031 = vunpack.c.l.b16 %v5550
    %v7032 = vunpack.c.h.b16 %v5550
    %v7033 = vunpack.c.l.b16 %v5551
    %v7034 = vunpack.c.h.b16 %v5551
    %v7035 = vunpack.c.l.b16 %v5552
    %v7036 = vunpack.c.h.b16 %v5552
    %v7037 = vunpack.c.l.b16 %v5553
    %v7038 = vunpack.c.h.b16 %v5553
    %v7039 = vunpack.c.l.b16 %v5554
    %v7040 = vunpack.c.h.b16 %v5554
    %v7041 = vunpack.c.l.b16 %v5555
    %v7042 = vunpack.c.h.b16 %v5555
    %v7043 = vunpack.c.l.b16 %v5556
    %v7044 = vunpack.c.h.b16 %v5556
    %v7045 = vunpack.c.l.b16 %v5557
    %v7046 = vunpack.c.h.b16 %v5557
    %v7047 = vunpack.c.l.b16 %v5558
    %v7048 = vunpack.c.h.b16 %v5558
    %v7049 = vunpack.c.l.b16 %v5559
    %v7050 = vunpack.c.h.b16 %v5559
    %v7051 = vunpack.c.l.b16 %v5560
    %v7052 = vunpack.c.h.b16 %v5560
    %v7053 = vunpack.c.l.b16 %v5561
    %v7054 = vunpack.c.h.b16 %v5561
    %v7055 = vunpack.c.l.b16 %v5562
    %v7056 = vunpack.c.h.b16 %v5562
    %v7057 = vunpack.c.l.b16 %v5563
    %v7058 = vunpack.c.h.b16 %v5563
    %v7059 = vunpack.c.l.b16 %v5564
    %v7060 = vunpack.c.h.b16 %v5564
    %v7061 = vunpack.c.l.b16 %v5565
    %v7062 = vunpack.c.h.b16 %v5565
    %v7063 = vunpack.c.l.b16 %v5566
    %v7064 = vunpack.c.h.b16 %v5566
    %v7065 = vunpack.c.l.b16 %v5567
    %v7066 = vunpack.c.h.b16 %v5567
    %v7067 = vunpack.c.l.b16 %v5568
    %v7068 = vunpack.c.h.b16 %v5568
    %v7069 = vunpack.c.l.b16 %v5569
    %v7070 = vunpack.c.h.b16 %v5569
    %v7071 = vunpack.c.l.b16 %v5570
    %v7072 = vunpack.c.h.b16 %v5570
    %v7073 = vunpack.c.l.b16 %v5571
    %v7074 = vunpack.c.h.b16 %v5571
    %v7075 = vunpack.c.l.b16 %v5572
    %v7076 = vunpack.c.h.b16 %v5572
    %v7077 = vunpack.c.l.b16 %v5573
    %v7078 = vunpack.c.h.b16 %v5573
    %v7079 = vunpack.c.l.b16 %v5574
    %v7080 = vunpack.c.h.b16 %v5574
    %v7081 = vunpack.c.l.b16 %v5575
    %v7082 = vunpack.c.h.b16 %v5575
    %v7083 = vunpack.c.l.b16 %v5576
    %v7084 = vunpack.c.h.b16 %v5576
    %v7085 = vunpack.c.l.b16 %v5577
    %v7086 = vunpack.c.h.b16 %v5577
    %v7087 = vunpack.c.l.b16 %v5578
    %v7088 = vunpack.c.h.b16 %v5578
    %v7089 = vunpack.c.l.b16 %v5579
    %v7090 = vunpack.c.h.b16 %v5579
    %v7091 = vunpack.c.l.b16 %v5580
    %v7092 = vunpack.c.h.b16 %v5580
    %v7093 = vunpack.c.l.b16 %v5581
    %v7094 = vunpack.c.h.b16 %v5581
    %v7095 = vunpack.c.l.b16 %v5582
    %v7096 = vunpack.c.h.b16 %v5582
    %v7097 = vunpack.c.l.b16 %v5583
    %v7098 = vunpack.c.h.b16 %v5583
    %v7099 = vunpack.c.l.b16 %v5584
    %v7100 = vunpack.c.h.b16 %v5584
    %v7101 = vunpack.c.l.b16 %v5585
    %v7102 = vunpack.c.h.b16 %v5585
    %v7103 = vunpack.c.l.b16 %v5586
    %v7104 = vunpack.c.h.b16 %v5586
    %v7105 = vunpack.c.l.b16 %v5587
    %v7106 = vunpack.c.h.b16 %v5587
    %v7107 = vunpack.c.l.b16 %v5588
    %v7108 = vunpack.c.h.b16 %v5588
    %v7109 = vunpack.c.l.b16 %v5589
    %v7110 = vunpack.c.h.b16 %v5589
    %v7111 = vunpack.c.l.b16 %v5590
    %v7112 = vunpack.c.h.b16 %v5590
    %v7113 = vunpack.c.l.b16 %v5591
    %v7114 = vunpack.c.h.b16 %v5591
    %v7115 = vunpack.c.l.b16 %v5592
    %v7116 = vunpack.c.h.b16 %v5592
    %v7117 = vunpack.c.l.b16 %v5593
    %v7118 = vunpack.c.h.b16 %v5593
    %v7119 = vunpack.c.l.b16 %v5594
    %v7120 = vunpack.c.h.b16 %v5594
    %v7121 = vunpack.c.l.b16 %v5595
    %v7122 = vunpack.c.h.b16 %v5595
    %v7123 = vunpack.c.l.b16 %v5596
    %v7124 = vunpack.c.h.b16 %v5596
    %v7125 = vunpack.c.l.b16 %v5597
    %v7126 = vunpack.c.h.b16 %v5597
    %v7127 = vunpack.c.l.b16 %v5598
    %v7128 = vunpack.c.h.b16 %v5598
    %v7129 = vunpack.c.l.b16 %v5599
    %v7130 = vunpack.c.h.b16 %v5599
    %v7131 = vunpack.c.l.b16 %v5600
    %v7132 = vunpack.c.h.b16 %v5600
    %v7133 = vunpack.c.l.b16 %v5601
    %v7134 = vunpack.c.h.b16 %v5601
    %v7135 = vunpack.c.l.b16 %v5602
    %v7136 = vunpack.c.h.b16 %v5602
    %v7137 = vunpack.c.l.b16 %v5603
    %v7138 = vunpack.c.h.b16 %v5603
    %v7139 = vunpack.c.l.b16 %v5604
    %v7140 = vunpack.c.h.b16 %v5604
    %v7141 = vunpack.c.l.b16 %v5605
    %v7142 = vunpack.c.h.b16 %v5605
    %v7143 = vunpack.c.l.b16 %v5606
    %v7144 = vunpack.c.h.b16 %v5606
    %v7145 = vunpack.c.l.b16 %v5607
    %v7146 = vunpack.c.h.b16 %v5607
    %v7147 = vunpack.c.l.b16 %v5608
    %v7148 = vunpack.c.h.b16 %v5608
    %v7149 = vunpack.c.l.b16 %v5609
    %v7150 = vunpack.c.h.b16 %v5609
    %v7151 = vunpack.c.l.b16 %v5610
    %v7152 = vunpack.c.h.b16 %v5610
    %v7153 = vunpack.c.l.b16 %v5611
    %v7154 = vunpack.c.h.b16 %v5611
    %v7155 = vunpack.c.l.b16 %v5612
    %v7156 = vunpack.c.h.b16 %v5612
    %v7157 = vunpack.c.l.b16 %v5613
    %v7158 = vunpack.c.h.b16 %v5613
    %v7159 = vunpack.c.l.b16 %v5614
    %v7160 = vunpack.c.h.b16 %v5614
    %v7161 = vunpack.c.l.b16 %v5615
    %v7162 = vunpack.c.h.b16 %v5615
    %v7163 = vunpack.c.l.b16 %v5616
    %v7164 = vunpack.c.h.b16 %v5616
    %v7165 = vunpack.c.l.b16 %v5617
    %v7166 = vunpack.c.h.b16 %v5617
    %v7167 = vunpack.c.l.b16 %v5618
    %v7168 = vunpack.c.h.b16 %v5618
    %v7169 = vunpack.c.l.b16 %v5619
    %v7170 = vunpack.c.h.b16 %v5619
    %v7171 = vunpack.c.l.b16 %v5620
    %v7172 = vunpack.c.h.b16 %v5620
    %v7173 = vunpack.c.l.b16 %v5621
    %v7174 = vunpack.c.h.b16 %v5621
    %v7175 = vunpack.c.l.b16 %v5622
    %v7176 = vunpack.c.h.b16 %v5622
    %v7177 = vunpack.c.l.b16 %v5623
    %v7178 = vunpack.c.h.b16 %v5623
    %v7179 = vunpack.c.l.b16 %v5624
    %v7180 = vunpack.c.h.b16 %v5624
    %v7181 = vunpack.c.l.b16 %v5625
    %v7182 = vunpack.c.h.b16 %v5625
    %v7183 = vunpack.c.l.b16 %v5626
    %v7184 = vunpack.c.h.b16 %v5626
    %v7185 = vpack.c.b16 %v6165, %v6161
    %v7186 = vpack.c.b16 %v6166, %v6162
    %v7187 = vpack.c.b16 %v6167, %v6163
    %v7188 = vpack.c.b16 %v6168, %v6164
    %v7189 = vpack.c.b16 %v6173, %v6169
    %v7190 = vpack.c.b16 %v6174, %v6170
    %v7191 = vpack.c.b16 %v6175, %v6171
    %v7192 = vpack.c.b16 %v6176, %v6172
    %v7193 = vpack.c.b16 %v6181, %v6177
    %v7194 = vpack.c.b16 %v6182, %v6178
    %v7195 = vpack.c.b16 %v6183, %v6179
    %v7196 = vpack.c.b16 %v6184, %v6180
    %v7197 = vpack.c.b16 %v6189, %v6185
    %v7198 = vpack.c.b16 %v6190, %v6186
    %v7199 = vpack.c.b16 %v6191, %v6187
    %v7200 = vpack.c.b16 %v6192, %v6188
    %v7201 = vpack.c.b16 %v6197, %v6193
    %v7202 = vpack.c.b16 %v6198, %v6194
    %v7203 = vpack.c.b16 %v6199, %v6195
    %v7204 = vpack.c.b16 %v6200, %v6196
    %v7205 = vpack.c.b16 %v6205, %v6201
    %v7206 = vpack.c.b16 %v6206, %v6202
    %v7207 = vpack.c.b16 %v6207, %v6203
    %v7208 = vpack.c.b16 %v6208, %v6204
    %v7209 = vpack.c.b16 %v6213, %v6209
    %v7210 = vpack.c.b16 %v6214, %v6210
    %v7211 = vpack.c.b16 %v6215, %v6211
    %v7212 = vpack.c.b16 %v6216, %v6212
    %v7213 = vpack.c.b16 %v6221, %v6217
    %v7214 = vpack.c.b16 %v6222, %v6218
    %v7215 = vpack.c.b16 %v6223, %v6219
    %v7216 = vpack.c.b16 %v6224, %v6220
    %v7217 = vpack.c.b16 %v6229, %v6225
    %v7218 = vpack.c.b16 %v6230, %v6226
    %v7219 = vpack.c.b16 %v6231, %v6227
    %v7220 = vpack.c.b16 %v6232, %v6228
    %v7221 = vpack.c.b16 %v6237, %v6233
    %v7222 = vpack.c.b16 %v6238, %v6234
    %v7223 = vpack.c.b16 %v6239, %v6235
    %v7224 = vpack.c.b16 %v6240, %v6236
    %v7225 = vpack.c.b16 %v6245, %v6241
    %v7226 = vpack.c.b16 %v6246, %v6242
    %v7227 = vpack.c.b16 %v6247, %v6243
    %v7228 = vpack.c.b16 %v6248, %v6244
    %v7229 = vpack.c.b16 %v6253, %v6249
    %v7230 = vpack.c.b16 %v6254, %v6250
    %v7231 = vpack.c.b16 %v6255, %v6251
    %v7232 = vpack.c.b16 %v6256, %v6252
    %v7233 = vpack.c.b16 %v6261, %v6257
    %v7234 = vpack.c.b16 %v6262, %v6258
    %v7235 = vpack.c.b16 %v6263, %v6259
    %v7236 = vpack.c.b16 %v6264, %v6260
    %v7237 = vpack.c.b16 %v6269, %v6265
    %v7238 = vpack.c.b16 %v6270, %v6266
    %v7239 = vpack.c.b16 %v6271, %v6267
    %v7240 = vpack.c.b16 %v6272, %v6268
    %v7241 = vpack.c.b16 %v6277, %v6273
    %v7242 = vpack.c.b16 %v6278, %v6274
    %v7243 = vpack.c.b16 %v6279, %v6275
    %v7244 = vpack.c.b16 %v6280, %v6276
    %v7245 = vpack.c.b16 %v6285, %v6281
    %v7246 = vpack.c.b16 %v6286, %v6282
    %v7247 = vpack.c.b16 %v6287, %v6283
    %v7248 = vpack.c.b16 %v6288, %v6284
    %v7249 = vpack.c.b16 %v6293, %v6289
    %v7250 = vpack.c.b16 %v6294, %v6290
    %v7251 = vpack.c.b16 %v6295, %v6291
    %v7252 = vpack.c.b16 %v6296, %v6292
    %v7253 = vpack.c.b16 %v6301, %v6297
    %v7254 = vpack.c.b16 %v6302, %v6298
    %v7255 = vpack.c.b16 %v6303, %v6299
    %v7256 = vpack.c.b16 %v6304, %v6300
    %v7257 = vpack.c.b16 %v6309, %v6305
    %v7258 = vpack.c.b16 %v6310, %v6306
    %v7259 = vpack.c.b16 %v6311, %v6307
    %v7260 = vpack.c.b16 %v6312, %v6308
    %v7261 = vpack.c.b16 %v6317, %v6313
    %v7262 = vpack.c.b16 %v6318, %v6314
    %v7263 = vpack.c.b16 %v6319, %v6315
    %v7264 = vpack.c.b16 %v6320, %v6316
    %v7265 = vpack.c.b16 %v6325, %v6321
    %v7266 = vpack.c.b16 %v6326, %v6322
    %v7267 = vpack.c.b16 %v6327, %v6323
    %v7268 = vpack.c.b16 %v6328, %v6324
    %v7269 = vpack.c.b16 %v6333, %v6329
    %v7270 = vpack.c.b16 %v6334, %v6330
    %v7271 = vpack.c.b16 %v6335, %v6331
    %v7272 = vpack.c.b16 %v6336, %v6332
    %v7273 = vpack.c.b16 %v6341, %v6337
    %v7274 = vpack.c.b16 %v6342, %v6338
    %v7275 = vpack.c.b16 %v6343, %v6339
    %v7276 = vpack.c.b16 %v6344, %v6340
    %v7277 = vpack.c.b16 %v6349, %v6345
    %v7278 = vpack.c.b16 %v6350, %v6346
    %v7279 = vpack.c.b16 %v6351, %v6347
    %v7280 = vpack.c.b16 %v6352, %v6348
    %v7281 = vpack.c.b16 %v6357, %v6353
    %v7282 = vpack.c.b16 %v6358, %v6354
    %v7283 = vpack.c.b16 %v6359, %v6355
    %v7284 = vpack.c.b16 %v6360, %v6356
    %v7285 = vpack.c.b16 %v6365, %v6361
    %v7286 = vpack.c.b16 %v6366, %v6362
    %v7287 = vpack.c.b16 %v6367, %v6363
    %v7288 = vpack.c.b16 %v6368, %v6364
    %v7289 = vpack.c.b16 %v6373, %v6369
    %v7290 = vpack.c.b16 %v6374, %v6370
    %v7291 = vpack.c.b16 %v6375, %v6371
    %v7292 = vpack.c.b16 %v6376, %v6372
    %v7293 = vpack.c.b16 %v6381, %v6377
    %v7294 = vpack.c.b16 %v6382, %v6378
    %v7295 = vpack.c.b16 %v6383, %v6379
    %v7296 = vpack.c.b16 %v6384, %v6380
    %v7297 = vpack.c.b16 %v6389, %v6385
    %v7298 = vpack.c.b16 %v6390, %v6386
    %v7299 = vpack.c.b16 %v6391, %v6387
    %v7300 = vpack.c.b16 %v6392, %v6388
    %v7301 = vpack.c.b16 %v6397, %v6393
    %v7302 = vpack.c.b16 %v6398, %v6394
    %v7303 = vpack.c.b16 %v6399, %v6395
    %v7304 = vpack.c.b16 %v6400, %v6396
    %v7305 = vpack.c.b16 %v6405, %v6401
    %v7306 = vpack.c.b16 %v6406, %v6402
    %v7307 = vpack.c.b16 %v6407, %v6403
    %v7308 = vpack.c.b16 %v6408, %v6404
    %v7309 = vpack.c.b16 %v6413, %v6409
    %v7310 = vpack.c.b16 %v6414, %v6410
    %v7311 = vpack.c.b16 %v6415, %v6411
    %v7312 = vpack.c.b16 %v6416, %v6412
    %v7313 = vpack.c.b16 %v6421, %v6417
    %v7314 = vpack.c.b16 %v6422, %v6418
    %v7315 = vpack.c.b16 %v6423, %v6419
    %v7316 = vpack.c.b16 %v6424, %v6420
    %v7317 = vpack.c.b16 %v6429, %v6425
    %v7318 = vpack.c.b16 %v6430, %v6426
    %v7319 = vpack.c.b16 %v6431, %v6427
    %v7320 = vpack.c.b16 %v6432, %v6428
    %v7321 = vpack.c.b16 %v6437, %v6433
    %v7322 = vpack.c.b16 %v6438, %v6434
    %v7323 = vpack.c.b16 %v6439, %v6435
    %v7324 = vpack.c.b16 %v6440, %v6436
    %v7325 = vpack.c.b16 %v6445, %v6441
    %v7326 = vpack.c.b16 %v6446, %v6442
    %v7327 = vpack.c.b16 %v6447, %v6443
    %v7328 = vpack.c.b16 %v6448, %v6444
    %v7329 = vpack.c.b16 %v6453, %v6449
    %v7330 = vpack.c.b16 %v6454, %v6450
    %v7331 = vpack.c.b16 %v6455, %v6451
    %v7332 = vpack.c.b16 %v6456, %v6452
    %v7333 = vpack.c.b16 %v6461, %v6457
    %v7334 = vpack.c.b16 %v6462, %v6458
    %v7335 = vpack.c.b16 %v6463, %v6459
    %v7336 = vpack.c.b16 %v6464, %v6460
    %v7337 = vpack.c.b16 %v6469, %v6465
    %v7338 = vpack.c.b16 %v6470, %v6466
    %v7339 = vpack.c.b16 %v6471, %v6467
    %v7340 = vpack.c.b16 %v6472, %v6468
    %v7341 = vpack.c.b16 %v6477, %v6473
    %v7342 = vpack.c.b16 %v6478, %v6474
    %v7343 = vpack.c.b16 %v6479, %v6475
    %v7344 = vpack.c.b16 %v6480, %v6476
    %v7345 = vpack.c.b16 %v6485, %v6481
    %v7346 = vpack.c.b16 %v6486, %v6482
    %v7347 = vpack.c.b16 %v6487, %v6483
    %v7348 = vpack.c.b16 %v6488, %v6484
    %v7349 = vpack.c.b16 %v6493, %v6489
    %v7350 = vpack.c.b16 %v6494, %v6490
    %v7351 = vpack.c.b16 %v6495, %v6491
    %v7352 = vpack.c.b16 %v6496, %v6492
    %v7353 = vpack.c.b16 %v6501, %v6497
    %v7354 = vpack.c.b16 %v6502, %v6498
    %v7355 = vpack.c.b16 %v6503, %v6499
    %v7356 = vpack.c.b16 %v6504, %v6500
    %v7357 = vpack.c.b16 %v6509, %v6505
    %v7358 = vpack.c.b16 %v6510, %v6506
    %v7359 = vpack.c.b16 %v6511, %v6507
    %v7360 = vpack.c.b16 %v6512, %v6508
    %v7361 = vpack.c.b16 %v6517, %v6513
    %v7362 = vpack.c.b16 %v6518, %v6514
    %v7363 = vpack.c.b16 %v6519, %v6515
    %v7364 = vpack.c.b16 %v6520, %v6516
    %v7365 = vpack.c.b16 %v6525, %v6521
    %v7366 = vpack.c.b16 %v6526, %v6522
    %v7367 = vpack.c.b16 %v6527, %v6523
    %v7368 = vpack.c.b16 %v6528, %v6524
    %v7369 = vpack.c.b16 %v6533, %v6529
    %v7370 = vpack.c.b16 %v6534, %v6530
    %v7371 = vpack.c.b16 %v6535, %v6531
    %v7372 = vpack.c.b16 %v6536, %v6532
    %v7373 = vpack.c.b16 %v6541, %v6537
    %v7374 = vpack.c.b16 %v6542, %v6538
    %v7375 = vpack.c.b16 %v6543, %v6539
    %v7376 = vpack.c.b16 %v6544, %v6540
    %v7377 = vpack.c.b16 %v6549, %v6545
    %v7378 = vpack.c.b16 %v6550, %v6546
    %v7379 = vpack.c.b16 %v6551, %v6547
    %v7380 = vpack.c.b16 %v6552, %v6548
    %v7381 = vpack.c.b16 %v6557, %v6553
    %v7382 = vpack.c.b16 %v6558, %v6554
    %v7383 = vpack.c.b16 %v6559, %v6555
    %v7384 = vpack.c.b16 %v6560, %v6556
    %v7385 = vpack.c.b16 %v6565, %v6561
    %v7386 = vpack.c.b16 %v6566, %v6562
    %v7387 = vpack.c.b16 %v6567, %v6563
    %v7388 = vpack.c.b16 %v6568, %v6564
    %v7389 = vpack.c.b16 %v6573, %v6569
    %v7390 = vpack.c.b16 %v6574, %v6570
    %v7391 = vpack.c.b16 %v6575, %v6571
    %v7392 = vpack.c.b16 %v6576, %v6572
    %v7393 = vpack.c.b16 %v6581, %v6577
    %v7394 = vpack.c.b16 %v6582, %v6578
    %v7395 = vpack.c.b16 %v6583, %v6579
    %v7396 = vpack.c.b16 %v6584, %v6580
    %v7397 = vpack.c.b16 %v6589, %v6585
    %v7398 = vpack.c.b16 %v6590, %v6586
    %v7399 = vpack.c.b16 %v6591, %v6587
    %v7400 = vpack.c.b16 %v6592, %v6588
    %v7401 = vpack.c.b16 %v6597, %v6593
    %v7402 = vpack.c.b16 %v6598, %v6594
    %v7403 = vpack.c.b16 %v6599, %v6595
    %v7404 = vpack.c.b16 %v6600, %v6596
    %v7405 = vpack.c.b16 %v6605, %v6601
    %v7406 = vpack.c.b16 %v6606, %v6602
    %v7407 = vpack.c.b16 %v6607, %v6603
    %v7408 = vpack.c.b16 %v6608, %v6604
    %v7409 = vpack.c.b16 %v6613, %v6609
    %v7410 = vpack.c.b16 %v6614, %v6610
    %v7411 = vpack.c.b16 %v6615, %v6611
    %v7412 = vpack.c.b16 %v6616, %v6612
    %v7413 = vpack.c.b16 %v6621, %v6617
    %v7414 = vpack.c.b16 %v6622, %v6618
    %v7415 = vpack.c.b16 %v6623, %v6619
    %v7416 = vpack.c.b16 %v6624, %v6620
    %v7417 = vpack.c.b16 %v6629, %v6625
    %v7418 = vpack.c.b16 %v6630, %v6626
    %v7419 = vpack.c.b16 %v6631, %v6627
    %v7420 = vpack.c.b16 %v6632, %v6628
    %v7421 = vpack.c.b16 %v6637, %v6633
    %v7422 = vpack.c.b16 %v6638, %v6634
    %v7423 = vpack.c.b16 %v6639, %v6635
    %v7424 = vpack.c.b16 %v6640, %v6636
    %v7425 = vpack.c.b16 %v6645, %v6641
    %v7426 = vpack.c.b16 %v6646, %v6642
    %v7427 = vpack.c.b16 %v6647, %v6643
    %v7428 = vpack.c.b16 %v6648, %v6644
    %v7429 = vpack.c.b16 %v6653, %v6649
    %v7430 = vpack.c.b16 %v6654, %v6650
    %v7431 = vpack.c.b16 %v6655, %v6651
    %v7432 = vpack.c.b16 %v6656, %v6652
    %v7433 = vpack.c.b16 %v6661, %v6657
    %v7434 = vpack.c.b16 %v6662, %v6658
    %v7435 = vpack.c.b16 %v6663, %v6659
    %v7436 = vpack.c.b16 %v6664, %v6660
    %v7437 = vpack.c.b16 %v6669, %v6665
    %v7438 = vpack.c.b16 %v6670, %v6666
    %v7439 = vpack.c.b16 %v6671, %v6667
    %v7440 = vpack.c.b16 %v6672, %v6668
    %v7441 = vpack.c.b16 %v6677, %v6673
    %v7442 = vpack.c.b16 %v6678, %v6674
    %v7443 = vpack.c.b16 %v6679, %v6675
    %v7444 = vpack.c.b16 %v6680, %v6676
    %v7445 = vpack.c.b16 %v6685, %v6681
    %v7446 = vpack.c.b16 %v6686, %v6682
    %v7447 = vpack.c.b16 %v6687, %v6683
    %v7448 = vpack.c.b16 %v6688, %v6684
    %v7449 = vpack.c.b16 %v6693, %v6689
    %v7450 = vpack.c.b16 %v6694, %v6690
    %v7451 = vpack.c.b16 %v6695, %v6691
    %v7452 = vpack.c.b16 %v6696, %v6692
    %v7453 = vpack.c.b16 %v6701, %v6697
    %v7454 = vpack.c.b16 %v6702, %v6698
    %v7455 = vpack.c.b16 %v6703, %v6699
    %v7456 = vpack.c.b16 %v6704, %v6700
    %v7457 = vpack.c.b16 %v6709, %v6705
    %v7458 = vpack.c.b16 %v6710, %v6706
    %v7459 = vpack.c.b16 %v6711, %v6707
    %v7460 = vpack.c.b16 %v6712, %v6708
    %v7461 = vpack.c.b16 %v6717, %v6713
    %v7462 = vpack.c.b16 %v6718, %v6714
    %v7463 = vpack.c.b16 %v6719, %v6715
    %v7464 = vpack.c.b16 %v6720, %v6716
    %v7465 = vpack.c.b16 %v6725, %v6721
    %v7466 = vpack.c.b16 %v6726, %v6722
    %v7467 = vpack.c.b16 %v6727, %v6723
    %v7468 = vpack.c.b16 %v6728, %v6724
    %v7469 = vpack.c.b16 %v6733, %v6729
    %v7470 = vpack.c.b16 %v6734, %v6730
    %v7471 = vpack.c.b16 %v6735, %v6731
    %v7472 = vpack.c.b16 %v6736, %v6732
    %v7473 = vpack.c.b16 %v6741, %v6737
    %v7474 = vpack.c.b16 %v6742, %v6738
    %v7475 = vpack.c.b16 %v6743, %v6739
    %v7476 = vpack.c.b16 %v6744, %v6740
    %v7477 = vpack.c.b16 %v6749, %v6745
    %v7478 = vpack.c.b16 %v6750, %v6746
    %v7479 = vpack.c.b16 %v6751, %v6747
    %v7480 = vpack.c.b16 %v6752, %v6748
    %v7481 = vpack.c.b16 %v6757, %v6753
    %v7482 = vpack.c.b16 %v6758, %v6754
    %v7483 = vpack.c.b16 %v6759, %v6755
    %v7484 = vpack.c.b16 %v6760, %v6756
    %v7485 = vpack.c.b16 %v6765, %v6761
    %v7486 = vpack.c.b16 %v6766, %v6762
    %v7487 = vpack.c.b16 %v6767, %v6763
    %v7488 = vpack.c.b16 %v6768, %v6764
    %v7489 = vpack.c.b16 %v6773, %v6769
    %v7490 = vpack.c.b16 %v6774, %v6770
    %v7491 = vpack.c.b16 %v6775, %v6771
    %v7492 = vpack.c.b16 %v6776, %v6772
    %v7493 = vpack.c.b16 %v6781, %v6777
    %v7494 = vpack.c.b16 %v6782, %v6778
    %v7495 = vpack.c.b16 %v6783, %v6779
    %v7496 = vpack.c.b16 %v6784, %v6780
    %v7497 = vpack.c.b16 %v6789, %v6785
    %v7498 = vpack.c.b16 %v6790, %v6786
    %v7499 = vpack.c.b16 %v6791, %v6787
    %v7500 = vpack.c.b16 %v6792, %v6788
    %v7501 = vpack.c.b16 %v6797, %v6793
    %v7502 = vpack.c.b16 %v6798, %v6794
    %v7503 = vpack.c.b16 %v6799, %v6795
    %v7504 = vpack.c.b16 %v6800, %v6796
    %v7505 = vpack.c.b16 %v6805, %v6801
    %v7506 = vpack.c.b16 %v6806, %v6802
    %v7507 = vpack.c.b16 %v6807, %v6803
    %v7508 = vpack.c.b16 %v6808, %v6804
    %v7509 = vpack.c.b16 %v6813, %v6809
    %v7510 = vpack.c.b16 %v6814, %v6810
    %v7511 = vpack.c.b16 %v6815, %v6811
    %v7512 = vpack.c.b16 %v6816, %v6812
    %v7513 = vpack.c.b16 %v6821, %v6817
    %v7514 = vpack.c.b16 %v6822, %v6818
    %v7515 = vpack.c.b16 %v6823, %v6819
    %v7516 = vpack.c.b16 %v6824, %v6820
    %v7517 = vpack.c.b16 %v6829, %v6825
    %v7518 = vpack.c.b16 %v6830, %v6826
    %v7519 = vpack.c.b16 %v6831, %v6827
    %v7520 = vpack.c.b16 %v6832, %v6828
    %v7521 = vpack.c.b16 %v6837, %v6833
    %v7522 = vpack.c.b16 %v6838, %v6834
    %v7523 = vpack.c.b16 %v6839, %v6835
    %v7524 = vpack.c.b16 %v6840, %v6836
    %v7525 = vpack.c.b16 %v6845, %v6841
    %v7526 = vpack.c.b16 %v6846, %v6842
    %v7527 = vpack.c.b16 %v6847, %v6843
    %v7528 = vpack.c.b16 %v6848, %v6844
    %v7529 = vpack.c.b16 %v6853, %v6849
    %v7530 = vpack.c.b16 %v6854, %v6850
    %v7531 = vpack.c.b16 %v6855, %v6851
    %v7532 = vpack.c.b16 %v6856, %v6852
    %v7533 = vpack.c.b16 %v6861, %v6857
    %v7534 = vpack.c.b16 %v6862, %v6858
    %v7535 = vpack.c.b16 %v6863, %v6859
    %v7536 = vpack.c.b16 %v6864, %v6860
    %v7537 = vpack.c.b16 %v6869, %v6865
    %v7538 = vpack.c.b16 %v6870, %v6866
    %v7539 = vpack.c.b16 %v6871, %v6867
    %v7540 = vpack.c.b16 %v6872, %v6868
    %v7541 = vpack.c.b16 %v6877, %v6873
    %v7542 = vpack.c.b16 %v6878, %v6874
    %v7543 = vpack.c.b16 %v6879, %v6875
    %v7544 = vpack.c.b16 %v6880, %v6876
    %v7545 = vpack.c.b16 %v6885, %v6881
    %v7546 = vpack.c.b16 %v6886, %v6882
    %v7547 = vpack.c.b16 %v6887, %v6883
    %v7548 = vpack.c.b16 %v6888, %v6884
    %v7549 = vpack.c.b16 %v6893, %v6889
    %v7550 = vpack.c.b16 %v6894, %v6890
    %v7551 = vpack.c.b16 %v6895, %v6891
    %v7552 = vpack.c.b16 %v6896, %v6892
    %v7553 = vpack.c.b16 %v6901, %v6897
    %v7554 = vpack.c.b16 %v6902, %v6898
    %v7555 = vpack.c.b16 %v6903, %v6899
    %v7556 = vpack.c.b16 %v6904, %v6900
    %v7557 = vpack.c.b16 %v6909, %v6905
    %v7558 = vpack.c.b16 %v6910, %v6906
    %v7559 = vpack.c.b16 %v6911, %v6907
    %v7560 = vpack.c.b16 %v6912, %v6908
    %v7561 = vpack.c.b16 %v6917, %v6913
    %v7562 = vpack.c.b16 %v6918, %v6914
    %v7563 = vpack.c.b16 %v6919, %v6915
    %v7564 = vpack.c.b16 %v6920, %v6916
    %v7565 = vpack.c.b16 %v6925, %v6921
    %v7566 = vpack.c.b16 %v6926, %v6922
    %v7567 = vpack.c.b16 %v6927, %v6923
    %v7568 = vpack.c.b16 %v6928, %v6924
    %v7569 = vpack.c.b16 %v6933, %v6929
    %v7570 = vpack.c.b16 %v6934, %v6930
    %v7571 = vpack.c.b16 %v6935, %v6931
    %v7572 = vpack.c.b16 %v6936, %v6932
    %v7573 = vpack.c.b16 %v6941, %v6937
    %v7574 = vpack.c.b16 %v6942, %v6938
    %v7575 = vpack.c.b16 %v6943, %v6939
    %v7576 = vpack.c.b16 %v6944, %v6940
    %v7577 = vpack.c.b16 %v6949, %v6945
    %v7578 = vpack.c.b16 %v6950, %v6946
    %v7579 = vpack.c.b16 %v6951, %v6947
    %v7580 = vpack.c.b16 %v6952, %v6948
    %v7581 = vpack.c.b16 %v6957, %v6953
    %v7582 = vpack.c.b16 %v6958, %v6954
    %v7583 = vpack.c.b16 %v6959, %v6955
    %v7584 = vpack.c.b16 %v6960, %v6956
    %v7585 = vpack.c.b16 %v6965, %v6961
    %v7586 = vpack.c.b16 %v6966, %v6962
    %v7587 = vpack.c.b16 %v6967, %v6963
    %v7588 = vpack.c.b16 %v6968, %v6964
    %v7589 = vpack.c.b16 %v6973, %v6969
    %v7590 = vpack.c.b16 %v6974, %v6970
    %v7591 = vpack.c.b16 %v6975, %v6971
    %v7592 = vpack.c.b16 %v6976, %v6972
    %v7593 = vpack.c.b16 %v6981, %v6977
    %v7594 = vpack.c.b16 %v6982, %v6978
    %v7595 = vpack.c.b16 %v6983, %v6979
    %v7596 = vpack.c.b16 %v6984, %v6980
    %v7597 = vpack.c.b16 %v6989, %v6985
    %v7598 = vpack.c.b16 %v6990, %v6986
    %v7599 = vpack.c.b16 %v6991, %v6987
    %v7600 = vpack.c.b16 %v6992, %v6988
    %v7601 = vpack.c.b16 %v6997, %v6993
    %v7602 = vpack.c.b16 %v6998, %v6994
    %v7603 = vpack.c.b16 %v6999, %v6995
    %v7604 = vpack.c.b16 %v7000, %v6996
    %v7605 = vpack.c.b16 %v7005, %v7001
    %v7606 = vpack.c.b16 %v7006, %v7002
    %v7607 = vpack.c.b16 %v7007, %v7003
    %v7608 = vpack.c.b16 %v7008, %v7004
    %v7609 = vpack.c.b16 %v7013, %v7009
    %v7610 = vpack.c.b16 %v7014, %v7010
    %v7611 = vpack.c.b16 %v7015, %v7011
    %v7612 = vpack.c.b16 %v7016, %v7012
    %v7613 = vpack.c.b16 %v7021, %v7017
    %v7614 = vpack.c.b16 %v7022, %v7018
    %v7615 = vpack.c.b16 %v7023, %v7019
    %v7616 = vpack.c.b16 %v7024, %v7020
    %v7617 = vpack.c.b16 %v7029, %v7025
    %v7618 = vpack.c.b16 %v7030, %v7026
    %v7619 = vpack.c.b16 %v7031, %v7027
    %v7620 = vpack.c.b16 %v7032, %v7028
    %v7621 = vpack.c.b16 %v7037, %v7033
    %v7622 = vpack.c.b16 %v7038, %v7034
    %v7623 = vpack.c.b16 %v7039, %v7035
    %v7624 = vpack.c.b16 %v7040, %v7036
    %v7625 = vpack.c.b16 %v7045, %v7041
    %v7626 = vpack.c.b16 %v7046, %v7042
    %v7627 = vpack.c.b16 %v7047, %v7043
    %v7628 = vpack.c.b16 %v7048, %v7044
    %v7629 = vpack.c.b16 %v7053, %v7049
    %v7630 = vpack.c.b16 %v7054, %v7050
    %v7631 = vpack.c.b16 %v7055, %v7051
    %v7632 = vpack.c.b16 %v7056, %v7052
    %v7633 = vpack.c.b16 %v7061, %v7057
    %v7634 = vpack.c.b16 %v7062, %v7058
    %v7635 = vpack.c.b16 %v7063, %v7059
    %v7636 = vpack.c.b16 %v7064, %v7060
    %v7637 = vpack.c.b16 %v7069, %v7065
    %v7638 = vpack.c.b16 %v7070, %v7066
    %v7639 = vpack.c.b16 %v7071, %v7067
    %v7640 = vpack.c.b16 %v7072, %v7068
    %v7641 = vpack.c.b16 %v7077, %v7073
    %v7642 = vpack.c.b16 %v7078, %v7074
    %v7643 = vpack.c.b16 %v7079, %v7075
    %v7644 = vpack.c.b16 %v7080, %v7076
    %v7645 = vpack.c.b16 %v7085, %v7081
    %v7646 = vpack.c.b16 %v7086, %v7082
    %v7647 = vpack.c.b16 %v7087, %v7083
    %v7648 = vpack.c.b16 %v7088, %v7084
    %v7649 = vpack.c.b16 %v7093, %v7089
    %v7650 = vpack.c.b16 %v7094, %v7090
    %v7651 = vpack.c.b16 %v7095, %v7091
    %v7652 = vpack.c.b16 %v7096, %v7092
    %v7653 = vpack.c.b16 %v7101, %v7097
    %v7654 = vpack.c.b16 %v7102, %v7098
    %v7655 = vpack.c.b16 %v7103, %v7099
    %v7656 = vpack.c.b16 %v7104, %v7100
    %v7657 = vpack.c.b16 %v7109, %v7105
    %v7658 = vpack.c.b16 %v7110, %v7106
    %v7659 = vpack.c.b16 %v7111, %v7107
    %v7660 = vpack.c.b16 %v7112, %v7108
    %v7661 = vpack.c.b16 %v7117, %v7113
    %v7662 = vpack.c.b16 %v7118, %v7114
    %v7663 = vpack.c.b16 %v7119, %v7115
    %v7664 = vpack.c.b16 %v7120, %v7116
    %v7665 = vpack.c.b16 %v7125, %v7121
    %v7666 = vpack.c.b16 %v7126, %v7122
    %v7667 = vpack.c.b16 %v7127, %v7123
    %v7668 = vpack.c.b16 %v7128, %v7124
    %v7669 = vpack.c.b16 %v7133, %v7129
    %v7670 = vpack.c.b16 %v7134, %v7130
    %v7671 = vpack.c.b16 %v7135, %v7131
    %v7672 = vpack.c.b16 %v7136, %v7132
    %v7673 = vpack.c.b16 %v7141, %v7137
    %v7674 = vpack.c.b16 %v7142, %v7138
    %v7675 = vpack.c.b16 %v7143, %v7139
    %v7676 = vpack.c.b16 %v7144, %v7140
    %v7677 = vpack.c.b16 %v7149, %v7145
    %v7678 = vpack.c.b16 %v7150, %v7146
    %v7679 = vpack.c.b16 %v7151, %v7147
    %v7680 = vpack.c.b16 %v7152, %v7148
    %v7681 = vpack.c.b16 %v7157, %v7153
    %v7682 = vpack.c.b16 %v7158, %v7154
    %v7683 = vpack.c.b16 %v7159, %v7155
    %v7684 = vpack.c.b16 %v7160, %v7156
    %v7685 = vpack.c.b16 %v7165, %v7161
    %v7686 = vpack.c.b16 %v7166, %v7162
    %v7687 = vpack.c.b16 %v7167, %v7163
    %v7688 = vpack.c.b16 %v7168, %v7164
    %v7689 = vpack.c.b16 %v7173, %v7169
    %v7690 = vpack.c.b16 %v7174, %v7170
    %v7691 = vpack.c.b16 %v7175, %v7171
    %v7692 = vpack.c.b16 %v7176, %v7172
    %v7693 = vpack.c.b16 %v7181, %v7177
    %v7694 = vpack.c.b16 %v7182, %v7178
    %v7695 = vpack.c.b16 %v7183, %v7179
    %v7696 = vpack.c.b16 %v7184, %v7180
    %8209 = vmatprep.subr.bf16.mxu0 %v7214
    %8210 = vmatpush1.bf16.msra.mxu0 %v7213
    %8211 = vmatprep.subr.bf16.mxu0 %v7210
    %8212 = vmatpush1.bf16.msra.mxu0 %v7209
    %8213 = vmatprep.subr.bf16.mxu0 %v7206
    %8214 = vmatpush1.bf16.msra.mxu0 %v7205
    %8215 = vmatprep.subr.bf16.mxu0 %v7202
    %8216 = vmatpush1.bf16.msra.mxu0 %v7201
    %8217 = vmatprep.subr.bf16.mxu0 %v7198
    %8218 = vmatpush1.bf16.msra.mxu0 %v7197
    %8219 = vmatprep.subr.bf16.mxu0 %v7194
    %8220 = vmatpush1.bf16.msra.mxu0 %v7193
    %8221 = vmatprep.subr.bf16.mxu0 %v7190
    %8222 = vmatpush1.bf16.msra.mxu0 %v7189
    %8223 = vmatprep.subr.bf16.mxu0 %v7186
    %8224 = vmatpush1.bf16.msra.mxu0 %v7185
    %8225 = vmatprep.subr.bf16.mxu0 %v7246
    %8226 = vmatpush2.bf16.msra.mxu0 %v7245
    %8227 = vmatprep.subr.bf16.mxu0 %v7242
    %8228 = vmatpush2.bf16.msra.mxu0 %v7241
    %8229 = vmatprep.subr.bf16.mxu0 %v7238
    %8230 = vmatpush2.bf16.msra.mxu0 %v7237
    %8231 = vmatprep.subr.bf16.mxu0 %v7234
    %8232 = vmatpush2.bf16.msra.mxu0 %v7233
    %8233 = vmatprep.subr.bf16.mxu0 %v7230
    %8234 = vmatpush2.bf16.msra.mxu0 %v7229
    %8235 = vmatprep.subr.bf16.mxu0 %v7226
    %8236 = vmatpush2.bf16.msra.mxu0 %v7225
    %8237 = vmatprep.subr.bf16.mxu0 %v7222
    %8238 = vmatpush2.bf16.msra.mxu0 %v7221
    %8239 = vmatprep.subr.bf16.mxu0 %v7218
    %8240 = vmatpush2.bf16.msra.mxu0 %v7217
    %8241 = vmatprep.mubr.bf16.mxu0 %v5100
    %8242 = vmatmul.mubr.bf16.gmra.mxu0 %v5099
    %v8243 = vpop.f32.mrf.mxu0
    %v8244 = vadd.f32 %v5632, %v8243
    %v8245 = vpop.f32.mrf.mxu0
    %v8246 = vadd.f32 %v5636, %v8245
    %v8247 = vpop.f32.mrf.mxu0
    %v8248 = vpop.f32.mrf.mxu0
    %8249 = vdwg.mxu0
    %8250 = vmatprep.subr.bf16.mxu0 %v7278
    %8251 = vmatpush1.bf16.msra.mxu0 %v7277
    %8252 = vmatprep.subr.bf16.mxu0 %v7274
    %8253 = vmatpush1.bf16.msra.mxu0 %v7273
    %8254 = vmatprep.subr.bf16.mxu0 %v7270
    %8255 = vmatpush1.bf16.msra.mxu0 %v7269
    %8256 = vmatprep.subr.bf16.mxu0 %v7266
    %8257 = vmatpush1.bf16.msra.mxu0 %v7265
    %8258 = vmatprep.subr.bf16.mxu0 %v7262
    %8259 = vmatpush1.bf16.msra.mxu0 %v7261
    %8260 = vmatprep.subr.bf16.mxu0 %v7258
    %8261 = vmatpush1.bf16.msra.mxu0 %v7257
    %8262 = vmatprep.subr.bf16.mxu0 %v7254
    %8263 = vmatpush1.bf16.msra.mxu0 %v7253
    %8264 = vmatprep.subr.bf16.mxu0 %v7250
    %8265 = vmatpush1.bf16.msra.mxu0 %v7249
    %8266 = vmatprep.subr.bf16.mxu0 %v7310
    %8267 = vmatpush2.bf16.msra.mxu0 %v7309
    %8268 = vmatprep.subr.bf16.mxu0 %v7306
    %8269 = vmatpush2.bf16.msra.mxu0 %v7305
    %8270 = vmatprep.subr.bf16.mxu0 %v7302
    %8271 = vmatpush2.bf16.msra.mxu0 %v7301
    %8272 = vmatprep.subr.bf16.mxu0 %v7298
    %8273 = vmatpush2.bf16.msra.mxu0 %v7297
    %8274 = vmatprep.subr.bf16.mxu0 %v7294
    %8275 = vmatpush2.bf16.msra.mxu0 %v7293
    %8276 = vmatprep.subr.bf16.mxu0 %v7290
    %8277 = vmatpush2.bf16.msra.mxu0 %v7289
    %8278 = vmatprep.subr.bf16.mxu0 %v7286
    %8279 = vmatpush2.bf16.msra.mxu0 %v7285
    %8280 = vmatprep.subr.bf16.mxu0 %v7282
    %8281 = vmatpush2.bf16.msra.mxu0 %v7281
    %8282 = vmatprep.mubr.bf16.mxu0 %v5102
    %8283 = vmatmul.mubr.bf16.gmra.mxu0 %v5101
    %v8284 = vpop.f32.mrf.mxu0
    %v8285 = vadd.f32 %v8244, %v8284
    %v8286 = vpop.f32.mrf.mxu0
    %v8287 = vadd.f32 %v8246, %v8286
    %v8288 = vpop.f32.mrf.mxu0
    %v8289 = vpop.f32.mrf.mxu0
    %8290 = vdwg.mxu0
    %8291 = vmatprep.subr.bf16.mxu0 %v7342
    %8292 = vmatpush1.bf16.msra.mxu0 %v7341
    %8293 = vmatprep.subr.bf16.mxu0 %v7338
    %8294 = vmatpush1.bf16.msra.mxu0 %v7337
    %8295 = vmatprep.subr.bf16.mxu0 %v7334
    %8296 = vmatpush1.bf16.msra.mxu0 %v7333
    %8297 = vmatprep.subr.bf16.mxu0 %v7330
    %8298 = vmatpush1.bf16.msra.mxu0 %v7329
    %8299 = vmatprep.subr.bf16.mxu0 %v7326
    %8300 = vmatpush1.bf16.msra.mxu0 %v7325
    %8301 = vmatprep.subr.bf16.mxu0 %v7322
    %8302 = vmatpush1.bf16.msra.mxu0 %v7321
    %8303 = vmatprep.subr.bf16.mxu0 %v7318
    %8304 = vmatpush1.bf16.msra.mxu0 %v7317
    %8305 = vmatprep.subr.bf16.mxu0 %v7314
    %8306 = vmatpush1.bf16.msra.mxu0 %v7313
    %8307 = vmatprep.subr.bf16.mxu0 %v7374
    %8308 = vmatpush2.bf16.msra.mxu0 %v7373
    %8309 = vmatprep.subr.bf16.mxu0 %v7370
    %8310 = vmatpush2.bf16.msra.mxu0 %v7369
    %8311 = vmatprep.subr.bf16.mxu0 %v7366
    %8312 = vmatpush2.bf16.msra.mxu0 %v7365
    %8313 = vmatprep.subr.bf16.mxu0 %v7362
    %8314 = vmatpush2.bf16.msra.mxu0 %v7361
    %8315 = vmatprep.subr.bf16.mxu0 %v7358
    %8316 = vmatpush2.bf16.msra.mxu0 %v7357
    %8317 = vmatprep.subr.bf16.mxu0 %v7354
    %8318 = vmatpush2.bf16.msra.mxu0 %v7353
    %8319 = vmatprep.subr.bf16.mxu0 %v7350
    %8320 = vmatpush2.bf16.msra.mxu0 %v7349
    %8321 = vmatprep.subr.bf16.mxu0 %v7346
    %8322 = vmatpush2.bf16.msra.mxu0 %v7345
    %8323 = vmatprep.mubr.bf16.mxu0 %v5104
    %8324 = vmatmul.mubr.bf16.gmra.mxu0 %v5103
    %v8325 = vpop.f32.mrf.mxu0
    %v8326 = vadd.f32 %v8285, %v8325
    %v8327 = vpop.f32.mrf.mxu0
    %v8328 = vadd.f32 %v8287, %v8327
    %v8329 = vpop.f32.mrf.mxu0
    %v8330 = vpop.f32.mrf.mxu0
    %8331 = vdwg.mxu0
    %8332 = vmatprep.subr.bf16.mxu0 %v7406
    %8333 = vmatpush1.bf16.msra.mxu0 %v7405
    %8334 = vmatprep.subr.bf16.mxu0 %v7402
    %8335 = vmatpush1.bf16.msra.mxu0 %v7401
    %8336 = vmatprep.subr.bf16.mxu0 %v7398
    %8337 = vmatpush1.bf16.msra.mxu0 %v7397
    %8338 = vmatprep.subr.bf16.mxu0 %v7394
    %8339 = vmatpush1.bf16.msra.mxu0 %v7393
    %8340 = vmatprep.subr.bf16.mxu0 %v7390
    %8341 = vmatpush1.bf16.msra.mxu0 %v7389
    %8342 = vmatprep.subr.bf16.mxu0 %v7386
    %8343 = vmatpush1.bf16.msra.mxu0 %v7385
    %8344 = vmatprep.subr.bf16.mxu0 %v7382
    %8345 = vmatpush1.bf16.msra.mxu0 %v7381
    %8346 = vmatprep.subr.bf16.mxu0 %v7378
    %8347 = vmatpush1.bf16.msra.mxu0 %v7377
    %8348 = vmatprep.subr.bf16.mxu0 %v7438
    %8349 = vmatpush2.bf16.msra.mxu0 %v7437
    %8350 = vmatprep.subr.bf16.mxu0 %v7434
    %8351 = vmatpush2.bf16.msra.mxu0 %v7433
    %8352 = vmatprep.subr.bf16.mxu0 %v7430
    %8353 = vmatpush2.bf16.msra.mxu0 %v7429
    %8354 = vmatprep.subr.bf16.mxu0 %v7426
    %8355 = vmatpush2.bf16.msra.mxu0 %v7425
    %8356 = vmatprep.subr.bf16.mxu0 %v7422
    %8357 = vmatpush2.bf16.msra.mxu0 %v7421
    %8358 = vmatprep.subr.bf16.mxu0 %v7418
    %8359 = vmatpush2.bf16.msra.mxu0 %v7417
    %8360 = vmatprep.subr.bf16.mxu0 %v7414
    %8361 = vmatpush2.bf16.msra.mxu0 %v7413
    %8362 = vmatprep.subr.bf16.mxu0 %v7410
    %8363 = vmatpush2.bf16.msra.mxu0 %v7409
    %8364 = vmatprep.mubr.bf16.mxu0 %v5106
    %8365 = vmatmul.mubr.bf16.gmra.mxu0 %v5105
    %v8366 = vpop.f32.mrf.mxu0
    %v8367 = vadd.f32 %v8326, %v8366
    %v8368 = vpop.f32.mrf.mxu0
    %v8369 = vadd.f32 %v8328, %v8368
    %v8370 = vpop.f32.mrf.mxu0
    %v8371 = vpop.f32.mrf.mxu0
    %8372 = vdwg.mxu0
    %8373 = vmatprep.subr.bf16.mxu0 %v7470
    %8374 = vmatpush1.bf16.msra.mxu0 %v7469
    %8375 = vmatprep.subr.bf16.mxu0 %v7466
    %8376 = vmatpush1.bf16.msra.mxu0 %v7465
    %8377 = vmatprep.subr.bf16.mxu0 %v7462
    %8378 = vmatpush1.bf16.msra.mxu0 %v7461
    %8379 = vmatprep.subr.bf16.mxu0 %v7458
    %8380 = vmatpush1.bf16.msra.mxu0 %v7457
    %8381 = vmatprep.subr.bf16.mxu0 %v7454
    %8382 = vmatpush1.bf16.msra.mxu0 %v7453
    %8383 = vmatprep.subr.bf16.mxu0 %v7450
    %8384 = vmatpush1.bf16.msra.mxu0 %v7449
    %8385 = vmatprep.subr.bf16.mxu0 %v7446
    %8386 = vmatpush1.bf16.msra.mxu0 %v7445
    %8387 = vmatprep.subr.bf16.mxu0 %v7442
    %8388 = vmatpush1.bf16.msra.mxu0 %v7441
    %8389 = vmatprep.subr.bf16.mxu0 %v7502
    %8390 = vmatpush2.bf16.msra.mxu0 %v7501
    %8391 = vmatprep.subr.bf16.mxu0 %v7498
    %8392 = vmatpush2.bf16.msra.mxu0 %v7497
    %8393 = vmatprep.subr.bf16.mxu0 %v7494
    %8394 = vmatpush2.bf16.msra.mxu0 %v7493
    %8395 = vmatprep.subr.bf16.mxu0 %v7490
    %8396 = vmatpush2.bf16.msra.mxu0 %v7489
    %8397 = vmatprep.subr.bf16.mxu0 %v7486
    %8398 = vmatpush2.bf16.msra.mxu0 %v7485
    %8399 = vmatprep.subr.bf16.mxu0 %v7482
    %8400 = vmatpush2.bf16.msra.mxu0 %v7481
    %8401 = vmatprep.subr.bf16.mxu0 %v7478
    %8402 = vmatpush2.bf16.msra.mxu0 %v7477
    %8403 = vmatprep.subr.bf16.mxu0 %v7474
    %8404 = vmatpush2.bf16.msra.mxu0 %v7473
    %8405 = vmatprep.mubr.bf16.mxu0 %v5108
    %8406 = vmatmul.mubr.bf16.gmra.mxu0 %v5107
    %v8407 = vpop.f32.mrf.mxu0
    %v8408 = vadd.f32 %v8367, %v8407
    %v8409 = vpop.f32.mrf.mxu0
    %v8410 = vadd.f32 %v8369, %v8409
    %v8411 = vpop.f32.mrf.mxu0
    %v8412 = vpop.f32.mrf.mxu0
    %8413 = vdwg.mxu0
    %8414 = vmatprep.subr.bf16.mxu0 %v7534
    %8415 = vmatpush1.bf16.msra.mxu0 %v7533
    %8416 = vmatprep.subr.bf16.mxu0 %v7530
    %8417 = vmatpush1.bf16.msra.mxu0 %v7529
    %8418 = vmatprep.subr.bf16.mxu0 %v7526
    %8419 = vmatpush1.bf16.msra.mxu0 %v7525
    %8420 = vmatprep.subr.bf16.mxu0 %v7522
    %8421 = vmatpush1.bf16.msra.mxu0 %v7521
    %8422 = vmatprep.subr.bf16.mxu0 %v7518
    %8423 = vmatpush1.bf16.msra.mxu0 %v7517
    %8424 = vmatprep.subr.bf16.mxu0 %v7514
    %8425 = vmatpush1.bf16.msra.mxu0 %v7513
    %8426 = vmatprep.subr.bf16.mxu0 %v7510
    %8427 = vmatpush1.bf16.msra.mxu0 %v7509
    %8428 = vmatprep.subr.bf16.mxu0 %v7506
    %8429 = vmatpush1.bf16.msra.mxu0 %v7505
    %8430 = vmatprep.subr.bf16.mxu0 %v7566
    %8431 = vmatpush2.bf16.msra.mxu0 %v7565
    %8432 = vmatprep.subr.bf16.mxu0 %v7562
    %8433 = vmatpush2.bf16.msra.mxu0 %v7561
    %8434 = vmatprep.subr.bf16.mxu0 %v7558
    %8435 = vmatpush2.bf16.msra.mxu0 %v7557
    %8436 = vmatprep.subr.bf16.mxu0 %v7554
    %8437 = vmatpush2.bf16.msra.mxu0 %v7553
    %8438 = vmatprep.subr.bf16.mxu0 %v7550
    %8439 = vmatpush2.bf16.msra.mxu0 %v7549
    %8440 = vmatprep.subr.bf16.mxu0 %v7546
    %8441 = vmatpush2.bf16.msra.mxu0 %v7545
    %8442 = vmatprep.subr.bf16.mxu0 %v7542
    %8443 = vmatpush2.bf16.msra.mxu0 %v7541
    %8444 = vmatprep.subr.bf16.mxu0 %v7538
    %8445 = vmatpush2.bf16.msra.mxu0 %v7537
    %8446 = vmatprep.mubr.bf16.mxu0 %v5110
    %8447 = vmatmul.mubr.bf16.gmra.mxu0 %v5109
    %v8448 = vpop.f32.mrf.mxu0
    %v8449 = vadd.f32 %v8408, %v8448
    %v8450 = vpop.f32.mrf.mxu0
    %v8451 = vadd.f32 %v8410, %v8450
    %v8452 = vpop.f32.mrf.mxu0
    %v8453 = vpop.f32.mrf.mxu0
    %8454 = vdwg.mxu0
    %8455 = vmatprep.subr.bf16.mxu0 %v7598
    %8456 = vmatpush1.bf16.msra.mxu0 %v7597
    %8457 = vmatprep.subr.bf16.mxu0 %v7594
    %8458 = vmatpush1.bf16.msra.mxu0 %v7593
    %8459 = vmatprep.subr.bf16.mxu0 %v7590
    %8460 = vmatpush1.bf16.msra.mxu0 %v7589
    %8461 = vmatprep.subr.bf16.mxu0 %v7586
    %8462 = vmatpush1.bf16.msra.mxu0 %v7585
    %8463 = vmatprep.subr.bf16.mxu0 %v7582
    %8464 = vmatpush1.bf16.msra.mxu0 %v7581
    %8465 = vmatprep.subr.bf16.mxu0 %v7578
    %8466 = vmatpush1.bf16.msra.mxu0 %v7577
    %8467 = vmatprep.subr.bf16.mxu0 %v7574
    %8468 = vmatpush1.bf16.msra.mxu0 %v7573
    %8469 = vmatprep.subr.bf16.mxu0 %v7570
    %8470 = vmatpush1.bf16.msra.mxu0 %v7569
    %8471 = vmatprep.subr.bf16.mxu0 %v7630
    %8472 = vmatpush2.bf16.msra.mxu0 %v7629
    %8473 = vmatprep.subr.bf16.mxu0 %v7626
    %8474 = vmatpush2.bf16.msra.mxu0 %v7625
    %8475 = vmatprep.subr.bf16.mxu0 %v7622
    %8476 = vmatpush2.bf16.msra.mxu0 %v7621
    %8477 = vmatprep.subr.bf16.mxu0 %v7618
    %8478 = vmatpush2.bf16.msra.mxu0 %v7617
    %8479 = vmatprep.subr.bf16.mxu0 %v7614
    %8480 = vmatpush2.bf16.msra.mxu0 %v7613
    %8481 = vmatprep.subr.bf16.mxu0 %v7610
    %8482 = vmatpush2.bf16.msra.mxu0 %v7609
    %8483 = vmatprep.subr.bf16.mxu0 %v7606
    %8484 = vmatpush2.bf16.msra.mxu0 %v7605
    %8485 = vmatprep.subr.bf16.mxu0 %v7602
    %8486 = vmatpush2.bf16.msra.mxu0 %v7601
    %8487 = vmatprep.mubr.bf16.mxu0 %v5112
    %8488 = vmatmul.mubr.bf16.gmra.mxu0 %v5111
    %v8489 = vpop.f32.mrf.mxu0
    %v8490 = vadd.f32 %v8449, %v8489
    %v8491 = vpop.f32.mrf.mxu0
    %v8492 = vadd.f32 %v8451, %v8491
    %v8493 = vpop.f32.mrf.mxu0
    %v8494 = vpop.f32.mrf.mxu0
    %8495 = vdwg.mxu0
    %8496 = vmatprep.subr.bf16.mxu0 %v7662
    %8497 = vmatpush1.bf16.msra.mxu0 %v7661
    %8498 = vmatprep.subr.bf16.mxu0 %v7658
    %8499 = vmatpush1.bf16.msra.mxu0 %v7657
    %8500 = vmatprep.subr.bf16.mxu0 %v7654
    %8501 = vmatpush1.bf16.msra.mxu0 %v7653
    %8502 = vmatprep.subr.bf16.mxu0 %v7650
    %8503 = vmatpush1.bf16.msra.mxu0 %v7649
    %8504 = vmatprep.subr.bf16.mxu0 %v7646
    %8505 = vmatpush1.bf16.msra.mxu0 %v7645
    %8506 = vmatprep.subr.bf16.mxu0 %v7642
    %8507 = vmatpush1.bf16.msra.mxu0 %v7641
    %8508 = vmatprep.subr.bf16.mxu0 %v7638
    %8509 = vmatpush1.bf16.msra.mxu0 %v7637
    %8510 = vmatprep.subr.bf16.mxu0 %v7634
    %8511 = vmatpush1.bf16.msra.mxu0 %v7633
    %8512 = vmatprep.subr.bf16.mxu0 %v7694
    %8513 = vmatpush2.bf16.msra.mxu0 %v7693
    %8514 = vmatprep.subr.bf16.mxu0 %v7690
    %8515 = vmatpush2.bf16.msra.mxu0 %v7689
    %8516 = vmatprep.subr.bf16.mxu0 %v7686
    %8517 = vmatpush2.bf16.msra.mxu0 %v7685
    %8518 = vmatprep.subr.bf16.mxu0 %v7682
    %8519 = vmatpush2.bf16.msra.mxu0 %v7681
    %8520 = vmatprep.subr.bf16.mxu0 %v7678
    %8521 = vmatpush2.bf16.msra.mxu0 %v7677
    %8522 = vmatprep.subr.bf16.mxu0 %v7674
    %8523 = vmatpush2.bf16.msra.mxu0 %v7673
    %8524 = vmatprep.subr.bf16.mxu0 %v7670
    %8525 = vmatpush2.bf16.msra.mxu0 %v7669
    %8526 = vmatprep.subr.bf16.mxu0 %v7666
    %8527 = vmatpush2.bf16.msra.mxu0 %v7665
    %8528 = vmatprep.mubr.bf16.mxu0 %v5114
    %8529 = vmatmul.mubr.bf16.gmra.mxu0 %v5113
    %v8530 = vpop.f32.mrf.mxu0
    %v8531 = vadd.f32 %v8490, %v8530
    %v8532 = vpop.f32.mrf.mxu0
    %v8533 = vadd.f32 %v8492, %v8532
    %v8534 = vpop.f32.mrf.mxu0
    %v8535 = vpop.f32.mrf.mxu0
    %8536 = vdwg.mxu0
    %8537 = vmatprep.subr.bf16.mxu0 %v7216
    %8538 = vmatpush1.bf16.msra.mxu0 %v7215
    %8539 = vmatprep.subr.bf16.mxu0 %v7212
    %8540 = vmatpush1.bf16.msra.mxu0 %v7211
    %8541 = vmatprep.subr.bf16.mxu0 %v7208
    %8542 = vmatpush1.bf16.msra.mxu0 %v7207
    %8543 = vmatprep.subr.bf16.mxu0 %v7204
    %8544 = vmatpush1.bf16.msra.mxu0 %v7203
    %8545 = vmatprep.subr.bf16.mxu0 %v7200
    %8546 = vmatpush1.bf16.msra.mxu0 %v7199
    %8547 = vmatprep.subr.bf16.mxu0 %v7196
    %8548 = vmatpush1.bf16.msra.mxu0 %v7195
    %8549 = vmatprep.subr.bf16.mxu0 %v7192
    %8550 = vmatpush1.bf16.msra.mxu0 %v7191
    %8551 = vmatprep.subr.bf16.mxu0 %v7188
    %8552 = vmatpush1.bf16.msra.mxu0 %v7187
    %8553 = vmatprep.subr.bf16.mxu0 %v7248
    %8554 = vmatpush2.bf16.msra.mxu0 %v7247
    %8555 = vmatprep.subr.bf16.mxu0 %v7244
    %8556 = vmatpush2.bf16.msra.mxu0 %v7243
    %8557 = vmatprep.subr.bf16.mxu0 %v7240
    %8558 = vmatpush2.bf16.msra.mxu0 %v7239
    %8559 = vmatprep.subr.bf16.mxu0 %v7236
    %8560 = vmatpush2.bf16.msra.mxu0 %v7235
    %8561 = vmatprep.subr.bf16.mxu0 %v7232
    %8562 = vmatpush2.bf16.msra.mxu0 %v7231
    %8563 = vmatprep.subr.bf16.mxu0 %v7228
    %8564 = vmatpush2.bf16.msra.mxu0 %v7227
    %8565 = vmatprep.subr.bf16.mxu0 %v7224
    %8566 = vmatpush2.bf16.msra.mxu0 %v7223
    %8567 = vmatprep.subr.bf16.mxu0 %v7220
    %8568 = vmatpush2.bf16.msra.mxu0 %v7219
    %8569 = vmatprep.mubr.bf16.mxu0 %v5100
    %8570 = vmatmul.mubr.bf16.gmra.mxu0 %v5099
    %v8571 = vpop.f32.mrf.mxu0
    %v8572 = vadd.f32 %v5640, %v8571
    %v8573 = vpop.f32.mrf.mxu0
    %v8574 = vadd.f32 %v5644, %v8573
    %v8575 = vpop.f32.mrf.mxu0
    %v8576 = vpop.f32.mrf.mxu0
    %8577 = vdwg.mxu0
    %8578 = vmatprep.subr.bf16.mxu0 %v7280
    %8579 = vmatpush1.bf16.msra.mxu0 %v7279
    %8580 = vmatprep.subr.bf16.mxu0 %v7276
    %8581 = vmatpush1.bf16.msra.mxu0 %v7275
    %8582 = vmatprep.subr.bf16.mxu0 %v7272
    %8583 = vmatpush1.bf16.msra.mxu0 %v7271
    %8584 = vmatprep.subr.bf16.mxu0 %v7268
    %8585 = vmatpush1.bf16.msra.mxu0 %v7267
    %8586 = vmatprep.subr.bf16.mxu0 %v7264
    %8587 = vmatpush1.bf16.msra.mxu0 %v7263
    %8588 = vmatprep.subr.bf16.mxu0 %v7260
    %8589 = vmatpush1.bf16.msra.mxu0 %v7259
    %8590 = vmatprep.subr.bf16.mxu0 %v7256
    %8591 = vmatpush1.bf16.msra.mxu0 %v7255
    %8592 = vmatprep.subr.bf16.mxu0 %v7252
    %8593 = vmatpush1.bf16.msra.mxu0 %v7251
    %8594 = vmatprep.subr.bf16.mxu0 %v7312
    %8595 = vmatpush2.bf16.msra.mxu0 %v7311
    %8596 = vmatprep.subr.bf16.mxu0 %v7308
    %8597 = vmatpush2.bf16.msra.mxu0 %v7307
    %8598 = vmatprep.subr.bf16.mxu0 %v7304
    %8599 = vmatpush2.bf16.msra.mxu0 %v7303
    %8600 = vmatprep.subr.bf16.mxu0 %v7300
    %8601 = vmatpush2.bf16.msra.mxu0 %v7299
    %8602 = vmatprep.subr.bf16.mxu0 %v7296
    %8603 = vmatpush2.bf16.msra.mxu0 %v7295
    %8604 = vmatprep.subr.bf16.mxu0 %v7292
    %8605 = vmatpush2.bf16.msra.mxu0 %v7291
    %8606 = vmatprep.subr.bf16.mxu0 %v7288
    %8607 = vmatpush2.bf16.msra.mxu0 %v7287
    %8608 = vmatprep.subr.bf16.mxu0 %v7284
    %8609 = vmatpush2.bf16.msra.mxu0 %v7283
    %8610 = vmatprep.mubr.bf16.mxu0 %v5102
    %8611 = vmatmul.mubr.bf16.gmra.mxu0 %v5101
    %v8612 = vpop.f32.mrf.mxu0
    %v8613 = vadd.f32 %v8572, %v8612
    %v8614 = vpop.f32.mrf.mxu0
    %v8615 = vadd.f32 %v8574, %v8614
    %v8616 = vpop.f32.mrf.mxu0
    %v8617 = vpop.f32.mrf.mxu0
    %8618 = vdwg.mxu0
    %8619 = vmatprep.subr.bf16.mxu0 %v7344
    %8620 = vmatpush1.bf16.msra.mxu0 %v7343
    %8621 = vmatprep.subr.bf16.mxu0 %v7340
    %8622 = vmatpush1.bf16.msra.mxu0 %v7339
    %8623 = vmatprep.subr.bf16.mxu0 %v7336
    %8624 = vmatpush1.bf16.msra.mxu0 %v7335
    %8625 = vmatprep.subr.bf16.mxu0 %v7332
    %8626 = vmatpush1.bf16.msra.mxu0 %v7331
    %8627 = vmatprep.subr.bf16.mxu0 %v7328
    %8628 = vmatpush1.bf16.msra.mxu0 %v7327
    %8629 = vmatprep.subr.bf16.mxu0 %v7324
    %8630 = vmatpush1.bf16.msra.mxu0 %v7323
    %8631 = vmatprep.subr.bf16.mxu0 %v7320
    %8632 = vmatpush1.bf16.msra.mxu0 %v7319
    %8633 = vmatprep.subr.bf16.mxu0 %v7316
    %8634 = vmatpush1.bf16.msra.mxu0 %v7315
    %8635 = vmatprep.subr.bf16.mxu0 %v7376
    %8636 = vmatpush2.bf16.msra.mxu0 %v7375
    %8637 = vmatprep.subr.bf16.mxu0 %v7372
    %8638 = vmatpush2.bf16.msra.mxu0 %v7371
    %8639 = vmatprep.subr.bf16.mxu0 %v7368
    %8640 = vmatpush2.bf16.msra.mxu0 %v7367
    %8641 = vmatprep.subr.bf16.mxu0 %v7364
    %8642 = vmatpush2.bf16.msra.mxu0 %v7363
    %8643 = vmatprep.subr.bf16.mxu0 %v7360
    %8644 = vmatpush2.bf16.msra.mxu0 %v7359
    %8645 = vmatprep.subr.bf16.mxu0 %v7356
    %8646 = vmatpush2.bf16.msra.mxu0 %v7355
    %8647 = vmatprep.subr.bf16.mxu0 %v7352
    %8648 = vmatpush2.bf16.msra.mxu0 %v7351
    %8649 = vmatprep.subr.bf16.mxu0 %v7348
    %8650 = vmatpush2.bf16.msra.mxu0 %v7347
    %8651 = vmatprep.mubr.bf16.mxu0 %v5104
    %8652 = vmatmul.mubr.bf16.gmra.mxu0 %v5103
    %v8653 = vpop.f32.mrf.mxu0
    %v8654 = vadd.f32 %v8613, %v8653
    %v8655 = vpop.f32.mrf.mxu0
    %v8656 = vadd.f32 %v8615, %v8655
    %v8657 = vpop.f32.mrf.mxu0
    %v8658 = vpop.f32.mrf.mxu0
    %8659 = vdwg.mxu0
    %8660 = vmatprep.subr.bf16.mxu0 %v7408
    %8661 = vmatpush1.bf16.msra.mxu0 %v7407
    %8662 = vmatprep.subr.bf16.mxu0 %v7404
    %8663 = vmatpush1.bf16.msra.mxu0 %v7403
    %8664 = vmatprep.subr.bf16.mxu0 %v7400
    %8665 = vmatpush1.bf16.msra.mxu0 %v7399
    %8666 = vmatprep.subr.bf16.mxu0 %v7396
    %8667 = vmatpush1.bf16.msra.mxu0 %v7395
    %8668 = vmatprep.subr.bf16.mxu0 %v7392
    %8669 = vmatpush1.bf16.msra.mxu0 %v7391
    %8670 = vmatprep.subr.bf16.mxu0 %v7388
    %8671 = vmatpush1.bf16.msra.mxu0 %v7387
    %8672 = vmatprep.subr.bf16.mxu0 %v7384
    %8673 = vmatpush1.bf16.msra.mxu0 %v7383
    %8674 = vmatprep.subr.bf16.mxu0 %v7380
    %8675 = vmatpush1.bf16.msra.mxu0 %v7379
    %8676 = vmatprep.subr.bf16.mxu0 %v7440
    %8677 = vmatpush2.bf16.msra.mxu0 %v7439
    %8678 = vmatprep.subr.bf16.mxu0 %v7436
    %8679 = vmatpush2.bf16.msra.mxu0 %v7435
    %8680 = vmatprep.subr.bf16.mxu0 %v7432
    %8681 = vmatpush2.bf16.msra.mxu0 %v7431
    %8682 = vmatprep.subr.bf16.mxu0 %v7428
    %8683 = vmatpush2.bf16.msra.mxu0 %v7427
    %8684 = vmatprep.subr.bf16.mxu0 %v7424
    %8685 = vmatpush2.bf16.msra.mxu0 %v7423
    %8686 = vmatprep.subr.bf16.mxu0 %v7420
    %8687 = vmatpush2.bf16.msra.mxu0 %v7419
    %8688 = vmatprep.subr.bf16.mxu0 %v7416
    %8689 = vmatpush2.bf16.msra.mxu0 %v7415
    %8690 = vmatprep.subr.bf16.mxu0 %v7412
    %8691 = vmatpush2.bf16.msra.mxu0 %v7411
    %8692 = vmatprep.mubr.bf16.mxu0 %v5106
    %8693 = vmatmul.mubr.bf16.gmra.mxu0 %v5105
    %v8694 = vpop.f32.mrf.mxu0
    %v8695 = vadd.f32 %v8654, %v8694
    %v8696 = vpop.f32.mrf.mxu0
    %v8697 = vadd.f32 %v8656, %v8696
    %v8698 = vpop.f32.mrf.mxu0
    %v8699 = vpop.f32.mrf.mxu0
    %8700 = vdwg.mxu0
    %8701 = vmatprep.subr.bf16.mxu0 %v7472
    %8702 = vmatpush1.bf16.msra.mxu0 %v7471
    %8703 = vmatprep.subr.bf16.mxu0 %v7468
    %8704 = vmatpush1.bf16.msra.mxu0 %v7467
    %8705 = vmatprep.subr.bf16.mxu0 %v7464
    %8706 = vmatpush1.bf16.msra.mxu0 %v7463
    %8707 = vmatprep.subr.bf16.mxu0 %v7460
    %8708 = vmatpush1.bf16.msra.mxu0 %v7459
    %8709 = vmatprep.subr.bf16.mxu0 %v7456
    %8710 = vmatpush1.bf16.msra.mxu0 %v7455
    %8711 = vmatprep.subr.bf16.mxu0 %v7452
    %8712 = vmatpush1.bf16.msra.mxu0 %v7451
    %8713 = vmatprep.subr.bf16.mxu0 %v7448
    %8714 = vmatpush1.bf16.msra.mxu0 %v7447
    %8715 = vmatprep.subr.bf16.mxu0 %v7444
    %8716 = vmatpush1.bf16.msra.mxu0 %v7443
    %8717 = vmatprep.subr.bf16.mxu0 %v7504
    %8718 = vmatpush2.bf16.msra.mxu0 %v7503
    %8719 = vmatprep.subr.bf16.mxu0 %v7500
    %8720 = vmatpush2.bf16.msra.mxu0 %v7499
    %8721 = vmatprep.subr.bf16.mxu0 %v7496
    %8722 = vmatpush2.bf16.msra.mxu0 %v7495
    %8723 = vmatprep.subr.bf16.mxu0 %v7492
    %8724 = vmatpush2.bf16.msra.mxu0 %v7491
    %8725 = vmatprep.subr.bf16.mxu0 %v7488
    %8726 = vmatpush2.bf16.msra.mxu0 %v7487
    %8727 = vmatprep.subr.bf16.mxu0 %v7484
    %8728 = vmatpush2.bf16.msra.mxu0 %v7483
    %8729 = vmatprep.subr.bf16.mxu0 %v7480
    %8730 = vmatpush2.bf16.msra.mxu0 %v7479
    %8731 = vmatprep.subr.bf16.mxu0 %v7476
    %8732 = vmatpush2.bf16.msra.mxu0 %v7475
    %8733 = vmatprep.mubr.bf16.mxu0 %v5108
    %8734 = vmatmul.mubr.bf16.gmra.mxu0 %v5107
    %v8735 = vpop.f32.mrf.mxu0
    %v8736 = vadd.f32 %v8695, %v8735
    %v8737 = vpop.f32.mrf.mxu0
    %v8738 = vadd.f32 %v8697, %v8737
    %v8739 = vpop.f32.mrf.mxu0
    %v8740 = vpop.f32.mrf.mxu0
    %8741 = vdwg.mxu0
    %8742 = vmatprep.subr.bf16.mxu0 %v7536
    %8743 = vmatpush1.bf16.msra.mxu0 %v7535
    %8744 = vmatprep.subr.bf16.mxu0 %v7532
    %8745 = vmatpush1.bf16.msra.mxu0 %v7531
    %8746 = vmatprep.subr.bf16.mxu0 %v7528
    %8747 = vmatpush1.bf16.msra.mxu0 %v7527
    %8748 = vmatprep.subr.bf16.mxu0 %v7524
    %8749 = vmatpush1.bf16.msra.mxu0 %v7523
    %8750 = vmatprep.subr.bf16.mxu0 %v7520
    %8751 = vmatpush1.bf16.msra.mxu0 %v7519
    %8752 = vmatprep.subr.bf16.mxu0 %v7516
    %8753 = vmatpush1.bf16.msra.mxu0 %v7515
    %8754 = vmatprep.subr.bf16.mxu0 %v7512
    %8755 = vmatpush1.bf16.msra.mxu0 %v7511
    %8756 = vmatprep.subr.bf16.mxu0 %v7508
    %8757 = vmatpush1.bf16.msra.mxu0 %v7507
    %8758 = vmatprep.subr.bf16.mxu0 %v7568
    %8759 = vmatpush2.bf16.msra.mxu0 %v7567
    %8760 = vmatprep.subr.bf16.mxu0 %v7564
    %8761 = vmatpush2.bf16.msra.mxu0 %v7563
    %8762 = vmatprep.subr.bf16.mxu0 %v7560
    %8763 = vmatpush2.bf16.msra.mxu0 %v7559
    %8764 = vmatprep.subr.bf16.mxu0 %v7556
    %8765 = vmatpush2.bf16.msra.mxu0 %v7555
    %8766 = vmatprep.subr.bf16.mxu0 %v7552
    %8767 = vmatpush2.bf16.msra.mxu0 %v7551
    %8768 = vmatprep.subr.bf16.mxu0 %v7548
    %8769 = vmatpush2.bf16.msra.mxu0 %v7547
    %8770 = vmatprep.subr.bf16.mxu0 %v7544
    %8771 = vmatpush2.bf16.msra.mxu0 %v7543
    %8772 = vmatprep.subr.bf16.mxu0 %v7540
    %8773 = vmatpush2.bf16.msra.mxu0 %v7539
    %8774 = vmatprep.mubr.bf16.mxu0 %v5110
    %8775 = vmatmul.mubr.bf16.gmra.mxu0 %v5109
    %v8776 = vpop.f32.mrf.mxu0
    %v8777 = vadd.f32 %v8736, %v8776
    %v8778 = vpop.f32.mrf.mxu0
    %v8779 = vadd.f32 %v8738, %v8778
    %v8780 = vpop.f32.mrf.mxu0
    %v8781 = vpop.f32.mrf.mxu0
    %8782 = vdwg.mxu0
    %8783 = vmatprep.subr.bf16.mxu0 %v7600
    %8784 = vmatpush1.bf16.msra.mxu0 %v7599
    %8785 = vmatprep.subr.bf16.mxu0 %v7596
    %8786 = vmatpush1.bf16.msra.mxu0 %v7595
    %8787 = vmatprep.subr.bf16.mxu0 %v7592
    %8788 = vmatpush1.bf16.msra.mxu0 %v7591
    %8789 = vmatprep.subr.bf16.mxu0 %v7588
    %8790 = vmatpush1.bf16.msra.mxu0 %v7587
    %8791 = vmatprep.subr.bf16.mxu0 %v7584
    %8792 = vmatpush1.bf16.msra.mxu0 %v7583
    %8793 = vmatprep.subr.bf16.mxu0 %v7580
    %8794 = vmatpush1.bf16.msra.mxu0 %v7579
    %8795 = vmatprep.subr.bf16.mxu0 %v7576
    %8796 = vmatpush1.bf16.msra.mxu0 %v7575
    %8797 = vmatprep.subr.bf16.mxu0 %v7572
    %8798 = vmatpush1.bf16.msra.mxu0 %v7571
    %8799 = vmatprep.subr.bf16.mxu0 %v7632
    %8800 = vmatpush2.bf16.msra.mxu0 %v7631
    %8801 = vmatprep.subr.bf16.mxu0 %v7628
    %8802 = vmatpush2.bf16.msra.mxu0 %v7627
    %8803 = vmatprep.subr.bf16.mxu0 %v7624
    %8804 = vmatpush2.bf16.msra.mxu0 %v7623
    %8805 = vmatprep.subr.bf16.mxu0 %v7620
    %8806 = vmatpush2.bf16.msra.mxu0 %v7619
    %8807 = vmatprep.subr.bf16.mxu0 %v7616
    %8808 = vmatpush2.bf16.msra.mxu0 %v7615
    %8809 = vmatprep.subr.bf16.mxu0 %v7612
    %8810 = vmatpush2.bf16.msra.mxu0 %v7611
    %8811 = vmatprep.subr.bf16.mxu0 %v7608
    %8812 = vmatpush2.bf16.msra.mxu0 %v7607
    %8813 = vmatprep.subr.bf16.mxu0 %v7604
    %8814 = vmatpush2.bf16.msra.mxu0 %v7603
    %8815 = vmatprep.mubr.bf16.mxu0 %v5112
    %8816 = vmatmul.mubr.bf16.gmra.mxu0 %v5111
    %v8817 = vpop.f32.mrf.mxu0
    %v8818 = vadd.f32 %v8777, %v8817
    %v8819 = vpop.f32.mrf.mxu0
    %v8820 = vadd.f32 %v8779, %v8819
    %v8821 = vpop.f32.mrf.mxu0
    %v8822 = vpop.f32.mrf.mxu0
    %8823 = vdwg.mxu0
    %8824 = vmatprep.subr.bf16.mxu0 %v7664
    %8825 = vmatpush1.bf16.msra.mxu0 %v7663
    %8826 = vmatprep.subr.bf16.mxu0 %v7660
    %8827 = vmatpush1.bf16.msra.mxu0 %v7659
    %8828 = vmatprep.subr.bf16.mxu0 %v7656
    %8829 = vmatpush1.bf16.msra.mxu0 %v7655
    %8830 = vmatprep.subr.bf16.mxu0 %v7652
    %8831 = vmatpush1.bf16.msra.mxu0 %v7651
    %8832 = vmatprep.subr.bf16.mxu0 %v7648
    %8833 = vmatpush1.bf16.msra.mxu0 %v7647
    %8834 = vmatprep.subr.bf16.mxu0 %v7644
    %8835 = vmatpush1.bf16.msra.mxu0 %v7643
    %8836 = vmatprep.subr.bf16.mxu0 %v7640
    %8837 = vmatpush1.bf16.msra.mxu0 %v7639
    %8838 = vmatprep.subr.bf16.mxu0 %v7636
    %8839 = vmatpush1.bf16.msra.mxu0 %v7635
    %8840 = vmatprep.subr.bf16.mxu0 %v7696
    %8841 = vmatpush2.bf16.msra.mxu0 %v7695
    %8842 = vmatprep.subr.bf16.mxu0 %v7692
    %8843 = vmatpush2.bf16.msra.mxu0 %v7691
    %8844 = vmatprep.subr.bf16.mxu0 %v7688
    %8845 = vmatpush2.bf16.msra.mxu0 %v7687
    %8846 = vmatprep.subr.bf16.mxu0 %v7684
    %8847 = vmatpush2.bf16.msra.mxu0 %v7683
    %8848 = vmatprep.subr.bf16.mxu0 %v7680
    %8849 = vmatpush2.bf16.msra.mxu0 %v7679
    %8850 = vmatprep.subr.bf16.mxu0 %v7676
    %8851 = vmatpush2.bf16.msra.mxu0 %v7675
    %8852 = vmatprep.subr.bf16.mxu0 %v7672
    %8853 = vmatpush2.bf16.msra.mxu0 %v7671
    %8854 = vmatprep.subr.bf16.mxu0 %v7668
    %8855 = vmatpush2.bf16.msra.mxu0 %v7667
    %8856 = vmatprep.mubr.bf16.mxu0 %v5114
    %8857 = vmatmul.mubr.bf16.gmra.mxu0 %v5113
    %v8858 = vpop.f32.mrf.mxu0
    %v8859 = vadd.f32 %v8818, %v8858
    %v8860 = vpop.f32.mrf.mxu0
    %v8861 = vadd.f32 %v8820, %v8860
    %v8862 = vpop.f32.mrf.mxu0
    %v8863 = vpop.f32.mrf.mxu0
    %8864 = vdwg.mxu0
    %vm8865 = vcmp.gt.f32.partialorder %v8531, 0.0
    %vm8866 = vcmp.gt.f32.partialorder %v8533, 0.0
    %vm8867 = vcmp.gt.f32.partialorder %v8859, 0.0
    %vm8868 = vcmp.gt.f32.partialorder %v8861, 0.0
    %v8869 = vmin.f32 %v8531, 0.0
    %v8870 = vmin.f32 %v8533, 0.0
    %v8871 = vmin.f32 %v8859, 0.0
    %v8872 = vmin.f32 %v8861, 0.0
    %v8873 = vmul.f32 %v8869, 1.442695
    %v8874 = vpow.pop %v8873
    %v8875 = vmul.f32 %v8870, 1.442695
    %v8876 = vpow.pop %v8875
    %v8877 = vmul.f32 %v8871, 1.442695
    %v8878 = vpow.pop %v8877
    %v8879 = vmul.f32 %v8872, 1.442695
    %v8880 = vpow.pop %v8879
    %v8881 = vsub.f32 %v8874, 1.0
    %v8882 = vsub.f32 %v8876, 1.0
    %v8883 = vsub.f32 %v8878, 1.0
    %v8884 = vsub.f32 %v8880, 1.0
    %v8885 = vsel %vm8865, %v8531, %v8881
    %v8886 = vsel %vm8866, %v8533, %v8882
    %v8887 = vsel %vm8867, %v8859, %v8883
    %v8888 = vsel %vm8868, %v8861, %v8884
    %v8889 = vpack.c.bf16 %v8885, %v8885
    %v8890 = vpack.c.bf16 %v8886, %v8886
    %v8891 = vpack.c.bf16 %v8887, %v8887
    %v8892 = vpack.c.bf16 %v8888, %v8888
    %v8893 = vld [vmem:[#allocation6] sm:$0xf]
    %v8894 = vld [vmem:[#allocation6 + $0x4] sm:$0xf]
    %v8895 = vld [vmem:[#allocation6 + $0x8] sm:$0xf]
    %v8896 = vld [vmem:[#allocation6 + $0xc] sm:$0xf]
    %v8897 = vld [vmem:[#allocation6 + $0x10] sm:$0xf]
    %v8898 = vld [vmem:[#allocation6 + $0x14] sm:$0xf]
    %v8899 = vld [vmem:[#allocation6 + $0x18] sm:$0xf]
    %v8900 = vld [vmem:[#allocation6 + $0x1c] sm:$0xf]
    %v8901 = vld [vmem:[#allocation6 + $0x20] sm:$0xf]
    %v8902 = vld [vmem:[#allocation6 + $0x24] sm:$0xf]
    %v8903 = vld [vmem:[#allocation6 + $0x28] sm:$0xf]
    %v8904 = vld [vmem:[#allocation6 + $0x2c] sm:$0xf]
    %v8905 = vld [vmem:[#allocation6 + $0x30] sm:$0xf]
    %v8906 = vld [vmem:[#allocation6 + $0x34] sm:$0xf]
    %v8907 = vld [vmem:[#allocation6 + $0x38] sm:$0xf]
    %v8908 = vld [vmem:[#allocation6 + $0x3c] sm:$0xf]
    %v8909 = vld [vmem:[#allocation6 + $0x40] sm:$0xf]
    %v8910 = vld [vmem:[#allocation6 + $0x44] sm:$0xf]
    %v8911 = vld [vmem:[#allocation6 + $0x48] sm:$0xf]
    %v8912 = vld [vmem:[#allocation6 + $0x4c] sm:$0xf]
    %v8913 = vld [vmem:[#allocation6 + $0x50] sm:$0xf]
    %v8914 = vld [vmem:[#allocation6 + $0x54] sm:$0xf]
    %v8915 = vld [vmem:[#allocation6 + $0x58] sm:$0xf]
    %v8916 = vld [vmem:[#allocation6 + $0x5c] sm:$0xf]
    %v8917 = vld [vmem:[#allocation6 + $0x60] sm:$0xf]
    %v8918 = vld [vmem:[#allocation6 + $0x64] sm:$0xf]
    %v8919 = vld [vmem:[#allocation6 + $0x68] sm:$0xf]
    %v8920 = vld [vmem:[#allocation6 + $0x6c] sm:$0xf]
    %v8921 = vld [vmem:[#allocation6 + $0x70] sm:$0xf]
    %v8922 = vld [vmem:[#allocation6 + $0x74] sm:$0xf]
    %v8923 = vld [vmem:[#allocation6 + $0x78] sm:$0xf]
    %v8924 = vld [vmem:[#allocation6 + $0x7c] sm:$0xf]
    %v8925 = vld [vmem:[#allocation6 + $0x80] sm:$0xf]
    %v8926 = vld [vmem:[#allocation6 + $0x84] sm:$0xf]
    %v8927 = vld [vmem:[#allocation6 + $0x88] sm:$0xf]
    %v8928 = vld [vmem:[#allocation6 + $0x8c] sm:$0xf]
    %v8929 = vld [vmem:[#allocation6 + $0x90] sm:$0xf]
    %v8930 = vld [vmem:[#allocation6 + $0x94] sm:$0xf]
    %v8931 = vld [vmem:[#allocation6 + $0x98] sm:$0xf]
    %v8932 = vld [vmem:[#allocation6 + $0x9c] sm:$0xf]
    %v8933 = vld [vmem:[#allocation6 + $0xa0] sm:$0xf]
    %v8934 = vld [vmem:[#allocation6 + $0xa4] sm:$0xf]
    %v8935 = vld [vmem:[#allocation6 + $0xa8] sm:$0xf]
    %v8936 = vld [vmem:[#allocation6 + $0xac] sm:$0xf]
    %v8937 = vld [vmem:[#allocation6 + $0xb0] sm:$0xf]
    %v8938 = vld [vmem:[#allocation6 + $0xb4] sm:$0xf]
    %v8939 = vld [vmem:[#allocation6 + $0xb8] sm:$0xf]
    %v8940 = vld [vmem:[#allocation6 + $0xbc] sm:$0xf]
    %v8941 = vld [vmem:[#allocation6 + $0xc0] sm:$0xf]
    %v8942 = vld [vmem:[#allocation6 + $0xc4] sm:$0xf]
    %v8943 = vld [vmem:[#allocation6 + $0xc8] sm:$0xf]
    %v8944 = vld [vmem:[#allocation6 + $0xcc] sm:$0xf]
    %v8945 = vld [vmem:[#allocation6 + $0xd0] sm:$0xf]
    %v8946 = vld [vmem:[#allocation6 + $0xd4] sm:$0xf]
    %v8947 = vld [vmem:[#allocation6 + $0xd8] sm:$0xf]
    %v8948 = vld [vmem:[#allocation6 + $0xdc] sm:$0xf]
    %v8949 = vld [vmem:[#allocation6 + $0xe0] sm:$0xf]
    %v8950 = vld [vmem:[#allocation6 + $0xe4] sm:$0xf]
    %v8951 = vld [vmem:[#allocation6 + $0xe8] sm:$0xf]
    %v8952 = vld [vmem:[#allocation6 + $0xec] sm:$0xf]
    %v8953 = vld [vmem:[#allocation6 + $0xf0] sm:$0xf]
    %v8954 = vld [vmem:[#allocation6 + $0xf4] sm:$0xf]
    %v8955 = vld [vmem:[#allocation6 + $0xf8] sm:$0xf]
    %v8956 = vld [vmem:[#allocation6 + $0xfc] sm:$0xf]
    %v8957 = vld [vmem:[#allocation7 + $0x14] sm:$0x1]
    %v8959 = vlaneseq
    %v8960 = vshrl.u32 %v8959, 7
    %v8961 = vsub.s32 0, %v8960
    %v8962 = vrot.slane %v8957, %v8961
    %v9028 = vunpack.c.l.b16 %v8893
    %v9029 = vunpack.c.l.b16 %v8894
    %v9030 = vunpack.c.l.b16 %v8895
    %v9031 = vunpack.c.l.b16 %v8896
    %v9032 = vunpack.c.l.b16 %v8897
    %v9033 = vunpack.c.l.b16 %v8898
    %v9034 = vunpack.c.l.b16 %v8899
    %v9035 = vunpack.c.l.b16 %v8900
    %v9036 = vunpack.c.l.b16 %v8901
    %v9037 = vunpack.c.l.b16 %v8902
    %v9038 = vunpack.c.l.b16 %v8903
    %v9039 = vunpack.c.l.b16 %v8904
    %v9040 = vunpack.c.l.b16 %v8905
    %v9041 = vunpack.c.l.b16 %v8906
    %v9042 = vunpack.c.l.b16 %v8907
    %v9043 = vunpack.c.l.b16 %v8908
    %v9044 = vunpack.c.l.b16 %v8909
    %v9045 = vunpack.c.l.b16 %v8910
    %v9046 = vunpack.c.l.b16 %v8911
    %v9047 = vunpack.c.l.b16 %v8912
    %v9048 = vunpack.c.l.b16 %v8913
    %v9049 = vunpack.c.l.b16 %v8914
    %v9050 = vunpack.c.l.b16 %v8915
    %v9051 = vunpack.c.l.b16 %v8916
    %v9052 = vunpack.c.l.b16 %v8917
    %v9053 = vunpack.c.l.b16 %v8918
    %v9054 = vunpack.c.l.b16 %v8919
    %v9055 = vunpack.c.l.b16 %v8920
    %v9056 = vunpack.c.l.b16 %v8921
    %v9057 = vunpack.c.l.b16 %v8922
    %v9058 = vunpack.c.l.b16 %v8923
    %v9059 = vunpack.c.l.b16 %v8924
    %v9060 = vunpack.c.l.b16 %v8925
    %v9061 = vunpack.c.l.b16 %v8926
    %v9062 = vunpack.c.l.b16 %v8927
    %v9063 = vunpack.c.l.b16 %v8928
    %v9064 = vunpack.c.l.b16 %v8929
    %v9065 = vunpack.c.l.b16 %v8930
    %v9066 = vunpack.c.l.b16 %v8931
    %v9067 = vunpack.c.l.b16 %v8932
    %v9068 = vunpack.c.l.b16 %v8933
    %v9069 = vunpack.c.l.b16 %v8934
    %v9070 = vunpack.c.l.b16 %v8935
    %v9071 = vunpack.c.l.b16 %v8936
    %v9072 = vunpack.c.l.b16 %v8937
    %v9073 = vunpack.c.l.b16 %v8938
    %v9074 = vunpack.c.l.b16 %v8939
    %v9075 = vunpack.c.l.b16 %v8940
    %v9076 = vunpack.c.l.b16 %v8941
    %v9077 = vunpack.c.l.b16 %v8942
    %v9078 = vunpack.c.l.b16 %v8943
    %v9079 = vunpack.c.l.b16 %v8944
    %v9080 = vunpack.c.l.b16 %v8945
    %v9081 = vunpack.c.l.b16 %v8946
    %v9082 = vunpack.c.l.b16 %v8947
    %v9083 = vunpack.c.l.b16 %v8948
    %v9084 = vunpack.c.l.b16 %v8949
    %v9085 = vunpack.c.l.b16 %v8950
    %v9086 = vunpack.c.l.b16 %v8951
    %v9087 = vunpack.c.l.b16 %v8952
    %v9088 = vunpack.c.l.b16 %v8953
    %v9089 = vunpack.c.l.b16 %v8954
    %v9090 = vunpack.c.l.b16 %v8955
    %v9091 = vunpack.c.l.b16 %v8956
    %v9092 = vpack.c.b16 %v9029, %v9028
    %v9093 = vpack.c.b16 %v9031, %v9030
    %v9094 = vpack.c.b16 %v9033, %v9032
    %v9095 = vpack.c.b16 %v9035, %v9034
    %v9096 = vpack.c.b16 %v9037, %v9036
    %v9097 = vpack.c.b16 %v9039, %v9038
    %v9098 = vpack.c.b16 %v9041, %v9040
    %v9099 = vpack.c.b16 %v9043, %v9042
    %v9100 = vpack.c.b16 %v9045, %v9044
    %v9101 = vpack.c.b16 %v9047, %v9046
    %v9102 = vpack.c.b16 %v9049, %v9048
    %v9103 = vpack.c.b16 %v9051, %v9050
    %v9104 = vpack.c.b16 %v9053, %v9052
    %v9105 = vpack.c.b16 %v9055, %v9054
    %v9106 = vpack.c.b16 %v9057, %v9056
    %v9107 = vpack.c.b16 %v9059, %v9058
    %v9108 = vpack.c.b16 %v9061, %v9060
    %v9109 = vpack.c.b16 %v9063, %v9062
    %v9110 = vpack.c.b16 %v9065, %v9064
    %v9111 = vpack.c.b16 %v9067, %v9066
    %v9112 = vpack.c.b16 %v9069, %v9068
    %v9113 = vpack.c.b16 %v9071, %v9070
    %v9114 = vpack.c.b16 %v9073, %v9072
    %v9115 = vpack.c.b16 %v9075, %v9074
    %v9116 = vpack.c.b16 %v9077, %v9076
    %v9117 = vpack.c.b16 %v9079, %v9078
    %v9118 = vpack.c.b16 %v9081, %v9080
    %v9119 = vpack.c.b16 %v9083, %v9082
    %v9120 = vpack.c.b16 %v9085, %v9084
    %v9121 = vpack.c.b16 %v9087, %v9086
    %v9122 = vpack.c.b16 %v9089, %v9088
    %v9123 = vpack.c.b16 %v9091, %v9090
    %9156 = vmatprep.subr.bf16.mxu0 0
    %9157 = vmatpush1.bf16.msra.mxu0 %v9099
    %9158 = vmatprep.subr.bf16.mxu0 0
    %9159 = vmatpush1.bf16.msra.mxu0 %v9098
    %9160 = vmatprep.subr.bf16.mxu0 0
    %9161 = vmatpush1.bf16.msra.mxu0 %v9097
    %9162 = vmatprep.subr.bf16.mxu0 0
    %9163 = vmatpush1.bf16.msra.mxu0 %v9096
    %9164 = vmatprep.subr.bf16.mxu0 0
    %9165 = vmatpush1.bf16.msra.mxu0 %v9095
    %9166 = vmatprep.subr.bf16.mxu0 0
    %9167 = vmatpush1.bf16.msra.mxu0 %v9094
    %9168 = vmatprep.subr.bf16.mxu0 0
    %9169 = vmatpush1.bf16.msra.mxu0 %v9093
    %9170 = vmatprep.subr.bf16.mxu0 0
    %9171 = vmatpush1.bf16.msra.mxu0 %v9092
    %9172 = vmatprep.subr.bf16.mxu0 0
    %9173 = vmatpush2.bf16.msra.mxu0 %v9107
    %9174 = vmatprep.subr.bf16.mxu0 0
    %9175 = vmatpush2.bf16.msra.mxu0 %v9106
    %9176 = vmatprep.subr.bf16.mxu0 0
    %9177 = vmatpush2.bf16.msra.mxu0 %v9105
    %9178 = vmatprep.subr.bf16.mxu0 0
    %9179 = vmatpush2.bf16.msra.mxu0 %v9104
    %9180 = vmatprep.subr.bf16.mxu0 0
    %9181 = vmatpush2.bf16.msra.mxu0 %v9103
    %9182 = vmatprep.subr.bf16.mxu0 0
    %9183 = vmatpush2.bf16.msra.mxu0 %v9102
    %9184 = vmatprep.subr.bf16.mxu0 0
    %9185 = vmatpush2.bf16.msra.mxu0 %v9101
    %9186 = vmatprep.subr.bf16.mxu0 0
    %9187 = vmatpush2.bf16.msra.mxu0 %v9100
    %9188 = vmatprep.mubr.bf16.mxu0 %v8890
    %9189 = vmatmul.mubr.bf16.gmra.mxu0 %v8889
    %v9190 = vpop.f32.mrf.mxu0
    %v9191 = vadd.f32 %v8962, %v9190
    %v9192 = vpop.f32.mrf.mxu0
    %v9193 = vpop.f32.mrf.mxu0
    %v9194 = vpop.f32.mrf.mxu0
    %9195 = vdwg.mxu0
    %9196 = vmatprep.subr.bf16.mxu0 0
    %9197 = vmatpush1.bf16.msra.mxu0 %v9115
    %9198 = vmatprep.subr.bf16.mxu0 0
    %9199 = vmatpush1.bf16.msra.mxu0 %v9114
    %9200 = vmatprep.subr.bf16.mxu0 0
    %9201 = vmatpush1.bf16.msra.mxu0 %v9113
    %9202 = vmatprep.subr.bf16.mxu0 0
    %9203 = vmatpush1.bf16.msra.mxu0 %v9112
    %9204 = vmatprep.subr.bf16.mxu0 0
    %9205 = vmatpush1.bf16.msra.mxu0 %v9111
    %9206 = vmatprep.subr.bf16.mxu0 0
    %9207 = vmatpush1.bf16.msra.mxu0 %v9110
    %9208 = vmatprep.subr.bf16.mxu0 0
    %9209 = vmatpush1.bf16.msra.mxu0 %v9109
    %9210 = vmatprep.subr.bf16.mxu0 0
    %9211 = vmatpush1.bf16.msra.mxu0 %v9108
    %9212 = vmatprep.subr.bf16.mxu0 0
    %9213 = vmatpush2.bf16.msra.mxu0 %v9123
    %9214 = vmatprep.subr.bf16.mxu0 0
    %9215 = vmatpush2.bf16.msra.mxu0 %v9122
    %9216 = vmatprep.subr.bf16.mxu0 0
    %9217 = vmatpush2.bf16.msra.mxu0 %v9121
    %9218 = vmatprep.subr.bf16.mxu0 0
    %9219 = vmatpush2.bf16.msra.mxu0 %v9120
    %9220 = vmatprep.subr.bf16.mxu0 0
    %9221 = vmatpush2.bf16.msra.mxu0 %v9119
    %9222 = vmatprep.subr.bf16.mxu0 0
    %9223 = vmatpush2.bf16.msra.mxu0 %v9118
    %9224 = vmatprep.subr.bf16.mxu0 0
    %9225 = vmatpush2.bf16.msra.mxu0 %v9117
    %9226 = vmatprep.subr.bf16.mxu0 0
    %9227 = vmatpush2.bf16.msra.mxu0 %v9116
    %9228 = vmatprep.mubr.bf16.mxu0 %v8892
    %9229 = vmatmul.mubr.bf16.gmra.mxu0 %v8891
    %v9230 = vpop.f32.mrf.mxu0
    %v9231 = vadd.f32 %v9191, %v9230
    %v9232 = vpop.f32.mrf.mxu0
    %v9233 = vpop.f32.mrf.mxu0
    %v9234 = vpop.f32.mrf.mxu0
    %9235 = vdwg.mxu0
    %9236 = vst [vmem:[%s5] sm:$0xff] %v9231
    // Predicated region
    $region38: #{_eegnet_apply.1} parent=1 // pred_check
      _
    $region39: #{_eegnet_apply.1} parent=1 // pred_check_branch
      %9238 = sbr.rel (0) target = $region41
    $region40: #{_eegnet_apply.1} parent=1 // pred_region
      _
    $region41: #{_eegnet_apply.1} parent=1 // pred_fallthru
      _
    // Predicated region
    $region42: #{_eegnet_apply.1} parent=1 // pred_check
      _
    $region43: #{_eegnet_apply.1} parent=1 // pred_check_branch
      %9240 = sbr.rel (0) target = $region45
    $region44: #{_eegnet_apply.1} parent=1 // pred_region
      _
    $region45: #{_eegnet_apply.1} parent=1 // pred_fallthru
      _
    %9241 = vsyncpa [#allocation3], 1
    %9242 = vsyncpa [#allocation5], 1
    %9243 = vsyncpa [#allocation8], 1

</llo_original>
